<compile_context>
chip_gen: v7x
topology: tpu7x:2x2x1
jax: 0.10.0
libtpu: 0.0.40
codegen_flags: <defaults>
</compile_context>

<pallas_src>
import jax
import jax.numpy as jnp
from jax import lax
from jax.experimental import pallas as pl
from jax.experimental.pallas import tpu as pltpu


def _round_up(x, m):
    return (x + m - 1) // m * m


def cbow_forward(context, emb_table, weight, bias, *, tb=None, tv=None):
    """CBOW forward: logits = mean_c(Emb[context]) @ W^T + b.

    context:   (B, C) int32 token indices
    emb_table: (V, D) float32 embedding weights
    weight:    (V, D) float32 linear weight (torch nn.Linear layout)
    bias:      (V,)   float32 linear bias
    returns:   (B, V) float32 logits
    """
    B, C = context.shape
    V, D = emb_table.shape

    # --- tile-size policy ---------------------------------------------------
    if tb is None:
        tb = min(128, _round_up(B, 8))        # sublane-aligned batch tile
    if tv is None:
        tv = min(512, _round_up(V, 128))      # lane-dense vocab tile

    DP = _round_up(D, 128)                    # lane-dense contraction dim
    VP = _round_up(V, tv)
    BP = _round_up(B, tb)

    n_rows = tb * C                           # gathered rows per batch tile
    unroll_gather = n_rows <= 64              # toy shapes: fully unroll

    # --- wrapper-side padding / dtype policy (no transpose, no gather) ------
    # Embedding table stays f32 (single-row DMA gathers into packed bf16
    # sublanes are awkward); the bandwidth-dominant stream is the weight,
    # which is cast to bf16 (halves HBM bytes, feeds the bf16 MXU).
    emb_p = jnp.pad(emb_table.astype(jnp.float32), ((0, 0), (0, DP - D)))
    w_p = jnp.pad(weight, ((0, VP - V), (0, DP - D))).astype(jnp.bfloat16)
    b_p = jnp.pad(bias.astype(jnp.float32), (0, VP - V)).reshape(1, VP)
    ctx_p = jnp.pad(context.astype(jnp.int32), ((0, BP - B), (0, 0))).reshape(BP * C)

    inv_c = 1.0 / C

    def kernel(ctx_ref, emb_ref, w_ref, b_ref, o_ref, h_ref, gbuf, sems):
        i = pl.program_id(0)   # batch tile
        j = pl.program_id(1)   # vocab tile

        # ---- gather + context mean, once per batch tile (vocab tile 0) ----
        @pl.when(j == 0)
        def _():
            base = i * n_rows  # first flattened (batch, ctx) index of tile i

            if unroll_gather:
                # Issue every row-gather DMA (static unroll -> full LLO view).
                for c in range(C):
                    for b in range(tb):
                        tok = ctx_ref[base + b * C + c]
                        pltpu.make_async_copy(
                            emb_ref.at[tok], gbuf.at[c, b], sems.at[c, b]).start()
                # Wait per context slot; interleave the sum with in-flight DMAs.
                acc = jnp.zeros((tb, DP), jnp.float32)
                for c in range(C):
                    for b in range(tb):
                        pltpu.make_async_copy(
                            emb_ref.at[0], gbuf.at[c, b], sems.at[c, b]).wait()
                    acc = acc + gbuf[c]
            else:
                def issue(t, carry):
                    c = t // tb
                    b = t % tb
                    tok = ctx_ref[base + b * C + c]
                    pltpu.make_async_copy(
                        emb_ref.at[tok], gbuf.at[c, b], sems.at[c, b]).start()
                    return carry

                lax.fori_loop(0, n_rows, issue, 0)

                def wait(t, carry):
                    c = t // tb
                    b = t % tb
                    pltpu.make_async_copy(
                        emb_ref.at[0], gbuf.at[c, b], sems.at[c, b]).wait()
                    return carry

                lax.fori_loop(0, n_rows, wait, 0)

                acc = gbuf[0]
                for c in range(1, C):
                    acc = acc + gbuf[c]

            # Apply 1/C once on the small (tb, DP) result; cache as bf16 so
            # the per-vocab-tile MXU feed needs no recast.
            h_ref[...] = (acc * inv_c).astype(jnp.bfloat16)

        # ---- linear: (tb, DP) @ (tv, DP)^T on the MXU, f32 accumulate ----
        logits = lax.dot_general(h_ref[...], w_ref[...],
                                 (((1,), (1,)), ((), ())),
                                 preferred_element_type=jnp.float32)
        o_ref[...] = logits + b_ref[...]

    out = pl.pallas_call(
        kernel,
        out_shape=jax.ShapeDtypeStruct((BP, VP), jnp.float32),
        grid_spec=pltpu.PrefetchScalarGridSpec(
            num_scalar_prefetch=1,                      # context indices -> SMEM
            grid=(BP // tb, VP // tv),
            in_specs=[
                pl.BlockSpec(memory_space=pl.ANY),                   # emb table (HBM)
                pl.BlockSpec((tv, DP), lambda i, j, ctx: (j, 0)),    # weight tile
                pl.BlockSpec((1, tv), lambda i, j, ctx: (0, j)),     # bias tile
            ],
            out_specs=pl.BlockSpec((tb, tv), lambda i, j, ctx: (i, j)),
            scratch_shapes=[
                pltpu.VMEM((tb, DP), jnp.bfloat16),       # cached context mean h
                pltpu.VMEM((C, tb, DP), jnp.float32),     # gathered embedding rows
                pltpu.SemaphoreType.DMA((C, tb)),         # one sem per gather DMA
            ],
        ),
        compiler_params=pltpu.CompilerParams(
            # vocab axis reuses the h scratch -> "arbitrary"; batch axis is
            # independent -> "parallel" (megacore sharding on v7x).
            dimension_semantics=("parallel", "arbitrary"),
            vmem_limit_bytes=32 * 1024 * 1024,
        ),
    )(ctx_p, emb_p, w_p, b_p)

    return out[:B, :V]


if __name__ == "__main__":
    # Small shapes consistent with the module's forward.
    vocab_size = 50
    embedding_dim = 32
    batch = 4
    context_size = 8

    key = jax.random.PRNGKey(0)
    k_emb, k_w, k_b, k_ctx = jax.random.split(key, 4)

    # Deterministic parameter init (shapes match the torch module __init__).
    emb_table = jax.random.normal(k_emb, (vocab_size, embedding_dim), jnp.float32)
    bound = 1.0 / (embedding_dim ** 0.5)
    weight = jax.random.uniform(k_w, (vocab_size, embedding_dim), jnp.float32,
                                minval=-bound, maxval=bound)
    bias = jax.random.uniform(k_b, (vocab_size,), jnp.float32,
                              minval=-bound, maxval=bound)
    context = jax.random.randint(k_ctx, (batch, context_size), 0, vocab_size,
                                 dtype=jnp.int32)

    out = cbow_forward(context, emb_table, weight, bias)
    out = jax.block_until_ready(out)

    # Pure-JAX reference (f32 math with the same bf16 quantization of the
    # hidden vector / weight that the kernel feeds to the MXU).
    h = jnp.take(emb_table, context, axis=0).mean(axis=1)
    h_bf = h.astype(jnp.bfloat16).astype(jnp.float32)
    w_bf = weight.astype(jnp.bfloat16).astype(jnp.float32)
    ref = h_bf @ w_bf.T + bias

    assert out.shape == (batch, vocab_size)
    assert jnp.allclose(out, ref, atol=5e-3, rtol=5e-3), \
        float(jnp.max(jnp.abs(out - ref)))

    print("KERNEL_OK")
</pallas_src>

<mosaic_0001>
module attributes {stable_mosaic.version = 11 : i64} {
  func.func @kernel(%arg0: i32, %arg1: i32, %arg2: memref<64xi32, #tpu.memory_space<smem>>, %arg3: memref<50x128xf32, #tpu.memory_space<any>>, %arg4: memref<128x128xbf16, #tpu.memory_space<vmem>>, %arg5: memref<1x128xf32, #tpu.memory_space<vmem>>, %arg6: memref<8x128xf32, #tpu.memory_space<vmem>>, %arg7: memref<8x128xbf16, #tpu.memory_space<vmem>>, %arg8: memref<8x8x128xf32, #tpu.memory_space<vmem>>, %arg9: memref<8x8x!tpu.dma_semaphore, #tpu.memory_space<semaphore_mem>>) attributes {dimension_semantics = [#tpu.dimension_semantics<parallel>, #tpu.dimension_semantics<arbitrary>], iteration_bounds = array<i64: 1, 1>, scalar_prefetch = 1 : i64, scratch_operands = 3 : i64, tpu.core_type = #tpu.core_type<tc>, window_params = [{}, {transform_indices = @transform_1, window_bounds = array<i64: 128, 128>}, {transform_indices = @transform_2, window_bounds = array<i64: 1, 128>}, {transform_indices = @transform_3, window_bounds = array<i64: 8, 128>}]} {
    %c0_i32 = arith.constant 0 : i32
    %0 = arith.cmpi eq, %arg1, %c0_i32 : i32
    %1 = arith.extui %0 : i1 to i32
    %c0_i32_0 = arith.constant 0 : i32
    %2 = arith.cmpi ne, %1, %c0_i32_0 : i32
    scf.if %2 {
      %c64_i32 = arith.constant 64 : i32
      %10 = arith.muli %arg0, %c64_i32 : i32
      %c0_i32_8 = arith.constant 0 : i32
      %11 = arith.addi %10, %c0_i32_8 : i32
      %c0_i32_9 = arith.constant 0 : i32
      %12 = arith.addi %11, %c0_i32_9 : i32
      %13 = arith.index_cast %12 : i32 to index
      %14 = memref.load %arg2[%13] : memref<64xi32, #tpu.memory_space<smem>>
      %c0_i32_10 = arith.constant 0 : i32
      %c0_i32_11 = arith.constant 0 : i32
      %c0_i32_12 = arith.constant 0 : i32
      %c0_i32_13 = arith.constant 0 : i32
      %c0_i32_14 = arith.constant 0 : i32
      %15 = tpu.memref_slice %arg3[%14, %c0_i32_14] : memref<50x128xf32, #tpu.memory_space<any>> -> memref<1x128xf32, #tpu.memory_space<any>>
      %16 = tpu.memref_squeeze %15 : memref<1x128xf32, #tpu.memory_space<any>> -> memref<128xf32, #tpu.memory_space<any>>
      %c0_i32_15 = arith.constant 0 : i32
      %17 = tpu.memref_slice %arg8[%c0_i32_10, %c0_i32_11, %c0_i32_15] : memref<8x8x128xf32, #tpu.memory_space<vmem>> -> memref<1x1x128xf32, #tpu.memory_space<vmem>>
      %18 = tpu.memref_squeeze %17 : memref<1x1x128xf32, #tpu.memory_space<vmem>> -> memref<128xf32, #tpu.memory_space<vmem>>
      %19 = tpu.memref_slice %arg9[%c0_i32_12, %c0_i32_13] : memref<8x8x!tpu.dma_semaphore, #tpu.memory_space<semaphore_mem>> -> memref<1x1x!tpu.dma_semaphore, #tpu.memory_space<semaphore_mem>>
      %20 = tpu.memref_squeeze %19 : memref<1x1x!tpu.dma_semaphore, #tpu.memory_space<semaphore_mem>> -> memref<!tpu.dma_semaphore, #tpu.memory_space<semaphore_mem>>
      tpu.enqueue_dma source(%16 : memref<128xf32, #tpu.memory_space<any>>) target(%18 : memref<128xf32, #tpu.memory_space<vmem>>) target_semaphore(%20 : memref<!tpu.dma_semaphore, #tpu.memory_space<semaphore_mem>>)
      %c8_i32 = arith.constant 8 : i32
      %21 = arith.addi %10, %c8_i32 : i32
      %c0_i32_16 = arith.constant 0 : i32
      %22 = arith.addi %21, %c0_i32_16 : i32
      %23 = arith.index_cast %22 : i32 to index
      %24 = memref.load %arg2[%23] : memref<64xi32, #tpu.memory_space<smem>>
      %c0_i32_17 = arith.constant 0 : i32
      %c1_i32 = arith.constant 1 : i32
      %c0_i32_18 = arith.constant 0 : i32
      %c1_i32_19 = arith.constant 1 : i32
      %c0_i32_20 = arith.constant 0 : i32
      %25 = tpu.memref_slice %arg3[%24, %c0_i32_20] : memref<50x128xf32, #tpu.memory_space<any>> -> memref<1x128xf32, #tpu.memory_space<any>>
      %26 = tpu.memref_squeeze %25 : memref<1x128xf32, #tpu.memory_space<any>> -> memref<128xf32, #tpu.memory_space<any>>
      %c0_i32_21 = arith.constant 0 : i32
      %27 = tpu.memref_slice %arg8[%c0_i32_17, %c1_i32, %c0_i32_21] : memref<8x8x128xf32, #tpu.memory_space<vmem>> -> memref<1x1x128xf32, #tpu.memory_space<vmem>>
      %28 = tpu.memref_squeeze %27 : memref<1x1x128xf32, #tpu.memory_space<vmem>> -> memref<128xf32, #tpu.memory_space<vmem>>
      %29 = tpu.memref_slice %arg9[%c0_i32_18, %c1_i32_19] : memref<8x8x!tpu.dma_semaphore, #tpu.memory_space<semaphore_mem>> -> memref<1x1x!tpu.dma_semaphore, #tpu.memory_space<semaphore_mem>>
      %30 = tpu.memref_squeeze %29 : memref<1x1x!tpu.dma_semaphore, #tpu.memory_space<semaphore_mem>> -> memref<!tpu.dma_semaphore, #tpu.memory_space<semaphore_mem>>
      tpu.enqueue_dma source(%26 : memref<128xf32, #tpu.memory_space<any>>) target(%28 : memref<128xf32, #tpu.memory_space<vmem>>) target_semaphore(%30 : memref<!tpu.dma_semaphore, #tpu.memory_space<semaphore_mem>>)
      %c16_i32 = arith.constant 16 : i32
      %31 = arith.addi %10, %c16_i32 : i32
      %c0_i32_22 = arith.constant 0 : i32
      %32 = arith.addi %31, %c0_i32_22 : i32
      %33 = arith.index_cast %32 : i32 to index
      %34 = memref.load %arg2[%33] : memref<64xi32, #tpu.memory_space<smem>>
      %c0_i32_23 = arith.constant 0 : i32
      %c2_i32 = arith.constant 2 : i32
      %c0_i32_24 = arith.constant 0 : i32
      %c2_i32_25 = arith.constant 2 : i32
      %c0_i32_26 = arith.constant 0 : i32
      %35 = tpu.memref_slice %arg3[%34, %c0_i32_26] : memref<50x128xf32, #tpu.memory_space<any>> -> memref<1x128xf32, #tpu.memory_space<any>>
      %36 = tpu.memref_squeeze %35 : memref<1x128xf32, #tpu.memory_space<any>> -> memref<128xf32, #tpu.memory_space<any>>
      %c0_i32_27 = arith.constant 0 : i32
      %37 = tpu.memref_slice %arg8[%c0_i32_23, %c2_i32, %c0_i32_27] : memref<8x8x128xf32, #tpu.memory_space<vmem>> -> memref<1x1x128xf32, #tpu.memory_space<vmem>>
      %38 = tpu.memref_squeeze %37 : memref<1x1x128xf32, #tpu.memory_space<vmem>> -> memref<128xf32, #tpu.memory_space<vmem>>
      %39 = tpu.memref_slice %arg9[%c0_i32_24, %c2_i32_25] : memref<8x8x!tpu.dma_semaphore, #tpu.memory_space<semaphore_mem>> -> memref<1x1x!tpu.dma_semaphore, #tpu.memory_space<semaphore_mem>>
      %40 = tpu.memref_squeeze %39 : memref<1x1x!tpu.dma_semaphore, #tpu.memory_space<semaphore_mem>> -> memref<!tpu.dma_semaphore, #tpu.memory_space<semaphore_mem>>
      tpu.enqueue_dma source(%36 : memref<128xf32, #tpu.memory_space<any>>) target(%38 : memref<128xf32, #tpu.memory_space<vmem>>) target_semaphore(%40 : memref<!tpu.dma_semaphore, #tpu.memory_space<semaphore_mem>>)
      %c24_i32 = arith.constant 24 : i32
      %41 = arith.addi %10, %c24_i32 : i32
      %c0_i32_28 = arith.constant 0 : i32
      %42 = arith.addi %41, %c0_i32_28 : i32
      %43 = arith.index_cast %42 : i32 to index
      %44 = memref.load %arg2[%43] : memref<64xi32, #tpu.memory_space<smem>>
      %c0_i32_29 = arith.constant 0 : i32
      %c3_i32 = arith.constant 3 : i32
      %c0_i32_30 = arith.constant 0 : i32
      %c3_i32_31 = arith.constant 3 : i32
      %c0_i32_32 = arith.constant 0 : i32
      %45 = tpu.memref_slice %arg3[%44, %c0_i32_32] : memref<50x128xf32, #tpu.memory_space<any>> -> memref<1x128xf32, #tpu.memory_space<any>>
      %46 = tpu.memref_squeeze %45 : memref<1x128xf32, #tpu.memory_space<any>> -> memref<128xf32, #tpu.memory_space<any>>
      %c0_i32_33 = arith.constant 0 : i32
      %47 = tpu.memref_slice %arg8[%c0_i32_29, %c3_i32, %c0_i32_33] : memref<8x8x128xf32, #tpu.memory_space<vmem>> -> memref<1x1x128xf32, #tpu.memory_space<vmem>>
      %48 = tpu.memref_squeeze %47 : memref<1x1x128xf32, #tpu.memory_space<vmem>> -> memref<128xf32, #tpu.memory_space<vmem>>
      %49 = tpu.memref_slice %arg9[%c0_i32_30, %c3_i32_31] : memref<8x8x!tpu.dma_semaphore, #tpu.memory_space<semaphore_mem>> -> memref<1x1x!tpu.dma_semaphore, #tpu.memory_space<semaphore_mem>>
      %50 = tpu.memref_squeeze %49 : memref<1x1x!tpu.dma_semaphore, #tpu.memory_space<semaphore_mem>> -> memref<!tpu.dma_semaphore, #tpu.memory_space<semaphore_mem>>
      tpu.enqueue_dma source(%46 : memref<128xf32, #tpu.memory_space<any>>) target(%48 : memref<128xf32, #tpu.memory_space<vmem>>) target_semaphore(%50 : memref<!tpu.dma_semaphore, #tpu.memory_space<semaphore_mem>>)
      %c32_i32 = arith.constant 32 : i32
      %51 = arith.addi %10, %c32_i32 : i32
      %c0_i32_34 = arith.constant 0 : i32
      %52 = arith.addi %51, %c0_i32_34 : i32
      %53 = arith.index_cast %52 : i32 to index
      %54 = memref.load %arg2[%53] : memref<64xi32, #tpu.memory_space<smem>>
      %c0_i32_35 = arith.constant 0 : i32
      %c4_i32 = arith.constant 4 : i32
      %c0_i32_36 = arith.constant 0 : i32
      %c4_i32_37 = arith.constant 4 : i32
      %c0_i32_38 = arith.constant 0 : i32
      %55 = tpu.memref_slice %arg3[%54, %c0_i32_38] : memref<50x128xf32, #tpu.memory_space<any>> -> memref<1x128xf32, #tpu.memory_space<any>>
      %56 = tpu.memref_squeeze %55 : memref<1x128xf32, #tpu.memory_space<any>> -> memref<128xf32, #tpu.memory_space<any>>
      %c0_i32_39 = arith.constant 0 : i32
      %57 = tpu.memref_slice %arg8[%c0_i32_35, %c4_i32, %c0_i32_39] : memref<8x8x128xf32, #tpu.memory_space<vmem>> -> memref<1x1x128xf32, #tpu.memory_space<vmem>>
      %58 = tpu.memref_squeeze %57 : memref<1x1x128xf32, #tpu.memory_space<vmem>> -> memref<128xf32, #tpu.memory_space<vmem>>
      %59 = tpu.memref_slice %arg9[%c0_i32_36, %c4_i32_37] : memref<8x8x!tpu.dma_semaphore, #tpu.memory_space<semaphore_mem>> -> memref<1x1x!tpu.dma_semaphore, #tpu.memory_space<semaphore_mem>>
      %60 = tpu.memref_squeeze %59 : memref<1x1x!tpu.dma_semaphore, #tpu.memory_space<semaphore_mem>> -> memref<!tpu.dma_semaphore, #tpu.memory_space<semaphore_mem>>
      tpu.enqueue_dma source(%56 : memref<128xf32, #tpu.memory_space<any>>) target(%58 : memref<128xf32, #tpu.memory_space<vmem>>) target_semaphore(%60 : memref<!tpu.dma_semaphore, #tpu.memory_space<semaphore_mem>>)
      %c40_i32 = arith.constant 40 : i32
      %61 = arith.addi %10, %c40_i32 : i32
      %c0_i32_40 = arith.constant 0 : i32
      %62 = arith.addi %61, %c0_i32_40 : i32
      %63 = arith.index_cast %62 : i32 to index
      %64 = memref.load %arg2[%63] : memref<64xi32, #tpu.memory_space<smem>>
      %c0_i32_41 = arith.constant 0 : i32
      %c5_i32 = arith.constant 5 : i32
      %c0_i32_42 = arith.constant 0 : i32
      %c5_i32_43 = arith.constant 5 : i32
      %c0_i32_44 = arith.constant 0 : i32
      %65 = tpu.memref_slice %arg3[%64, %c0_i32_44] : memref<50x128xf32, #tpu.memory_space<any>> -> memref<1x128xf32, #tpu.memory_space<any>>
      %66 = tpu.memref_squeeze %65 : memref<1x128xf32, #tpu.memory_space<any>> -> memref<128xf32, #tpu.memory_space<any>>
      %c0_i32_45 = arith.constant 0 : i32
      %67 = tpu.memref_slice %arg8[%c0_i32_41, %c5_i32, %c0_i32_45] : memref<8x8x128xf32, #tpu.memory_space<vmem>> -> memref<1x1x128xf32, #tpu.memory_space<vmem>>
      %68 = tpu.memref_squeeze %67 : memref<1x1x128xf32, #tpu.memory_space<vmem>> -> memref<128xf32, #tpu.memory_space<vmem>>
      %69 = tpu.memref_slice %arg9[%c0_i32_42, %c5_i32_43] : memref<8x8x!tpu.dma_semaphore, #tpu.memory_space<semaphore_mem>> -> memref<1x1x!tpu.dma_semaphore, #tpu.memory_space<semaphore_mem>>
      %70 = tpu.memref_squeeze %69 : memref<1x1x!tpu.dma_semaphore, #tpu.memory_space<semaphore_mem>> -> memref<!tpu.dma_semaphore, #tpu.memory_space<semaphore_mem>>
      tpu.enqueue_dma source(%66 : memref<128xf32, #tpu.memory_space<any>>) target(%68 : memref<128xf32, #tpu.memory_space<vmem>>) target_semaphore(%70 : memref<!tpu.dma_semaphore, #tpu.memory_space<semaphore_mem>>)
      %c48_i32 = arith.constant 48 : i32
      %71 = arith.addi %10, %c48_i32 : i32
      %c0_i32_46 = arith.constant 0 : i32
      %72 = arith.addi %71, %c0_i32_46 : i32
      %73 = arith.index_cast %72 : i32 to index
      %74 = memref.load %arg2[%73] : memref<64xi32, #tpu.memory_space<smem>>
      %c0_i32_47 = arith.constant 0 : i32
      %c6_i32 = arith.constant 6 : i32
      %c0_i32_48 = arith.constant 0 : i32
      %c6_i32_49 = arith.constant 6 : i32
      %c0_i32_50 = arith.constant 0 : i32
      %75 = tpu.memref_slice %arg3[%74, %c0_i32_50] : memref<50x128xf32, #tpu.memory_space<any>> -> memref<1x128xf32, #tpu.memory_space<any>>
      %76 = tpu.memref_squeeze %75 : memref<1x128xf32, #tpu.memory_space<any>> -> memref<128xf32, #tpu.memory_space<any>>
      %c0_i32_51 = arith.constant 0 : i32
      %77 = tpu.memref_slice %arg8[%c0_i32_47, %c6_i32, %c0_i32_51] : memref<8x8x128xf32, #tpu.memory_space<vmem>> -> memref<1x1x128xf32, #tpu.memory_space<vmem>>
      %78 = tpu.memref_squeeze %77 : memref<1x1x128xf32, #tpu.memory_space<vmem>> -> memref<128xf32, #tpu.memory_space<vmem>>
      %79 = tpu.memref_slice %arg9[%c0_i32_48, %c6_i32_49] : memref<8x8x!tpu.dma_semaphore, #tpu.memory_space<semaphore_mem>> -> memref<1x1x!tpu.dma_semaphore, #tpu.memory_space<semaphore_mem>>
      %80 = tpu.memref_squeeze %79 : memref<1x1x!tpu.dma_semaphore, #tpu.memory_space<semaphore_mem>> -> memref<!tpu.dma_semaphore, #tpu.memory_space<semaphore_mem>>
      tpu.enqueue_dma source(%76 : memref<128xf32, #tpu.memory_space<any>>) target(%78 : memref<128xf32, #tpu.memory_space<vmem>>) target_semaphore(%80 : memref<!tpu.dma_semaphore, #tpu.memory_space<semaphore_mem>>)
      %c56_i32 = arith.constant 56 : i32
      %81 = arith.addi %10, %c56_i32 : i32
      %c0_i32_52 = arith.constant 0 : i32
      %82 = arith.addi %81, %c0_i32_52 : i32
      %83 = arith.index_cast %82 : i32 to index
      %84 = memref.load %arg2[%83] : memref<64xi32, #tpu.memory_space<smem>>
      %c0_i32_53 = arith.constant 0 : i32
      %c7_i32 = arith.constant 7 : i32
      %c0_i32_54 = arith.constant 0 : i32
      %c7_i32_55 = arith.constant 7 : i32
      %c0_i32_56 = arith.constant 0 : i32
      %85 = tpu.memref_slice %arg3[%84, %c0_i32_56] : memref<50x128xf32, #tpu.memory_space<any>> -> memref<1x128xf32, #tpu.memory_space<any>>
      %86 = tpu.memref_squeeze %85 : memref<1x128xf32, #tpu.memory_space<any>> -> memref<128xf32, #tpu.memory_space<any>>
      %c0_i32_57 = arith.constant 0 : i32
      %87 = tpu.memref_slice %arg8[%c0_i32_53, %c7_i32, %c0_i32_57] : memref<8x8x128xf32, #tpu.memory_space<vmem>> -> memref<1x1x128xf32, #tpu.memory_space<vmem>>
      %88 = tpu.memref_squeeze %87 : memref<1x1x128xf32, #tpu.memory_space<vmem>> -> memref<128xf32, #tpu.memory_space<vmem>>
      %89 = tpu.memref_slice %arg9[%c0_i32_54, %c7_i32_55] : memref<8x8x!tpu.dma_semaphore, #tpu.memory_space<semaphore_mem>> -> memref<1x1x!tpu.dma_semaphore, #tpu.memory_space<semaphore_mem>>
      %90 = tpu.memref_squeeze %89 : memref<1x1x!tpu.dma_semaphore, #tpu.memory_space<semaphore_mem>> -> memref<!tpu.dma_semaphore, #tpu.memory_space<semaphore_mem>>
      tpu.enqueue_dma source(%86 : memref<128xf32, #tpu.memory_space<any>>) target(%88 : memref<128xf32, #tpu.memory_space<vmem>>) target_semaphore(%90 : memref<!tpu.dma_semaphore, #tpu.memory_space<semaphore_mem>>)
      %c0_i32_58 = arith.constant 0 : i32
      %91 = arith.addi %10, %c0_i32_58 : i32
      %c1_i32_59 = arith.constant 1 : i32
      %92 = arith.addi %91, %c1_i32_59 : i32
      %93 = arith.index_cast %92 : i32 to index
      %94 = memref.load %arg2[%93] : memref<64xi32, #tpu.memory_space<smem>>
      %c1_i32_60 = arith.constant 1 : i32
      %c0_i32_61 = arith.constant 0 : i32
      %c1_i32_62 = arith.constant 1 : i32
      %c0_i32_63 = arith.constant 0 : i32
      %c0_i32_64 = arith.constant 0 : i32
      %95 = tpu.memref_slice %arg3[%94, %c0_i32_64] : memref<50x128xf32, #tpu.memory_space<any>> -> memref<1x128xf32, #tpu.memory_space<any>>
      %96 = tpu.memref_squeeze %95 : memref<1x128xf32, #tpu.memory_space<any>> -> memref<128xf32, #tpu.memory_space<any>>
      %c0_i32_65 = arith.constant 0 : i32
      %97 = tpu.memref_slice %arg8[%c1_i32_60, %c0_i32_61, %c0_i32_65] : memref<8x8x128xf32, #tpu.memory_space<vmem>> -> memref<1x1x128xf32, #tpu.memory_space<vmem>>
      %98 = tpu.memref_squeeze %97 : memref<1x1x128xf32, #tpu.memory_space<vmem>> -> memref<128xf32, #tpu.memory_space<vmem>>
      %99 = tpu.memref_slice %arg9[%c1_i32_62, %c0_i32_63] : memref<8x8x!tpu.dma_semaphore, #tpu.memory_space<semaphore_mem>> -> memref<1x1x!tpu.dma_semaphore, #tpu.memory_space<semaphore_mem>>
      %100 = tpu.memref_squeeze %99 : memref<1x1x!tpu.dma_semaphore, #tpu.memory_space<semaphore_mem>> -> memref<!tpu.dma_semaphore, #tpu.memory_space<semaphore_mem>>
      tpu.enqueue_dma source(%96 : memref<128xf32, #tpu.memory_space<any>>) target(%98 : memref<128xf32, #tpu.memory_space<vmem>>) target_semaphore(%100 : memref<!tpu.dma_semaphore, #tpu.memory_space<semaphore_mem>>)
      %c8_i32_66 = arith.constant 8 : i32
      %101 = arith.addi %10, %c8_i32_66 : i32
      %c1_i32_67 = arith.constant 1 : i32
      %102 = arith.addi %101, %c1_i32_67 : i32
      %103 = arith.index_cast %102 : i32 to index
      %104 = memref.load %arg2[%103] : memref<64xi32, #tpu.memory_space<smem>>
      %c1_i32_68 = arith.constant 1 : i32
      %c1_i32_69 = arith.constant 1 : i32
      %c1_i32_70 = arith.constant 1 : i32
      %c1_i32_71 = arith.constant 1 : i32
      %c0_i32_72 = arith.constant 0 : i32
      %105 = tpu.memref_slice %arg3[%104, %c0_i32_72] : memref<50x128xf32, #tpu.memory_space<any>> -> memref<1x128xf32, #tpu.memory_space<any>>
      %106 = tpu.memref_squeeze %105 : memref<1x128xf32, #tpu.memory_space<any>> -> memref<128xf32, #tpu.memory_space<any>>
      %c0_i32_73 = arith.constant 0 : i32
      %107 = tpu.memref_slice %arg8[%c1_i32_68, %c1_i32_69, %c0_i32_73] : memref<8x8x128xf32, #tpu.memory_space<vmem>> -> memref<1x1x128xf32, #tpu.memory_space<vmem>>
      %108 = tpu.memref_squeeze %107 : memref<1x1x128xf32, #tpu.memory_space<vmem>> -> memref<128xf32, #tpu.memory_space<vmem>>
      %109 = tpu.memref_slice %arg9[%c1_i32_70, %c1_i32_71] : memref<8x8x!tpu.dma_semaphore, #tpu.memory_space<semaphore_mem>> -> memref<1x1x!tpu.dma_semaphore, #tpu.memory_space<semaphore_mem>>
      %110 = tpu.memref_squeeze %109 : memref<1x1x!tpu.dma_semaphore, #tpu.memory_space<semaphore_mem>> -> memref<!tpu.dma_semaphore, #tpu.memory_space<semaphore_mem>>
      tpu.enqueue_dma source(%106 : memref<128xf32, #tpu.memory_space<any>>) target(%108 : memref<128xf32, #tpu.memory_space<vmem>>) target_semaphore(%110 : memref<!tpu.dma_semaphore, #tpu.memory_space<semaphore_mem>>)
      %c16_i32_74 = arith.constant 16 : i32
      %111 = arith.addi %10, %c16_i32_74 : i32
      %c1_i32_75 = arith.constant 1 : i32
      %112 = arith.addi %111, %c1_i32_75 : i32
      %113 = arith.index_cast %112 : i32 to index
      %114 = memref.load %arg2[%113] : memref<64xi32, #tpu.memory_space<smem>>
      %c1_i32_76 = arith.constant 1 : i32
      %c2_i32_77 = arith.constant 2 : i32
      %c1_i32_78 = arith.constant 1 : i32
      %c2_i32_79 = arith.constant 2 : i32
      %c0_i32_80 = arith.constant 0 : i32
      %115 = tpu.memref_slice %arg3[%114, %c0_i32_80] : memref<50x128xf32, #tpu.memory_space<any>> -> memref<1x128xf32, #tpu.memory_space<any>>
      %116 = tpu.memref_squeeze %115 : memref<1x128xf32, #tpu.memory_space<any>> -> memref<128xf32, #tpu.memory_space<any>>
      %c0_i32_81 = arith.constant 0 : i32
      %117 = tpu.memref_slice %arg8[%c1_i32_76, %c2_i32_77, %c0_i32_81] : memref<8x8x128xf32, #tpu.memory_space<vmem>> -> memref<1x1x128xf32, #tpu.memory_space<vmem>>
      %118 = tpu.memref_squeeze %117 : memref<1x1x128xf32, #tpu.memory_space<vmem>> -> memref<128xf32, #tpu.memory_space<vmem>>
      %119 = tpu.memref_slice %arg9[%c1_i32_78, %c2_i32_79] : memref<8x8x!tpu.dma_semaphore, #tpu.memory_space<semaphore_mem>> -> memref<1x1x!tpu.dma_semaphore, #tpu.memory_space<semaphore_mem>>
      %120 = tpu.memref_squeeze %119 : memref<1x1x!tpu.dma_semaphore, #tpu.memory_space<semaphore_mem>> -> memref<!tpu.dma_semaphore, #tpu.memory_space<semaphore_mem>>
      tpu.enqueue_dma source(%116 : memref<128xf32, #tpu.memory_space<any>>) target(%118 : memref<128xf32, #tpu.memory_space<vmem>>) target_semaphore(%120 : memref<!tpu.dma_semaphore, #tpu.memory_space<semaphore_mem>>)
      %c24_i32_82 = arith.constant 24 : i32
      %121 = arith.addi %10, %c24_i32_82 : i32
      %c1_i32_83 = arith.constant 1 : i32
      %122 = arith.addi %121, %c1_i32_83 : i32
      %123 = arith.index_cast %122 : i32 to index
      %124 = memref.load %arg2[%123] : memref<64xi32, #tpu.memory_space<smem>>
      %c1_i32_84 = arith.constant 1 : i32
      %c3_i32_85 = arith.constant 3 : i32
      %c1_i32_86 = arith.constant 1 : i32
      %c3_i32_87 = arith.constant 3 : i32
      %c0_i32_88 = arith.constant 0 : i32
      %125 = tpu.memref_slice %arg3[%124, %c0_i32_88] : memref<50x128xf32, #tpu.memory_space<any>> -> memref<1x128xf32, #tpu.memory_space<any>>
      %126 = tpu.memref_squeeze %125 : memref<1x128xf32, #tpu.memory_space<any>> -> memref<128xf32, #tpu.memory_space<any>>
      %c0_i32_89 = arith.constant 0 : i32
      %127 = tpu.memref_slice %arg8[%c1_i32_84, %c3_i32_85, %c0_i32_89] : memref<8x8x128xf32, #tpu.memory_space<vmem>> -> memref<1x1x128xf32, #tpu.memory_space<vmem>>
      %128 = tpu.memref_squeeze %127 : memref<1x1x128xf32, #tpu.memory_space<vmem>> -> memref<128xf32, #tpu.memory_space<vmem>>
      %129 = tpu.memref_slice %arg9[%c1_i32_86, %c3_i32_87] : memref<8x8x!tpu.dma_semaphore, #tpu.memory_space<semaphore_mem>> -> memref<1x1x!tpu.dma_semaphore, #tpu.memory_space<semaphore_mem>>
      %130 = tpu.memref_squeeze %129 : memref<1x1x!tpu.dma_semaphore, #tpu.memory_space<semaphore_mem>> -> memref<!tpu.dma_semaphore, #tpu.memory_space<semaphore_mem>>
      tpu.enqueue_dma source(%126 : memref<128xf32, #tpu.memory_space<any>>) target(%128 : memref<128xf32, #tpu.memory_space<vmem>>) target_semaphore(%130 : memref<!tpu.dma_semaphore, #tpu.memory_space<semaphore_mem>>)
      %c32_i32_90 = arith.constant 32 : i32
      %131 = arith.addi %10, %c32_i32_90 : i32
      %c1_i32_91 = arith.constant 1 : i32
      %132 = arith.addi %131, %c1_i32_91 : i32
      %133 = arith.index_cast %132 : i32 to index
      %134 = memref.load %arg2[%133] : memref<64xi32, #tpu.memory_space<smem>>
      %c1_i32_92 = arith.constant 1 : i32
      %c4_i32_93 = arith.constant 4 : i32
      %c1_i32_94 = arith.constant 1 : i32
      %c4_i32_95 = arith.constant 4 : i32
      %c0_i32_96 = arith.constant 0 : i32
      %135 = tpu.memref_slice %arg3[%134, %c0_i32_96] : memref<50x128xf32, #tpu.memory_space<any>> -> memref<1x128xf32, #tpu.memory_space<any>>
      %136 = tpu.memref_squeeze %135 : memref<1x128xf32, #tpu.memory_space<any>> -> memref<128xf32, #tpu.memory_space<any>>
      %c0_i32_97 = arith.constant 0 : i32
      %137 = tpu.memref_slice %arg8[%c1_i32_92, %c4_i32_93, %c0_i32_97] : memref<8x8x128xf32, #tpu.memory_space<vmem>> -> memref<1x1x128xf32, #tpu.memory_space<vmem>>
      %138 = tpu.memref_squeeze %137 : memref<1x1x128xf32, #tpu.memory_space<vmem>> -> memref<128xf32, #tpu.memory_space<vmem>>
      %139 = tpu.memref_slice %arg9[%c1_i32_94, %c4_i32_95] : memref<8x8x!tpu.dma_semaphore, #tpu.memory_space<semaphore_mem>> -> memref<1x1x!tpu.dma_semaphore, #tpu.memory_space<semaphore_mem>>
      %140 = tpu.memref_squeeze %139 : memref<1x1x!tpu.dma_semaphore, #tpu.memory_space<semaphore_mem>> -> memref<!tpu.dma_semaphore, #tpu.memory_space<semaphore_mem>>
      tpu.enqueue_dma source(%136 : memref<128xf32, #tpu.memory_space<any>>) target(%138 : memref<128xf32, #tpu.memory_space<vmem>>) target_semaphore(%140 : memref<!tpu.dma_semaphore, #tpu.memory_space<semaphore_mem>>)
      %c40_i32_98 = arith.constant 40 : i32
      %141 = arith.addi %10, %c40_i32_98 : i32
      %c1_i32_99 = arith.constant 1 : i32
      %142 = arith.addi %141, %c1_i32_99 : i32
      %143 = arith.index_cast %142 : i32 to index
      %144 = memref.load %arg2[%143] : memref<64xi32, #tpu.memory_space<smem>>
      %c1_i32_100 = arith.constant 1 : i32
      %c5_i32_101 = arith.constant 5 : i32
      %c1_i32_102 = arith.constant 1 : i32
      %c5_i32_103 = arith.constant 5 : i32
      %c0_i32_104 = arith.constant 0 : i32
      %145 = tpu.memref_slice %arg3[%144, %c0_i32_104] : memref<50x128xf32, #tpu.memory_space<any>> -> memref<1x128xf32, #tpu.memory_space<any>>
      %146 = tpu.memref_squeeze %145 : memref<1x128xf32, #tpu.memory_space<any>> -> memref<128xf32, #tpu.memory_space<any>>
      %c0_i32_105 = arith.constant 0 : i32
      %147 = tpu.memref_slice %arg8[%c1_i32_100, %c5_i32_101, %c0_i32_105] : memref<8x8x128xf32, #tpu.memory_space<vmem>> -> memref<1x1x128xf32, #tpu.memory_space<vmem>>
      %148 = tpu.memref_squeeze %147 : memref<1x1x128xf32, #tpu.memory_space<vmem>> -> memref<128xf32, #tpu.memory_space<vmem>>
      %149 = tpu.memref_slice %arg9[%c1_i32_102, %c5_i32_103] : memref<8x8x!tpu.dma_semaphore, #tpu.memory_space<semaphore_mem>> -> memref<1x1x!tpu.dma_semaphore, #tpu.memory_space<semaphore_mem>>
      %150 = tpu.memref_squeeze %149 : memref<1x1x!tpu.dma_semaphore, #tpu.memory_space<semaphore_mem>> -> memref<!tpu.dma_semaphore, #tpu.memory_space<semaphore_mem>>
      tpu.enqueue_dma source(%146 : memref<128xf32, #tpu.memory_space<any>>) target(%148 : memref<128xf32, #tpu.memory_space<vmem>>) target_semaphore(%150 : memref<!tpu.dma_semaphore, #tpu.memory_space<semaphore_mem>>)
      %c48_i32_106 = arith.constant 48 : i32
      %151 = arith.addi %10, %c48_i32_106 : i32
      %c1_i32_107 = arith.constant 1 : i32
      %152 = arith.addi %151, %c1_i32_107 : i32
      %153 = arith.index_cast %152 : i32 to index
      %154 = memref.load %arg2[%153] : memref<64xi32, #tpu.memory_space<smem>>
      %c1_i32_108 = arith.constant 1 : i32
      %c6_i32_109 = arith.constant 6 : i32
      %c1_i32_110 = arith.constant 1 : i32
      %c6_i32_111 = arith.constant 6 : i32
      %c0_i32_112 = arith.constant 0 : i32
      %155 = tpu.memref_slice %arg3[%154, %c0_i32_112] : memref<50x128xf32, #tpu.memory_space<any>> -> memref<1x128xf32, #tpu.memory_space<any>>
      %156 = tpu.memref_squeeze %155 : memref<1x128xf32, #tpu.memory_space<any>> -> memref<128xf32, #tpu.memory_space<any>>
      %c0_i32_113 = arith.constant 0 : i32
      %157 = tpu.memref_slice %arg8[%c1_i32_108, %c6_i32_109, %c0_i32_113] : memref<8x8x128xf32, #tpu.memory_space<vmem>> -> memref<1x1x128xf32, #tpu.memory_space<vmem>>
      %158 = tpu.memref_squeeze %157 : memref<1x1x128xf32, #tpu.memory_space<vmem>> -> memref<128xf32, #tpu.memory_space<vmem>>
      %159 = tpu.memref_slice %arg9[%c1_i32_110, %c6_i32_111] : memref<8x8x!tpu.dma_semaphore, #tpu.memory_space<semaphore_mem>> -> memref<1x1x!tpu.dma_semaphore, #tpu.memory_space<semaphore_mem>>
      %160 = tpu.memref_squeeze %159 : memref<1x1x!tpu.dma_semaphore, #tpu.memory_space<semaphore_mem>> -> memref<!tpu.dma_semaphore, #tpu.memory_space<semaphore_mem>>
      tpu.enqueue_dma source(%156 : memref<128xf32, #tpu.memory_space<any>>) target(%158 : memref<128xf32, #tpu.memory_space<vmem>>) target_semaphore(%160 : memref<!tpu.dma_semaphore, #tpu.memory_space<semaphore_mem>>)
      %c56_i32_114 = arith.constant 56 : i32
      %161 = arith.addi %10, %c56_i32_114 : i32
      %c1_i32_115 = arith.constant 1 : i32
      %162 = arith.addi %161, %c1_i32_115 : i32
      %163 = arith.index_cast %162 : i32 to index
      %164 = memref.load %arg2[%163] : memref<64xi32, #tpu.memory_space<smem>>
      %c1_i32_116 = arith.constant 1 : i32
      %c7_i32_117 = arith.constant 7 : i32
      %c1_i32_118 = arith.constant 1 : i32
      %c7_i32_119 = arith.constant 7 : i32
      %c0_i32_120 = arith.constant 0 : i32
      %165 = tpu.memref_slice %arg3[%164, %c0_i32_120] : memref<50x128xf32, #tpu.memory_space<any>> -> memref<1x128xf32, #tpu.memory_space<any>>
      %166 = tpu.memref_squeeze %165 : memref<1x128xf32, #tpu.memory_space<any>> -> memref<128xf32, #tpu.memory_space<any>>
      %c0_i32_121 = arith.constant 0 : i32
      %167 = tpu.memref_slice %arg8[%c1_i32_116, %c7_i32_117, %c0_i32_121] : memref<8x8x128xf32, #tpu.memory_space<vmem>> -> memref<1x1x128xf32, #tpu.memory_space<vmem>>
      %168 = tpu.memref_squeeze %167 : memref<1x1x128xf32, #tpu.memory_space<vmem>> -> memref<128xf32, #tpu.memory_space<vmem>>
      %169 = tpu.memref_slice %arg9[%c1_i32_118, %c7_i32_119] : memref<8x8x!tpu.dma_semaphore, #tpu.memory_space<semaphore_mem>> -> memref<1x1x!tpu.dma_semaphore, #tpu.memory_space<semaphore_mem>>
      %170 = tpu.memref_squeeze %169 : memref<1x1x!tpu.dma_semaphore, #tpu.memory_space<semaphore_mem>> -> memref<!tpu.dma_semaphore, #tpu.memory_space<semaphore_mem>>
      tpu.enqueue_dma source(%166 : memref<128xf32, #tpu.memory_space<any>>) target(%168 : memref<128xf32, #tpu.memory_space<vmem>>) target_semaphore(%170 : memref<!tpu.dma_semaphore, #tpu.memory_space<semaphore_mem>>)
      %c0_i32_122 = arith.constant 0 : i32
      %171 = arith.addi %10, %c0_i32_122 : i32
      %c2_i32_123 = arith.constant 2 : i32
      %172 = arith.addi %171, %c2_i32_123 : i32
      %173 = arith.index_cast %172 : i32 to index
      %174 = memref.load %arg2[%173] : memref<64xi32, #tpu.memory_space<smem>>
      %c2_i32_124 = arith.constant 2 : i32
      %c0_i32_125 = arith.constant 0 : i32
      %c2_i32_126 = arith.constant 2 : i32
      %c0_i32_127 = arith.constant 0 : i32
      %c0_i32_128 = arith.constant 0 : i32
      %175 = tpu.memref_slice %arg3[%174, %c0_i32_128] : memref<50x128xf32, #tpu.memory_space<any>> -> memref<1x128xf32, #tpu.memory_space<any>>
      %176 = tpu.memref_squeeze %175 : memref<1x128xf32, #tpu.memory_space<any>> -> memref<128xf32, #tpu.memory_space<any>>
      %c0_i32_129 = arith.constant 0 : i32
      %177 = tpu.memref_slice %arg8[%c2_i32_124, %c0_i32_125, %c0_i32_129] : memref<8x8x128xf32, #tpu.memory_space<vmem>> -> memref<1x1x128xf32, #tpu.memory_space<vmem>>
      %178 = tpu.memref_squeeze %177 : memref<1x1x128xf32, #tpu.memory_space<vmem>> -> memref<128xf32, #tpu.memory_space<vmem>>
      %179 = tpu.memref_slice %arg9[%c2_i32_126, %c0_i32_127] : memref<8x8x!tpu.dma_semaphore, #tpu.memory_space<semaphore_mem>> -> memref<1x1x!tpu.dma_semaphore, #tpu.memory_space<semaphore_mem>>
      %180 = tpu.memref_squeeze %179 : memref<1x1x!tpu.dma_semaphore, #tpu.memory_space<semaphore_mem>> -> memref<!tpu.dma_semaphore, #tpu.memory_space<semaphore_mem>>
      tpu.enqueue_dma source(%176 : memref<128xf32, #tpu.memory_space<any>>) target(%178 : memref<128xf32, #tpu.memory_space<vmem>>) target_semaphore(%180 : memref<!tpu.dma_semaphore, #tpu.memory_space<semaphore_mem>>)
      %c8_i32_130 = arith.constant 8 : i32
      %181 = arith.addi %10, %c8_i32_130 : i32
      %c2_i32_131 = arith.constant 2 : i32
      %182 = arith.addi %181, %c2_i32_131 : i32
      %183 = arith.index_cast %182 : i32 to index
      %184 = memref.load %arg2[%183] : memref<64xi32, #tpu.memory_space<smem>>
      %c2_i32_132 = arith.constant 2 : i32
      %c1_i32_133 = arith.constant 1 : i32
      %c2_i32_134 = arith.constant 2 : i32
      %c1_i32_135 = arith.constant 1 : i32
      %c0_i32_136 = arith.constant 0 : i32
      %185 = tpu.memref_slice %arg3[%184, %c0_i32_136] : memref<50x128xf32, #tpu.memory_space<any>> -> memref<1x128xf32, #tpu.memory_space<any>>
      %186 = tpu.memref_squeeze %185 : memref<1x128xf32, #tpu.memory_space<any>> -> memref<128xf32, #tpu.memory_space<any>>
      %c0_i32_137 = arith.constant 0 : i32
      %187 = tpu.memref_slice %arg8[%c2_i32_132, %c1_i32_133, %c0_i32_137] : memref<8x8x128xf32, #tpu.memory_space<vmem>> -> memref<1x1x128xf32, #tpu.memory_space<vmem>>
      %188 = tpu.memref_squeeze %187 : memref<1x1x128xf32, #tpu.memory_space<vmem>> -> memref<128xf32, #tpu.memory_space<vmem>>
      %189 = tpu.memref_slice %arg9[%c2_i32_134, %c1_i32_135] : memref<8x8x!tpu.dma_semaphore, #tpu.memory_space<semaphore_mem>> -> memref<1x1x!tpu.dma_semaphore, #tpu.memory_space<semaphore_mem>>
      %190 = tpu.memref_squeeze %189 : memref<1x1x!tpu.dma_semaphore, #tpu.memory_space<semaphore_mem>> -> memref<!tpu.dma_semaphore, #tpu.memory_space<semaphore_mem>>
      tpu.enqueue_dma source(%186 : memref<128xf32, #tpu.memory_space<any>>) target(%188 : memref<128xf32, #tpu.memory_space<vmem>>) target_semaphore(%190 : memref<!tpu.dma_semaphore, #tpu.memory_space<semaphore_mem>>)
      %c16_i32_138 = arith.constant 16 : i32
      %191 = arith.addi %10, %c16_i32_138 : i32
      %c2_i32_139 = arith.constant 2 : i32
      %192 = arith.addi %191, %c2_i32_139 : i32
      %193 = arith.index_cast %192 : i32 to index
      %194 = memref.load %arg2[%193] : memref<64xi32, #tpu.memory_space<smem>>
      %c2_i32_140 = arith.constant 2 : i32
      %c2_i32_141 = arith.constant 2 : i32
      %c2_i32_142 = arith.constant 2 : i32
      %c2_i32_143 = arith.constant 2 : i32
      %c0_i32_144 = arith.constant 0 : i32
      %195 = tpu.memref_slice %arg3[%194, %c0_i32_144] : memref<50x128xf32, #tpu.memory_space<any>> -> memref<1x128xf32, #tpu.memory_space<any>>
      %196 = tpu.memref_squeeze %195 : memref<1x128xf32, #tpu.memory_space<any>> -> memref<128xf32, #tpu.memory_space<any>>
      %c0_i32_145 = arith.constant 0 : i32
      %197 = tpu.memref_slice %arg8[%c2_i32_140, %c2_i32_141, %c0_i32_145] : memref<8x8x128xf32, #tpu.memory_space<vmem>> -> memref<1x1x128xf32, #tpu.memory_space<vmem>>
      %198 = tpu.memref_squeeze %197 : memref<1x1x128xf32, #tpu.memory_space<vmem>> -> memref<128xf32, #tpu.memory_space<vmem>>
      %199 = tpu.memref_slice %arg9[%c2_i32_142, %c2_i32_143] : memref<8x8x!tpu.dma_semaphore, #tpu.memory_space<semaphore_mem>> -> memref<1x1x!tpu.dma_semaphore, #tpu.memory_space<semaphore_mem>>
      %200 = tpu.memref_squeeze %199 : memref<1x1x!tpu.dma_semaphore, #tpu.memory_space<semaphore_mem>> -> memref<!tpu.dma_semaphore, #tpu.memory_space<semaphore_mem>>
      tpu.enqueue_dma source(%196 : memref<128xf32, #tpu.memory_space<any>>) target(%198 : memref<128xf32, #tpu.memory_space<vmem>>) target_semaphore(%200 : memref<!tpu.dma_semaphore, #tpu.memory_space<semaphore_mem>>)
      %c24_i32_146 = arith.constant 24 : i32
      %201 = arith.addi %10, %c24_i32_146 : i32
      %c2_i32_147 = arith.constant 2 : i32
      %202 = arith.addi %201, %c2_i32_147 : i32
      %203 = arith.index_cast %202 : i32 to index
      %204 = memref.load %arg2[%203] : memref<64xi32, #tpu.memory_space<smem>>
      %c2_i32_148 = arith.constant 2 : i32
      %c3_i32_149 = arith.constant 3 : i32
      %c2_i32_150 = arith.constant 2 : i32
      %c3_i32_151 = arith.constant 3 : i32
      %c0_i32_152 = arith.constant 0 : i32
      %205 = tpu.memref_slice %arg3[%204, %c0_i32_152] : memref<50x128xf32, #tpu.memory_space<any>> -> memref<1x128xf32, #tpu.memory_space<any>>
      %206 = tpu.memref_squeeze %205 : memref<1x128xf32, #tpu.memory_space<any>> -> memref<128xf32, #tpu.memory_space<any>>
      %c0_i32_153 = arith.constant 0 : i32
      %207 = tpu.memref_slice %arg8[%c2_i32_148, %c3_i32_149, %c0_i32_153] : memref<8x8x128xf32, #tpu.memory_space<vmem>> -> memref<1x1x128xf32, #tpu.memory_space<vmem>>
      %208 = tpu.memref_squeeze %207 : memref<1x1x128xf32, #tpu.memory_space<vmem>> -> memref<128xf32, #tpu.memory_space<vmem>>
      %209 = tpu.memref_slice %arg9[%c2_i32_150, %c3_i32_151] : memref<8x8x!tpu.dma_semaphore, #tpu.memory_space<semaphore_mem>> -> memref<1x1x!tpu.dma_semaphore, #tpu.memory_space<semaphore_mem>>
      %210 = tpu.memref_squeeze %209 : memref<1x1x!tpu.dma_semaphore, #tpu.memory_space<semaphore_mem>> -> memref<!tpu.dma_semaphore, #tpu.memory_space<semaphore_mem>>
      tpu.enqueue_dma source(%206 : memref<128xf32, #tpu.memory_space<any>>) target(%208 : memref<128xf32, #tpu.memory_space<vmem>>) target_semaphore(%210 : memref<!tpu.dma_semaphore, #tpu.memory_space<semaphore_mem>>)
      %c32_i32_154 = arith.constant 32 : i32
      %211 = arith.addi %10, %c32_i32_154 : i32
      %c2_i32_155 = arith.constant 2 : i32
      %212 = arith.addi %211, %c2_i32_155 : i32
      %213 = arith.index_cast %212 : i32 to index
      %214 = memref.load %arg2[%213] : memref<64xi32, #tpu.memory_space<smem>>
      %c2_i32_156 = arith.constant 2 : i32
      %c4_i32_157 = arith.constant 4 : i32
      %c2_i32_158 = arith.constant 2 : i32
      %c4_i32_159 = arith.constant 4 : i32
      %c0_i32_160 = arith.constant 0 : i32
      %215 = tpu.memref_slice %arg3[%214, %c0_i32_160] : memref<50x128xf32, #tpu.memory_space<any>> -> memref<1x128xf32, #tpu.memory_space<any>>
      %216 = tpu.memref_squeeze %215 : memref<1x128xf32, #tpu.memory_space<any>> -> memref<128xf32, #tpu.memory_space<any>>
      %c0_i32_161 = arith.constant 0 : i32
      %217 = tpu.memref_slice %arg8[%c2_i32_156, %c4_i32_157, %c0_i32_161] : memref<8x8x128xf32, #tpu.memory_space<vmem>> -> memref<1x1x128xf32, #tpu.memory_space<vmem>>
      %218 = tpu.memref_squeeze %217 : memref<1x1x128xf32, #tpu.memory_space<vmem>> -> memref<128xf32, #tpu.memory_space<vmem>>
      %219 = tpu.memref_slice %arg9[%c2_i32_158, %c4_i32_159] : memref<8x8x!tpu.dma_semaphore, #tpu.memory_space<semaphore_mem>> -> memref<1x1x!tpu.dma_semaphore, #tpu.memory_space<semaphore_mem>>
      %220 = tpu.memref_squeeze %219 : memref<1x1x!tpu.dma_semaphore, #tpu.memory_space<semaphore_mem>> -> memref<!tpu.dma_semaphore, #tpu.memory_space<semaphore_mem>>
      tpu.enqueue_dma source(%216 : memref<128xf32, #tpu.memory_space<any>>) target(%218 : memref<128xf32, #tpu.memory_space<vmem>>) target_semaphore(%220 : memref<!tpu.dma_semaphore, #tpu.memory_space<semaphore_mem>>)
      %c40_i32_162 = arith.constant 40 : i32
      %221 = arith.addi %10, %c40_i32_162 : i32
      %c2_i32_163 = arith.constant 2 : i32
      %222 = arith.addi %221, %c2_i32_163 : i32
      %223 = arith.index_cast %222 : i32 to index
      %224 = memref.load %arg2[%223] : memref<64xi32, #tpu.memory_space<smem>>
      %c2_i32_164 = arith.constant 2 : i32
      %c5_i32_165 = arith.constant 5 : i32
      %c2_i32_166 = arith.constant 2 : i32
      %c5_i32_167 = arith.constant 5 : i32
      %c0_i32_168 = arith.constant 0 : i32
      %225 = tpu.memref_slice %arg3[%224, %c0_i32_168] : memref<50x128xf32, #tpu.memory_space<any>> -> memref<1x128xf32, #tpu.memory_space<any>>
      %226 = tpu.memref_squeeze %225 : memref<1x128xf32, #tpu.memory_space<any>> -> memref<128xf32, #tpu.memory_space<any>>
      %c0_i32_169 = arith.constant 0 : i32
      %227 = tpu.memref_slice %arg8[%c2_i32_164, %c5_i32_165, %c0_i32_169] : memref<8x8x128xf32, #tpu.memory_space<vmem>> -> memref<1x1x128xf32, #tpu.memory_space<vmem>>
      %228 = tpu.memref_squeeze %227 : memref<1x1x128xf32, #tpu.memory_space<vmem>> -> memref<128xf32, #tpu.memory_space<vmem>>
      %229 = tpu.memref_slice %arg9[%c2_i32_166, %c5_i32_167] : memref<8x8x!tpu.dma_semaphore, #tpu.memory_space<semaphore_mem>> -> memref<1x1x!tpu.dma_semaphore, #tpu.memory_space<semaphore_mem>>
      %230 = tpu.memref_squeeze %229 : memref<1x1x!tpu.dma_semaphore, #tpu.memory_space<semaphore_mem>> -> memref<!tpu.dma_semaphore, #tpu.memory_space<semaphore_mem>>
      tpu.enqueue_dma source(%226 : memref<128xf32, #tpu.memory_space<any>>) target(%228 : memref<128xf32, #tpu.memory_space<vmem>>) target_semaphore(%230 : memref<!tpu.dma_semaphore, #tpu.memory_space<semaphore_mem>>)
      %c48_i32_170 = arith.constant 48 : i32
      %231 = arith.addi %10, %c48_i32_170 : i32
      %c2_i32_171 = arith.constant 2 : i32
      %232 = arith.addi %231, %c2_i32_171 : i32
      %233 = arith.index_cast %232 : i32 to index
      %234 = memref.load %arg2[%233] : memref<64xi32, #tpu.memory_space<smem>>
      %c2_i32_172 = arith.constant 2 : i32
      %c6_i32_173 = arith.constant 6 : i32
      %c2_i32_174 = arith.constant 2 : i32
      %c6_i32_175 = arith.constant 6 : i32
      %c0_i32_176 = arith.constant 0 : i32
      %235 = tpu.memref_slice %arg3[%234, %c0_i32_176] : memref<50x128xf32, #tpu.memory_space<any>> -> memref<1x128xf32, #tpu.memory_space<any>>
      %236 = tpu.memref_squeeze %235 : memref<1x128xf32, #tpu.memory_space<any>> -> memref<128xf32, #tpu.memory_space<any>>
      %c0_i32_177 = arith.constant 0 : i32
      %237 = tpu.memref_slice %arg8[%c2_i32_172, %c6_i32_173, %c0_i32_177] : memref<8x8x128xf32, #tpu.memory_space<vmem>> -> memref<1x1x128xf32, #tpu.memory_space<vmem>>
      %238 = tpu.memref_squeeze %237 : memref<1x1x128xf32, #tpu.memory_space<vmem>> -> memref<128xf32, #tpu.memory_space<vmem>>
      %239 = tpu.memref_slice %arg9[%c2_i32_174, %c6_i32_175] : memref<8x8x!tpu.dma_semaphore, #tpu.memory_space<semaphore_mem>> -> memref<1x1x!tpu.dma_semaphore, #tpu.memory_space<semaphore_mem>>
      %240 = tpu.memref_squeeze %239 : memref<1x1x!tpu.dma_semaphore, #tpu.memory_space<semaphore_mem>> -> memref<!tpu.dma_semaphore, #tpu.memory_space<semaphore_mem>>
      tpu.enqueue_dma source(%236 : memref<128xf32, #tpu.memory_space<any>>) target(%238 : memref<128xf32, #tpu.memory_space<vmem>>) target_semaphore(%240 : memref<!tpu.dma_semaphore, #tpu.memory_space<semaphore_mem>>)
      %c56_i32_178 = arith.constant 56 : i32
      %241 = arith.addi %10, %c56_i32_178 : i32
      %c2_i32_179 = arith.constant 2 : i32
      %242 = arith.addi %241, %c2_i32_179 : i32
      %243 = arith.index_cast %242 : i32 to index
      %244 = memref.load %arg2[%243] : memref<64xi32, #tpu.memory_space<smem>>
      %c2_i32_180 = arith.constant 2 : i32
      %c7_i32_181 = arith.constant 7 : i32
      %c2_i32_182 = arith.constant 2 : i32
      %c7_i32_183 = arith.constant 7 : i32
      %c0_i32_184 = arith.constant 0 : i32
      %245 = tpu.memref_slice %arg3[%244, %c0_i32_184] : memref<50x128xf32, #tpu.memory_space<any>> -> memref<1x128xf32, #tpu.memory_space<any>>
      %246 = tpu.memref_squeeze %245 : memref<1x128xf32, #tpu.memory_space<any>> -> memref<128xf32, #tpu.memory_space<any>>
      %c0_i32_185 = arith.constant 0 : i32
      %247 = tpu.memref_slice %arg8[%c2_i32_180, %c7_i32_181, %c0_i32_185] : memref<8x8x128xf32, #tpu.memory_space<vmem>> -> memref<1x1x128xf32, #tpu.memory_space<vmem>>
      %248 = tpu.memref_squeeze %247 : memref<1x1x128xf32, #tpu.memory_space<vmem>> -> memref<128xf32, #tpu.memory_space<vmem>>
      %249 = tpu.memref_slice %arg9[%c2_i32_182, %c7_i32_183] : memref<8x8x!tpu.dma_semaphore, #tpu.memory_space<semaphore_mem>> -> memref<1x1x!tpu.dma_semaphore, #tpu.memory_space<semaphore_mem>>
      %250 = tpu.memref_squeeze %249 : memref<1x1x!tpu.dma_semaphore, #tpu.memory_space<semaphore_mem>> -> memref<!tpu.dma_semaphore, #tpu.memory_space<semaphore_mem>>
      tpu.enqueue_dma source(%246 : memref<128xf32, #tpu.memory_space<any>>) target(%248 : memref<128xf32, #tpu.memory_space<vmem>>) target_semaphore(%250 : memref<!tpu.dma_semaphore, #tpu.memory_space<semaphore_mem>>)
      %c0_i32_186 = arith.constant 0 : i32
      %251 = arith.addi %10, %c0_i32_186 : i32
      %c3_i32_187 = arith.constant 3 : i32
      %252 = arith.addi %251, %c3_i32_187 : i32
      %253 = arith.index_cast %252 : i32 to index
      %254 = memref.load %arg2[%253] : memref<64xi32, #tpu.memory_space<smem>>
      %c3_i32_188 = arith.constant 3 : i32
      %c0_i32_189 = arith.constant 0 : i32
      %c3_i32_190 = arith.constant 3 : i32
      %c0_i32_191 = arith.constant 0 : i32
      %c0_i32_192 = arith.constant 0 : i32
      %255 = tpu.memref_slice %arg3[%254, %c0_i32_192] : memref<50x128xf32, #tpu.memory_space<any>> -> memref<1x128xf32, #tpu.memory_space<any>>
      %256 = tpu.memref_squeeze %255 : memref<1x128xf32, #tpu.memory_space<any>> -> memref<128xf32, #tpu.memory_space<any>>
      %c0_i32_193 = arith.constant 0 : i32
      %257 = tpu.memref_slice %arg8[%c3_i32_188, %c0_i32_189, %c0_i32_193] : memref<8x8x128xf32, #tpu.memory_space<vmem>> -> memref<1x1x128xf32, #tpu.memory_space<vmem>>
      %258 = tpu.memref_squeeze %257 : memref<1x1x128xf32, #tpu.memory_space<vmem>> -> memref<128xf32, #tpu.memory_space<vmem>>
      %259 = tpu.memref_slice %arg9[%c3_i32_190, %c0_i32_191] : memref<8x8x!tpu.dma_semaphore, #tpu.memory_space<semaphore_mem>> -> memref<1x1x!tpu.dma_semaphore, #tpu.memory_space<semaphore_mem>>
      %260 = tpu.memref_squeeze %259 : memref<1x1x!tpu.dma_semaphore, #tpu.memory_space<semaphore_mem>> -> memref<!tpu.dma_semaphore, #tpu.memory_space<semaphore_mem>>
      tpu.enqueue_dma source(%256 : memref<128xf32, #tpu.memory_space<any>>) target(%258 : memref<128xf32, #tpu.memory_space<vmem>>) target_semaphore(%260 : memref<!tpu.dma_semaphore, #tpu.memory_space<semaphore_mem>>)
      %c8_i32_194 = arith.constant 8 : i32
      %261 = arith.addi %10, %c8_i32_194 : i32
      %c3_i32_195 = arith.constant 3 : i32
      %262 = arith.addi %261, %c3_i32_195 : i32
      %263 = arith.index_cast %262 : i32 to index
      %264 = memref.load %arg2[%263] : memref<64xi32, #tpu.memory_space<smem>>
      %c3_i32_196 = arith.constant 3 : i32
      %c1_i32_197 = arith.constant 1 : i32
      %c3_i32_198 = arith.constant 3 : i32
      %c1_i32_199 = arith.constant 1 : i32
      %c0_i32_200 = arith.constant 0 : i32
      %265 = tpu.memref_slice %arg3[%264, %c0_i32_200] : memref<50x128xf32, #tpu.memory_space<any>> -> memref<1x128xf32, #tpu.memory_space<any>>
      %266 = tpu.memref_squeeze %265 : memref<1x128xf32, #tpu.memory_space<any>> -> memref<128xf32, #tpu.memory_space<any>>
      %c0_i32_201 = arith.constant 0 : i32
      %267 = tpu.memref_slice %arg8[%c3_i32_196, %c1_i32_197, %c0_i32_201] : memref<8x8x128xf32, #tpu.memory_space<vmem>> -> memref<1x1x128xf32, #tpu.memory_space<vmem>>
      %268 = tpu.memref_squeeze %267 : memref<1x1x128xf32, #tpu.memory_space<vmem>> -> memref<128xf32, #tpu.memory_space<vmem>>
      %269 = tpu.memref_slice %arg9[%c3_i32_198, %c1_i32_199] : memref<8x8x!tpu.dma_semaphore, #tpu.memory_space<semaphore_mem>> -> memref<1x1x!tpu.dma_semaphore, #tpu.memory_space<semaphore_mem>>
      %270 = tpu.memref_squeeze %269 : memref<1x1x!tpu.dma_semaphore, #tpu.memory_space<semaphore_mem>> -> memref<!tpu.dma_semaphore, #tpu.memory_space<semaphore_mem>>
      tpu.enqueue_dma source(%266 : memref<128xf32, #tpu.memory_space<any>>) target(%268 : memref<128xf32, #tpu.memory_space<vmem>>) target_semaphore(%270 : memref<!tpu.dma_semaphore, #tpu.memory_space<semaphore_mem>>)
      %c16_i32_202 = arith.constant 16 : i32
      %271 = arith.addi %10, %c16_i32_202 : i32
      %c3_i32_203 = arith.constant 3 : i32
      %272 = arith.addi %271, %c3_i32_203 : i32
      %273 = arith.index_cast %272 : i32 to index
      %274 = memref.load %arg2[%273] : memref<64xi32, #tpu.memory_space<smem>>
      %c3_i32_204 = arith.constant 3 : i32
      %c2_i32_205 = arith.constant 2 : i32
      %c3_i32_206 = arith.constant 3 : i32
      %c2_i32_207 = arith.constant 2 : i32
      %c0_i32_208 = arith.constant 0 : i32
      %275 = tpu.memref_slice %arg3[%274, %c0_i32_208] : memref<50x128xf32, #tpu.memory_space<any>> -> memref<1x128xf32, #tpu.memory_space<any>>
      %276 = tpu.memref_squeeze %275 : memref<1x128xf32, #tpu.memory_space<any>> -> memref<128xf32, #tpu.memory_space<any>>
      %c0_i32_209 = arith.constant 0 : i32
      %277 = tpu.memref_slice %arg8[%c3_i32_204, %c2_i32_205, %c0_i32_209] : memref<8x8x128xf32, #tpu.memory_space<vmem>> -> memref<1x1x128xf32, #tpu.memory_space<vmem>>
      %278 = tpu.memref_squeeze %277 : memref<1x1x128xf32, #tpu.memory_space<vmem>> -> memref<128xf32, #tpu.memory_space<vmem>>
      %279 = tpu.memref_slice %arg9[%c3_i32_206, %c2_i32_207] : memref<8x8x!tpu.dma_semaphore, #tpu.memory_space<semaphore_mem>> -> memref<1x1x!tpu.dma_semaphore, #tpu.memory_space<semaphore_mem>>
      %280 = tpu.memref_squeeze %279 : memref<1x1x!tpu.dma_semaphore, #tpu.memory_space<semaphore_mem>> -> memref<!tpu.dma_semaphore, #tpu.memory_space<semaphore_mem>>
      tpu.enqueue_dma source(%276 : memref<128xf32, #tpu.memory_space<any>>) target(%278 : memref<128xf32, #tpu.memory_space<vmem>>) target_semaphore(%280 : memref<!tpu.dma_semaphore, #tpu.memory_space<semaphore_mem>>)
      %c24_i32_210 = arith.constant 24 : i32
      %281 = arith.addi %10, %c24_i32_210 : i32
      %c3_i32_211 = arith.constant 3 : i32
      %282 = arith.addi %281, %c3_i32_211 : i32
      %283 = arith.index_cast %282 : i32 to index
      %284 = memref.load %arg2[%283] : memref<64xi32, #tpu.memory_space<smem>>
      %c3_i32_212 = arith.constant 3 : i32
      %c3_i32_213 = arith.constant 3 : i32
      %c3_i32_214 = arith.constant 3 : i32
      %c3_i32_215 = arith.constant 3 : i32
      %c0_i32_216 = arith.constant 0 : i32
      %285 = tpu.memref_slice %arg3[%284, %c0_i32_216] : memref<50x128xf32, #tpu.memory_space<any>> -> memref<1x128xf32, #tpu.memory_space<any>>
      %286 = tpu.memref_squeeze %285 : memref<1x128xf32, #tpu.memory_space<any>> -> memref<128xf32, #tpu.memory_space<any>>
      %c0_i32_217 = arith.constant 0 : i32
      %287 = tpu.memref_slice %arg8[%c3_i32_212, %c3_i32_213, %c0_i32_217] : memref<8x8x128xf32, #tpu.memory_space<vmem>> -> memref<1x1x128xf32, #tpu.memory_space<vmem>>
      %288 = tpu.memref_squeeze %287 : memref<1x1x128xf32, #tpu.memory_space<vmem>> -> memref<128xf32, #tpu.memory_space<vmem>>
      %289 = tpu.memref_slice %arg9[%c3_i32_214, %c3_i32_215] : memref<8x8x!tpu.dma_semaphore, #tpu.memory_space<semaphore_mem>> -> memref<1x1x!tpu.dma_semaphore, #tpu.memory_space<semaphore_mem>>
      %290 = tpu.memref_squeeze %289 : memref<1x1x!tpu.dma_semaphore, #tpu.memory_space<semaphore_mem>> -> memref<!tpu.dma_semaphore, #tpu.memory_space<semaphore_mem>>
      tpu.enqueue_dma source(%286 : memref<128xf32, #tpu.memory_space<any>>) target(%288 : memref<128xf32, #tpu.memory_space<vmem>>) target_semaphore(%290 : memref<!tpu.dma_semaphore, #tpu.memory_space<semaphore_mem>>)
      %c32_i32_218 = arith.constant 32 : i32
      %291 = arith.addi %10, %c32_i32_218 : i32
      %c3_i32_219 = arith.constant 3 : i32
      %292 = arith.addi %291, %c3_i32_219 : i32
      %293 = arith.index_cast %292 : i32 to index
      %294 = memref.load %arg2[%293] : memref<64xi32, #tpu.memory_space<smem>>
      %c3_i32_220 = arith.constant 3 : i32
      %c4_i32_221 = arith.constant 4 : i32
      %c3_i32_222 = arith.constant 3 : i32
      %c4_i32_223 = arith.constant 4 : i32
      %c0_i32_224 = arith.constant 0 : i32
      %295 = tpu.memref_slice %arg3[%294, %c0_i32_224] : memref<50x128xf32, #tpu.memory_space<any>> -> memref<1x128xf32, #tpu.memory_space<any>>
      %296 = tpu.memref_squeeze %295 : memref<1x128xf32, #tpu.memory_space<any>> -> memref<128xf32, #tpu.memory_space<any>>
      %c0_i32_225 = arith.constant 0 : i32
      %297 = tpu.memref_slice %arg8[%c3_i32_220, %c4_i32_221, %c0_i32_225] : memref<8x8x128xf32, #tpu.memory_space<vmem>> -> memref<1x1x128xf32, #tpu.memory_space<vmem>>
      %298 = tpu.memref_squeeze %297 : memref<1x1x128xf32, #tpu.memory_space<vmem>> -> memref<128xf32, #tpu.memory_space<vmem>>
      %299 = tpu.memref_slice %arg9[%c3_i32_222, %c4_i32_223] : memref<8x8x!tpu.dma_semaphore, #tpu.memory_space<semaphore_mem>> -> memref<1x1x!tpu.dma_semaphore, #tpu.memory_space<semaphore_mem>>
      %300 = tpu.memref_squeeze %299 : memref<1x1x!tpu.dma_semaphore, #tpu.memory_space<semaphore_mem>> -> memref<!tpu.dma_semaphore, #tpu.memory_space<semaphore_mem>>
      tpu.enqueue_dma source(%296 : memref<128xf32, #tpu.memory_space<any>>) target(%298 : memref<128xf32, #tpu.memory_space<vmem>>) target_semaphore(%300 : memref<!tpu.dma_semaphore, #tpu.memory_space<semaphore_mem>>)
      %c40_i32_226 = arith.constant 40 : i32
      %301 = arith.addi %10, %c40_i32_226 : i32
      %c3_i32_227 = arith.constant 3 : i32
      %302 = arith.addi %301, %c3_i32_227 : i32
      %303 = arith.index_cast %302 : i32 to index
      %304 = memref.load %arg2[%303] : memref<64xi32, #tpu.memory_space<smem>>
      %c3_i32_228 = arith.constant 3 : i32
      %c5_i32_229 = arith.constant 5 : i32
      %c3_i32_230 = arith.constant 3 : i32
      %c5_i32_231 = arith.constant 5 : i32
      %c0_i32_232 = arith.constant 0 : i32
      %305 = tpu.memref_slice %arg3[%304, %c0_i32_232] : memref<50x128xf32, #tpu.memory_space<any>> -> memref<1x128xf32, #tpu.memory_space<any>>
      %306 = tpu.memref_squeeze %305 : memref<1x128xf32, #tpu.memory_space<any>> -> memref<128xf32, #tpu.memory_space<any>>
      %c0_i32_233 = arith.constant 0 : i32
      %307 = tpu.memref_slice %arg8[%c3_i32_228, %c5_i32_229, %c0_i32_233] : memref<8x8x128xf32, #tpu.memory_space<vmem>> -> memref<1x1x128xf32, #tpu.memory_space<vmem>>
      %308 = tpu.memref_squeeze %307 : memref<1x1x128xf32, #tpu.memory_space<vmem>> -> memref<128xf32, #tpu.memory_space<vmem>>
      %309 = tpu.memref_slice %arg9[%c3_i32_230, %c5_i32_231] : memref<8x8x!tpu.dma_semaphore, #tpu.memory_space<semaphore_mem>> -> memref<1x1x!tpu.dma_semaphore, #tpu.memory_space<semaphore_mem>>
      %310 = tpu.memref_squeeze %309 : memref<1x1x!tpu.dma_semaphore, #tpu.memory_space<semaphore_mem>> -> memref<!tpu.dma_semaphore, #tpu.memory_space<semaphore_mem>>
      tpu.enqueue_dma source(%306 : memref<128xf32, #tpu.memory_space<any>>) target(%308 : memref<128xf32, #tpu.memory_space<vmem>>) target_semaphore(%310 : memref<!tpu.dma_semaphore, #tpu.memory_space<semaphore_mem>>)
      %c48_i32_234 = arith.constant 48 : i32
      %311 = arith.addi %10, %c48_i32_234 : i32
      %c3_i32_235 = arith.constant 3 : i32
      %312 = arith.addi %311, %c3_i32_235 : i32
      %313 = arith.index_cast %312 : i32 to index
      %314 = memref.load %arg2[%313] : memref<64xi32, #tpu.memory_space<smem>>
      %c3_i32_236 = arith.constant 3 : i32
      %c6_i32_237 = arith.constant 6 : i32
      %c3_i32_238 = arith.constant 3 : i32
      %c6_i32_239 = arith.constant 6 : i32
      %c0_i32_240 = arith.constant 0 : i32
      %315 = tpu.memref_slice %arg3[%314, %c0_i32_240] : memref<50x128xf32, #tpu.memory_space<any>> -> memref<1x128xf32, #tpu.memory_space<any>>
      %316 = tpu.memref_squeeze %315 : memref<1x128xf32, #tpu.memory_space<any>> -> memref<128xf32, #tpu.memory_space<any>>
      %c0_i32_241 = arith.constant 0 : i32
      %317 = tpu.memref_slice %arg8[%c3_i32_236, %c6_i32_237, %c0_i32_241] : memref<8x8x128xf32, #tpu.memory_space<vmem>> -> memref<1x1x128xf32, #tpu.memory_space<vmem>>
      %318 = tpu.memref_squeeze %317 : memref<1x1x128xf32, #tpu.memory_space<vmem>> -> memref<128xf32, #tpu.memory_space<vmem>>
      %319 = tpu.memref_slice %arg9[%c3_i32_238, %c6_i32_239] : memref<8x8x!tpu.dma_semaphore, #tpu.memory_space<semaphore_mem>> -> memref<1x1x!tpu.dma_semaphore, #tpu.memory_space<semaphore_mem>>
      %320 = tpu.memref_squeeze %319 : memref<1x1x!tpu.dma_semaphore, #tpu.memory_space<semaphore_mem>> -> memref<!tpu.dma_semaphore, #tpu.memory_space<semaphore_mem>>
      tpu.enqueue_dma source(%316 : memref<128xf32, #tpu.memory_space<any>>) target(%318 : memref<128xf32, #tpu.memory_space<vmem>>) target_semaphore(%320 : memref<!tpu.dma_semaphore, #tpu.memory_space<semaphore_mem>>)
      %c56_i32_242 = arith.constant 56 : i32
      %321 = arith.addi %10, %c56_i32_242 : i32
      %c3_i32_243 = arith.constant 3 : i32
      %322 = arith.addi %321, %c3_i32_243 : i32
      %323 = arith.index_cast %322 : i32 to index
      %324 = memref.load %arg2[%323] : memref<64xi32, #tpu.memory_space<smem>>
      %c3_i32_244 = arith.constant 3 : i32
      %c7_i32_245 = arith.constant 7 : i32
      %c3_i32_246 = arith.constant 3 : i32
      %c7_i32_247 = arith.constant 7 : i32
      %c0_i32_248 = arith.constant 0 : i32
      %325 = tpu.memref_slice %arg3[%324, %c0_i32_248] : memref<50x128xf32, #tpu.memory_space<any>> -> memref<1x128xf32, #tpu.memory_space<any>>
      %326 = tpu.memref_squeeze %325 : memref<1x128xf32, #tpu.memory_space<any>> -> memref<128xf32, #tpu.memory_space<any>>
      %c0_i32_249 = arith.constant 0 : i32
      %327 = tpu.memref_slice %arg8[%c3_i32_244, %c7_i32_245, %c0_i32_249] : memref<8x8x128xf32, #tpu.memory_space<vmem>> -> memref<1x1x128xf32, #tpu.memory_space<vmem>>
      %328 = tpu.memref_squeeze %327 : memref<1x1x128xf32, #tpu.memory_space<vmem>> -> memref<128xf32, #tpu.memory_space<vmem>>
      %329 = tpu.memref_slice %arg9[%c3_i32_246, %c7_i32_247] : memref<8x8x!tpu.dma_semaphore, #tpu.memory_space<semaphore_mem>> -> memref<1x1x!tpu.dma_semaphore, #tpu.memory_space<semaphore_mem>>
      %330 = tpu.memref_squeeze %329 : memref<1x1x!tpu.dma_semaphore, #tpu.memory_space<semaphore_mem>> -> memref<!tpu.dma_semaphore, #tpu.memory_space<semaphore_mem>>
      tpu.enqueue_dma source(%326 : memref<128xf32, #tpu.memory_space<any>>) target(%328 : memref<128xf32, #tpu.memory_space<vmem>>) target_semaphore(%330 : memref<!tpu.dma_semaphore, #tpu.memory_space<semaphore_mem>>)
      %c0_i32_250 = arith.constant 0 : i32
      %331 = arith.addi %10, %c0_i32_250 : i32
      %c4_i32_251 = arith.constant 4 : i32
      %332 = arith.addi %331, %c4_i32_251 : i32
      %333 = arith.index_cast %332 : i32 to index
      %334 = memref.load %arg2[%333] : memref<64xi32, #tpu.memory_space<smem>>
      %c4_i32_252 = arith.constant 4 : i32
      %c0_i32_253 = arith.constant 0 : i32
      %c4_i32_254 = arith.constant 4 : i32
      %c0_i32_255 = arith.constant 0 : i32
      %c0_i32_256 = arith.constant 0 : i32
      %335 = tpu.memref_slice %arg3[%334, %c0_i32_256] : memref<50x128xf32, #tpu.memory_space<any>> -> memref<1x128xf32, #tpu.memory_space<any>>
      %336 = tpu.memref_squeeze %335 : memref<1x128xf32, #tpu.memory_space<any>> -> memref<128xf32, #tpu.memory_space<any>>
      %c0_i32_257 = arith.constant 0 : i32
      %337 = tpu.memref_slice %arg8[%c4_i32_252, %c0_i32_253, %c0_i32_257] : memref<8x8x128xf32, #tpu.memory_space<vmem>> -> memref<1x1x128xf32, #tpu.memory_space<vmem>>
      %338 = tpu.memref_squeeze %337 : memref<1x1x128xf32, #tpu.memory_space<vmem>> -> memref<128xf32, #tpu.memory_space<vmem>>
      %339 = tpu.memref_slice %arg9[%c4_i32_254, %c0_i32_255] : memref<8x8x!tpu.dma_semaphore, #tpu.memory_space<semaphore_mem>> -> memref<1x1x!tpu.dma_semaphore, #tpu.memory_space<semaphore_mem>>
      %340 = tpu.memref_squeeze %339 : memref<1x1x!tpu.dma_semaphore, #tpu.memory_space<semaphore_mem>> -> memref<!tpu.dma_semaphore, #tpu.memory_space<semaphore_mem>>
      tpu.enqueue_dma source(%336 : memref<128xf32, #tpu.memory_space<any>>) target(%338 : memref<128xf32, #tpu.memory_space<vmem>>) target_semaphore(%340 : memref<!tpu.dma_semaphore, #tpu.memory_space<semaphore_mem>>)
      %c8_i32_258 = arith.constant 8 : i32
      %341 = arith.addi %10, %c8_i32_258 : i32
      %c4_i32_259 = arith.constant 4 : i32
      %342 = arith.addi %341, %c4_i32_259 : i32
      %343 = arith.index_cast %342 : i32 to index
      %344 = memref.load %arg2[%343] : memref<64xi32, #tpu.memory_space<smem>>
      %c4_i32_260 = arith.constant 4 : i32
      %c1_i32_261 = arith.constant 1 : i32
      %c4_i32_262 = arith.constant 4 : i32
      %c1_i32_263 = arith.constant 1 : i32
      %c0_i32_264 = arith.constant 0 : i32
      %345 = tpu.memref_slice %arg3[%344, %c0_i32_264] : memref<50x128xf32, #tpu.memory_space<any>> -> memref<1x128xf32, #tpu.memory_space<any>>
      %346 = tpu.memref_squeeze %345 : memref<1x128xf32, #tpu.memory_space<any>> -> memref<128xf32, #tpu.memory_space<any>>
      %c0_i32_265 = arith.constant 0 : i32
      %347 = tpu.memref_slice %arg8[%c4_i32_260, %c1_i32_261, %c0_i32_265] : memref<8x8x128xf32, #tpu.memory_space<vmem>> -> memref<1x1x128xf32, #tpu.memory_space<vmem>>
      %348 = tpu.memref_squeeze %347 : memref<1x1x128xf32, #tpu.memory_space<vmem>> -> memref<128xf32, #tpu.memory_space<vmem>>
      %349 = tpu.memref_slice %arg9[%c4_i32_262, %c1_i32_263] : memref<8x8x!tpu.dma_semaphore, #tpu.memory_space<semaphore_mem>> -> memref<1x1x!tpu.dma_semaphore, #tpu.memory_space<semaphore_mem>>
      %350 = tpu.memref_squeeze %349 : memref<1x1x!tpu.dma_semaphore, #tpu.memory_space<semaphore_mem>> -> memref<!tpu.dma_semaphore, #tpu.memory_space<semaphore_mem>>
      tpu.enqueue_dma source(%346 : memref<128xf32, #tpu.memory_space<any>>) target(%348 : memref<128xf32, #tpu.memory_space<vmem>>) target_semaphore(%350 : memref<!tpu.dma_semaphore, #tpu.memory_space<semaphore_mem>>)
      %c16_i32_266 = arith.constant 16 : i32
      %351 = arith.addi %10, %c16_i32_266 : i32
      %c4_i32_267 = arith.constant 4 : i32
      %352 = arith.addi %351, %c4_i32_267 : i32
      %353 = arith.index_cast %352 : i32 to index
      %354 = memref.load %arg2[%353] : memref<64xi32, #tpu.memory_space<smem>>
      %c4_i32_268 = arith.constant 4 : i32
      %c2_i32_269 = arith.constant 2 : i32
      %c4_i32_270 = arith.constant 4 : i32
      %c2_i32_271 = arith.constant 2 : i32
      %c0_i32_272 = arith.constant 0 : i32
      %355 = tpu.memref_slice %arg3[%354, %c0_i32_272] : memref<50x128xf32, #tpu.memory_space<any>> -> memref<1x128xf32, #tpu.memory_space<any>>
      %356 = tpu.memref_squeeze %355 : memref<1x128xf32, #tpu.memory_space<any>> -> memref<128xf32, #tpu.memory_space<any>>
      %c0_i32_273 = arith.constant 0 : i32
      %357 = tpu.memref_slice %arg8[%c4_i32_268, %c2_i32_269, %c0_i32_273] : memref<8x8x128xf32, #tpu.memory_space<vmem>> -> memref<1x1x128xf32, #tpu.memory_space<vmem>>
      %358 = tpu.memref_squeeze %357 : memref<1x1x128xf32, #tpu.memory_space<vmem>> -> memref<128xf32, #tpu.memory_space<vmem>>
      %359 = tpu.memref_slice %arg9[%c4_i32_270, %c2_i32_271] : memref<8x8x!tpu.dma_semaphore, #tpu.memory_space<semaphore_mem>> -> memref<1x1x!tpu.dma_semaphore, #tpu.memory_space<semaphore_mem>>
      %360 = tpu.memref_squeeze %359 : memref<1x1x!tpu.dma_semaphore, #tpu.memory_space<semaphore_mem>> -> memref<!tpu.dma_semaphore, #tpu.memory_space<semaphore_mem>>
      tpu.enqueue_dma source(%356 : memref<128xf32, #tpu.memory_space<any>>) target(%358 : memref<128xf32, #tpu.memory_space<vmem>>) target_semaphore(%360 : memref<!tpu.dma_semaphore, #tpu.memory_space<semaphore_mem>>)
      %c24_i32_274 = arith.constant 24 : i32
      %361 = arith.addi %10, %c24_i32_274 : i32
      %c4_i32_275 = arith.constant 4 : i32
      %362 = arith.addi %361, %c4_i32_275 : i32
      %363 = arith.index_cast %362 : i32 to index
      %364 = memref.load %arg2[%363] : memref<64xi32, #tpu.memory_space<smem>>
      %c4_i32_276 = arith.constant 4 : i32
      %c3_i32_277 = arith.constant 3 : i32
      %c4_i32_278 = arith.constant 4 : i32
      %c3_i32_279 = arith.constant 3 : i32
      %c0_i32_280 = arith.constant 0 : i32
      %365 = tpu.memref_slice %arg3[%364, %c0_i32_280] : memref<50x128xf32, #tpu.memory_space<any>> -> memref<1x128xf32, #tpu.memory_space<any>>
      %366 = tpu.memref_squeeze %365 : memref<1x128xf32, #tpu.memory_space<any>> -> memref<128xf32, #tpu.memory_space<any>>
      %c0_i32_281 = arith.constant 0 : i32
      %367 = tpu.memref_slice %arg8[%c4_i32_276, %c3_i32_277, %c0_i32_281] : memref<8x8x128xf32, #tpu.memory_space<vmem>> -> memref<1x1x128xf32, #tpu.memory_space<vmem>>
      %368 = tpu.memref_squeeze %367 : memref<1x1x128xf32, #tpu.memory_space<vmem>> -> memref<128xf32, #tpu.memory_space<vmem>>
      %369 = tpu.memref_slice %arg9[%c4_i32_278, %c3_i32_279] : memref<8x8x!tpu.dma_semaphore, #tpu.memory_space<semaphore_mem>> -> memref<1x1x!tpu.dma_semaphore, #tpu.memory_space<semaphore_mem>>
      %370 = tpu.memref_squeeze %369 : memref<1x1x!tpu.dma_semaphore, #tpu.memory_space<semaphore_mem>> -> memref<!tpu.dma_semaphore, #tpu.memory_space<semaphore_mem>>
      tpu.enqueue_dma source(%366 : memref<128xf32, #tpu.memory_space<any>>) target(%368 : memref<128xf32, #tpu.memory_space<vmem>>) target_semaphore(%370 : memref<!tpu.dma_semaphore, #tpu.memory_space<semaphore_mem>>)
      %c32_i32_282 = arith.constant 32 : i32
      %371 = arith.addi %10, %c32_i32_282 : i32
      %c4_i32_283 = arith.constant 4 : i32
      %372 = arith.addi %371, %c4_i32_283 : i32
      %373 = arith.index_cast %372 : i32 to index
      %374 = memref.load %arg2[%373] : memref<64xi32, #tpu.memory_space<smem>>
      %c4_i32_284 = arith.constant 4 : i32
      %c4_i32_285 = arith.constant 4 : i32
      %c4_i32_286 = arith.constant 4 : i32
      %c4_i32_287 = arith.constant 4 : i32
      %c0_i32_288 = arith.constant 0 : i32
      %375 = tpu.memref_slice %arg3[%374, %c0_i32_288] : memref<50x128xf32, #tpu.memory_space<any>> -> memref<1x128xf32, #tpu.memory_space<any>>
      %376 = tpu.memref_squeeze %375 : memref<1x128xf32, #tpu.memory_space<any>> -> memref<128xf32, #tpu.memory_space<any>>
      %c0_i32_289 = arith.constant 0 : i32
      %377 = tpu.memref_slice %arg8[%c4_i32_284, %c4_i32_285, %c0_i32_289] : memref<8x8x128xf32, #tpu.memory_space<vmem>> -> memref<1x1x128xf32, #tpu.memory_space<vmem>>
      %378 = tpu.memref_squeeze %377 : memref<1x1x128xf32, #tpu.memory_space<vmem>> -> memref<128xf32, #tpu.memory_space<vmem>>
      %379 = tpu.memref_slice %arg9[%c4_i32_286, %c4_i32_287] : memref<8x8x!tpu.dma_semaphore, #tpu.memory_space<semaphore_mem>> -> memref<1x1x!tpu.dma_semaphore, #tpu.memory_space<semaphore_mem>>
      %380 = tpu.memref_squeeze %379 : memref<1x1x!tpu.dma_semaphore, #tpu.memory_space<semaphore_mem>> -> memref<!tpu.dma_semaphore, #tpu.memory_space<semaphore_mem>>
      tpu.enqueue_dma source(%376 : memref<128xf32, #tpu.memory_space<any>>) target(%378 : memref<128xf32, #tpu.memory_space<vmem>>) target_semaphore(%380 : memref<!tpu.dma_semaphore, #tpu.memory_space<semaphore_mem>>)
      %c40_i32_290 = arith.constant 40 : i32
      %381 = arith.addi %10, %c40_i32_290 : i32
      %c4_i32_291 = arith.constant 4 : i32
      %382 = arith.addi %381, %c4_i32_291 : i32
      %383 = arith.index_cast %382 : i32 to index
      %384 = memref.load %arg2[%383] : memref<64xi32, #tpu.memory_space<smem>>
      %c4_i32_292 = arith.constant 4 : i32
      %c5_i32_293 = arith.constant 5 : i32
      %c4_i32_294 = arith.constant 4 : i32
      %c5_i32_295 = arith.constant 5 : i32
      %c0_i32_296 = arith.constant 0 : i32
      %385 = tpu.memref_slice %arg3[%384, %c0_i32_296] : memref<50x128xf32, #tpu.memory_space<any>> -> memref<1x128xf32, #tpu.memory_space<any>>
      %386 = tpu.memref_squeeze %385 : memref<1x128xf32, #tpu.memory_space<any>> -> memref<128xf32, #tpu.memory_space<any>>
      %c0_i32_297 = arith.constant 0 : i32
      %387 = tpu.memref_slice %arg8[%c4_i32_292, %c5_i32_293, %c0_i32_297] : memref<8x8x128xf32, #tpu.memory_space<vmem>> -> memref<1x1x128xf32, #tpu.memory_space<vmem>>
      %388 = tpu.memref_squeeze %387 : memref<1x1x128xf32, #tpu.memory_space<vmem>> -> memref<128xf32, #tpu.memory_space<vmem>>
      %389 = tpu.memref_slice %arg9[%c4_i32_294, %c5_i32_295] : memref<8x8x!tpu.dma_semaphore, #tpu.memory_space<semaphore_mem>> -> memref<1x1x!tpu.dma_semaphore, #tpu.memory_space<semaphore_mem>>
      %390 = tpu.memref_squeeze %389 : memref<1x1x!tpu.dma_semaphore, #tpu.memory_space<semaphore_mem>> -> memref<!tpu.dma_semaphore, #tpu.memory_space<semaphore_mem>>
      tpu.enqueue_dma source(%386 : memref<128xf32, #tpu.memory_space<any>>) target(%388 : memref<128xf32, #tpu.memory_space<vmem>>) target_semaphore(%390 : memref<!tpu.dma_semaphore, #tpu.memory_space<semaphore_mem>>)
      %c48_i32_298 = arith.constant 48 : i32
      %391 = arith.addi %10, %c48_i32_298 : i32
      %c4_i32_299 = arith.constant 4 : i32
      %392 = arith.addi %391, %c4_i32_299 : i32
      %393 = arith.index_cast %392 : i32 to index
      %394 = memref.load %arg2[%393] : memref<64xi32, #tpu.memory_space<smem>>
      %c4_i32_300 = arith.constant 4 : i32
      %c6_i32_301 = arith.constant 6 : i32
      %c4_i32_302 = arith.constant 4 : i32
      %c6_i32_303 = arith.constant 6 : i32
      %c0_i32_304 = arith.constant 0 : i32
      %395 = tpu.memref_slice %arg3[%394, %c0_i32_304] : memref<50x128xf32, #tpu.memory_space<any>> -> memref<1x128xf32, #tpu.memory_space<any>>
      %396 = tpu.memref_squeeze %395 : memref<1x128xf32, #tpu.memory_space<any>> -> memref<128xf32, #tpu.memory_space<any>>
      %c0_i32_305 = arith.constant 0 : i32
      %397 = tpu.memref_slice %arg8[%c4_i32_300, %c6_i32_301, %c0_i32_305] : memref<8x8x128xf32, #tpu.memory_space<vmem>> -> memref<1x1x128xf32, #tpu.memory_space<vmem>>
      %398 = tpu.memref_squeeze %397 : memref<1x1x128xf32, #tpu.memory_space<vmem>> -> memref<128xf32, #tpu.memory_space<vmem>>
      %399 = tpu.memref_slice %arg9[%c4_i32_302, %c6_i32_303] : memref<8x8x!tpu.dma_semaphore, #tpu.memory_space<semaphore_mem>> -> memref<1x1x!tpu.dma_semaphore, #tpu.memory_space<semaphore_mem>>
      %400 = tpu.memref_squeeze %399 : memref<1x1x!tpu.dma_semaphore, #tpu.memory_space<semaphore_mem>> -> memref<!tpu.dma_semaphore, #tpu.memory_space<semaphore_mem>>
      tpu.enqueue_dma source(%396 : memref<128xf32, #tpu.memory_space<any>>) target(%398 : memref<128xf32, #tpu.memory_space<vmem>>) target_semaphore(%400 : memref<!tpu.dma_semaphore, #tpu.memory_space<semaphore_mem>>)
      %c56_i32_306 = arith.constant 56 : i32
      %401 = arith.addi %10, %c56_i32_306 : i32
      %c4_i32_307 = arith.constant 4 : i32
      %402 = arith.addi %401, %c4_i32_307 : i32
      %403 = arith.index_cast %402 : i32 to index
      %404 = memref.load %arg2[%403] : memref<64xi32, #tpu.memory_space<smem>>
      %c4_i32_308 = arith.constant 4 : i32
      %c7_i32_309 = arith.constant 7 : i32
      %c4_i32_310 = arith.constant 4 : i32
      %c7_i32_311 = arith.constant 7 : i32
      %c0_i32_312 = arith.constant 0 : i32
      %405 = tpu.memref_slice %arg3[%404, %c0_i32_312] : memref<50x128xf32, #tpu.memory_space<any>> -> memref<1x128xf32, #tpu.memory_space<any>>
      %406 = tpu.memref_squeeze %405 : memref<1x128xf32, #tpu.memory_space<any>> -> memref<128xf32, #tpu.memory_space<any>>
      %c0_i32_313 = arith.constant 0 : i32
      %407 = tpu.memref_slice %arg8[%c4_i32_308, %c7_i32_309, %c0_i32_313] : memref<8x8x128xf32, #tpu.memory_space<vmem>> -> memref<1x1x128xf32, #tpu.memory_space<vmem>>
      %408 = tpu.memref_squeeze %407 : memref<1x1x128xf32, #tpu.memory_space<vmem>> -> memref<128xf32, #tpu.memory_space<vmem>>
      %409 = tpu.memref_slice %arg9[%c4_i32_310, %c7_i32_311] : memref<8x8x!tpu.dma_semaphore, #tpu.memory_space<semaphore_mem>> -> memref<1x1x!tpu.dma_semaphore, #tpu.memory_space<semaphore_mem>>
      %410 = tpu.memref_squeeze %409 : memref<1x1x!tpu.dma_semaphore, #tpu.memory_space<semaphore_mem>> -> memref<!tpu.dma_semaphore, #tpu.memory_space<semaphore_mem>>
      tpu.enqueue_dma source(%406 : memref<128xf32, #tpu.memory_space<any>>) target(%408 : memref<128xf32, #tpu.memory_space<vmem>>) target_semaphore(%410 : memref<!tpu.dma_semaphore, #tpu.memory_space<semaphore_mem>>)
      %c0_i32_314 = arith.constant 0 : i32
      %411 = arith.addi %10, %c0_i32_314 : i32
      %c5_i32_315 = arith.constant 5 : i32
      %412 = arith.addi %411, %c5_i32_315 : i32
      %413 = arith.index_cast %412 : i32 to index
      %414 = memref.load %arg2[%413] : memref<64xi32, #tpu.memory_space<smem>>
      %c5_i32_316 = arith.constant 5 : i32
      %c0_i32_317 = arith.constant 0 : i32
      %c5_i32_318 = arith.constant 5 : i32
      %c0_i32_319 = arith.constant 0 : i32
      %c0_i32_320 = arith.constant 0 : i32
      %415 = tpu.memref_slice %arg3[%414, %c0_i32_320] : memref<50x128xf32, #tpu.memory_space<any>> -> memref<1x128xf32, #tpu.memory_space<any>>
      %416 = tpu.memref_squeeze %415 : memref<1x128xf32, #tpu.memory_space<any>> -> memref<128xf32, #tpu.memory_space<any>>
      %c0_i32_321 = arith.constant 0 : i32
      %417 = tpu.memref_slice %arg8[%c5_i32_316, %c0_i32_317, %c0_i32_321] : memref<8x8x128xf32, #tpu.memory_space<vmem>> -> memref<1x1x128xf32, #tpu.memory_space<vmem>>
      %418 = tpu.memref_squeeze %417 : memref<1x1x128xf32, #tpu.memory_space<vmem>> -> memref<128xf32, #tpu.memory_space<vmem>>
      %419 = tpu.memref_slice %arg9[%c5_i32_318, %c0_i32_319] : memref<8x8x!tpu.dma_semaphore, #tpu.memory_space<semaphore_mem>> -> memref<1x1x!tpu.dma_semaphore, #tpu.memory_space<semaphore_mem>>
      %420 = tpu.memref_squeeze %419 : memref<1x1x!tpu.dma_semaphore, #tpu.memory_space<semaphore_mem>> -> memref<!tpu.dma_semaphore, #tpu.memory_space<semaphore_mem>>
      tpu.enqueue_dma source(%416 : memref<128xf32, #tpu.memory_space<any>>) target(%418 : memref<128xf32, #tpu.memory_space<vmem>>) target_semaphore(%420 : memref<!tpu.dma_semaphore, #tpu.memory_space<semaphore_mem>>)
      %c8_i32_322 = arith.constant 8 : i32
      %421 = arith.addi %10, %c8_i32_322 : i32
      %c5_i32_323 = arith.constant 5 : i32
      %422 = arith.addi %421, %c5_i32_323 : i32
      %423 = arith.index_cast %422 : i32 to index
      %424 = memref.load %arg2[%423] : memref<64xi32, #tpu.memory_space<smem>>
      %c5_i32_324 = arith.constant 5 : i32
      %c1_i32_325 = arith.constant 1 : i32
      %c5_i32_326 = arith.constant 5 : i32
      %c1_i32_327 = arith.constant 1 : i32
      %c0_i32_328 = arith.constant 0 : i32
      %425 = tpu.memref_slice %arg3[%424, %c0_i32_328] : memref<50x128xf32, #tpu.memory_space<any>> -> memref<1x128xf32, #tpu.memory_space<any>>
      %426 = tpu.memref_squeeze %425 : memref<1x128xf32, #tpu.memory_space<any>> -> memref<128xf32, #tpu.memory_space<any>>
      %c0_i32_329 = arith.constant 0 : i32
      %427 = tpu.memref_slice %arg8[%c5_i32_324, %c1_i32_325, %c0_i32_329] : memref<8x8x128xf32, #tpu.memory_space<vmem>> -> memref<1x1x128xf32, #tpu.memory_space<vmem>>
      %428 = tpu.memref_squeeze %427 : memref<1x1x128xf32, #tpu.memory_space<vmem>> -> memref<128xf32, #tpu.memory_space<vmem>>
      %429 = tpu.memref_slice %arg9[%c5_i32_326, %c1_i32_327] : memref<8x8x!tpu.dma_semaphore, #tpu.memory_space<semaphore_mem>> -> memref<1x1x!tpu.dma_semaphore, #tpu.memory_space<semaphore_mem>>
      %430 = tpu.memref_squeeze %429 : memref<1x1x!tpu.dma_semaphore, #tpu.memory_space<semaphore_mem>> -> memref<!tpu.dma_semaphore, #tpu.memory_space<semaphore_mem>>
      tpu.enqueue_dma source(%426 : memref<128xf32, #tpu.memory_space<any>>) target(%428 : memref<128xf32, #tpu.memory_space<vmem>>) target_semaphore(%430 : memref<!tpu.dma_semaphore, #tpu.memory_space<semaphore_mem>>)
      %c16_i32_330 = arith.constant 16 : i32
      %431 = arith.addi %10, %c16_i32_330 : i32
      %c5_i32_331 = arith.constant 5 : i32
      %432 = arith.addi %431, %c5_i32_331 : i32
      %433 = arith.index_cast %432 : i32 to index
      %434 = memref.load %arg2[%433] : memref<64xi32, #tpu.memory_space<smem>>
      %c5_i32_332 = arith.constant 5 : i32
      %c2_i32_333 = arith.constant 2 : i32
      %c5_i32_334 = arith.constant 5 : i32
      %c2_i32_335 = arith.constant 2 : i32
      %c0_i32_336 = arith.constant 0 : i32
      %435 = tpu.memref_slice %arg3[%434, %c0_i32_336] : memref<50x128xf32, #tpu.memory_space<any>> -> memref<1x128xf32, #tpu.memory_space<any>>
      %436 = tpu.memref_squeeze %435 : memref<1x128xf32, #tpu.memory_space<any>> -> memref<128xf32, #tpu.memory_space<any>>
      %c0_i32_337 = arith.constant 0 : i32
      %437 = tpu.memref_slice %arg8[%c5_i32_332, %c2_i32_333, %c0_i32_337] : memref<8x8x128xf32, #tpu.memory_space<vmem>> -> memref<1x1x128xf32, #tpu.memory_space<vmem>>
      %438 = tpu.memref_squeeze %437 : memref<1x1x128xf32, #tpu.memory_space<vmem>> -> memref<128xf32, #tpu.memory_space<vmem>>
      %439 = tpu.memref_slice %arg9[%c5_i32_334, %c2_i32_335] : memref<8x8x!tpu.dma_semaphore, #tpu.memory_space<semaphore_mem>> -> memref<1x1x!tpu.dma_semaphore, #tpu.memory_space<semaphore_mem>>
      %440 = tpu.memref_squeeze %439 : memref<1x1x!tpu.dma_semaphore, #tpu.memory_space<semaphore_mem>> -> memref<!tpu.dma_semaphore, #tpu.memory_space<semaphore_mem>>
      tpu.enqueue_dma source(%436 : memref<128xf32, #tpu.memory_space<any>>) target(%438 : memref<128xf32, #tpu.memory_space<vmem>>) target_semaphore(%440 : memref<!tpu.dma_semaphore, #tpu.memory_space<semaphore_mem>>)
      %c24_i32_338 = arith.constant 24 : i32
      %441 = arith.addi %10, %c24_i32_338 : i32
      %c5_i32_339 = arith.constant 5 : i32
      %442 = arith.addi %441, %c5_i32_339 : i32
      %443 = arith.index_cast %442 : i32 to index
      %444 = memref.load %arg2[%443] : memref<64xi32, #tpu.memory_space<smem>>
      %c5_i32_340 = arith.constant 5 : i32
      %c3_i32_341 = arith.constant 3 : i32
      %c5_i32_342 = arith.constant 5 : i32
      %c3_i32_343 = arith.constant 3 : i32
      %c0_i32_344 = arith.constant 0 : i32
      %445 = tpu.memref_slice %arg3[%444, %c0_i32_344] : memref<50x128xf32, #tpu.memory_space<any>> -> memref<1x128xf32, #tpu.memory_space<any>>
      %446 = tpu.memref_squeeze %445 : memref<1x128xf32, #tpu.memory_space<any>> -> memref<128xf32, #tpu.memory_space<any>>
      %c0_i32_345 = arith.constant 0 : i32
      %447 = tpu.memref_slice %arg8[%c5_i32_340, %c3_i32_341, %c0_i32_345] : memref<8x8x128xf32, #tpu.memory_space<vmem>> -> memref<1x1x128xf32, #tpu.memory_space<vmem>>
      %448 = tpu.memref_squeeze %447 : memref<1x1x128xf32, #tpu.memory_space<vmem>> -> memref<128xf32, #tpu.memory_space<vmem>>
      %449 = tpu.memref_slice %arg9[%c5_i32_342, %c3_i32_343] : memref<8x8x!tpu.dma_semaphore, #tpu.memory_space<semaphore_mem>> -> memref<1x1x!tpu.dma_semaphore, #tpu.memory_space<semaphore_mem>>
      %450 = tpu.memref_squeeze %449 : memref<1x1x!tpu.dma_semaphore, #tpu.memory_space<semaphore_mem>> -> memref<!tpu.dma_semaphore, #tpu.memory_space<semaphore_mem>>
      tpu.enqueue_dma source(%446 : memref<128xf32, #tpu.memory_space<any>>) target(%448 : memref<128xf32, #tpu.memory_space<vmem>>) target_semaphore(%450 : memref<!tpu.dma_semaphore, #tpu.memory_space<semaphore_mem>>)
      %c32_i32_346 = arith.constant 32 : i32
      %451 = arith.addi %10, %c32_i32_346 : i32
      %c5_i32_347 = arith.constant 5 : i32
      %452 = arith.addi %451, %c5_i32_347 : i32
      %453 = arith.index_cast %452 : i32 to index
      %454 = memref.load %arg2[%453] : memref<64xi32, #tpu.memory_space<smem>>
      %c5_i32_348 = arith.constant 5 : i32
      %c4_i32_349 = arith.constant 4 : i32
      %c5_i32_350 = arith.constant 5 : i32
      %c4_i32_351 = arith.constant 4 : i32
      %c0_i32_352 = arith.constant 0 : i32
      %455 = tpu.memref_slice %arg3[%454, %c0_i32_352] : memref<50x128xf32, #tpu.memory_space<any>> -> memref<1x128xf32, #tpu.memory_space<any>>
      %456 = tpu.memref_squeeze %455 : memref<1x128xf32, #tpu.memory_space<any>> -> memref<128xf32, #tpu.memory_space<any>>
      %c0_i32_353 = arith.constant 0 : i32
      %457 = tpu.memref_slice %arg8[%c5_i32_348, %c4_i32_349, %c0_i32_353] : memref<8x8x128xf32, #tpu.memory_space<vmem>> -> memref<1x1x128xf32, #tpu.memory_space<vmem>>
      %458 = tpu.memref_squeeze %457 : memref<1x1x128xf32, #tpu.memory_space<vmem>> -> memref<128xf32, #tpu.memory_space<vmem>>
      %459 = tpu.memref_slice %arg9[%c5_i32_350, %c4_i32_351] : memref<8x8x!tpu.dma_semaphore, #tpu.memory_space<semaphore_mem>> -> memref<1x1x!tpu.dma_semaphore, #tpu.memory_space<semaphore_mem>>
      %460 = tpu.memref_squeeze %459 : memref<1x1x!tpu.dma_semaphore, #tpu.memory_space<semaphore_mem>> -> memref<!tpu.dma_semaphore, #tpu.memory_space<semaphore_mem>>
      tpu.enqueue_dma source(%456 : memref<128xf32, #tpu.memory_space<any>>) target(%458 : memref<128xf32, #tpu.memory_space<vmem>>) target_semaphore(%460 : memref<!tpu.dma_semaphore, #tpu.memory_space<semaphore_mem>>)
      %c40_i32_354 = arith.constant 40 : i32
      %461 = arith.addi %10, %c40_i32_354 : i32
      %c5_i32_355 = arith.constant 5 : i32
      %462 = arith.addi %461, %c5_i32_355 : i32
      %463 = arith.index_cast %462 : i32 to index
      %464 = memref.load %arg2[%463] : memref<64xi32, #tpu.memory_space<smem>>
      %c5_i32_356 = arith.constant 5 : i32
      %c5_i32_357 = arith.constant 5 : i32
      %c5_i32_358 = arith.constant 5 : i32
      %c5_i32_359 = arith.constant 5 : i32
      %c0_i32_360 = arith.constant 0 : i32
      %465 = tpu.memref_slice %arg3[%464, %c0_i32_360] : memref<50x128xf32, #tpu.memory_space<any>> -> memref<1x128xf32, #tpu.memory_space<any>>
      %466 = tpu.memref_squeeze %465 : memref<1x128xf32, #tpu.memory_space<any>> -> memref<128xf32, #tpu.memory_space<any>>
      %c0_i32_361 = arith.constant 0 : i32
      %467 = tpu.memref_slice %arg8[%c5_i32_356, %c5_i32_357, %c0_i32_361] : memref<8x8x128xf32, #tpu.memory_space<vmem>> -> memref<1x1x128xf32, #tpu.memory_space<vmem>>
      %468 = tpu.memref_squeeze %467 : memref<1x1x128xf32, #tpu.memory_space<vmem>> -> memref<128xf32, #tpu.memory_space<vmem>>
      %469 = tpu.memref_slice %arg9[%c5_i32_358, %c5_i32_359] : memref<8x8x!tpu.dma_semaphore, #tpu.memory_space<semaphore_mem>> -> memref<1x1x!tpu.dma_semaphore, #tpu.memory_space<semaphore_mem>>
      %470 = tpu.memref_squeeze %469 : memref<1x1x!tpu.dma_semaphore, #tpu.memory_space<semaphore_mem>> -> memref<!tpu.dma_semaphore, #tpu.memory_space<semaphore_mem>>
      tpu.enqueue_dma source(%466 : memref<128xf32, #tpu.memory_space<any>>) target(%468 : memref<128xf32, #tpu.memory_space<vmem>>) target_semaphore(%470 : memref<!tpu.dma_semaphore, #tpu.memory_space<semaphore_mem>>)
      %c48_i32_362 = arith.constant 48 : i32
      %471 = arith.addi %10, %c48_i32_362 : i32
      %c5_i32_363 = arith.constant 5 : i32
      %472 = arith.addi %471, %c5_i32_363 : i32
      %473 = arith.index_cast %472 : i32 to index
      %474 = memref.load %arg2[%473] : memref<64xi32, #tpu.memory_space<smem>>
      %c5_i32_364 = arith.constant 5 : i32
      %c6_i32_365 = arith.constant 6 : i32
      %c5_i32_366 = arith.constant 5 : i32
      %c6_i32_367 = arith.constant 6 : i32
      %c0_i32_368 = arith.constant 0 : i32
      %475 = tpu.memref_slice %arg3[%474, %c0_i32_368] : memref<50x128xf32, #tpu.memory_space<any>> -> memref<1x128xf32, #tpu.memory_space<any>>
      %476 = tpu.memref_squeeze %475 : memref<1x128xf32, #tpu.memory_space<any>> -> memref<128xf32, #tpu.memory_space<any>>
      %c0_i32_369 = arith.constant 0 : i32
      %477 = tpu.memref_slice %arg8[%c5_i32_364, %c6_i32_365, %c0_i32_369] : memref<8x8x128xf32, #tpu.memory_space<vmem>> -> memref<1x1x128xf32, #tpu.memory_space<vmem>>
      %478 = tpu.memref_squeeze %477 : memref<1x1x128xf32, #tpu.memory_space<vmem>> -> memref<128xf32, #tpu.memory_space<vmem>>
      %479 = tpu.memref_slice %arg9[%c5_i32_366, %c6_i32_367] : memref<8x8x!tpu.dma_semaphore, #tpu.memory_space<semaphore_mem>> -> memref<1x1x!tpu.dma_semaphore, #tpu.memory_space<semaphore_mem>>
      %480 = tpu.memref_squeeze %479 : memref<1x1x!tpu.dma_semaphore, #tpu.memory_space<semaphore_mem>> -> memref<!tpu.dma_semaphore, #tpu.memory_space<semaphore_mem>>
      tpu.enqueue_dma source(%476 : memref<128xf32, #tpu.memory_space<any>>) target(%478 : memref<128xf32, #tpu.memory_space<vmem>>) target_semaphore(%480 : memref<!tpu.dma_semaphore, #tpu.memory_space<semaphore_mem>>)
      %c56_i32_370 = arith.constant 56 : i32
      %481 = arith.addi %10, %c56_i32_370 : i32
      %c5_i32_371 = arith.constant 5 : i32
      %482 = arith.addi %481, %c5_i32_371 : i32
      %483 = arith.index_cast %482 : i32 to index
      %484 = memref.load %arg2[%483] : memref<64xi32, #tpu.memory_space<smem>>
      %c5_i32_372 = arith.constant 5 : i32
      %c7_i32_373 = arith.constant 7 : i32
      %c5_i32_374 = arith.constant 5 : i32
      %c7_i32_375 = arith.constant 7 : i32
      %c0_i32_376 = arith.constant 0 : i32
      %485 = tpu.memref_slice %arg3[%484, %c0_i32_376] : memref<50x128xf32, #tpu.memory_space<any>> -> memref<1x128xf32, #tpu.memory_space<any>>
      %486 = tpu.memref_squeeze %485 : memref<1x128xf32, #tpu.memory_space<any>> -> memref<128xf32, #tpu.memory_space<any>>
      %c0_i32_377 = arith.constant 0 : i32
      %487 = tpu.memref_slice %arg8[%c5_i32_372, %c7_i32_373, %c0_i32_377] : memref<8x8x128xf32, #tpu.memory_space<vmem>> -> memref<1x1x128xf32, #tpu.memory_space<vmem>>
      %488 = tpu.memref_squeeze %487 : memref<1x1x128xf32, #tpu.memory_space<vmem>> -> memref<128xf32, #tpu.memory_space<vmem>>
      %489 = tpu.memref_slice %arg9[%c5_i32_374, %c7_i32_375] : memref<8x8x!tpu.dma_semaphore, #tpu.memory_space<semaphore_mem>> -> memref<1x1x!tpu.dma_semaphore, #tpu.memory_space<semaphore_mem>>
      %490 = tpu.memref_squeeze %489 : memref<1x1x!tpu.dma_semaphore, #tpu.memory_space<semaphore_mem>> -> memref<!tpu.dma_semaphore, #tpu.memory_space<semaphore_mem>>
      tpu.enqueue_dma source(%486 : memref<128xf32, #tpu.memory_space<any>>) target(%488 : memref<128xf32, #tpu.memory_space<vmem>>) target_semaphore(%490 : memref<!tpu.dma_semaphore, #tpu.memory_space<semaphore_mem>>)
      %c0_i32_378 = arith.constant 0 : i32
      %491 = arith.addi %10, %c0_i32_378 : i32
      %c6_i32_379 = arith.constant 6 : i32
      %492 = arith.addi %491, %c6_i32_379 : i32
      %493 = arith.index_cast %492 : i32 to index
      %494 = memref.load %arg2[%493] : memref<64xi32, #tpu.memory_space<smem>>
      %c6_i32_380 = arith.constant 6 : i32
      %c0_i32_381 = arith.constant 0 : i32
      %c6_i32_382 = arith.constant 6 : i32
      %c0_i32_383 = arith.constant 0 : i32
      %c0_i32_384 = arith.constant 0 : i32
      %495 = tpu.memref_slice %arg3[%494, %c0_i32_384] : memref<50x128xf32, #tpu.memory_space<any>> -> memref<1x128xf32, #tpu.memory_space<any>>
      %496 = tpu.memref_squeeze %495 : memref<1x128xf32, #tpu.memory_space<any>> -> memref<128xf32, #tpu.memory_space<any>>
      %c0_i32_385 = arith.constant 0 : i32
      %497 = tpu.memref_slice %arg8[%c6_i32_380, %c0_i32_381, %c0_i32_385] : memref<8x8x128xf32, #tpu.memory_space<vmem>> -> memref<1x1x128xf32, #tpu.memory_space<vmem>>
      %498 = tpu.memref_squeeze %497 : memref<1x1x128xf32, #tpu.memory_space<vmem>> -> memref<128xf32, #tpu.memory_space<vmem>>
      %499 = tpu.memref_slice %arg9[%c6_i32_382, %c0_i32_383] : memref<8x8x!tpu.dma_semaphore, #tpu.memory_space<semaphore_mem>> -> memref<1x1x!tpu.dma_semaphore, #tpu.memory_space<semaphore_mem>>
      %500 = tpu.memref_squeeze %499 : memref<1x1x!tpu.dma_semaphore, #tpu.memory_space<semaphore_mem>> -> memref<!tpu.dma_semaphore, #tpu.memory_space<semaphore_mem>>
      tpu.enqueue_dma source(%496 : memref<128xf32, #tpu.memory_space<any>>) target(%498 : memref<128xf32, #tpu.memory_space<vmem>>) target_semaphore(%500 : memref<!tpu.dma_semaphore, #tpu.memory_space<semaphore_mem>>)
      %c8_i32_386 = arith.constant 8 : i32
      %501 = arith.addi %10, %c8_i32_386 : i32
      %c6_i32_387 = arith.constant 6 : i32
      %502 = arith.addi %501, %c6_i32_387 : i32
      %503 = arith.index_cast %502 : i32 to index
      %504 = memref.load %arg2[%503] : memref<64xi32, #tpu.memory_space<smem>>
      %c6_i32_388 = arith.constant 6 : i32
      %c1_i32_389 = arith.constant 1 : i32
      %c6_i32_390 = arith.constant 6 : i32
      %c1_i32_391 = arith.constant 1 : i32
      %c0_i32_392 = arith.constant 0 : i32
      %505 = tpu.memref_slice %arg3[%504, %c0_i32_392] : memref<50x128xf32, #tpu.memory_space<any>> -> memref<1x128xf32, #tpu.memory_space<any>>
      %506 = tpu.memref_squeeze %505 : memref<1x128xf32, #tpu.memory_space<any>> -> memref<128xf32, #tpu.memory_space<any>>
      %c0_i32_393 = arith.constant 0 : i32
      %507 = tpu.memref_slice %arg8[%c6_i32_388, %c1_i32_389, %c0_i32_393] : memref<8x8x128xf32, #tpu.memory_space<vmem>> -> memref<1x1x128xf32, #tpu.memory_space<vmem>>
      %508 = tpu.memref_squeeze %507 : memref<1x1x128xf32, #tpu.memory_space<vmem>> -> memref<128xf32, #tpu.memory_space<vmem>>
      %509 = tpu.memref_slice %arg9[%c6_i32_390, %c1_i32_391] : memref<8x8x!tpu.dma_semaphore, #tpu.memory_space<semaphore_mem>> -> memref<1x1x!tpu.dma_semaphore, #tpu.memory_space<semaphore_mem>>
      %510 = tpu.memref_squeeze %509 : memref<1x1x!tpu.dma_semaphore, #tpu.memory_space<semaphore_mem>> -> memref<!tpu.dma_semaphore, #tpu.memory_space<semaphore_mem>>
      tpu.enqueue_dma source(%506 : memref<128xf32, #tpu.memory_space<any>>) target(%508 : memref<128xf32, #tpu.memory_space<vmem>>) target_semaphore(%510 : memref<!tpu.dma_semaphore, #tpu.memory_space<semaphore_mem>>)
      %c16_i32_394 = arith.constant 16 : i32
      %511 = arith.addi %10, %c16_i32_394 : i32
      %c6_i32_395 = arith.constant 6 : i32
      %512 = arith.addi %511, %c6_i32_395 : i32
      %513 = arith.index_cast %512 : i32 to index
      %514 = memref.load %arg2[%513] : memref<64xi32, #tpu.memory_space<smem>>
      %c6_i32_396 = arith.constant 6 : i32
      %c2_i32_397 = arith.constant 2 : i32
      %c6_i32_398 = arith.constant 6 : i32
      %c2_i32_399 = arith.constant 2 : i32
      %c0_i32_400 = arith.constant 0 : i32
      %515 = tpu.memref_slice %arg3[%514, %c0_i32_400] : memref<50x128xf32, #tpu.memory_space<any>> -> memref<1x128xf32, #tpu.memory_space<any>>
      %516 = tpu.memref_squeeze %515 : memref<1x128xf32, #tpu.memory_space<any>> -> memref<128xf32, #tpu.memory_space<any>>
      %c0_i32_401 = arith.constant 0 : i32
      %517 = tpu.memref_slice %arg8[%c6_i32_396, %c2_i32_397, %c0_i32_401] : memref<8x8x128xf32, #tpu.memory_space<vmem>> -> memref<1x1x128xf32, #tpu.memory_space<vmem>>
      %518 = tpu.memref_squeeze %517 : memref<1x1x128xf32, #tpu.memory_space<vmem>> -> memref<128xf32, #tpu.memory_space<vmem>>
      %519 = tpu.memref_slice %arg9[%c6_i32_398, %c2_i32_399] : memref<8x8x!tpu.dma_semaphore, #tpu.memory_space<semaphore_mem>> -> memref<1x1x!tpu.dma_semaphore, #tpu.memory_space<semaphore_mem>>
      %520 = tpu.memref_squeeze %519 : memref<1x1x!tpu.dma_semaphore, #tpu.memory_space<semaphore_mem>> -> memref<!tpu.dma_semaphore, #tpu.memory_space<semaphore_mem>>
      tpu.enqueue_dma source(%516 : memref<128xf32, #tpu.memory_space<any>>) target(%518 : memref<128xf32, #tpu.memory_space<vmem>>) target_semaphore(%520 : memref<!tpu.dma_semaphore, #tpu.memory_space<semaphore_mem>>)
      %c24_i32_402 = arith.constant 24 : i32
      %521 = arith.addi %10, %c24_i32_402 : i32
      %c6_i32_403 = arith.constant 6 : i32
      %522 = arith.addi %521, %c6_i32_403 : i32
      %523 = arith.index_cast %522 : i32 to index
      %524 = memref.load %arg2[%523] : memref<64xi32, #tpu.memory_space<smem>>
      %c6_i32_404 = arith.constant 6 : i32
      %c3_i32_405 = arith.constant 3 : i32
      %c6_i32_406 = arith.constant 6 : i32
      %c3_i32_407 = arith.constant 3 : i32
      %c0_i32_408 = arith.constant 0 : i32
      %525 = tpu.memref_slice %arg3[%524, %c0_i32_408] : memref<50x128xf32, #tpu.memory_space<any>> -> memref<1x128xf32, #tpu.memory_space<any>>
      %526 = tpu.memref_squeeze %525 : memref<1x128xf32, #tpu.memory_space<any>> -> memref<128xf32, #tpu.memory_space<any>>
      %c0_i32_409 = arith.constant 0 : i32
      %527 = tpu.memref_slice %arg8[%c6_i32_404, %c3_i32_405, %c0_i32_409] : memref<8x8x128xf32, #tpu.memory_space<vmem>> -> memref<1x1x128xf32, #tpu.memory_space<vmem>>
      %528 = tpu.memref_squeeze %527 : memref<1x1x128xf32, #tpu.memory_space<vmem>> -> memref<128xf32, #tpu.memory_space<vmem>>
      %529 = tpu.memref_slice %arg9[%c6_i32_406, %c3_i32_407] : memref<8x8x!tpu.dma_semaphore, #tpu.memory_space<semaphore_mem>> -> memref<1x1x!tpu.dma_semaphore, #tpu.memory_space<semaphore_mem>>
      %530 = tpu.memref_squeeze %529 : memref<1x1x!tpu.dma_semaphore, #tpu.memory_space<semaphore_mem>> -> memref<!tpu.dma_semaphore, #tpu.memory_space<semaphore_mem>>
      tpu.enqueue_dma source(%526 : memref<128xf32, #tpu.memory_space<any>>) target(%528 : memref<128xf32, #tpu.memory_space<vmem>>) target_semaphore(%530 : memref<!tpu.dma_semaphore, #tpu.memory_space<semaphore_mem>>)
      %c32_i32_410 = arith.constant 32 : i32
      %531 = arith.addi %10, %c32_i32_410 : i32
      %c6_i32_411 = arith.constant 6 : i32
      %532 = arith.addi %531, %c6_i32_411 : i32
      %533 = arith.index_cast %532 : i32 to index
      %534 = memref.load %arg2[%533] : memref<64xi32, #tpu.memory_space<smem>>
      %c6_i32_412 = arith.constant 6 : i32
      %c4_i32_413 = arith.constant 4 : i32
      %c6_i32_414 = arith.constant 6 : i32
      %c4_i32_415 = arith.constant 4 : i32
      %c0_i32_416 = arith.constant 0 : i32
      %535 = tpu.memref_slice %arg3[%534, %c0_i32_416] : memref<50x128xf32, #tpu.memory_space<any>> -> memref<1x128xf32, #tpu.memory_space<any>>
      %536 = tpu.memref_squeeze %535 : memref<1x128xf32, #tpu.memory_space<any>> -> memref<128xf32, #tpu.memory_space<any>>
      %c0_i32_417 = arith.constant 0 : i32
      %537 = tpu.memref_slice %arg8[%c6_i32_412, %c4_i32_413, %c0_i32_417] : memref<8x8x128xf32, #tpu.memory_space<vmem>> -> memref<1x1x128xf32, #tpu.memory_space<vmem>>
      %538 = tpu.memref_squeeze %537 : memref<1x1x128xf32, #tpu.memory_space<vmem>> -> memref<128xf32, #tpu.memory_space<vmem>>
      %539 = tpu.memref_slice %arg9[%c6_i32_414, %c4_i32_415] : memref<8x8x!tpu.dma_semaphore, #tpu.memory_space<semaphore_mem>> -> memref<1x1x!tpu.dma_semaphore, #tpu.memory_space<semaphore_mem>>
      %540 = tpu.memref_squeeze %539 : memref<1x1x!tpu.dma_semaphore, #tpu.memory_space<semaphore_mem>> -> memref<!tpu.dma_semaphore, #tpu.memory_space<semaphore_mem>>
      tpu.enqueue_dma source(%536 : memref<128xf32, #tpu.memory_space<any>>) target(%538 : memref<128xf32, #tpu.memory_space<vmem>>) target_semaphore(%540 : memref<!tpu.dma_semaphore, #tpu.memory_space<semaphore_mem>>)
      %c40_i32_418 = arith.constant 40 : i32
      %541 = arith.addi %10, %c40_i32_418 : i32
      %c6_i32_419 = arith.constant 6 : i32
      %542 = arith.addi %541, %c6_i32_419 : i32
      %543 = arith.index_cast %542 : i32 to index
      %544 = memref.load %arg2[%543] : memref<64xi32, #tpu.memory_space<smem>>
      %c6_i32_420 = arith.constant 6 : i32
      %c5_i32_421 = arith.constant 5 : i32
      %c6_i32_422 = arith.constant 6 : i32
      %c5_i32_423 = arith.constant 5 : i32
      %c0_i32_424 = arith.constant 0 : i32
      %545 = tpu.memref_slice %arg3[%544, %c0_i32_424] : memref<50x128xf32, #tpu.memory_space<any>> -> memref<1x128xf32, #tpu.memory_space<any>>
      %546 = tpu.memref_squeeze %545 : memref<1x128xf32, #tpu.memory_space<any>> -> memref<128xf32, #tpu.memory_space<any>>
      %c0_i32_425 = arith.constant 0 : i32
      %547 = tpu.memref_slice %arg8[%c6_i32_420, %c5_i32_421, %c0_i32_425] : memref<8x8x128xf32, #tpu.memory_space<vmem>> -> memref<1x1x128xf32, #tpu.memory_space<vmem>>
      %548 = tpu.memref_squeeze %547 : memref<1x1x128xf32, #tpu.memory_space<vmem>> -> memref<128xf32, #tpu.memory_space<vmem>>
      %549 = tpu.memref_slice %arg9[%c6_i32_422, %c5_i32_423] : memref<8x8x!tpu.dma_semaphore, #tpu.memory_space<semaphore_mem>> -> memref<1x1x!tpu.dma_semaphore, #tpu.memory_space<semaphore_mem>>
      %550 = tpu.memref_squeeze %549 : memref<1x1x!tpu.dma_semaphore, #tpu.memory_space<semaphore_mem>> -> memref<!tpu.dma_semaphore, #tpu.memory_space<semaphore_mem>>
      tpu.enqueue_dma source(%546 : memref<128xf32, #tpu.memory_space<any>>) target(%548 : memref<128xf32, #tpu.memory_space<vmem>>) target_semaphore(%550 : memref<!tpu.dma_semaphore, #tpu.memory_space<semaphore_mem>>)
      %c48_i32_426 = arith.constant 48 : i32
      %551 = arith.addi %10, %c48_i32_426 : i32
      %c6_i32_427 = arith.constant 6 : i32
      %552 = arith.addi %551, %c6_i32_427 : i32
      %553 = arith.index_cast %552 : i32 to index
      %554 = memref.load %arg2[%553] : memref<64xi32, #tpu.memory_space<smem>>
      %c6_i32_428 = arith.constant 6 : i32
      %c6_i32_429 = arith.constant 6 : i32
      %c6_i32_430 = arith.constant 6 : i32
      %c6_i32_431 = arith.constant 6 : i32
      %c0_i32_432 = arith.constant 0 : i32
      %555 = tpu.memref_slice %arg3[%554, %c0_i32_432] : memref<50x128xf32, #tpu.memory_space<any>> -> memref<1x128xf32, #tpu.memory_space<any>>
      %556 = tpu.memref_squeeze %555 : memref<1x128xf32, #tpu.memory_space<any>> -> memref<128xf32, #tpu.memory_space<any>>
      %c0_i32_433 = arith.constant 0 : i32
      %557 = tpu.memref_slice %arg8[%c6_i32_428, %c6_i32_429, %c0_i32_433] : memref<8x8x128xf32, #tpu.memory_space<vmem>> -> memref<1x1x128xf32, #tpu.memory_space<vmem>>
      %558 = tpu.memref_squeeze %557 : memref<1x1x128xf32, #tpu.memory_space<vmem>> -> memref<128xf32, #tpu.memory_space<vmem>>
      %559 = tpu.memref_slice %arg9[%c6_i32_430, %c6_i32_431] : memref<8x8x!tpu.dma_semaphore, #tpu.memory_space<semaphore_mem>> -> memref<1x1x!tpu.dma_semaphore, #tpu.memory_space<semaphore_mem>>
      %560 = tpu.memref_squeeze %559 : memref<1x1x!tpu.dma_semaphore, #tpu.memory_space<semaphore_mem>> -> memref<!tpu.dma_semaphore, #tpu.memory_space<semaphore_mem>>
      tpu.enqueue_dma source(%556 : memref<128xf32, #tpu.memory_space<any>>) target(%558 : memref<128xf32, #tpu.memory_space<vmem>>) target_semaphore(%560 : memref<!tpu.dma_semaphore, #tpu.memory_space<semaphore_mem>>)
      %c56_i32_434 = arith.constant 56 : i32
      %561 = arith.addi %10, %c56_i32_434 : i32
      %c6_i32_435 = arith.constant 6 : i32
      %562 = arith.addi %561, %c6_i32_435 : i32
      %563 = arith.index_cast %562 : i32 to index
      %564 = memref.load %arg2[%563] : memref<64xi32, #tpu.memory_space<smem>>
      %c6_i32_436 = arith.constant 6 : i32
      %c7_i32_437 = arith.constant 7 : i32
      %c6_i32_438 = arith.constant 6 : i32
      %c7_i32_439 = arith.constant 7 : i32
      %c0_i32_440 = arith.constant 0 : i32
      %565 = tpu.memref_slice %arg3[%564, %c0_i32_440] : memref<50x128xf32, #tpu.memory_space<any>> -> memref<1x128xf32, #tpu.memory_space<any>>
      %566 = tpu.memref_squeeze %565 : memref<1x128xf32, #tpu.memory_space<any>> -> memref<128xf32, #tpu.memory_space<any>>
      %c0_i32_441 = arith.constant 0 : i32
      %567 = tpu.memref_slice %arg8[%c6_i32_436, %c7_i32_437, %c0_i32_441] : memref<8x8x128xf32, #tpu.memory_space<vmem>> -> memref<1x1x128xf32, #tpu.memory_space<vmem>>
      %568 = tpu.memref_squeeze %567 : memref<1x1x128xf32, #tpu.memory_space<vmem>> -> memref<128xf32, #tpu.memory_space<vmem>>
      %569 = tpu.memref_slice %arg9[%c6_i32_438, %c7_i32_439] : memref<8x8x!tpu.dma_semaphore, #tpu.memory_space<semaphore_mem>> -> memref<1x1x!tpu.dma_semaphore, #tpu.memory_space<semaphore_mem>>
      %570 = tpu.memref_squeeze %569 : memref<1x1x!tpu.dma_semaphore, #tpu.memory_space<semaphore_mem>> -> memref<!tpu.dma_semaphore, #tpu.memory_space<semaphore_mem>>
      tpu.enqueue_dma source(%566 : memref<128xf32, #tpu.memory_space<any>>) target(%568 : memref<128xf32, #tpu.memory_space<vmem>>) target_semaphore(%570 : memref<!tpu.dma_semaphore, #tpu.memory_space<semaphore_mem>>)
      %c0_i32_442 = arith.constant 0 : i32
      %571 = arith.addi %10, %c0_i32_442 : i32
      %c7_i32_443 = arith.constant 7 : i32
      %572 = arith.addi %571, %c7_i32_443 : i32
      %573 = arith.index_cast %572 : i32 to index
      %574 = memref.load %arg2[%573] : memref<64xi32, #tpu.memory_space<smem>>
      %c7_i32_444 = arith.constant 7 : i32
      %c0_i32_445 = arith.constant 0 : i32
      %c7_i32_446 = arith.constant 7 : i32
      %c0_i32_447 = arith.constant 0 : i32
      %c0_i32_448 = arith.constant 0 : i32
      %575 = tpu.memref_slice %arg3[%574, %c0_i32_448] : memref<50x128xf32, #tpu.memory_space<any>> -> memref<1x128xf32, #tpu.memory_space<any>>
      %576 = tpu.memref_squeeze %575 : memref<1x128xf32, #tpu.memory_space<any>> -> memref<128xf32, #tpu.memory_space<any>>
      %c0_i32_449 = arith.constant 0 : i32
      %577 = tpu.memref_slice %arg8[%c7_i32_444, %c0_i32_445, %c0_i32_449] : memref<8x8x128xf32, #tpu.memory_space<vmem>> -> memref<1x1x128xf32, #tpu.memory_space<vmem>>
      %578 = tpu.memref_squeeze %577 : memref<1x1x128xf32, #tpu.memory_space<vmem>> -> memref<128xf32, #tpu.memory_space<vmem>>
      %579 = tpu.memref_slice %arg9[%c7_i32_446, %c0_i32_447] : memref<8x8x!tpu.dma_semaphore, #tpu.memory_space<semaphore_mem>> -> memref<1x1x!tpu.dma_semaphore, #tpu.memory_space<semaphore_mem>>
      %580 = tpu.memref_squeeze %579 : memref<1x1x!tpu.dma_semaphore, #tpu.memory_space<semaphore_mem>> -> memref<!tpu.dma_semaphore, #tpu.memory_space<semaphore_mem>>
      tpu.enqueue_dma source(%576 : memref<128xf32, #tpu.memory_space<any>>) target(%578 : memref<128xf32, #tpu.memory_space<vmem>>) target_semaphore(%580 : memref<!tpu.dma_semaphore, #tpu.memory_space<semaphore_mem>>)
      %c8_i32_450 = arith.constant 8 : i32
      %581 = arith.addi %10, %c8_i32_450 : i32
      %c7_i32_451 = arith.constant 7 : i32
      %582 = arith.addi %581, %c7_i32_451 : i32
      %583 = arith.index_cast %582 : i32 to index
      %584 = memref.load %arg2[%583] : memref<64xi32, #tpu.memory_space<smem>>
      %c7_i32_452 = arith.constant 7 : i32
      %c1_i32_453 = arith.constant 1 : i32
      %c7_i32_454 = arith.constant 7 : i32
      %c1_i32_455 = arith.constant 1 : i32
      %c0_i32_456 = arith.constant 0 : i32
      %585 = tpu.memref_slice %arg3[%584, %c0_i32_456] : memref<50x128xf32, #tpu.memory_space<any>> -> memref<1x128xf32, #tpu.memory_space<any>>
      %586 = tpu.memref_squeeze %585 : memref<1x128xf32, #tpu.memory_space<any>> -> memref<128xf32, #tpu.memory_space<any>>
      %c0_i32_457 = arith.constant 0 : i32
      %587 = tpu.memref_slice %arg8[%c7_i32_452, %c1_i32_453, %c0_i32_457] : memref<8x8x128xf32, #tpu.memory_space<vmem>> -> memref<1x1x128xf32, #tpu.memory_space<vmem>>
      %588 = tpu.memref_squeeze %587 : memref<1x1x128xf32, #tpu.memory_space<vmem>> -> memref<128xf32, #tpu.memory_space<vmem>>
      %589 = tpu.memref_slice %arg9[%c7_i32_454, %c1_i32_455] : memref<8x8x!tpu.dma_semaphore, #tpu.memory_space<semaphore_mem>> -> memref<1x1x!tpu.dma_semaphore, #tpu.memory_space<semaphore_mem>>
      %590 = tpu.memref_squeeze %589 : memref<1x1x!tpu.dma_semaphore, #tpu.memory_space<semaphore_mem>> -> memref<!tpu.dma_semaphore, #tpu.memory_space<semaphore_mem>>
      tpu.enqueue_dma source(%586 : memref<128xf32, #tpu.memory_space<any>>) target(%588 : memref<128xf32, #tpu.memory_space<vmem>>) target_semaphore(%590 : memref<!tpu.dma_semaphore, #tpu.memory_space<semaphore_mem>>)
      %c16_i32_458 = arith.constant 16 : i32
      %591 = arith.addi %10, %c16_i32_458 : i32
      %c7_i32_459 = arith.constant 7 : i32
      %592 = arith.addi %591, %c7_i32_459 : i32
      %593 = arith.index_cast %592 : i32 to index
      %594 = memref.load %arg2[%593] : memref<64xi32, #tpu.memory_space<smem>>
      %c7_i32_460 = arith.constant 7 : i32
      %c2_i32_461 = arith.constant 2 : i32
      %c7_i32_462 = arith.constant 7 : i32
      %c2_i32_463 = arith.constant 2 : i32
      %c0_i32_464 = arith.constant 0 : i32
      %595 = tpu.memref_slice %arg3[%594, %c0_i32_464] : memref<50x128xf32, #tpu.memory_space<any>> -> memref<1x128xf32, #tpu.memory_space<any>>
      %596 = tpu.memref_squeeze %595 : memref<1x128xf32, #tpu.memory_space<any>> -> memref<128xf32, #tpu.memory_space<any>>
      %c0_i32_465 = arith.constant 0 : i32
      %597 = tpu.memref_slice %arg8[%c7_i32_460, %c2_i32_461, %c0_i32_465] : memref<8x8x128xf32, #tpu.memory_space<vmem>> -> memref<1x1x128xf32, #tpu.memory_space<vmem>>
      %598 = tpu.memref_squeeze %597 : memref<1x1x128xf32, #tpu.memory_space<vmem>> -> memref<128xf32, #tpu.memory_space<vmem>>
      %599 = tpu.memref_slice %arg9[%c7_i32_462, %c2_i32_463] : memref<8x8x!tpu.dma_semaphore, #tpu.memory_space<semaphore_mem>> -> memref<1x1x!tpu.dma_semaphore, #tpu.memory_space<semaphore_mem>>
      %600 = tpu.memref_squeeze %599 : memref<1x1x!tpu.dma_semaphore, #tpu.memory_space<semaphore_mem>> -> memref<!tpu.dma_semaphore, #tpu.memory_space<semaphore_mem>>
      tpu.enqueue_dma source(%596 : memref<128xf32, #tpu.memory_space<any>>) target(%598 : memref<128xf32, #tpu.memory_space<vmem>>) target_semaphore(%600 : memref<!tpu.dma_semaphore, #tpu.memory_space<semaphore_mem>>)
      %c24_i32_466 = arith.constant 24 : i32
      %601 = arith.addi %10, %c24_i32_466 : i32
      %c7_i32_467 = arith.constant 7 : i32
      %602 = arith.addi %601, %c7_i32_467 : i32
      %603 = arith.index_cast %602 : i32 to index
      %604 = memref.load %arg2[%603] : memref<64xi32, #tpu.memory_space<smem>>
      %c7_i32_468 = arith.constant 7 : i32
      %c3_i32_469 = arith.constant 3 : i32
      %c7_i32_470 = arith.constant 7 : i32
      %c3_i32_471 = arith.constant 3 : i32
      %c0_i32_472 = arith.constant 0 : i32
      %605 = tpu.memref_slice %arg3[%604, %c0_i32_472] : memref<50x128xf32, #tpu.memory_space<any>> -> memref<1x128xf32, #tpu.memory_space<any>>
      %606 = tpu.memref_squeeze %605 : memref<1x128xf32, #tpu.memory_space<any>> -> memref<128xf32, #tpu.memory_space<any>>
      %c0_i32_473 = arith.constant 0 : i32
      %607 = tpu.memref_slice %arg8[%c7_i32_468, %c3_i32_469, %c0_i32_473] : memref<8x8x128xf32, #tpu.memory_space<vmem>> -> memref<1x1x128xf32, #tpu.memory_space<vmem>>
      %608 = tpu.memref_squeeze %607 : memref<1x1x128xf32, #tpu.memory_space<vmem>> -> memref<128xf32, #tpu.memory_space<vmem>>
      %609 = tpu.memref_slice %arg9[%c7_i32_470, %c3_i32_471] : memref<8x8x!tpu.dma_semaphore, #tpu.memory_space<semaphore_mem>> -> memref<1x1x!tpu.dma_semaphore, #tpu.memory_space<semaphore_mem>>
      %610 = tpu.memref_squeeze %609 : memref<1x1x!tpu.dma_semaphore, #tpu.memory_space<semaphore_mem>> -> memref<!tpu.dma_semaphore, #tpu.memory_space<semaphore_mem>>
      tpu.enqueue_dma source(%606 : memref<128xf32, #tpu.memory_space<any>>) target(%608 : memref<128xf32, #tpu.memory_space<vmem>>) target_semaphore(%610 : memref<!tpu.dma_semaphore, #tpu.memory_space<semaphore_mem>>)
      %c32_i32_474 = arith.constant 32 : i32
      %611 = arith.addi %10, %c32_i32_474 : i32
      %c7_i32_475 = arith.constant 7 : i32
      %612 = arith.addi %611, %c7_i32_475 : i32
      %613 = arith.index_cast %612 : i32 to index
      %614 = memref.load %arg2[%613] : memref<64xi32, #tpu.memory_space<smem>>
      %c7_i32_476 = arith.constant 7 : i32
      %c4_i32_477 = arith.constant 4 : i32
      %c7_i32_478 = arith.constant 7 : i32
      %c4_i32_479 = arith.constant 4 : i32
      %c0_i32_480 = arith.constant 0 : i32
      %615 = tpu.memref_slice %arg3[%614, %c0_i32_480] : memref<50x128xf32, #tpu.memory_space<any>> -> memref<1x128xf32, #tpu.memory_space<any>>
      %616 = tpu.memref_squeeze %615 : memref<1x128xf32, #tpu.memory_space<any>> -> memref<128xf32, #tpu.memory_space<any>>
      %c0_i32_481 = arith.constant 0 : i32
      %617 = tpu.memref_slice %arg8[%c7_i32_476, %c4_i32_477, %c0_i32_481] : memref<8x8x128xf32, #tpu.memory_space<vmem>> -> memref<1x1x128xf32, #tpu.memory_space<vmem>>
      %618 = tpu.memref_squeeze %617 : memref<1x1x128xf32, #tpu.memory_space<vmem>> -> memref<128xf32, #tpu.memory_space<vmem>>
      %619 = tpu.memref_slice %arg9[%c7_i32_478, %c4_i32_479] : memref<8x8x!tpu.dma_semaphore, #tpu.memory_space<semaphore_mem>> -> memref<1x1x!tpu.dma_semaphore, #tpu.memory_space<semaphore_mem>>
      %620 = tpu.memref_squeeze %619 : memref<1x1x!tpu.dma_semaphore, #tpu.memory_space<semaphore_mem>> -> memref<!tpu.dma_semaphore, #tpu.memory_space<semaphore_mem>>
      tpu.enqueue_dma source(%616 : memref<128xf32, #tpu.memory_space<any>>) target(%618 : memref<128xf32, #tpu.memory_space<vmem>>) target_semaphore(%620 : memref<!tpu.dma_semaphore, #tpu.memory_space<semaphore_mem>>)
      %c40_i32_482 = arith.constant 40 : i32
      %621 = arith.addi %10, %c40_i32_482 : i32
      %c7_i32_483 = arith.constant 7 : i32
      %622 = arith.addi %621, %c7_i32_483 : i32
      %623 = arith.index_cast %622 : i32 to index
      %624 = memref.load %arg2[%623] : memref<64xi32, #tpu.memory_space<smem>>
      %c7_i32_484 = arith.constant 7 : i32
      %c5_i32_485 = arith.constant 5 : i32
      %c7_i32_486 = arith.constant 7 : i32
      %c5_i32_487 = arith.constant 5 : i32
      %c0_i32_488 = arith.constant 0 : i32
      %625 = tpu.memref_slice %arg3[%624, %c0_i32_488] : memref<50x128xf32, #tpu.memory_space<any>> -> memref<1x128xf32, #tpu.memory_space<any>>
      %626 = tpu.memref_squeeze %625 : memref<1x128xf32, #tpu.memory_space<any>> -> memref<128xf32, #tpu.memory_space<any>>
      %c0_i32_489 = arith.constant 0 : i32
      %627 = tpu.memref_slice %arg8[%c7_i32_484, %c5_i32_485, %c0_i32_489] : memref<8x8x128xf32, #tpu.memory_space<vmem>> -> memref<1x1x128xf32, #tpu.memory_space<vmem>>
      %628 = tpu.memref_squeeze %627 : memref<1x1x128xf32, #tpu.memory_space<vmem>> -> memref<128xf32, #tpu.memory_space<vmem>>
      %629 = tpu.memref_slice %arg9[%c7_i32_486, %c5_i32_487] : memref<8x8x!tpu.dma_semaphore, #tpu.memory_space<semaphore_mem>> -> memref<1x1x!tpu.dma_semaphore, #tpu.memory_space<semaphore_mem>>
      %630 = tpu.memref_squeeze %629 : memref<1x1x!tpu.dma_semaphore, #tpu.memory_space<semaphore_mem>> -> memref<!tpu.dma_semaphore, #tpu.memory_space<semaphore_mem>>
      tpu.enqueue_dma source(%626 : memref<128xf32, #tpu.memory_space<any>>) target(%628 : memref<128xf32, #tpu.memory_space<vmem>>) target_semaphore(%630 : memref<!tpu.dma_semaphore, #tpu.memory_space<semaphore_mem>>)
      %c48_i32_490 = arith.constant 48 : i32
      %631 = arith.addi %10, %c48_i32_490 : i32
      %c7_i32_491 = arith.constant 7 : i32
      %632 = arith.addi %631, %c7_i32_491 : i32
      %633 = arith.index_cast %632 : i32 to index
      %634 = memref.load %arg2[%633] : memref<64xi32, #tpu.memory_space<smem>>
      %c7_i32_492 = arith.constant 7 : i32
      %c6_i32_493 = arith.constant 6 : i32
      %c7_i32_494 = arith.constant 7 : i32
      %c6_i32_495 = arith.constant 6 : i32
      %c0_i32_496 = arith.constant 0 : i32
      %635 = tpu.memref_slice %arg3[%634, %c0_i32_496] : memref<50x128xf32, #tpu.memory_space<any>> -> memref<1x128xf32, #tpu.memory_space<any>>
      %636 = tpu.memref_squeeze %635 : memref<1x128xf32, #tpu.memory_space<any>> -> memref<128xf32, #tpu.memory_space<any>>
      %c0_i32_497 = arith.constant 0 : i32
      %637 = tpu.memref_slice %arg8[%c7_i32_492, %c6_i32_493, %c0_i32_497] : memref<8x8x128xf32, #tpu.memory_space<vmem>> -> memref<1x1x128xf32, #tpu.memory_space<vmem>>
      %638 = tpu.memref_squeeze %637 : memref<1x1x128xf32, #tpu.memory_space<vmem>> -> memref<128xf32, #tpu.memory_space<vmem>>
      %639 = tpu.memref_slice %arg9[%c7_i32_494, %c6_i32_495] : memref<8x8x!tpu.dma_semaphore, #tpu.memory_space<semaphore_mem>> -> memref<1x1x!tpu.dma_semaphore, #tpu.memory_space<semaphore_mem>>
      %640 = tpu.memref_squeeze %639 : memref<1x1x!tpu.dma_semaphore, #tpu.memory_space<semaphore_mem>> -> memref<!tpu.dma_semaphore, #tpu.memory_space<semaphore_mem>>
      tpu.enqueue_dma source(%636 : memref<128xf32, #tpu.memory_space<any>>) target(%638 : memref<128xf32, #tpu.memory_space<vmem>>) target_semaphore(%640 : memref<!tpu.dma_semaphore, #tpu.memory_space<semaphore_mem>>)
      %c56_i32_498 = arith.constant 56 : i32
      %641 = arith.addi %10, %c56_i32_498 : i32
      %c7_i32_499 = arith.constant 7 : i32
      %642 = arith.addi %641, %c7_i32_499 : i32
      %643 = arith.index_cast %642 : i32 to index
      %644 = memref.load %arg2[%643] : memref<64xi32, #tpu.memory_space<smem>>
      %c7_i32_500 = arith.constant 7 : i32
      %c7_i32_501 = arith.constant 7 : i32
      %c7_i32_502 = arith.constant 7 : i32
      %c7_i32_503 = arith.constant 7 : i32
      %c0_i32_504 = arith.constant 0 : i32
      %645 = tpu.memref_slice %arg3[%644, %c0_i32_504] : memref<50x128xf32, #tpu.memory_space<any>> -> memref<1x128xf32, #tpu.memory_space<any>>
      %646 = tpu.memref_squeeze %645 : memref<1x128xf32, #tpu.memory_space<any>> -> memref<128xf32, #tpu.memory_space<any>>
      %c0_i32_505 = arith.constant 0 : i32
      %647 = tpu.memref_slice %arg8[%c7_i32_500, %c7_i32_501, %c0_i32_505] : memref<8x8x128xf32, #tpu.memory_space<vmem>> -> memref<1x1x128xf32, #tpu.memory_space<vmem>>
      %648 = tpu.memref_squeeze %647 : memref<1x1x128xf32, #tpu.memory_space<vmem>> -> memref<128xf32, #tpu.memory_space<vmem>>
      %649 = tpu.memref_slice %arg9[%c7_i32_502, %c7_i32_503] : memref<8x8x!tpu.dma_semaphore, #tpu.memory_space<semaphore_mem>> -> memref<1x1x!tpu.dma_semaphore, #tpu.memory_space<semaphore_mem>>
      %650 = tpu.memref_squeeze %649 : memref<1x1x!tpu.dma_semaphore, #tpu.memory_space<semaphore_mem>> -> memref<!tpu.dma_semaphore, #tpu.memory_space<semaphore_mem>>
      tpu.enqueue_dma source(%646 : memref<128xf32, #tpu.memory_space<any>>) target(%648 : memref<128xf32, #tpu.memory_space<vmem>>) target_semaphore(%650 : memref<!tpu.dma_semaphore, #tpu.memory_space<semaphore_mem>>)
      %cst_506 = arith.constant 0.000000e+00 : f32
      %651 = vector.broadcast %cst_506 : f32 to vector<8x128xf32>
      %c0_i32_507 = arith.constant 0 : i32
      %c0_i32_508 = arith.constant 0 : i32
      %c0_i32_509 = arith.constant 0 : i32
      %c0_i32_510 = arith.constant 0 : i32
      %c0_i32_511 = arith.constant 0 : i32
      %c0_i32_512 = arith.constant 0 : i32
      %652 = tpu.memref_slice %arg3[%c0_i32_507, %c0_i32_512] : memref<50x128xf32, #tpu.memory_space<any>> -> memref<1x128xf32, #tpu.memory_space<any>>
      %653 = tpu.memref_squeeze %652 : memref<1x128xf32, #tpu.memory_space<any>> -> memref<128xf32, #tpu.memory_space<any>>
      %c0_i32_513 = arith.constant 0 : i32
      %654 = tpu.memref_slice %arg8[%c0_i32_508, %c0_i32_509, %c0_i32_513] : memref<8x8x128xf32, #tpu.memory_space<vmem>> -> memref<1x1x128xf32, #tpu.memory_space<vmem>>
      %655 = tpu.memref_squeeze %654 : memref<1x1x128xf32, #tpu.memory_space<vmem>> -> memref<128xf32, #tpu.memory_space<vmem>>
      %656 = tpu.memref_slice %arg9[%c0_i32_510, %c0_i32_511] : memref<8x8x!tpu.dma_semaphore, #tpu.memory_space<semaphore_mem>> -> memref<1x1x!tpu.dma_semaphore, #tpu.memory_space<semaphore_mem>>
      %657 = tpu.memref_squeeze %656 : memref<1x1x!tpu.dma_semaphore, #tpu.memory_space<semaphore_mem>> -> memref<!tpu.dma_semaphore, #tpu.memory_space<semaphore_mem>>
      tpu.wait_dma2 semaphore(%657 : memref<!tpu.dma_semaphore, #tpu.memory_space<semaphore_mem>>) src(%653 : memref<128xf32, #tpu.memory_space<any>>) dst(%655 : memref<128xf32, #tpu.memory_space<vmem>>)
      %c0_i32_514 = arith.constant 0 : i32
      %c0_i32_515 = arith.constant 0 : i32
      %c1_i32_516 = arith.constant 1 : i32
      %c0_i32_517 = arith.constant 0 : i32
      %c1_i32_518 = arith.constant 1 : i32
      %c0_i32_519 = arith.constant 0 : i32
      %658 = tpu.memref_slice %arg3[%c0_i32_514, %c0_i32_519] : memref<50x128xf32, #tpu.memory_space<any>> -> memref<1x128xf32, #tpu.memory_space<any>>
      %659 = tpu.memref_squeeze %658 : memref<1x128xf32, #tpu.memory_space<any>> -> memref<128xf32, #tpu.memory_space<any>>
      %c0_i32_520 = arith.constant 0 : i32
      %660 = tpu.memref_slice %arg8[%c0_i32_515, %c1_i32_516, %c0_i32_520] : memref<8x8x128xf32, #tpu.memory_space<vmem>> -> memref<1x1x128xf32, #tpu.memory_space<vmem>>
      %661 = tpu.memref_squeeze %660 : memref<1x1x128xf32, #tpu.memory_space<vmem>> -> memref<128xf32, #tpu.memory_space<vmem>>
      %662 = tpu.memref_slice %arg9[%c0_i32_517, %c1_i32_518] : memref<8x8x!tpu.dma_semaphore, #tpu.memory_space<semaphore_mem>> -> memref<1x1x!tpu.dma_semaphore, #tpu.memory_space<semaphore_mem>>
      %663 = tpu.memref_squeeze %662 : memref<1x1x!tpu.dma_semaphore, #tpu.memory_space<semaphore_mem>> -> memref<!tpu.dma_semaphore, #tpu.memory_space<semaphore_mem>>
      tpu.wait_dma2 semaphore(%663 : memref<!tpu.dma_semaphore, #tpu.memory_space<semaphore_mem>>) src(%659 : memref<128xf32, #tpu.memory_space<any>>) dst(%661 : memref<128xf32, #tpu.memory_space<vmem>>)
      %c0_i32_521 = arith.constant 0 : i32
      %c0_i32_522 = arith.constant 0 : i32
      %c2_i32_523 = arith.constant 2 : i32
      %c0_i32_524 = arith.constant 0 : i32
      %c2_i32_525 = arith.constant 2 : i32
      %c0_i32_526 = arith.constant 0 : i32
      %664 = tpu.memref_slice %arg3[%c0_i32_521, %c0_i32_526] : memref<50x128xf32, #tpu.memory_space<any>> -> memref<1x128xf32, #tpu.memory_space<any>>
      %665 = tpu.memref_squeeze %664 : memref<1x128xf32, #tpu.memory_space<any>> -> memref<128xf32, #tpu.memory_space<any>>
      %c0_i32_527 = arith.constant 0 : i32
      %666 = tpu.memref_slice %arg8[%c0_i32_522, %c2_i32_523, %c0_i32_527] : memref<8x8x128xf32, #tpu.memory_space<vmem>> -> memref<1x1x128xf32, #tpu.memory_space<vmem>>
      %667 = tpu.memref_squeeze %666 : memref<1x1x128xf32, #tpu.memory_space<vmem>> -> memref<128xf32, #tpu.memory_space<vmem>>
      %668 = tpu.memref_slice %arg9[%c0_i32_524, %c2_i32_525] : memref<8x8x!tpu.dma_semaphore, #tpu.memory_space<semaphore_mem>> -> memref<1x1x!tpu.dma_semaphore, #tpu.memory_space<semaphore_mem>>
      %669 = tpu.memref_squeeze %668 : memref<1x1x!tpu.dma_semaphore, #tpu.memory_space<semaphore_mem>> -> memref<!tpu.dma_semaphore, #tpu.memory_space<semaphore_mem>>
      tpu.wait_dma2 semaphore(%669 : memref<!tpu.dma_semaphore, #tpu.memory_space<semaphore_mem>>) src(%665 : memref<128xf32, #tpu.memory_space<any>>) dst(%667 : memref<128xf32, #tpu.memory_space<vmem>>)
      %c0_i32_528 = arith.constant 0 : i32
      %c0_i32_529 = arith.constant 0 : i32
      %c3_i32_530 = arith.constant 3 : i32
      %c0_i32_531 = arith.constant 0 : i32
      %c3_i32_532 = arith.constant 3 : i32
      %c0_i32_533 = arith.constant 0 : i32
      %670 = tpu.memref_slice %arg3[%c0_i32_528, %c0_i32_533] : memref<50x128xf32, #tpu.memory_space<any>> -> memref<1x128xf32, #tpu.memory_space<any>>
      %671 = tpu.memref_squeeze %670 : memref<1x128xf32, #tpu.memory_space<any>> -> memref<128xf32, #tpu.memory_space<any>>
      %c0_i32_534 = arith.constant 0 : i32
      %672 = tpu.memref_slice %arg8[%c0_i32_529, %c3_i32_530, %c0_i32_534] : memref<8x8x128xf32, #tpu.memory_space<vmem>> -> memref<1x1x128xf32, #tpu.memory_space<vmem>>
      %673 = tpu.memref_squeeze %672 : memref<1x1x128xf32, #tpu.memory_space<vmem>> -> memref<128xf32, #tpu.memory_space<vmem>>
      %674 = tpu.memref_slice %arg9[%c0_i32_531, %c3_i32_532] : memref<8x8x!tpu.dma_semaphore, #tpu.memory_space<semaphore_mem>> -> memref<1x1x!tpu.dma_semaphore, #tpu.memory_space<semaphore_mem>>
      %675 = tpu.memref_squeeze %674 : memref<1x1x!tpu.dma_semaphore, #tpu.memory_space<semaphore_mem>> -> memref<!tpu.dma_semaphore, #tpu.memory_space<semaphore_mem>>
      tpu.wait_dma2 semaphore(%675 : memref<!tpu.dma_semaphore, #tpu.memory_space<semaphore_mem>>) src(%671 : memref<128xf32, #tpu.memory_space<any>>) dst(%673 : memref<128xf32, #tpu.memory_space<vmem>>)
      %c0_i32_535 = arith.constant 0 : i32
      %c0_i32_536 = arith.constant 0 : i32
      %c4_i32_537 = arith.constant 4 : i32
      %c0_i32_538 = arith.constant 0 : i32
      %c4_i32_539 = arith.constant 4 : i32
      %c0_i32_540 = arith.constant 0 : i32
      %676 = tpu.memref_slice %arg3[%c0_i32_535, %c0_i32_540] : memref<50x128xf32, #tpu.memory_space<any>> -> memref<1x128xf32, #tpu.memory_space<any>>
      %677 = tpu.memref_squeeze %676 : memref<1x128xf32, #tpu.memory_space<any>> -> memref<128xf32, #tpu.memory_space<any>>
      %c0_i32_541 = arith.constant 0 : i32
      %678 = tpu.memref_slice %arg8[%c0_i32_536, %c4_i32_537, %c0_i32_541] : memref<8x8x128xf32, #tpu.memory_space<vmem>> -> memref<1x1x128xf32, #tpu.memory_space<vmem>>
      %679 = tpu.memref_squeeze %678 : memref<1x1x128xf32, #tpu.memory_space<vmem>> -> memref<128xf32, #tpu.memory_space<vmem>>
      %680 = tpu.memref_slice %arg9[%c0_i32_538, %c4_i32_539] : memref<8x8x!tpu.dma_semaphore, #tpu.memory_space<semaphore_mem>> -> memref<1x1x!tpu.dma_semaphore, #tpu.memory_space<semaphore_mem>>
      %681 = tpu.memref_squeeze %680 : memref<1x1x!tpu.dma_semaphore, #tpu.memory_space<semaphore_mem>> -> memref<!tpu.dma_semaphore, #tpu.memory_space<semaphore_mem>>
      tpu.wait_dma2 semaphore(%681 : memref<!tpu.dma_semaphore, #tpu.memory_space<semaphore_mem>>) src(%677 : memref<128xf32, #tpu.memory_space<any>>) dst(%679 : memref<128xf32, #tpu.memory_space<vmem>>)
      %c0_i32_542 = arith.constant 0 : i32
      %c0_i32_543 = arith.constant 0 : i32
      %c5_i32_544 = arith.constant 5 : i32
      %c0_i32_545 = arith.constant 0 : i32
      %c5_i32_546 = arith.constant 5 : i32
      %c0_i32_547 = arith.constant 0 : i32
      %682 = tpu.memref_slice %arg3[%c0_i32_542, %c0_i32_547] : memref<50x128xf32, #tpu.memory_space<any>> -> memref<1x128xf32, #tpu.memory_space<any>>
      %683 = tpu.memref_squeeze %682 : memref<1x128xf32, #tpu.memory_space<any>> -> memref<128xf32, #tpu.memory_space<any>>
      %c0_i32_548 = arith.constant 0 : i32
      %684 = tpu.memref_slice %arg8[%c0_i32_543, %c5_i32_544, %c0_i32_548] : memref<8x8x128xf32, #tpu.memory_space<vmem>> -> memref<1x1x128xf32, #tpu.memory_space<vmem>>
      %685 = tpu.memref_squeeze %684 : memref<1x1x128xf32, #tpu.memory_space<vmem>> -> memref<128xf32, #tpu.memory_space<vmem>>
      %686 = tpu.memref_slice %arg9[%c0_i32_545, %c5_i32_546] : memref<8x8x!tpu.dma_semaphore, #tpu.memory_space<semaphore_mem>> -> memref<1x1x!tpu.dma_semaphore, #tpu.memory_space<semaphore_mem>>
      %687 = tpu.memref_squeeze %686 : memref<1x1x!tpu.dma_semaphore, #tpu.memory_space<semaphore_mem>> -> memref<!tpu.dma_semaphore, #tpu.memory_space<semaphore_mem>>
      tpu.wait_dma2 semaphore(%687 : memref<!tpu.dma_semaphore, #tpu.memory_space<semaphore_mem>>) src(%683 : memref<128xf32, #tpu.memory_space<any>>) dst(%685 : memref<128xf32, #tpu.memory_space<vmem>>)
      %c0_i32_549 = arith.constant 0 : i32
      %c0_i32_550 = arith.constant 0 : i32
      %c6_i32_551 = arith.constant 6 : i32
      %c0_i32_552 = arith.constant 0 : i32
      %c6_i32_553 = arith.constant 6 : i32
      %c0_i32_554 = arith.constant 0 : i32
      %688 = tpu.memref_slice %arg3[%c0_i32_549, %c0_i32_554] : memref<50x128xf32, #tpu.memory_space<any>> -> memref<1x128xf32, #tpu.memory_space<any>>
      %689 = tpu.memref_squeeze %688 : memref<1x128xf32, #tpu.memory_space<any>> -> memref<128xf32, #tpu.memory_space<any>>
      %c0_i32_555 = arith.constant 0 : i32
      %690 = tpu.memref_slice %arg8[%c0_i32_550, %c6_i32_551, %c0_i32_555] : memref<8x8x128xf32, #tpu.memory_space<vmem>> -> memref<1x1x128xf32, #tpu.memory_space<vmem>>
      %691 = tpu.memref_squeeze %690 : memref<1x1x128xf32, #tpu.memory_space<vmem>> -> memref<128xf32, #tpu.memory_space<vmem>>
      %692 = tpu.memref_slice %arg9[%c0_i32_552, %c6_i32_553] : memref<8x8x!tpu.dma_semaphore, #tpu.memory_space<semaphore_mem>> -> memref<1x1x!tpu.dma_semaphore, #tpu.memory_space<semaphore_mem>>
      %693 = tpu.memref_squeeze %692 : memref<1x1x!tpu.dma_semaphore, #tpu.memory_space<semaphore_mem>> -> memref<!tpu.dma_semaphore, #tpu.memory_space<semaphore_mem>>
      tpu.wait_dma2 semaphore(%693 : memref<!tpu.dma_semaphore, #tpu.memory_space<semaphore_mem>>) src(%689 : memref<128xf32, #tpu.memory_space<any>>) dst(%691 : memref<128xf32, #tpu.memory_space<vmem>>)
      %c0_i32_556 = arith.constant 0 : i32
      %c0_i32_557 = arith.constant 0 : i32
      %c7_i32_558 = arith.constant 7 : i32
      %c0_i32_559 = arith.constant 0 : i32
      %c7_i32_560 = arith.constant 7 : i32
      %c0_i32_561 = arith.constant 0 : i32
      %694 = tpu.memref_slice %arg3[%c0_i32_556, %c0_i32_561] : memref<50x128xf32, #tpu.memory_space<any>> -> memref<1x128xf32, #tpu.memory_space<any>>
      %695 = tpu.memref_squeeze %694 : memref<1x128xf32, #tpu.memory_space<any>> -> memref<128xf32, #tpu.memory_space<any>>
      %c0_i32_562 = arith.constant 0 : i32
      %696 = tpu.memref_slice %arg8[%c0_i32_557, %c7_i32_558, %c0_i32_562] : memref<8x8x128xf32, #tpu.memory_space<vmem>> -> memref<1x1x128xf32, #tpu.memory_space<vmem>>
      %697 = tpu.memref_squeeze %696 : memref<1x1x128xf32, #tpu.memory_space<vmem>> -> memref<128xf32, #tpu.memory_space<vmem>>
      %698 = tpu.memref_slice %arg9[%c0_i32_559, %c7_i32_560] : memref<8x8x!tpu.dma_semaphore, #tpu.memory_space<semaphore_mem>> -> memref<1x1x!tpu.dma_semaphore, #tpu.memory_space<semaphore_mem>>
      %699 = tpu.memref_squeeze %698 : memref<1x1x!tpu.dma_semaphore, #tpu.memory_space<semaphore_mem>> -> memref<!tpu.dma_semaphore, #tpu.memory_space<semaphore_mem>>
      tpu.wait_dma2 semaphore(%699 : memref<!tpu.dma_semaphore, #tpu.memory_space<semaphore_mem>>) src(%695 : memref<128xf32, #tpu.memory_space<any>>) dst(%697 : memref<128xf32, #tpu.memory_space<vmem>>)
      %c0_563 = arith.constant 0 : index
      %c0_564 = arith.constant 0 : index
      %c0_565 = arith.constant 0 : index
      %700 = vector.load %arg8[%c0_563, %c0_564, %c0_565] : memref<8x8x128xf32, #tpu.memory_space<vmem>>, vector<1x8x128xf32>
      %701 = vector.shape_cast %700 : vector<1x8x128xf32> to vector<8x128xf32>
      %702 = arith.addf %651, %701 : vector<8x128xf32>
      %c0_i32_566 = arith.constant 0 : i32
      %c1_i32_567 = arith.constant 1 : i32
      %c0_i32_568 = arith.constant 0 : i32
      %c1_i32_569 = arith.constant 1 : i32
      %c0_i32_570 = arith.constant 0 : i32
      %c0_i32_571 = arith.constant 0 : i32
      %703 = tpu.memref_slice %arg3[%c0_i32_566, %c0_i32_571] : memref<50x128xf32, #tpu.memory_space<any>> -> memref<1x128xf32, #tpu.memory_space<any>>
      %704 = tpu.memref_squeeze %703 : memref<1x128xf32, #tpu.memory_space<any>> -> memref<128xf32, #tpu.memory_space<any>>
      %c0_i32_572 = arith.constant 0 : i32
      %705 = tpu.memref_slice %arg8[%c1_i32_567, %c0_i32_568, %c0_i32_572] : memref<8x8x128xf32, #tpu.memory_space<vmem>> -> memref<1x1x128xf32, #tpu.memory_space<vmem>>
      %706 = tpu.memref_squeeze %705 : memref<1x1x128xf32, #tpu.memory_space<vmem>> -> memref<128xf32, #tpu.memory_space<vmem>>
      %707 = tpu.memref_slice %arg9[%c1_i32_569, %c0_i32_570] : memref<8x8x!tpu.dma_semaphore, #tpu.memory_space<semaphore_mem>> -> memref<1x1x!tpu.dma_semaphore, #tpu.memory_space<semaphore_mem>>
      %708 = tpu.memref_squeeze %707 : memref<1x1x!tpu.dma_semaphore, #tpu.memory_space<semaphore_mem>> -> memref<!tpu.dma_semaphore, #tpu.memory_space<semaphore_mem>>
      tpu.wait_dma2 semaphore(%708 : memref<!tpu.dma_semaphore, #tpu.memory_space<semaphore_mem>>) src(%704 : memref<128xf32, #tpu.memory_space<any>>) dst(%706 : memref<128xf32, #tpu.memory_space<vmem>>)
      %c0_i32_573 = arith.constant 0 : i32
      %c1_i32_574 = arith.constant 1 : i32
      %c1_i32_575 = arith.constant 1 : i32
      %c1_i32_576 = arith.constant 1 : i32
      %c1_i32_577 = arith.constant 1 : i32
      %c0_i32_578 = arith.constant 0 : i32
      %709 = tpu.memref_slice %arg3[%c0_i32_573, %c0_i32_578] : memref<50x128xf32, #tpu.memory_space<any>> -> memref<1x128xf32, #tpu.memory_space<any>>
      %710 = tpu.memref_squeeze %709 : memref<1x128xf32, #tpu.memory_space<any>> -> memref<128xf32, #tpu.memory_space<any>>
      %c0_i32_579 = arith.constant 0 : i32
      %711 = tpu.memref_slice %arg8[%c1_i32_574, %c1_i32_575, %c0_i32_579] : memref<8x8x128xf32, #tpu.memory_space<vmem>> -> memref<1x1x128xf32, #tpu.memory_space<vmem>>
      %712 = tpu.memref_squeeze %711 : memref<1x1x128xf32, #tpu.memory_space<vmem>> -> memref<128xf32, #tpu.memory_space<vmem>>
      %713 = tpu.memref_slice %arg9[%c1_i32_576, %c1_i32_577] : memref<8x8x!tpu.dma_semaphore, #tpu.memory_space<semaphore_mem>> -> memref<1x1x!tpu.dma_semaphore, #tpu.memory_space<semaphore_mem>>
      %714 = tpu.memref_squeeze %713 : memref<1x1x!tpu.dma_semaphore, #tpu.memory_space<semaphore_mem>> -> memref<!tpu.dma_semaphore, #tpu.memory_space<semaphore_mem>>
      tpu.wait_dma2 semaphore(%714 : memref<!tpu.dma_semaphore, #tpu.memory_space<semaphore_mem>>) src(%710 : memref<128xf32, #tpu.memory_space<any>>) dst(%712 : memref<128xf32, #tpu.memory_space<vmem>>)
      %c0_i32_580 = arith.constant 0 : i32
      %c1_i32_581 = arith.constant 1 : i32
      %c2_i32_582 = arith.constant 2 : i32
      %c1_i32_583 = arith.constant 1 : i32
      %c2_i32_584 = arith.constant 2 : i32
      %c0_i32_585 = arith.constant 0 : i32
      %715 = tpu.memref_slice %arg3[%c0_i32_580, %c0_i32_585] : memref<50x128xf32, #tpu.memory_space<any>> -> memref<1x128xf32, #tpu.memory_space<any>>
      %716 = tpu.memref_squeeze %715 : memref<1x128xf32, #tpu.memory_space<any>> -> memref<128xf32, #tpu.memory_space<any>>
      %c0_i32_586 = arith.constant 0 : i32
      %717 = tpu.memref_slice %arg8[%c1_i32_581, %c2_i32_582, %c0_i32_586] : memref<8x8x128xf32, #tpu.memory_space<vmem>> -> memref<1x1x128xf32, #tpu.memory_space<vmem>>
      %718 = tpu.memref_squeeze %717 : memref<1x1x128xf32, #tpu.memory_space<vmem>> -> memref<128xf32, #tpu.memory_space<vmem>>
      %719 = tpu.memref_slice %arg9[%c1_i32_583, %c2_i32_584] : memref<8x8x!tpu.dma_semaphore, #tpu.memory_space<semaphore_mem>> -> memref<1x1x!tpu.dma_semaphore, #tpu.memory_space<semaphore_mem>>
      %720 = tpu.memref_squeeze %719 : memref<1x1x!tpu.dma_semaphore, #tpu.memory_space<semaphore_mem>> -> memref<!tpu.dma_semaphore, #tpu.memory_space<semaphore_mem>>
      tpu.wait_dma2 semaphore(%720 : memref<!tpu.dma_semaphore, #tpu.memory_space<semaphore_mem>>) src(%716 : memref<128xf32, #tpu.memory_space<any>>) dst(%718 : memref<128xf32, #tpu.memory_space<vmem>>)
      %c0_i32_587 = arith.constant 0 : i32
      %c1_i32_588 = arith.constant 1 : i32
      %c3_i32_589 = arith.constant 3 : i32
      %c1_i32_590 = arith.constant 1 : i32
      %c3_i32_591 = arith.constant 3 : i32
      %c0_i32_592 = arith.constant 0 : i32
      %721 = tpu.memref_slice %arg3[%c0_i32_587, %c0_i32_592] : memref<50x128xf32, #tpu.memory_space<any>> -> memref<1x128xf32, #tpu.memory_space<any>>
      %722 = tpu.memref_squeeze %721 : memref<1x128xf32, #tpu.memory_space<any>> -> memref<128xf32, #tpu.memory_space<any>>
      %c0_i32_593 = arith.constant 0 : i32
      %723 = tpu.memref_slice %arg8[%c1_i32_588, %c3_i32_589, %c0_i32_593] : memref<8x8x128xf32, #tpu.memory_space<vmem>> -> memref<1x1x128xf32, #tpu.memory_space<vmem>>
      %724 = tpu.memref_squeeze %723 : memref<1x1x128xf32, #tpu.memory_space<vmem>> -> memref<128xf32, #tpu.memory_space<vmem>>
      %725 = tpu.memref_slice %arg9[%c1_i32_590, %c3_i32_591] : memref<8x8x!tpu.dma_semaphore, #tpu.memory_space<semaphore_mem>> -> memref<1x1x!tpu.dma_semaphore, #tpu.memory_space<semaphore_mem>>
      %726 = tpu.memref_squeeze %725 : memref<1x1x!tpu.dma_semaphore, #tpu.memory_space<semaphore_mem>> -> memref<!tpu.dma_semaphore, #tpu.memory_space<semaphore_mem>>
      tpu.wait_dma2 semaphore(%726 : memref<!tpu.dma_semaphore, #tpu.memory_space<semaphore_mem>>) src(%722 : memref<128xf32, #tpu.memory_space<any>>) dst(%724 : memref<128xf32, #tpu.memory_space<vmem>>)
      %c0_i32_594 = arith.constant 0 : i32
      %c1_i32_595 = arith.constant 1 : i32
      %c4_i32_596 = arith.constant 4 : i32
      %c1_i32_597 = arith.constant 1 : i32
      %c4_i32_598 = arith.constant 4 : i32
      %c0_i32_599 = arith.constant 0 : i32
      %727 = tpu.memref_slice %arg3[%c0_i32_594, %c0_i32_599] : memref<50x128xf32, #tpu.memory_space<any>> -> memref<1x128xf32, #tpu.memory_space<any>>
      %728 = tpu.memref_squeeze %727 : memref<1x128xf32, #tpu.memory_space<any>> -> memref<128xf32, #tpu.memory_space<any>>
      %c0_i32_600 = arith.constant 0 : i32
      %729 = tpu.memref_slice %arg8[%c1_i32_595, %c4_i32_596, %c0_i32_600] : memref<8x8x128xf32, #tpu.memory_space<vmem>> -> memref<1x1x128xf32, #tpu.memory_space<vmem>>
      %730 = tpu.memref_squeeze %729 : memref<1x1x128xf32, #tpu.memory_space<vmem>> -> memref<128xf32, #tpu.memory_space<vmem>>
      %731 = tpu.memref_slice %arg9[%c1_i32_597, %c4_i32_598] : memref<8x8x!tpu.dma_semaphore, #tpu.memory_space<semaphore_mem>> -> memref<1x1x!tpu.dma_semaphore, #tpu.memory_space<semaphore_mem>>
      %732 = tpu.memref_squeeze %731 : memref<1x1x!tpu.dma_semaphore, #tpu.memory_space<semaphore_mem>> -> memref<!tpu.dma_semaphore, #tpu.memory_space<semaphore_mem>>
      tpu.wait_dma2 semaphore(%732 : memref<!tpu.dma_semaphore, #tpu.memory_space<semaphore_mem>>) src(%728 : memref<128xf32, #tpu.memory_space<any>>) dst(%730 : memref<128xf32, #tpu.memory_space<vmem>>)
      %c0_i32_601 = arith.constant 0 : i32
      %c1_i32_602 = arith.constant 1 : i32
      %c5_i32_603 = arith.constant 5 : i32
      %c1_i32_604 = arith.constant 1 : i32
      %c5_i32_605 = arith.constant 5 : i32
      %c0_i32_606 = arith.constant 0 : i32
      %733 = tpu.memref_slice %arg3[%c0_i32_601, %c0_i32_606] : memref<50x128xf32, #tpu.memory_space<any>> -> memref<1x128xf32, #tpu.memory_space<any>>
      %734 = tpu.memref_squeeze %733 : memref<1x128xf32, #tpu.memory_space<any>> -> memref<128xf32, #tpu.memory_space<any>>
      %c0_i32_607 = arith.constant 0 : i32
      %735 = tpu.memref_slice %arg8[%c1_i32_602, %c5_i32_603, %c0_i32_607] : memref<8x8x128xf32, #tpu.memory_space<vmem>> -> memref<1x1x128xf32, #tpu.memory_space<vmem>>
      %736 = tpu.memref_squeeze %735 : memref<1x1x128xf32, #tpu.memory_space<vmem>> -> memref<128xf32, #tpu.memory_space<vmem>>
      %737 = tpu.memref_slice %arg9[%c1_i32_604, %c5_i32_605] : memref<8x8x!tpu.dma_semaphore, #tpu.memory_space<semaphore_mem>> -> memref<1x1x!tpu.dma_semaphore, #tpu.memory_space<semaphore_mem>>
      %738 = tpu.memref_squeeze %737 : memref<1x1x!tpu.dma_semaphore, #tpu.memory_space<semaphore_mem>> -> memref<!tpu.dma_semaphore, #tpu.memory_space<semaphore_mem>>
      tpu.wait_dma2 semaphore(%738 : memref<!tpu.dma_semaphore, #tpu.memory_space<semaphore_mem>>) src(%734 : memref<128xf32, #tpu.memory_space<any>>) dst(%736 : memref<128xf32, #tpu.memory_space<vmem>>)
      %c0_i32_608 = arith.constant 0 : i32
      %c1_i32_609 = arith.constant 1 : i32
      %c6_i32_610 = arith.constant 6 : i32
      %c1_i32_611 = arith.constant 1 : i32
      %c6_i32_612 = arith.constant 6 : i32
      %c0_i32_613 = arith.constant 0 : i32
      %739 = tpu.memref_slice %arg3[%c0_i32_608, %c0_i32_613] : memref<50x128xf32, #tpu.memory_space<any>> -> memref<1x128xf32, #tpu.memory_space<any>>
      %740 = tpu.memref_squeeze %739 : memref<1x128xf32, #tpu.memory_space<any>> -> memref<128xf32, #tpu.memory_space<any>>
      %c0_i32_614 = arith.constant 0 : i32
      %741 = tpu.memref_slice %arg8[%c1_i32_609, %c6_i32_610, %c0_i32_614] : memref<8x8x128xf32, #tpu.memory_space<vmem>> -> memref<1x1x128xf32, #tpu.memory_space<vmem>>
      %742 = tpu.memref_squeeze %741 : memref<1x1x128xf32, #tpu.memory_space<vmem>> -> memref<128xf32, #tpu.memory_space<vmem>>
      %743 = tpu.memref_slice %arg9[%c1_i32_611, %c6_i32_612] : memref<8x8x!tpu.dma_semaphore, #tpu.memory_space<semaphore_mem>> -> memref<1x1x!tpu.dma_semaphore, #tpu.memory_space<semaphore_mem>>
      %744 = tpu.memref_squeeze %743 : memref<1x1x!tpu.dma_semaphore, #tpu.memory_space<semaphore_mem>> -> memref<!tpu.dma_semaphore, #tpu.memory_space<semaphore_mem>>
      tpu.wait_dma2 semaphore(%744 : memref<!tpu.dma_semaphore, #tpu.memory_space<semaphore_mem>>) src(%740 : memref<128xf32, #tpu.memory_space<any>>) dst(%742 : memref<128xf32, #tpu.memory_space<vmem>>)
      %c0_i32_615 = arith.constant 0 : i32
      %c1_i32_616 = arith.constant 1 : i32
      %c7_i32_617 = arith.constant 7 : i32
      %c1_i32_618 = arith.constant 1 : i32
      %c7_i32_619 = arith.constant 7 : i32
      %c0_i32_620 = arith.constant 0 : i32
      %745 = tpu.memref_slice %arg3[%c0_i32_615, %c0_i32_620] : memref<50x128xf32, #tpu.memory_space<any>> -> memref<1x128xf32, #tpu.memory_space<any>>
      %746 = tpu.memref_squeeze %745 : memref<1x128xf32, #tpu.memory_space<any>> -> memref<128xf32, #tpu.memory_space<any>>
      %c0_i32_621 = arith.constant 0 : i32
      %747 = tpu.memref_slice %arg8[%c1_i32_616, %c7_i32_617, %c0_i32_621] : memref<8x8x128xf32, #tpu.memory_space<vmem>> -> memref<1x1x128xf32, #tpu.memory_space<vmem>>
      %748 = tpu.memref_squeeze %747 : memref<1x1x128xf32, #tpu.memory_space<vmem>> -> memref<128xf32, #tpu.memory_space<vmem>>
      %749 = tpu.memref_slice %arg9[%c1_i32_618, %c7_i32_619] : memref<8x8x!tpu.dma_semaphore, #tpu.memory_space<semaphore_mem>> -> memref<1x1x!tpu.dma_semaphore, #tpu.memory_space<semaphore_mem>>
      %750 = tpu.memref_squeeze %749 : memref<1x1x!tpu.dma_semaphore, #tpu.memory_space<semaphore_mem>> -> memref<!tpu.dma_semaphore, #tpu.memory_space<semaphore_mem>>
      tpu.wait_dma2 semaphore(%750 : memref<!tpu.dma_semaphore, #tpu.memory_space<semaphore_mem>>) src(%746 : memref<128xf32, #tpu.memory_space<any>>) dst(%748 : memref<128xf32, #tpu.memory_space<vmem>>)
      %c1 = arith.constant 1 : index
      %c0_622 = arith.constant 0 : index
      %c0_623 = arith.constant 0 : index
      %751 = vector.load %arg8[%c1, %c0_622, %c0_623] : memref<8x8x128xf32, #tpu.memory_space<vmem>>, vector<1x8x128xf32>
      %752 = vector.shape_cast %751 : vector<1x8x128xf32> to vector<8x128xf32>
      %753 = arith.addf %702, %752 : vector<8x128xf32>
      %c0_i32_624 = arith.constant 0 : i32
      %c2_i32_625 = arith.constant 2 : i32
      %c0_i32_626 = arith.constant 0 : i32
      %c2_i32_627 = arith.constant 2 : i32
      %c0_i32_628 = arith.constant 0 : i32
      %c0_i32_629 = arith.constant 0 : i32
      %754 = tpu.memref_slice %arg3[%c0_i32_624, %c0_i32_629] : memref<50x128xf32, #tpu.memory_space<any>> -> memref<1x128xf32, #tpu.memory_space<any>>
      %755 = tpu.memref_squeeze %754 : memref<1x128xf32, #tpu.memory_space<any>> -> memref<128xf32, #tpu.memory_space<any>>
      %c0_i32_630 = arith.constant 0 : i32
      %756 = tpu.memref_slice %arg8[%c2_i32_625, %c0_i32_626, %c0_i32_630] : memref<8x8x128xf32, #tpu.memory_space<vmem>> -> memref<1x1x128xf32, #tpu.memory_space<vmem>>
      %757 = tpu.memref_squeeze %756 : memref<1x1x128xf32, #tpu.memory_space<vmem>> -> memref<128xf32, #tpu.memory_space<vmem>>
      %758 = tpu.memref_slice %arg9[%c2_i32_627, %c0_i32_628] : memref<8x8x!tpu.dma_semaphore, #tpu.memory_space<semaphore_mem>> -> memref<1x1x!tpu.dma_semaphore, #tpu.memory_space<semaphore_mem>>
      %759 = tpu.memref_squeeze %758 : memref<1x1x!tpu.dma_semaphore, #tpu.memory_space<semaphore_mem>> -> memref<!tpu.dma_semaphore, #tpu.memory_space<semaphore_mem>>
      tpu.wait_dma2 semaphore(%759 : memref<!tpu.dma_semaphore, #tpu.memory_space<semaphore_mem>>) src(%755 : memref<128xf32, #tpu.memory_space<any>>) dst(%757 : memref<128xf32, #tpu.memory_space<vmem>>)
      %c0_i32_631 = arith.constant 0 : i32
      %c2_i32_632 = arith.constant 2 : i32
      %c1_i32_633 = arith.constant 1 : i32
      %c2_i32_634 = arith.constant 2 : i32
      %c1_i32_635 = arith.constant 1 : i32
      %c0_i32_636 = arith.constant 0 : i32
      %760 = tpu.memref_slice %arg3[%c0_i32_631, %c0_i32_636] : memref<50x128xf32, #tpu.memory_space<any>> -> memref<1x128xf32, #tpu.memory_space<any>>
      %761 = tpu.memref_squeeze %760 : memref<1x128xf32, #tpu.memory_space<any>> -> memref<128xf32, #tpu.memory_space<any>>
      %c0_i32_637 = arith.constant 0 : i32
      %762 = tpu.memref_slice %arg8[%c2_i32_632, %c1_i32_633, %c0_i32_637] : memref<8x8x128xf32, #tpu.memory_space<vmem>> -> memref<1x1x128xf32, #tpu.memory_space<vmem>>
      %763 = tpu.memref_squeeze %762 : memref<1x1x128xf32, #tpu.memory_space<vmem>> -> memref<128xf32, #tpu.memory_space<vmem>>
      %764 = tpu.memref_slice %arg9[%c2_i32_634, %c1_i32_635] : memref<8x8x!tpu.dma_semaphore, #tpu.memory_space<semaphore_mem>> -> memref<1x1x!tpu.dma_semaphore, #tpu.memory_space<semaphore_mem>>
      %765 = tpu.memref_squeeze %764 : memref<1x1x!tpu.dma_semaphore, #tpu.memory_space<semaphore_mem>> -> memref<!tpu.dma_semaphore, #tpu.memory_space<semaphore_mem>>
      tpu.wait_dma2 semaphore(%765 : memref<!tpu.dma_semaphore, #tpu.memory_space<semaphore_mem>>) src(%761 : memref<128xf32, #tpu.memory_space<any>>) dst(%763 : memref<128xf32, #tpu.memory_space<vmem>>)
      %c0_i32_638 = arith.constant 0 : i32
      %c2_i32_639 = arith.constant 2 : i32
      %c2_i32_640 = arith.constant 2 : i32
      %c2_i32_641 = arith.constant 2 : i32
      %c2_i32_642 = arith.constant 2 : i32
      %c0_i32_643 = arith.constant 0 : i32
      %766 = tpu.memref_slice %arg3[%c0_i32_638, %c0_i32_643] : memref<50x128xf32, #tpu.memory_space<any>> -> memref<1x128xf32, #tpu.memory_space<any>>
      %767 = tpu.memref_squeeze %766 : memref<1x128xf32, #tpu.memory_space<any>> -> memref<128xf32, #tpu.memory_space<any>>
      %c0_i32_644 = arith.constant 0 : i32
      %768 = tpu.memref_slice %arg8[%c2_i32_639, %c2_i32_640, %c0_i32_644] : memref<8x8x128xf32, #tpu.memory_space<vmem>> -> memref<1x1x128xf32, #tpu.memory_space<vmem>>
      %769 = tpu.memref_squeeze %768 : memref<1x1x128xf32, #tpu.memory_space<vmem>> -> memref<128xf32, #tpu.memory_space<vmem>>
      %770 = tpu.memref_slice %arg9[%c2_i32_641, %c2_i32_642] : memref<8x8x!tpu.dma_semaphore, #tpu.memory_space<semaphore_mem>> -> memref<1x1x!tpu.dma_semaphore, #tpu.memory_space<semaphore_mem>>
      %771 = tpu.memref_squeeze %770 : memref<1x1x!tpu.dma_semaphore, #tpu.memory_space<semaphore_mem>> -> memref<!tpu.dma_semaphore, #tpu.memory_space<semaphore_mem>>
      tpu.wait_dma2 semaphore(%771 : memref<!tpu.dma_semaphore, #tpu.memory_space<semaphore_mem>>) src(%767 : memref<128xf32, #tpu.memory_space<any>>) dst(%769 : memref<128xf32, #tpu.memory_space<vmem>>)
      %c0_i32_645 = arith.constant 0 : i32
      %c2_i32_646 = arith.constant 2 : i32
      %c3_i32_647 = arith.constant 3 : i32
      %c2_i32_648 = arith.constant 2 : i32
      %c3_i32_649 = arith.constant 3 : i32
      %c0_i32_650 = arith.constant 0 : i32
      %772 = tpu.memref_slice %arg3[%c0_i32_645, %c0_i32_650] : memref<50x128xf32, #tpu.memory_space<any>> -> memref<1x128xf32, #tpu.memory_space<any>>
      %773 = tpu.memref_squeeze %772 : memref<1x128xf32, #tpu.memory_space<any>> -> memref<128xf32, #tpu.memory_space<any>>
      %c0_i32_651 = arith.constant 0 : i32
      %774 = tpu.memref_slice %arg8[%c2_i32_646, %c3_i32_647, %c0_i32_651] : memref<8x8x128xf32, #tpu.memory_space<vmem>> -> memref<1x1x128xf32, #tpu.memory_space<vmem>>
      %775 = tpu.memref_squeeze %774 : memref<1x1x128xf32, #tpu.memory_space<vmem>> -> memref<128xf32, #tpu.memory_space<vmem>>
      %776 = tpu.memref_slice %arg9[%c2_i32_648, %c3_i32_649] : memref<8x8x!tpu.dma_semaphore, #tpu.memory_space<semaphore_mem>> -> memref<1x1x!tpu.dma_semaphore, #tpu.memory_space<semaphore_mem>>
      %777 = tpu.memref_squeeze %776 : memref<1x1x!tpu.dma_semaphore, #tpu.memory_space<semaphore_mem>> -> memref<!tpu.dma_semaphore, #tpu.memory_space<semaphore_mem>>
      tpu.wait_dma2 semaphore(%777 : memref<!tpu.dma_semaphore, #tpu.memory_space<semaphore_mem>>) src(%773 : memref<128xf32, #tpu.memory_space<any>>) dst(%775 : memref<128xf32, #tpu.memory_space<vmem>>)
      %c0_i32_652 = arith.constant 0 : i32
      %c2_i32_653 = arith.constant 2 : i32
      %c4_i32_654 = arith.constant 4 : i32
      %c2_i32_655 = arith.constant 2 : i32
      %c4_i32_656 = arith.constant 4 : i32
      %c0_i32_657 = arith.constant 0 : i32
      %778 = tpu.memref_slice %arg3[%c0_i32_652, %c0_i32_657] : memref<50x128xf32, #tpu.memory_space<any>> -> memref<1x128xf32, #tpu.memory_space<any>>
      %779 = tpu.memref_squeeze %778 : memref<1x128xf32, #tpu.memory_space<any>> -> memref<128xf32, #tpu.memory_space<any>>
      %c0_i32_658 = arith.constant 0 : i32
      %780 = tpu.memref_slice %arg8[%c2_i32_653, %c4_i32_654, %c0_i32_658] : memref<8x8x128xf32, #tpu.memory_space<vmem>> -> memref<1x1x128xf32, #tpu.memory_space<vmem>>
      %781 = tpu.memref_squeeze %780 : memref<1x1x128xf32, #tpu.memory_space<vmem>> -> memref<128xf32, #tpu.memory_space<vmem>>
      %782 = tpu.memref_slice %arg9[%c2_i32_655, %c4_i32_656] : memref<8x8x!tpu.dma_semaphore, #tpu.memory_space<semaphore_mem>> -> memref<1x1x!tpu.dma_semaphore, #tpu.memory_space<semaphore_mem>>
      %783 = tpu.memref_squeeze %782 : memref<1x1x!tpu.dma_semaphore, #tpu.memory_space<semaphore_mem>> -> memref<!tpu.dma_semaphore, #tpu.memory_space<semaphore_mem>>
      tpu.wait_dma2 semaphore(%783 : memref<!tpu.dma_semaphore, #tpu.memory_space<semaphore_mem>>) src(%779 : memref<128xf32, #tpu.memory_space<any>>) dst(%781 : memref<128xf32, #tpu.memory_space<vmem>>)
      %c0_i32_659 = arith.constant 0 : i32
      %c2_i32_660 = arith.constant 2 : i32
      %c5_i32_661 = arith.constant 5 : i32
      %c2_i32_662 = arith.constant 2 : i32
      %c5_i32_663 = arith.constant 5 : i32
      %c0_i32_664 = arith.constant 0 : i32
      %784 = tpu.memref_slice %arg3[%c0_i32_659, %c0_i32_664] : memref<50x128xf32, #tpu.memory_space<any>> -> memref<1x128xf32, #tpu.memory_space<any>>
      %785 = tpu.memref_squeeze %784 : memref<1x128xf32, #tpu.memory_space<any>> -> memref<128xf32, #tpu.memory_space<any>>
      %c0_i32_665 = arith.constant 0 : i32
      %786 = tpu.memref_slice %arg8[%c2_i32_660, %c5_i32_661, %c0_i32_665] : memref<8x8x128xf32, #tpu.memory_space<vmem>> -> memref<1x1x128xf32, #tpu.memory_space<vmem>>
      %787 = tpu.memref_squeeze %786 : memref<1x1x128xf32, #tpu.memory_space<vmem>> -> memref<128xf32, #tpu.memory_space<vmem>>
      %788 = tpu.memref_slice %arg9[%c2_i32_662, %c5_i32_663] : memref<8x8x!tpu.dma_semaphore, #tpu.memory_space<semaphore_mem>> -> memref<1x1x!tpu.dma_semaphore, #tpu.memory_space<semaphore_mem>>
      %789 = tpu.memref_squeeze %788 : memref<1x1x!tpu.dma_semaphore, #tpu.memory_space<semaphore_mem>> -> memref<!tpu.dma_semaphore, #tpu.memory_space<semaphore_mem>>
      tpu.wait_dma2 semaphore(%789 : memref<!tpu.dma_semaphore, #tpu.memory_space<semaphore_mem>>) src(%785 : memref<128xf32, #tpu.memory_space<any>>) dst(%787 : memref<128xf32, #tpu.memory_space<vmem>>)
      %c0_i32_666 = arith.constant 0 : i32
      %c2_i32_667 = arith.constant 2 : i32
      %c6_i32_668 = arith.constant 6 : i32
      %c2_i32_669 = arith.constant 2 : i32
      %c6_i32_670 = arith.constant 6 : i32
      %c0_i32_671 = arith.constant 0 : i32
      %790 = tpu.memref_slice %arg3[%c0_i32_666, %c0_i32_671] : memref<50x128xf32, #tpu.memory_space<any>> -> memref<1x128xf32, #tpu.memory_space<any>>
      %791 = tpu.memref_squeeze %790 : memref<1x128xf32, #tpu.memory_space<any>> -> memref<128xf32, #tpu.memory_space<any>>
      %c0_i32_672 = arith.constant 0 : i32
      %792 = tpu.memref_slice %arg8[%c2_i32_667, %c6_i32_668, %c0_i32_672] : memref<8x8x128xf32, #tpu.memory_space<vmem>> -> memref<1x1x128xf32, #tpu.memory_space<vmem>>
      %793 = tpu.memref_squeeze %792 : memref<1x1x128xf32, #tpu.memory_space<vmem>> -> memref<128xf32, #tpu.memory_space<vmem>>
      %794 = tpu.memref_slice %arg9[%c2_i32_669, %c6_i32_670] : memref<8x8x!tpu.dma_semaphore, #tpu.memory_space<semaphore_mem>> -> memref<1x1x!tpu.dma_semaphore, #tpu.memory_space<semaphore_mem>>
      %795 = tpu.memref_squeeze %794 : memref<1x1x!tpu.dma_semaphore, #tpu.memory_space<semaphore_mem>> -> memref<!tpu.dma_semaphore, #tpu.memory_space<semaphore_mem>>
      tpu.wait_dma2 semaphore(%795 : memref<!tpu.dma_semaphore, #tpu.memory_space<semaphore_mem>>) src(%791 : memref<128xf32, #tpu.memory_space<any>>) dst(%793 : memref<128xf32, #tpu.memory_space<vmem>>)
      %c0_i32_673 = arith.constant 0 : i32
      %c2_i32_674 = arith.constant 2 : i32
      %c7_i32_675 = arith.constant 7 : i32
      %c2_i32_676 = arith.constant 2 : i32
      %c7_i32_677 = arith.constant 7 : i32
      %c0_i32_678 = arith.constant 0 : i32
      %796 = tpu.memref_slice %arg3[%c0_i32_673, %c0_i32_678] : memref<50x128xf32, #tpu.memory_space<any>> -> memref<1x128xf32, #tpu.memory_space<any>>
      %797 = tpu.memref_squeeze %796 : memref<1x128xf32, #tpu.memory_space<any>> -> memref<128xf32, #tpu.memory_space<any>>
      %c0_i32_679 = arith.constant 0 : i32
      %798 = tpu.memref_slice %arg8[%c2_i32_674, %c7_i32_675, %c0_i32_679] : memref<8x8x128xf32, #tpu.memory_space<vmem>> -> memref<1x1x128xf32, #tpu.memory_space<vmem>>
      %799 = tpu.memref_squeeze %798 : memref<1x1x128xf32, #tpu.memory_space<vmem>> -> memref<128xf32, #tpu.memory_space<vmem>>
      %800 = tpu.memref_slice %arg9[%c2_i32_676, %c7_i32_677] : memref<8x8x!tpu.dma_semaphore, #tpu.memory_space<semaphore_mem>> -> memref<1x1x!tpu.dma_semaphore, #tpu.memory_space<semaphore_mem>>
      %801 = tpu.memref_squeeze %800 : memref<1x1x!tpu.dma_semaphore, #tpu.memory_space<semaphore_mem>> -> memref<!tpu.dma_semaphore, #tpu.memory_space<semaphore_mem>>
      tpu.wait_dma2 semaphore(%801 : memref<!tpu.dma_semaphore, #tpu.memory_space<semaphore_mem>>) src(%797 : memref<128xf32, #tpu.memory_space<any>>) dst(%799 : memref<128xf32, #tpu.memory_space<vmem>>)
      %c2 = arith.constant 2 : index
      %c0_680 = arith.constant 0 : index
      %c0_681 = arith.constant 0 : index
      %802 = vector.load %arg8[%c2, %c0_680, %c0_681] : memref<8x8x128xf32, #tpu.memory_space<vmem>>, vector<1x8x128xf32>
      %803 = vector.shape_cast %802 : vector<1x8x128xf32> to vector<8x128xf32>
      %804 = arith.addf %753, %803 : vector<8x128xf32>
      %c0_i32_682 = arith.constant 0 : i32
      %c3_i32_683 = arith.constant 3 : i32
      %c0_i32_684 = arith.constant 0 : i32
      %c3_i32_685 = arith.constant 3 : i32
      %c0_i32_686 = arith.constant 0 : i32
      %c0_i32_687 = arith.constant 0 : i32
      %805 = tpu.memref_slice %arg3[%c0_i32_682, %c0_i32_687] : memref<50x128xf32, #tpu.memory_space<any>> -> memref<1x128xf32, #tpu.memory_space<any>>
      %806 = tpu.memref_squeeze %805 : memref<1x128xf32, #tpu.memory_space<any>> -> memref<128xf32, #tpu.memory_space<any>>
      %c0_i32_688 = arith.constant 0 : i32
      %807 = tpu.memref_slice %arg8[%c3_i32_683, %c0_i32_684, %c0_i32_688] : memref<8x8x128xf32, #tpu.memory_space<vmem>> -> memref<1x1x128xf32, #tpu.memory_space<vmem>>
      %808 = tpu.memref_squeeze %807 : memref<1x1x128xf32, #tpu.memory_space<vmem>> -> memref<128xf32, #tpu.memory_space<vmem>>
      %809 = tpu.memref_slice %arg9[%c3_i32_685, %c0_i32_686] : memref<8x8x!tpu.dma_semaphore, #tpu.memory_space<semaphore_mem>> -> memref<1x1x!tpu.dma_semaphore, #tpu.memory_space<semaphore_mem>>
      %810 = tpu.memref_squeeze %809 : memref<1x1x!tpu.dma_semaphore, #tpu.memory_space<semaphore_mem>> -> memref<!tpu.dma_semaphore, #tpu.memory_space<semaphore_mem>>
      tpu.wait_dma2 semaphore(%810 : memref<!tpu.dma_semaphore, #tpu.memory_space<semaphore_mem>>) src(%806 : memref<128xf32, #tpu.memory_space<any>>) dst(%808 : memref<128xf32, #tpu.memory_space<vmem>>)
      %c0_i32_689 = arith.constant 0 : i32
      %c3_i32_690 = arith.constant 3 : i32
      %c1_i32_691 = arith.constant 1 : i32
      %c3_i32_692 = arith.constant 3 : i32
      %c1_i32_693 = arith.constant 1 : i32
      %c0_i32_694 = arith.constant 0 : i32
      %811 = tpu.memref_slice %arg3[%c0_i32_689, %c0_i32_694] : memref<50x128xf32, #tpu.memory_space<any>> -> memref<1x128xf32, #tpu.memory_space<any>>
      %812 = tpu.memref_squeeze %811 : memref<1x128xf32, #tpu.memory_space<any>> -> memref<128xf32, #tpu.memory_space<any>>
      %c0_i32_695 = arith.constant 0 : i32
      %813 = tpu.memref_slice %arg8[%c3_i32_690, %c1_i32_691, %c0_i32_695] : memref<8x8x128xf32, #tpu.memory_space<vmem>> -> memref<1x1x128xf32, #tpu.memory_space<vmem>>
      %814 = tpu.memref_squeeze %813 : memref<1x1x128xf32, #tpu.memory_space<vmem>> -> memref<128xf32, #tpu.memory_space<vmem>>
      %815 = tpu.memref_slice %arg9[%c3_i32_692, %c1_i32_693] : memref<8x8x!tpu.dma_semaphore, #tpu.memory_space<semaphore_mem>> -> memref<1x1x!tpu.dma_semaphore, #tpu.memory_space<semaphore_mem>>
      %816 = tpu.memref_squeeze %815 : memref<1x1x!tpu.dma_semaphore, #tpu.memory_space<semaphore_mem>> -> memref<!tpu.dma_semaphore, #tpu.memory_space<semaphore_mem>>
      tpu.wait_dma2 semaphore(%816 : memref<!tpu.dma_semaphore, #tpu.memory_space<semaphore_mem>>) src(%812 : memref<128xf32, #tpu.memory_space<any>>) dst(%814 : memref<128xf32, #tpu.memory_space<vmem>>)
      %c0_i32_696 = arith.constant 0 : i32
      %c3_i32_697 = arith.constant 3 : i32
      %c2_i32_698 = arith.constant 2 : i32
      %c3_i32_699 = arith.constant 3 : i32
      %c2_i32_700 = arith.constant 2 : i32
      %c0_i32_701 = arith.constant 0 : i32
      %817 = tpu.memref_slice %arg3[%c0_i32_696, %c0_i32_701] : memref<50x128xf32, #tpu.memory_space<any>> -> memref<1x128xf32, #tpu.memory_space<any>>
      %818 = tpu.memref_squeeze %817 : memref<1x128xf32, #tpu.memory_space<any>> -> memref<128xf32, #tpu.memory_space<any>>
      %c0_i32_702 = arith.constant 0 : i32
      %819 = tpu.memref_slice %arg8[%c3_i32_697, %c2_i32_698, %c0_i32_702] : memref<8x8x128xf32, #tpu.memory_space<vmem>> -> memref<1x1x128xf32, #tpu.memory_space<vmem>>
      %820 = tpu.memref_squeeze %819 : memref<1x1x128xf32, #tpu.memory_space<vmem>> -> memref<128xf32, #tpu.memory_space<vmem>>
      %821 = tpu.memref_slice %arg9[%c3_i32_699, %c2_i32_700] : memref<8x8x!tpu.dma_semaphore, #tpu.memory_space<semaphore_mem>> -> memref<1x1x!tpu.dma_semaphore, #tpu.memory_space<semaphore_mem>>
      %822 = tpu.memref_squeeze %821 : memref<1x1x!tpu.dma_semaphore, #tpu.memory_space<semaphore_mem>> -> memref<!tpu.dma_semaphore, #tpu.memory_space<semaphore_mem>>
      tpu.wait_dma2 semaphore(%822 : memref<!tpu.dma_semaphore, #tpu.memory_space<semaphore_mem>>) src(%818 : memref<128xf32, #tpu.memory_space<any>>) dst(%820 : memref<128xf32, #tpu.memory_space<vmem>>)
      %c0_i32_703 = arith.constant 0 : i32
      %c3_i32_704 = arith.constant 3 : i32
      %c3_i32_705 = arith.constant 3 : i32
      %c3_i32_706 = arith.constant 3 : i32
      %c3_i32_707 = arith.constant 3 : i32
      %c0_i32_708 = arith.constant 0 : i32
      %823 = tpu.memref_slice %arg3[%c0_i32_703, %c0_i32_708] : memref<50x128xf32, #tpu.memory_space<any>> -> memref<1x128xf32, #tpu.memory_space<any>>
      %824 = tpu.memref_squeeze %823 : memref<1x128xf32, #tpu.memory_space<any>> -> memref<128xf32, #tpu.memory_space<any>>
      %c0_i32_709 = arith.constant 0 : i32
      %825 = tpu.memref_slice %arg8[%c3_i32_704, %c3_i32_705, %c0_i32_709] : memref<8x8x128xf32, #tpu.memory_space<vmem>> -> memref<1x1x128xf32, #tpu.memory_space<vmem>>
      %826 = tpu.memref_squeeze %825 : memref<1x1x128xf32, #tpu.memory_space<vmem>> -> memref<128xf32, #tpu.memory_space<vmem>>
      %827 = tpu.memref_slice %arg9[%c3_i32_706, %c3_i32_707] : memref<8x8x!tpu.dma_semaphore, #tpu.memory_space<semaphore_mem>> -> memref<1x1x!tpu.dma_semaphore, #tpu.memory_space<semaphore_mem>>
      %828 = tpu.memref_squeeze %827 : memref<1x1x!tpu.dma_semaphore, #tpu.memory_space<semaphore_mem>> -> memref<!tpu.dma_semaphore, #tpu.memory_space<semaphore_mem>>
      tpu.wait_dma2 semaphore(%828 : memref<!tpu.dma_semaphore, #tpu.memory_space<semaphore_mem>>) src(%824 : memref<128xf32, #tpu.memory_space<any>>) dst(%826 : memref<128xf32, #tpu.memory_space<vmem>>)
      %c0_i32_710 = arith.constant 0 : i32
      %c3_i32_711 = arith.constant 3 : i32
      %c4_i32_712 = arith.constant 4 : i32
      %c3_i32_713 = arith.constant 3 : i32
      %c4_i32_714 = arith.constant 4 : i32
      %c0_i32_715 = arith.constant 0 : i32
      %829 = tpu.memref_slice %arg3[%c0_i32_710, %c0_i32_715] : memref<50x128xf32, #tpu.memory_space<any>> -> memref<1x128xf32, #tpu.memory_space<any>>
      %830 = tpu.memref_squeeze %829 : memref<1x128xf32, #tpu.memory_space<any>> -> memref<128xf32, #tpu.memory_space<any>>
      %c0_i32_716 = arith.constant 0 : i32
      %831 = tpu.memref_slice %arg8[%c3_i32_711, %c4_i32_712, %c0_i32_716] : memref<8x8x128xf32, #tpu.memory_space<vmem>> -> memref<1x1x128xf32, #tpu.memory_space<vmem>>
      %832 = tpu.memref_squeeze %831 : memref<1x1x128xf32, #tpu.memory_space<vmem>> -> memref<128xf32, #tpu.memory_space<vmem>>
      %833 = tpu.memref_slice %arg9[%c3_i32_713, %c4_i32_714] : memref<8x8x!tpu.dma_semaphore, #tpu.memory_space<semaphore_mem>> -> memref<1x1x!tpu.dma_semaphore, #tpu.memory_space<semaphore_mem>>
      %834 = tpu.memref_squeeze %833 : memref<1x1x!tpu.dma_semaphore, #tpu.memory_space<semaphore_mem>> -> memref<!tpu.dma_semaphore, #tpu.memory_space<semaphore_mem>>
      tpu.wait_dma2 semaphore(%834 : memref<!tpu.dma_semaphore, #tpu.memory_space<semaphore_mem>>) src(%830 : memref<128xf32, #tpu.memory_space<any>>) dst(%832 : memref<128xf32, #tpu.memory_space<vmem>>)
      %c0_i32_717 = arith.constant 0 : i32
      %c3_i32_718 = arith.constant 3 : i32
      %c5_i32_719 = arith.constant 5 : i32
      %c3_i32_720 = arith.constant 3 : i32
      %c5_i32_721 = arith.constant 5 : i32
      %c0_i32_722 = arith.constant 0 : i32
      %835 = tpu.memref_slice %arg3[%c0_i32_717, %c0_i32_722] : memref<50x128xf32, #tpu.memory_space<any>> -> memref<1x128xf32, #tpu.memory_space<any>>
      %836 = tpu.memref_squeeze %835 : memref<1x128xf32, #tpu.memory_space<any>> -> memref<128xf32, #tpu.memory_space<any>>
      %c0_i32_723 = arith.constant 0 : i32
      %837 = tpu.memref_slice %arg8[%c3_i32_718, %c5_i32_719, %c0_i32_723] : memref<8x8x128xf32, #tpu.memory_space<vmem>> -> memref<1x1x128xf32, #tpu.memory_space<vmem>>
      %838 = tpu.memref_squeeze %837 : memref<1x1x128xf32, #tpu.memory_space<vmem>> -> memref<128xf32, #tpu.memory_space<vmem>>
      %839 = tpu.memref_slice %arg9[%c3_i32_720, %c5_i32_721] : memref<8x8x!tpu.dma_semaphore, #tpu.memory_space<semaphore_mem>> -> memref<1x1x!tpu.dma_semaphore, #tpu.memory_space<semaphore_mem>>
      %840 = tpu.memref_squeeze %839 : memref<1x1x!tpu.dma_semaphore, #tpu.memory_space<semaphore_mem>> -> memref<!tpu.dma_semaphore, #tpu.memory_space<semaphore_mem>>
      tpu.wait_dma2 semaphore(%840 : memref<!tpu.dma_semaphore, #tpu.memory_space<semaphore_mem>>) src(%836 : memref<128xf32, #tpu.memory_space<any>>) dst(%838 : memref<128xf32, #tpu.memory_space<vmem>>)
      %c0_i32_724 = arith.constant 0 : i32
      %c3_i32_725 = arith.constant 3 : i32
      %c6_i32_726 = arith.constant 6 : i32
      %c3_i32_727 = arith.constant 3 : i32
      %c6_i32_728 = arith.constant 6 : i32
      %c0_i32_729 = arith.constant 0 : i32
      %841 = tpu.memref_slice %arg3[%c0_i32_724, %c0_i32_729] : memref<50x128xf32, #tpu.memory_space<any>> -> memref<1x128xf32, #tpu.memory_space<any>>
      %842 = tpu.memref_squeeze %841 : memref<1x128xf32, #tpu.memory_space<any>> -> memref<128xf32, #tpu.memory_space<any>>
      %c0_i32_730 = arith.constant 0 : i32
      %843 = tpu.memref_slice %arg8[%c3_i32_725, %c6_i32_726, %c0_i32_730] : memref<8x8x128xf32, #tpu.memory_space<vmem>> -> memref<1x1x128xf32, #tpu.memory_space<vmem>>
      %844 = tpu.memref_squeeze %843 : memref<1x1x128xf32, #tpu.memory_space<vmem>> -> memref<128xf32, #tpu.memory_space<vmem>>
      %845 = tpu.memref_slice %arg9[%c3_i32_727, %c6_i32_728] : memref<8x8x!tpu.dma_semaphore, #tpu.memory_space<semaphore_mem>> -> memref<1x1x!tpu.dma_semaphore, #tpu.memory_space<semaphore_mem>>
      %846 = tpu.memref_squeeze %845 : memref<1x1x!tpu.dma_semaphore, #tpu.memory_space<semaphore_mem>> -> memref<!tpu.dma_semaphore, #tpu.memory_space<semaphore_mem>>
      tpu.wait_dma2 semaphore(%846 : memref<!tpu.dma_semaphore, #tpu.memory_space<semaphore_mem>>) src(%842 : memref<128xf32, #tpu.memory_space<any>>) dst(%844 : memref<128xf32, #tpu.memory_space<vmem>>)
      %c0_i32_731 = arith.constant 0 : i32
      %c3_i32_732 = arith.constant 3 : i32
      %c7_i32_733 = arith.constant 7 : i32
      %c3_i32_734 = arith.constant 3 : i32
      %c7_i32_735 = arith.constant 7 : i32
      %c0_i32_736 = arith.constant 0 : i32
      %847 = tpu.memref_slice %arg3[%c0_i32_731, %c0_i32_736] : memref<50x128xf32, #tpu.memory_space<any>> -> memref<1x128xf32, #tpu.memory_space<any>>
      %848 = tpu.memref_squeeze %847 : memref<1x128xf32, #tpu.memory_space<any>> -> memref<128xf32, #tpu.memory_space<any>>
      %c0_i32_737 = arith.constant 0 : i32
      %849 = tpu.memref_slice %arg8[%c3_i32_732, %c7_i32_733, %c0_i32_737] : memref<8x8x128xf32, #tpu.memory_space<vmem>> -> memref<1x1x128xf32, #tpu.memory_space<vmem>>
      %850 = tpu.memref_squeeze %849 : memref<1x1x128xf32, #tpu.memory_space<vmem>> -> memref<128xf32, #tpu.memory_space<vmem>>
      %851 = tpu.memref_slice %arg9[%c3_i32_734, %c7_i32_735] : memref<8x8x!tpu.dma_semaphore, #tpu.memory_space<semaphore_mem>> -> memref<1x1x!tpu.dma_semaphore, #tpu.memory_space<semaphore_mem>>
      %852 = tpu.memref_squeeze %851 : memref<1x1x!tpu.dma_semaphore, #tpu.memory_space<semaphore_mem>> -> memref<!tpu.dma_semaphore, #tpu.memory_space<semaphore_mem>>
      tpu.wait_dma2 semaphore(%852 : memref<!tpu.dma_semaphore, #tpu.memory_space<semaphore_mem>>) src(%848 : memref<128xf32, #tpu.memory_space<any>>) dst(%850 : memref<128xf32, #tpu.memory_space<vmem>>)
      %c3 = arith.constant 3 : index
      %c0_738 = arith.constant 0 : index
      %c0_739 = arith.constant 0 : index
      %853 = vector.load %arg8[%c3, %c0_738, %c0_739] : memref<8x8x128xf32, #tpu.memory_space<vmem>>, vector<1x8x128xf32>
      %854 = vector.shape_cast %853 : vector<1x8x128xf32> to vector<8x128xf32>
      %855 = arith.addf %804, %854 : vector<8x128xf32>
      %c0_i32_740 = arith.constant 0 : i32
      %c4_i32_741 = arith.constant 4 : i32
      %c0_i32_742 = arith.constant 0 : i32
      %c4_i32_743 = arith.constant 4 : i32
      %c0_i32_744 = arith.constant 0 : i32
      %c0_i32_745 = arith.constant 0 : i32
      %856 = tpu.memref_slice %arg3[%c0_i32_740, %c0_i32_745] : memref<50x128xf32, #tpu.memory_space<any>> -> memref<1x128xf32, #tpu.memory_space<any>>
      %857 = tpu.memref_squeeze %856 : memref<1x128xf32, #tpu.memory_space<any>> -> memref<128xf32, #tpu.memory_space<any>>
      %c0_i32_746 = arith.constant 0 : i32
      %858 = tpu.memref_slice %arg8[%c4_i32_741, %c0_i32_742, %c0_i32_746] : memref<8x8x128xf32, #tpu.memory_space<vmem>> -> memref<1x1x128xf32, #tpu.memory_space<vmem>>
      %859 = tpu.memref_squeeze %858 : memref<1x1x128xf32, #tpu.memory_space<vmem>> -> memref<128xf32, #tpu.memory_space<vmem>>
      %860 = tpu.memref_slice %arg9[%c4_i32_743, %c0_i32_744] : memref<8x8x!tpu.dma_semaphore, #tpu.memory_space<semaphore_mem>> -> memref<1x1x!tpu.dma_semaphore, #tpu.memory_space<semaphore_mem>>
      %861 = tpu.memref_squeeze %860 : memref<1x1x!tpu.dma_semaphore, #tpu.memory_space<semaphore_mem>> -> memref<!tpu.dma_semaphore, #tpu.memory_space<semaphore_mem>>
      tpu.wait_dma2 semaphore(%861 : memref<!tpu.dma_semaphore, #tpu.memory_space<semaphore_mem>>) src(%857 : memref<128xf32, #tpu.memory_space<any>>) dst(%859 : memref<128xf32, #tpu.memory_space<vmem>>)
      %c0_i32_747 = arith.constant 0 : i32
      %c4_i32_748 = arith.constant 4 : i32
      %c1_i32_749 = arith.constant 1 : i32
      %c4_i32_750 = arith.constant 4 : i32
      %c1_i32_751 = arith.constant 1 : i32
      %c0_i32_752 = arith.constant 0 : i32
      %862 = tpu.memref_slice %arg3[%c0_i32_747, %c0_i32_752] : memref<50x128xf32, #tpu.memory_space<any>> -> memref<1x128xf32, #tpu.memory_space<any>>
      %863 = tpu.memref_squeeze %862 : memref<1x128xf32, #tpu.memory_space<any>> -> memref<128xf32, #tpu.memory_space<any>>
      %c0_i32_753 = arith.constant 0 : i32
      %864 = tpu.memref_slice %arg8[%c4_i32_748, %c1_i32_749, %c0_i32_753] : memref<8x8x128xf32, #tpu.memory_space<vmem>> -> memref<1x1x128xf32, #tpu.memory_space<vmem>>
      %865 = tpu.memref_squeeze %864 : memref<1x1x128xf32, #tpu.memory_space<vmem>> -> memref<128xf32, #tpu.memory_space<vmem>>
      %866 = tpu.memref_slice %arg9[%c4_i32_750, %c1_i32_751] : memref<8x8x!tpu.dma_semaphore, #tpu.memory_space<semaphore_mem>> -> memref<1x1x!tpu.dma_semaphore, #tpu.memory_space<semaphore_mem>>
      %867 = tpu.memref_squeeze %866 : memref<1x1x!tpu.dma_semaphore, #tpu.memory_space<semaphore_mem>> -> memref<!tpu.dma_semaphore, #tpu.memory_space<semaphore_mem>>
      tpu.wait_dma2 semaphore(%867 : memref<!tpu.dma_semaphore, #tpu.memory_space<semaphore_mem>>) src(%863 : memref<128xf32, #tpu.memory_space<any>>) dst(%865 : memref<128xf32, #tpu.memory_space<vmem>>)
      %c0_i32_754 = arith.constant 0 : i32
      %c4_i32_755 = arith.constant 4 : i32
      %c2_i32_756 = arith.constant 2 : i32
      %c4_i32_757 = arith.constant 4 : i32
      %c2_i32_758 = arith.constant 2 : i32
      %c0_i32_759 = arith.constant 0 : i32
      %868 = tpu.memref_slice %arg3[%c0_i32_754, %c0_i32_759] : memref<50x128xf32, #tpu.memory_space<any>> -> memref<1x128xf32, #tpu.memory_space<any>>
      %869 = tpu.memref_squeeze %868 : memref<1x128xf32, #tpu.memory_space<any>> -> memref<128xf32, #tpu.memory_space<any>>
      %c0_i32_760 = arith.constant 0 : i32
      %870 = tpu.memref_slice %arg8[%c4_i32_755, %c2_i32_756, %c0_i32_760] : memref<8x8x128xf32, #tpu.memory_space<vmem>> -> memref<1x1x128xf32, #tpu.memory_space<vmem>>
      %871 = tpu.memref_squeeze %870 : memref<1x1x128xf32, #tpu.memory_space<vmem>> -> memref<128xf32, #tpu.memory_space<vmem>>
      %872 = tpu.memref_slice %arg9[%c4_i32_757, %c2_i32_758] : memref<8x8x!tpu.dma_semaphore, #tpu.memory_space<semaphore_mem>> -> memref<1x1x!tpu.dma_semaphore, #tpu.memory_space<semaphore_mem>>
      %873 = tpu.memref_squeeze %872 : memref<1x1x!tpu.dma_semaphore, #tpu.memory_space<semaphore_mem>> -> memref<!tpu.dma_semaphore, #tpu.memory_space<semaphore_mem>>
      tpu.wait_dma2 semaphore(%873 : memref<!tpu.dma_semaphore, #tpu.memory_space<semaphore_mem>>) src(%869 : memref<128xf32, #tpu.memory_space<any>>) dst(%871 : memref<128xf32, #tpu.memory_space<vmem>>)
      %c0_i32_761 = arith.constant 0 : i32
      %c4_i32_762 = arith.constant 4 : i32
      %c3_i32_763 = arith.constant 3 : i32
      %c4_i32_764 = arith.constant 4 : i32
      %c3_i32_765 = arith.constant 3 : i32
      %c0_i32_766 = arith.constant 0 : i32
      %874 = tpu.memref_slice %arg3[%c0_i32_761, %c0_i32_766] : memref<50x128xf32, #tpu.memory_space<any>> -> memref<1x128xf32, #tpu.memory_space<any>>
      %875 = tpu.memref_squeeze %874 : memref<1x128xf32, #tpu.memory_space<any>> -> memref<128xf32, #tpu.memory_space<any>>
      %c0_i32_767 = arith.constant 0 : i32
      %876 = tpu.memref_slice %arg8[%c4_i32_762, %c3_i32_763, %c0_i32_767] : memref<8x8x128xf32, #tpu.memory_space<vmem>> -> memref<1x1x128xf32, #tpu.memory_space<vmem>>
      %877 = tpu.memref_squeeze %876 : memref<1x1x128xf32, #tpu.memory_space<vmem>> -> memref<128xf32, #tpu.memory_space<vmem>>
      %878 = tpu.memref_slice %arg9[%c4_i32_764, %c3_i32_765] : memref<8x8x!tpu.dma_semaphore, #tpu.memory_space<semaphore_mem>> -> memref<1x1x!tpu.dma_semaphore, #tpu.memory_space<semaphore_mem>>
      %879 = tpu.memref_squeeze %878 : memref<1x1x!tpu.dma_semaphore, #tpu.memory_space<semaphore_mem>> -> memref<!tpu.dma_semaphore, #tpu.memory_space<semaphore_mem>>
      tpu.wait_dma2 semaphore(%879 : memref<!tpu.dma_semaphore, #tpu.memory_space<semaphore_mem>>) src(%875 : memref<128xf32, #tpu.memory_space<any>>) dst(%877 : memref<128xf32, #tpu.memory_space<vmem>>)
      %c0_i32_768 = arith.constant 0 : i32
      %c4_i32_769 = arith.constant 4 : i32
      %c4_i32_770 = arith.constant 4 : i32
      %c4_i32_771 = arith.constant 4 : i32
      %c4_i32_772 = arith.constant 4 : i32
      %c0_i32_773 = arith.constant 0 : i32
      %880 = tpu.memref_slice %arg3[%c0_i32_768, %c0_i32_773] : memref<50x128xf32, #tpu.memory_space<any>> -> memref<1x128xf32, #tpu.memory_space<any>>
      %881 = tpu.memref_squeeze %880 : memref<1x128xf32, #tpu.memory_space<any>> -> memref<128xf32, #tpu.memory_space<any>>
      %c0_i32_774 = arith.constant 0 : i32
      %882 = tpu.memref_slice %arg8[%c4_i32_769, %c4_i32_770, %c0_i32_774] : memref<8x8x128xf32, #tpu.memory_space<vmem>> -> memref<1x1x128xf32, #tpu.memory_space<vmem>>
      %883 = tpu.memref_squeeze %882 : memref<1x1x128xf32, #tpu.memory_space<vmem>> -> memref<128xf32, #tpu.memory_space<vmem>>
      %884 = tpu.memref_slice %arg9[%c4_i32_771, %c4_i32_772] : memref<8x8x!tpu.dma_semaphore, #tpu.memory_space<semaphore_mem>> -> memref<1x1x!tpu.dma_semaphore, #tpu.memory_space<semaphore_mem>>
      %885 = tpu.memref_squeeze %884 : memref<1x1x!tpu.dma_semaphore, #tpu.memory_space<semaphore_mem>> -> memref<!tpu.dma_semaphore, #tpu.memory_space<semaphore_mem>>
      tpu.wait_dma2 semaphore(%885 : memref<!tpu.dma_semaphore, #tpu.memory_space<semaphore_mem>>) src(%881 : memref<128xf32, #tpu.memory_space<any>>) dst(%883 : memref<128xf32, #tpu.memory_space<vmem>>)
      %c0_i32_775 = arith.constant 0 : i32
      %c4_i32_776 = arith.constant 4 : i32
      %c5_i32_777 = arith.constant 5 : i32
      %c4_i32_778 = arith.constant 4 : i32
      %c5_i32_779 = arith.constant 5 : i32
      %c0_i32_780 = arith.constant 0 : i32
      %886 = tpu.memref_slice %arg3[%c0_i32_775, %c0_i32_780] : memref<50x128xf32, #tpu.memory_space<any>> -> memref<1x128xf32, #tpu.memory_space<any>>
      %887 = tpu.memref_squeeze %886 : memref<1x128xf32, #tpu.memory_space<any>> -> memref<128xf32, #tpu.memory_space<any>>
      %c0_i32_781 = arith.constant 0 : i32
      %888 = tpu.memref_slice %arg8[%c4_i32_776, %c5_i32_777, %c0_i32_781] : memref<8x8x128xf32, #tpu.memory_space<vmem>> -> memref<1x1x128xf32, #tpu.memory_space<vmem>>
      %889 = tpu.memref_squeeze %888 : memref<1x1x128xf32, #tpu.memory_space<vmem>> -> memref<128xf32, #tpu.memory_space<vmem>>
      %890 = tpu.memref_slice %arg9[%c4_i32_778, %c5_i32_779] : memref<8x8x!tpu.dma_semaphore, #tpu.memory_space<semaphore_mem>> -> memref<1x1x!tpu.dma_semaphore, #tpu.memory_space<semaphore_mem>>
      %891 = tpu.memref_squeeze %890 : memref<1x1x!tpu.dma_semaphore, #tpu.memory_space<semaphore_mem>> -> memref<!tpu.dma_semaphore, #tpu.memory_space<semaphore_mem>>
      tpu.wait_dma2 semaphore(%891 : memref<!tpu.dma_semaphore, #tpu.memory_space<semaphore_mem>>) src(%887 : memref<128xf32, #tpu.memory_space<any>>) dst(%889 : memref<128xf32, #tpu.memory_space<vmem>>)
      %c0_i32_782 = arith.constant 0 : i32
      %c4_i32_783 = arith.constant 4 : i32
      %c6_i32_784 = arith.constant 6 : i32
      %c4_i32_785 = arith.constant 4 : i32
      %c6_i32_786 = arith.constant 6 : i32
      %c0_i32_787 = arith.constant 0 : i32
      %892 = tpu.memref_slice %arg3[%c0_i32_782, %c0_i32_787] : memref<50x128xf32, #tpu.memory_space<any>> -> memref<1x128xf32, #tpu.memory_space<any>>
      %893 = tpu.memref_squeeze %892 : memref<1x128xf32, #tpu.memory_space<any>> -> memref<128xf32, #tpu.memory_space<any>>
      %c0_i32_788 = arith.constant 0 : i32
      %894 = tpu.memref_slice %arg8[%c4_i32_783, %c6_i32_784, %c0_i32_788] : memref<8x8x128xf32, #tpu.memory_space<vmem>> -> memref<1x1x128xf32, #tpu.memory_space<vmem>>
      %895 = tpu.memref_squeeze %894 : memref<1x1x128xf32, #tpu.memory_space<vmem>> -> memref<128xf32, #tpu.memory_space<vmem>>
      %896 = tpu.memref_slice %arg9[%c4_i32_785, %c6_i32_786] : memref<8x8x!tpu.dma_semaphore, #tpu.memory_space<semaphore_mem>> -> memref<1x1x!tpu.dma_semaphore, #tpu.memory_space<semaphore_mem>>
      %897 = tpu.memref_squeeze %896 : memref<1x1x!tpu.dma_semaphore, #tpu.memory_space<semaphore_mem>> -> memref<!tpu.dma_semaphore, #tpu.memory_space<semaphore_mem>>
      tpu.wait_dma2 semaphore(%897 : memref<!tpu.dma_semaphore, #tpu.memory_space<semaphore_mem>>) src(%893 : memref<128xf32, #tpu.memory_space<any>>) dst(%895 : memref<128xf32, #tpu.memory_space<vmem>>)
      %c0_i32_789 = arith.constant 0 : i32
      %c4_i32_790 = arith.constant 4 : i32
      %c7_i32_791 = arith.constant 7 : i32
      %c4_i32_792 = arith.constant 4 : i32
      %c7_i32_793 = arith.constant 7 : i32
      %c0_i32_794 = arith.constant 0 : i32
      %898 = tpu.memref_slice %arg3[%c0_i32_789, %c0_i32_794] : memref<50x128xf32, #tpu.memory_space<any>> -> memref<1x128xf32, #tpu.memory_space<any>>
      %899 = tpu.memref_squeeze %898 : memref<1x128xf32, #tpu.memory_space<any>> -> memref<128xf32, #tpu.memory_space<any>>
      %c0_i32_795 = arith.constant 0 : i32
      %900 = tpu.memref_slice %arg8[%c4_i32_790, %c7_i32_791, %c0_i32_795] : memref<8x8x128xf32, #tpu.memory_space<vmem>> -> memref<1x1x128xf32, #tpu.memory_space<vmem>>
      %901 = tpu.memref_squeeze %900 : memref<1x1x128xf32, #tpu.memory_space<vmem>> -> memref<128xf32, #tpu.memory_space<vmem>>
      %902 = tpu.memref_slice %arg9[%c4_i32_792, %c7_i32_793] : memref<8x8x!tpu.dma_semaphore, #tpu.memory_space<semaphore_mem>> -> memref<1x1x!tpu.dma_semaphore, #tpu.memory_space<semaphore_mem>>
      %903 = tpu.memref_squeeze %902 : memref<1x1x!tpu.dma_semaphore, #tpu.memory_space<semaphore_mem>> -> memref<!tpu.dma_semaphore, #tpu.memory_space<semaphore_mem>>
      tpu.wait_dma2 semaphore(%903 : memref<!tpu.dma_semaphore, #tpu.memory_space<semaphore_mem>>) src(%899 : memref<128xf32, #tpu.memory_space<any>>) dst(%901 : memref<128xf32, #tpu.memory_space<vmem>>)
      %c4 = arith.constant 4 : index
      %c0_796 = arith.constant 0 : index
      %c0_797 = arith.constant 0 : index
      %904 = vector.load %arg8[%c4, %c0_796, %c0_797] : memref<8x8x128xf32, #tpu.memory_space<vmem>>, vector<1x8x128xf32>
      %905 = vector.shape_cast %904 : vector<1x8x128xf32> to vector<8x128xf32>
      %906 = arith.addf %855, %905 : vector<8x128xf32>
      %c0_i32_798 = arith.constant 0 : i32
      %c5_i32_799 = arith.constant 5 : i32
      %c0_i32_800 = arith.constant 0 : i32
      %c5_i32_801 = arith.constant 5 : i32
      %c0_i32_802 = arith.constant 0 : i32
      %c0_i32_803 = arith.constant 0 : i32
      %907 = tpu.memref_slice %arg3[%c0_i32_798, %c0_i32_803] : memref<50x128xf32, #tpu.memory_space<any>> -> memref<1x128xf32, #tpu.memory_space<any>>
      %908 = tpu.memref_squeeze %907 : memref<1x128xf32, #tpu.memory_space<any>> -> memref<128xf32, #tpu.memory_space<any>>
      %c0_i32_804 = arith.constant 0 : i32
      %909 = tpu.memref_slice %arg8[%c5_i32_799, %c0_i32_800, %c0_i32_804] : memref<8x8x128xf32, #tpu.memory_space<vmem>> -> memref<1x1x128xf32, #tpu.memory_space<vmem>>
      %910 = tpu.memref_squeeze %909 : memref<1x1x128xf32, #tpu.memory_space<vmem>> -> memref<128xf32, #tpu.memory_space<vmem>>
      %911 = tpu.memref_slice %arg9[%c5_i32_801, %c0_i32_802] : memref<8x8x!tpu.dma_semaphore, #tpu.memory_space<semaphore_mem>> -> memref<1x1x!tpu.dma_semaphore, #tpu.memory_space<semaphore_mem>>
      %912 = tpu.memref_squeeze %911 : memref<1x1x!tpu.dma_semaphore, #tpu.memory_space<semaphore_mem>> -> memref<!tpu.dma_semaphore, #tpu.memory_space<semaphore_mem>>
      tpu.wait_dma2 semaphore(%912 : memref<!tpu.dma_semaphore, #tpu.memory_space<semaphore_mem>>) src(%908 : memref<128xf32, #tpu.memory_space<any>>) dst(%910 : memref<128xf32, #tpu.memory_space<vmem>>)
      %c0_i32_805 = arith.constant 0 : i32
      %c5_i32_806 = arith.constant 5 : i32
      %c1_i32_807 = arith.constant 1 : i32
      %c5_i32_808 = arith.constant 5 : i32
      %c1_i32_809 = arith.constant 1 : i32
      %c0_i32_810 = arith.constant 0 : i32
      %913 = tpu.memref_slice %arg3[%c0_i32_805, %c0_i32_810] : memref<50x128xf32, #tpu.memory_space<any>> -> memref<1x128xf32, #tpu.memory_space<any>>
      %914 = tpu.memref_squeeze %913 : memref<1x128xf32, #tpu.memory_space<any>> -> memref<128xf32, #tpu.memory_space<any>>
      %c0_i32_811 = arith.constant 0 : i32
      %915 = tpu.memref_slice %arg8[%c5_i32_806, %c1_i32_807, %c0_i32_811] : memref<8x8x128xf32, #tpu.memory_space<vmem>> -> memref<1x1x128xf32, #tpu.memory_space<vmem>>
      %916 = tpu.memref_squeeze %915 : memref<1x1x128xf32, #tpu.memory_space<vmem>> -> memref<128xf32, #tpu.memory_space<vmem>>
      %917 = tpu.memref_slice %arg9[%c5_i32_808, %c1_i32_809] : memref<8x8x!tpu.dma_semaphore, #tpu.memory_space<semaphore_mem>> -> memref<1x1x!tpu.dma_semaphore, #tpu.memory_space<semaphore_mem>>
      %918 = tpu.memref_squeeze %917 : memref<1x1x!tpu.dma_semaphore, #tpu.memory_space<semaphore_mem>> -> memref<!tpu.dma_semaphore, #tpu.memory_space<semaphore_mem>>
      tpu.wait_dma2 semaphore(%918 : memref<!tpu.dma_semaphore, #tpu.memory_space<semaphore_mem>>) src(%914 : memref<128xf32, #tpu.memory_space<any>>) dst(%916 : memref<128xf32, #tpu.memory_space<vmem>>)
      %c0_i32_812 = arith.constant 0 : i32
      %c5_i32_813 = arith.constant 5 : i32
      %c2_i32_814 = arith.constant 2 : i32
      %c5_i32_815 = arith.constant 5 : i32
      %c2_i32_816 = arith.constant 2 : i32
      %c0_i32_817 = arith.constant 0 : i32
      %919 = tpu.memref_slice %arg3[%c0_i32_812, %c0_i32_817] : memref<50x128xf32, #tpu.memory_space<any>> -> memref<1x128xf32, #tpu.memory_space<any>>
      %920 = tpu.memref_squeeze %919 : memref<1x128xf32, #tpu.memory_space<any>> -> memref<128xf32, #tpu.memory_space<any>>
      %c0_i32_818 = arith.constant 0 : i32
      %921 = tpu.memref_slice %arg8[%c5_i32_813, %c2_i32_814, %c0_i32_818] : memref<8x8x128xf32, #tpu.memory_space<vmem>> -> memref<1x1x128xf32, #tpu.memory_space<vmem>>
      %922 = tpu.memref_squeeze %921 : memref<1x1x128xf32, #tpu.memory_space<vmem>> -> memref<128xf32, #tpu.memory_space<vmem>>
      %923 = tpu.memref_slice %arg9[%c5_i32_815, %c2_i32_816] : memref<8x8x!tpu.dma_semaphore, #tpu.memory_space<semaphore_mem>> -> memref<1x1x!tpu.dma_semaphore, #tpu.memory_space<semaphore_mem>>
      %924 = tpu.memref_squeeze %923 : memref<1x1x!tpu.dma_semaphore, #tpu.memory_space<semaphore_mem>> -> memref<!tpu.dma_semaphore, #tpu.memory_space<semaphore_mem>>
      tpu.wait_dma2 semaphore(%924 : memref<!tpu.dma_semaphore, #tpu.memory_space<semaphore_mem>>) src(%920 : memref<128xf32, #tpu.memory_space<any>>) dst(%922 : memref<128xf32, #tpu.memory_space<vmem>>)
      %c0_i32_819 = arith.constant 0 : i32
      %c5_i32_820 = arith.constant 5 : i32
      %c3_i32_821 = arith.constant 3 : i32
      %c5_i32_822 = arith.constant 5 : i32
      %c3_i32_823 = arith.constant 3 : i32
      %c0_i32_824 = arith.constant 0 : i32
      %925 = tpu.memref_slice %arg3[%c0_i32_819, %c0_i32_824] : memref<50x128xf32, #tpu.memory_space<any>> -> memref<1x128xf32, #tpu.memory_space<any>>
      %926 = tpu.memref_squeeze %925 : memref<1x128xf32, #tpu.memory_space<any>> -> memref<128xf32, #tpu.memory_space<any>>
      %c0_i32_825 = arith.constant 0 : i32
      %927 = tpu.memref_slice %arg8[%c5_i32_820, %c3_i32_821, %c0_i32_825] : memref<8x8x128xf32, #tpu.memory_space<vmem>> -> memref<1x1x128xf32, #tpu.memory_space<vmem>>
      %928 = tpu.memref_squeeze %927 : memref<1x1x128xf32, #tpu.memory_space<vmem>> -> memref<128xf32, #tpu.memory_space<vmem>>
      %929 = tpu.memref_slice %arg9[%c5_i32_822, %c3_i32_823] : memref<8x8x!tpu.dma_semaphore, #tpu.memory_space<semaphore_mem>> -> memref<1x1x!tpu.dma_semaphore, #tpu.memory_space<semaphore_mem>>
      %930 = tpu.memref_squeeze %929 : memref<1x1x!tpu.dma_semaphore, #tpu.memory_space<semaphore_mem>> -> memref<!tpu.dma_semaphore, #tpu.memory_space<semaphore_mem>>
      tpu.wait_dma2 semaphore(%930 : memref<!tpu.dma_semaphore, #tpu.memory_space<semaphore_mem>>) src(%926 : memref<128xf32, #tpu.memory_space<any>>) dst(%928 : memref<128xf32, #tpu.memory_space<vmem>>)
      %c0_i32_826 = arith.constant 0 : i32
      %c5_i32_827 = arith.constant 5 : i32
      %c4_i32_828 = arith.constant 4 : i32
      %c5_i32_829 = arith.constant 5 : i32
      %c4_i32_830 = arith.constant 4 : i32
      %c0_i32_831 = arith.constant 0 : i32
      %931 = tpu.memref_slice %arg3[%c0_i32_826, %c0_i32_831] : memref<50x128xf32, #tpu.memory_space<any>> -> memref<1x128xf32, #tpu.memory_space<any>>
      %932 = tpu.memref_squeeze %931 : memref<1x128xf32, #tpu.memory_space<any>> -> memref<128xf32, #tpu.memory_space<any>>
      %c0_i32_832 = arith.constant 0 : i32
      %933 = tpu.memref_slice %arg8[%c5_i32_827, %c4_i32_828, %c0_i32_832] : memref<8x8x128xf32, #tpu.memory_space<vmem>> -> memref<1x1x128xf32, #tpu.memory_space<vmem>>
      %934 = tpu.memref_squeeze %933 : memref<1x1x128xf32, #tpu.memory_space<vmem>> -> memref<128xf32, #tpu.memory_space<vmem>>
      %935 = tpu.memref_slice %arg9[%c5_i32_829, %c4_i32_830] : memref<8x8x!tpu.dma_semaphore, #tpu.memory_space<semaphore_mem>> -> memref<1x1x!tpu.dma_semaphore, #tpu.memory_space<semaphore_mem>>
      %936 = tpu.memref_squeeze %935 : memref<1x1x!tpu.dma_semaphore, #tpu.memory_space<semaphore_mem>> -> memref<!tpu.dma_semaphore, #tpu.memory_space<semaphore_mem>>
      tpu.wait_dma2 semaphore(%936 : memref<!tpu.dma_semaphore, #tpu.memory_space<semaphore_mem>>) src(%932 : memref<128xf32, #tpu.memory_space<any>>) dst(%934 : memref<128xf32, #tpu.memory_space<vmem>>)
      %c0_i32_833 = arith.constant 0 : i32
      %c5_i32_834 = arith.constant 5 : i32
      %c5_i32_835 = arith.constant 5 : i32
      %c5_i32_836 = arith.constant 5 : i32
      %c5_i32_837 = arith.constant 5 : i32
      %c0_i32_838 = arith.constant 0 : i32
      %937 = tpu.memref_slice %arg3[%c0_i32_833, %c0_i32_838] : memref<50x128xf32, #tpu.memory_space<any>> -> memref<1x128xf32, #tpu.memory_space<any>>
      %938 = tpu.memref_squeeze %937 : memref<1x128xf32, #tpu.memory_space<any>> -> memref<128xf32, #tpu.memory_space<any>>
      %c0_i32_839 = arith.constant 0 : i32
      %939 = tpu.memref_slice %arg8[%c5_i32_834, %c5_i32_835, %c0_i32_839] : memref<8x8x128xf32, #tpu.memory_space<vmem>> -> memref<1x1x128xf32, #tpu.memory_space<vmem>>
      %940 = tpu.memref_squeeze %939 : memref<1x1x128xf32, #tpu.memory_space<vmem>> -> memref<128xf32, #tpu.memory_space<vmem>>
      %941 = tpu.memref_slice %arg9[%c5_i32_836, %c5_i32_837] : memref<8x8x!tpu.dma_semaphore, #tpu.memory_space<semaphore_mem>> -> memref<1x1x!tpu.dma_semaphore, #tpu.memory_space<semaphore_mem>>
      %942 = tpu.memref_squeeze %941 : memref<1x1x!tpu.dma_semaphore, #tpu.memory_space<semaphore_mem>> -> memref<!tpu.dma_semaphore, #tpu.memory_space<semaphore_mem>>
      tpu.wait_dma2 semaphore(%942 : memref<!tpu.dma_semaphore, #tpu.memory_space<semaphore_mem>>) src(%938 : memref<128xf32, #tpu.memory_space<any>>) dst(%940 : memref<128xf32, #tpu.memory_space<vmem>>)
      %c0_i32_840 = arith.constant 0 : i32
      %c5_i32_841 = arith.constant 5 : i32
      %c6_i32_842 = arith.constant 6 : i32
      %c5_i32_843 = arith.constant 5 : i32
      %c6_i32_844 = arith.constant 6 : i32
      %c0_i32_845 = arith.constant 0 : i32
      %943 = tpu.memref_slice %arg3[%c0_i32_840, %c0_i32_845] : memref<50x128xf32, #tpu.memory_space<any>> -> memref<1x128xf32, #tpu.memory_space<any>>
      %944 = tpu.memref_squeeze %943 : memref<1x128xf32, #tpu.memory_space<any>> -> memref<128xf32, #tpu.memory_space<any>>
      %c0_i32_846 = arith.constant 0 : i32
      %945 = tpu.memref_slice %arg8[%c5_i32_841, %c6_i32_842, %c0_i32_846] : memref<8x8x128xf32, #tpu.memory_space<vmem>> -> memref<1x1x128xf32, #tpu.memory_space<vmem>>
      %946 = tpu.memref_squeeze %945 : memref<1x1x128xf32, #tpu.memory_space<vmem>> -> memref<128xf32, #tpu.memory_space<vmem>>
      %947 = tpu.memref_slice %arg9[%c5_i32_843, %c6_i32_844] : memref<8x8x!tpu.dma_semaphore, #tpu.memory_space<semaphore_mem>> -> memref<1x1x!tpu.dma_semaphore, #tpu.memory_space<semaphore_mem>>
      %948 = tpu.memref_squeeze %947 : memref<1x1x!tpu.dma_semaphore, #tpu.memory_space<semaphore_mem>> -> memref<!tpu.dma_semaphore, #tpu.memory_space<semaphore_mem>>
      tpu.wait_dma2 semaphore(%948 : memref<!tpu.dma_semaphore, #tpu.memory_space<semaphore_mem>>) src(%944 : memref<128xf32, #tpu.memory_space<any>>) dst(%946 : memref<128xf32, #tpu.memory_space<vmem>>)
      %c0_i32_847 = arith.constant 0 : i32
      %c5_i32_848 = arith.constant 5 : i32
      %c7_i32_849 = arith.constant 7 : i32
      %c5_i32_850 = arith.constant 5 : i32
      %c7_i32_851 = arith.constant 7 : i32
      %c0_i32_852 = arith.constant 0 : i32
      %949 = tpu.memref_slice %arg3[%c0_i32_847, %c0_i32_852] : memref<50x128xf32, #tpu.memory_space<any>> -> memref<1x128xf32, #tpu.memory_space<any>>
      %950 = tpu.memref_squeeze %949 : memref<1x128xf32, #tpu.memory_space<any>> -> memref<128xf32, #tpu.memory_space<any>>
      %c0_i32_853 = arith.constant 0 : i32
      %951 = tpu.memref_slice %arg8[%c5_i32_848, %c7_i32_849, %c0_i32_853] : memref<8x8x128xf32, #tpu.memory_space<vmem>> -> memref<1x1x128xf32, #tpu.memory_space<vmem>>
      %952 = tpu.memref_squeeze %951 : memref<1x1x128xf32, #tpu.memory_space<vmem>> -> memref<128xf32, #tpu.memory_space<vmem>>
      %953 = tpu.memref_slice %arg9[%c5_i32_850, %c7_i32_851] : memref<8x8x!tpu.dma_semaphore, #tpu.memory_space<semaphore_mem>> -> memref<1x1x!tpu.dma_semaphore, #tpu.memory_space<semaphore_mem>>
      %954 = tpu.memref_squeeze %953 : memref<1x1x!tpu.dma_semaphore, #tpu.memory_space<semaphore_mem>> -> memref<!tpu.dma_semaphore, #tpu.memory_space<semaphore_mem>>
      tpu.wait_dma2 semaphore(%954 : memref<!tpu.dma_semaphore, #tpu.memory_space<semaphore_mem>>) src(%950 : memref<128xf32, #tpu.memory_space<any>>) dst(%952 : memref<128xf32, #tpu.memory_space<vmem>>)
      %c5 = arith.constant 5 : index
      %c0_854 = arith.constant 0 : index
      %c0_855 = arith.constant 0 : index
      %955 = vector.load %arg8[%c5, %c0_854, %c0_855] : memref<8x8x128xf32, #tpu.memory_space<vmem>>, vector<1x8x128xf32>
      %956 = vector.shape_cast %955 : vector<1x8x128xf32> to vector<8x128xf32>
      %957 = arith.addf %906, %956 : vector<8x128xf32>
      %c0_i32_856 = arith.constant 0 : i32
      %c6_i32_857 = arith.constant 6 : i32
      %c0_i32_858 = arith.constant 0 : i32
      %c6_i32_859 = arith.constant 6 : i32
      %c0_i32_860 = arith.constant 0 : i32
      %c0_i32_861 = arith.constant 0 : i32
      %958 = tpu.memref_slice %arg3[%c0_i32_856, %c0_i32_861] : memref<50x128xf32, #tpu.memory_space<any>> -> memref<1x128xf32, #tpu.memory_space<any>>
      %959 = tpu.memref_squeeze %958 : memref<1x128xf32, #tpu.memory_space<any>> -> memref<128xf32, #tpu.memory_space<any>>
      %c0_i32_862 = arith.constant 0 : i32
      %960 = tpu.memref_slice %arg8[%c6_i32_857, %c0_i32_858, %c0_i32_862] : memref<8x8x128xf32, #tpu.memory_space<vmem>> -> memref<1x1x128xf32, #tpu.memory_space<vmem>>
      %961 = tpu.memref_squeeze %960 : memref<1x1x128xf32, #tpu.memory_space<vmem>> -> memref<128xf32, #tpu.memory_space<vmem>>
      %962 = tpu.memref_slice %arg9[%c6_i32_859, %c0_i32_860] : memref<8x8x!tpu.dma_semaphore, #tpu.memory_space<semaphore_mem>> -> memref<1x1x!tpu.dma_semaphore, #tpu.memory_space<semaphore_mem>>
      %963 = tpu.memref_squeeze %962 : memref<1x1x!tpu.dma_semaphore, #tpu.memory_space<semaphore_mem>> -> memref<!tpu.dma_semaphore, #tpu.memory_space<semaphore_mem>>
      tpu.wait_dma2 semaphore(%963 : memref<!tpu.dma_semaphore, #tpu.memory_space<semaphore_mem>>) src(%959 : memref<128xf32, #tpu.memory_space<any>>) dst(%961 : memref<128xf32, #tpu.memory_space<vmem>>)
      %c0_i32_863 = arith.constant 0 : i32
      %c6_i32_864 = arith.constant 6 : i32
      %c1_i32_865 = arith.constant 1 : i32
      %c6_i32_866 = arith.constant 6 : i32
      %c1_i32_867 = arith.constant 1 : i32
      %c0_i32_868 = arith.constant 0 : i32
      %964 = tpu.memref_slice %arg3[%c0_i32_863, %c0_i32_868] : memref<50x128xf32, #tpu.memory_space<any>> -> memref<1x128xf32, #tpu.memory_space<any>>
      %965 = tpu.memref_squeeze %964 : memref<1x128xf32, #tpu.memory_space<any>> -> memref<128xf32, #tpu.memory_space<any>>
      %c0_i32_869 = arith.constant 0 : i32
      %966 = tpu.memref_slice %arg8[%c6_i32_864, %c1_i32_865, %c0_i32_869] : memref<8x8x128xf32, #tpu.memory_space<vmem>> -> memref<1x1x128xf32, #tpu.memory_space<vmem>>
      %967 = tpu.memref_squeeze %966 : memref<1x1x128xf32, #tpu.memory_space<vmem>> -> memref<128xf32, #tpu.memory_space<vmem>>
      %968 = tpu.memref_slice %arg9[%c6_i32_866, %c1_i32_867] : memref<8x8x!tpu.dma_semaphore, #tpu.memory_space<semaphore_mem>> -> memref<1x1x!tpu.dma_semaphore, #tpu.memory_space<semaphore_mem>>
      %969 = tpu.memref_squeeze %968 : memref<1x1x!tpu.dma_semaphore, #tpu.memory_space<semaphore_mem>> -> memref<!tpu.dma_semaphore, #tpu.memory_space<semaphore_mem>>
      tpu.wait_dma2 semaphore(%969 : memref<!tpu.dma_semaphore, #tpu.memory_space<semaphore_mem>>) src(%965 : memref<128xf32, #tpu.memory_space<any>>) dst(%967 : memref<128xf32, #tpu.memory_space<vmem>>)
      %c0_i32_870 = arith.constant 0 : i32
      %c6_i32_871 = arith.constant 6 : i32
      %c2_i32_872 = arith.constant 2 : i32
      %c6_i32_873 = arith.constant 6 : i32
      %c2_i32_874 = arith.constant 2 : i32
      %c0_i32_875 = arith.constant 0 : i32
      %970 = tpu.memref_slice %arg3[%c0_i32_870, %c0_i32_875] : memref<50x128xf32, #tpu.memory_space<any>> -> memref<1x128xf32, #tpu.memory_space<any>>
      %971 = tpu.memref_squeeze %970 : memref<1x128xf32, #tpu.memory_space<any>> -> memref<128xf32, #tpu.memory_space<any>>
      %c0_i32_876 = arith.constant 0 : i32
      %972 = tpu.memref_slice %arg8[%c6_i32_871, %c2_i32_872, %c0_i32_876] : memref<8x8x128xf32, #tpu.memory_space<vmem>> -> memref<1x1x128xf32, #tpu.memory_space<vmem>>
      %973 = tpu.memref_squeeze %972 : memref<1x1x128xf32, #tpu.memory_space<vmem>> -> memref<128xf32, #tpu.memory_space<vmem>>
      %974 = tpu.memref_slice %arg9[%c6_i32_873, %c2_i32_874] : memref<8x8x!tpu.dma_semaphore, #tpu.memory_space<semaphore_mem>> -> memref<1x1x!tpu.dma_semaphore, #tpu.memory_space<semaphore_mem>>
      %975 = tpu.memref_squeeze %974 : memref<1x1x!tpu.dma_semaphore, #tpu.memory_space<semaphore_mem>> -> memref<!tpu.dma_semaphore, #tpu.memory_space<semaphore_mem>>
      tpu.wait_dma2 semaphore(%975 : memref<!tpu.dma_semaphore, #tpu.memory_space<semaphore_mem>>) src(%971 : memref<128xf32, #tpu.memory_space<any>>) dst(%973 : memref<128xf32, #tpu.memory_space<vmem>>)
      %c0_i32_877 = arith.constant 0 : i32
      %c6_i32_878 = arith.constant 6 : i32
      %c3_i32_879 = arith.constant 3 : i32
      %c6_i32_880 = arith.constant 6 : i32
      %c3_i32_881 = arith.constant 3 : i32
      %c0_i32_882 = arith.constant 0 : i32
      %976 = tpu.memref_slice %arg3[%c0_i32_877, %c0_i32_882] : memref<50x128xf32, #tpu.memory_space<any>> -> memref<1x128xf32, #tpu.memory_space<any>>
      %977 = tpu.memref_squeeze %976 : memref<1x128xf32, #tpu.memory_space<any>> -> memref<128xf32, #tpu.memory_space<any>>
      %c0_i32_883 = arith.constant 0 : i32
      %978 = tpu.memref_slice %arg8[%c6_i32_878, %c3_i32_879, %c0_i32_883] : memref<8x8x128xf32, #tpu.memory_space<vmem>> -> memref<1x1x128xf32, #tpu.memory_space<vmem>>
      %979 = tpu.memref_squeeze %978 : memref<1x1x128xf32, #tpu.memory_space<vmem>> -> memref<128xf32, #tpu.memory_space<vmem>>
      %980 = tpu.memref_slice %arg9[%c6_i32_880, %c3_i32_881] : memref<8x8x!tpu.dma_semaphore, #tpu.memory_space<semaphore_mem>> -> memref<1x1x!tpu.dma_semaphore, #tpu.memory_space<semaphore_mem>>
      %981 = tpu.memref_squeeze %980 : memref<1x1x!tpu.dma_semaphore, #tpu.memory_space<semaphore_mem>> -> memref<!tpu.dma_semaphore, #tpu.memory_space<semaphore_mem>>
      tpu.wait_dma2 semaphore(%981 : memref<!tpu.dma_semaphore, #tpu.memory_space<semaphore_mem>>) src(%977 : memref<128xf32, #tpu.memory_space<any>>) dst(%979 : memref<128xf32, #tpu.memory_space<vmem>>)
      %c0_i32_884 = arith.constant 0 : i32
      %c6_i32_885 = arith.constant 6 : i32
      %c4_i32_886 = arith.constant 4 : i32
      %c6_i32_887 = arith.constant 6 : i32
      %c4_i32_888 = arith.constant 4 : i32
      %c0_i32_889 = arith.constant 0 : i32
      %982 = tpu.memref_slice %arg3[%c0_i32_884, %c0_i32_889] : memref<50x128xf32, #tpu.memory_space<any>> -> memref<1x128xf32, #tpu.memory_space<any>>
      %983 = tpu.memref_squeeze %982 : memref<1x128xf32, #tpu.memory_space<any>> -> memref<128xf32, #tpu.memory_space<any>>
      %c0_i32_890 = arith.constant 0 : i32
      %984 = tpu.memref_slice %arg8[%c6_i32_885, %c4_i32_886, %c0_i32_890] : memref<8x8x128xf32, #tpu.memory_space<vmem>> -> memref<1x1x128xf32, #tpu.memory_space<vmem>>
      %985 = tpu.memref_squeeze %984 : memref<1x1x128xf32, #tpu.memory_space<vmem>> -> memref<128xf32, #tpu.memory_space<vmem>>
      %986 = tpu.memref_slice %arg9[%c6_i32_887, %c4_i32_888] : memref<8x8x!tpu.dma_semaphore, #tpu.memory_space<semaphore_mem>> -> memref<1x1x!tpu.dma_semaphore, #tpu.memory_space<semaphore_mem>>
      %987 = tpu.memref_squeeze %986 : memref<1x1x!tpu.dma_semaphore, #tpu.memory_space<semaphore_mem>> -> memref<!tpu.dma_semaphore, #tpu.memory_space<semaphore_mem>>
      tpu.wait_dma2 semaphore(%987 : memref<!tpu.dma_semaphore, #tpu.memory_space<semaphore_mem>>) src(%983 : memref<128xf32, #tpu.memory_space<any>>) dst(%985 : memref<128xf32, #tpu.memory_space<vmem>>)
      %c0_i32_891 = arith.constant 0 : i32
      %c6_i32_892 = arith.constant 6 : i32
      %c5_i32_893 = arith.constant 5 : i32
      %c6_i32_894 = arith.constant 6 : i32
      %c5_i32_895 = arith.constant 5 : i32
      %c0_i32_896 = arith.constant 0 : i32
      %988 = tpu.memref_slice %arg3[%c0_i32_891, %c0_i32_896] : memref<50x128xf32, #tpu.memory_space<any>> -> memref<1x128xf32, #tpu.memory_space<any>>
      %989 = tpu.memref_squeeze %988 : memref<1x128xf32, #tpu.memory_space<any>> -> memref<128xf32, #tpu.memory_space<any>>
      %c0_i32_897 = arith.constant 0 : i32
      %990 = tpu.memref_slice %arg8[%c6_i32_892, %c5_i32_893, %c0_i32_897] : memref<8x8x128xf32, #tpu.memory_space<vmem>> -> memref<1x1x128xf32, #tpu.memory_space<vmem>>
      %991 = tpu.memref_squeeze %990 : memref<1x1x128xf32, #tpu.memory_space<vmem>> -> memref<128xf32, #tpu.memory_space<vmem>>
      %992 = tpu.memref_slice %arg9[%c6_i32_894, %c5_i32_895] : memref<8x8x!tpu.dma_semaphore, #tpu.memory_space<semaphore_mem>> -> memref<1x1x!tpu.dma_semaphore, #tpu.memory_space<semaphore_mem>>
      %993 = tpu.memref_squeeze %992 : memref<1x1x!tpu.dma_semaphore, #tpu.memory_space<semaphore_mem>> -> memref<!tpu.dma_semaphore, #tpu.memory_space<semaphore_mem>>
      tpu.wait_dma2 semaphore(%993 : memref<!tpu.dma_semaphore, #tpu.memory_space<semaphore_mem>>) src(%989 : memref<128xf32, #tpu.memory_space<any>>) dst(%991 : memref<128xf32, #tpu.memory_space<vmem>>)
      %c0_i32_898 = arith.constant 0 : i32
      %c6_i32_899 = arith.constant 6 : i32
      %c6_i32_900 = arith.constant 6 : i32
      %c6_i32_901 = arith.constant 6 : i32
      %c6_i32_902 = arith.constant 6 : i32
      %c0_i32_903 = arith.constant 0 : i32
      %994 = tpu.memref_slice %arg3[%c0_i32_898, %c0_i32_903] : memref<50x128xf32, #tpu.memory_space<any>> -> memref<1x128xf32, #tpu.memory_space<any>>
      %995 = tpu.memref_squeeze %994 : memref<1x128xf32, #tpu.memory_space<any>> -> memref<128xf32, #tpu.memory_space<any>>
      %c0_i32_904 = arith.constant 0 : i32
      %996 = tpu.memref_slice %arg8[%c6_i32_899, %c6_i32_900, %c0_i32_904] : memref<8x8x128xf32, #tpu.memory_space<vmem>> -> memref<1x1x128xf32, #tpu.memory_space<vmem>>
      %997 = tpu.memref_squeeze %996 : memref<1x1x128xf32, #tpu.memory_space<vmem>> -> memref<128xf32, #tpu.memory_space<vmem>>
      %998 = tpu.memref_slice %arg9[%c6_i32_901, %c6_i32_902] : memref<8x8x!tpu.dma_semaphore, #tpu.memory_space<semaphore_mem>> -> memref<1x1x!tpu.dma_semaphore, #tpu.memory_space<semaphore_mem>>
      %999 = tpu.memref_squeeze %998 : memref<1x1x!tpu.dma_semaphore, #tpu.memory_space<semaphore_mem>> -> memref<!tpu.dma_semaphore, #tpu.memory_space<semaphore_mem>>
      tpu.wait_dma2 semaphore(%999 : memref<!tpu.dma_semaphore, #tpu.memory_space<semaphore_mem>>) src(%995 : memref<128xf32, #tpu.memory_space<any>>) dst(%997 : memref<128xf32, #tpu.memory_space<vmem>>)
      %c0_i32_905 = arith.constant 0 : i32
      %c6_i32_906 = arith.constant 6 : i32
      %c7_i32_907 = arith.constant 7 : i32
      %c6_i32_908 = arith.constant 6 : i32
      %c7_i32_909 = arith.constant 7 : i32
      %c0_i32_910 = arith.constant 0 : i32
      %1000 = tpu.memref_slice %arg3[%c0_i32_905, %c0_i32_910] : memref<50x128xf32, #tpu.memory_space<any>> -> memref<1x128xf32, #tpu.memory_space<any>>
      %1001 = tpu.memref_squeeze %1000 : memref<1x128xf32, #tpu.memory_space<any>> -> memref<128xf32, #tpu.memory_space<any>>
      %c0_i32_911 = arith.constant 0 : i32
      %1002 = tpu.memref_slice %arg8[%c6_i32_906, %c7_i32_907, %c0_i32_911] : memref<8x8x128xf32, #tpu.memory_space<vmem>> -> memref<1x1x128xf32, #tpu.memory_space<vmem>>
      %1003 = tpu.memref_squeeze %1002 : memref<1x1x128xf32, #tpu.memory_space<vmem>> -> memref<128xf32, #tpu.memory_space<vmem>>
      %1004 = tpu.memref_slice %arg9[%c6_i32_908, %c7_i32_909] : memref<8x8x!tpu.dma_semaphore, #tpu.memory_space<semaphore_mem>> -> memref<1x1x!tpu.dma_semaphore, #tpu.memory_space<semaphore_mem>>
      %1005 = tpu.memref_squeeze %1004 : memref<1x1x!tpu.dma_semaphore, #tpu.memory_space<semaphore_mem>> -> memref<!tpu.dma_semaphore, #tpu.memory_space<semaphore_mem>>
      tpu.wait_dma2 semaphore(%1005 : memref<!tpu.dma_semaphore, #tpu.memory_space<semaphore_mem>>) src(%1001 : memref<128xf32, #tpu.memory_space<any>>) dst(%1003 : memref<128xf32, #tpu.memory_space<vmem>>)
      %c6 = arith.constant 6 : index
      %c0_912 = arith.constant 0 : index
      %c0_913 = arith.constant 0 : index
      %1006 = vector.load %arg8[%c6, %c0_912, %c0_913] : memref<8x8x128xf32, #tpu.memory_space<vmem>>, vector<1x8x128xf32>
      %1007 = vector.shape_cast %1006 : vector<1x8x128xf32> to vector<8x128xf32>
      %1008 = arith.addf %957, %1007 : vector<8x128xf32>
      %c0_i32_914 = arith.constant 0 : i32
      %c7_i32_915 = arith.constant 7 : i32
      %c0_i32_916 = arith.constant 0 : i32
      %c7_i32_917 = arith.constant 7 : i32
      %c0_i32_918 = arith.constant 0 : i32
      %c0_i32_919 = arith.constant 0 : i32
      %1009 = tpu.memref_slice %arg3[%c0_i32_914, %c0_i32_919] : memref<50x128xf32, #tpu.memory_space<any>> -> memref<1x128xf32, #tpu.memory_space<any>>
      %1010 = tpu.memref_squeeze %1009 : memref<1x128xf32, #tpu.memory_space<any>> -> memref<128xf32, #tpu.memory_space<any>>
      %c0_i32_920 = arith.constant 0 : i32
      %1011 = tpu.memref_slice %arg8[%c7_i32_915, %c0_i32_916, %c0_i32_920] : memref<8x8x128xf32, #tpu.memory_space<vmem>> -> memref<1x1x128xf32, #tpu.memory_space<vmem>>
      %1012 = tpu.memref_squeeze %1011 : memref<1x1x128xf32, #tpu.memory_space<vmem>> -> memref<128xf32, #tpu.memory_space<vmem>>
      %1013 = tpu.memref_slice %arg9[%c7_i32_917, %c0_i32_918] : memref<8x8x!tpu.dma_semaphore, #tpu.memory_space<semaphore_mem>> -> memref<1x1x!tpu.dma_semaphore, #tpu.memory_space<semaphore_mem>>
      %1014 = tpu.memref_squeeze %1013 : memref<1x1x!tpu.dma_semaphore, #tpu.memory_space<semaphore_mem>> -> memref<!tpu.dma_semaphore, #tpu.memory_space<semaphore_mem>>
      tpu.wait_dma2 semaphore(%1014 : memref<!tpu.dma_semaphore, #tpu.memory_space<semaphore_mem>>) src(%1010 : memref<128xf32, #tpu.memory_space<any>>) dst(%1012 : memref<128xf32, #tpu.memory_space<vmem>>)
      %c0_i32_921 = arith.constant 0 : i32
      %c7_i32_922 = arith.constant 7 : i32
      %c1_i32_923 = arith.constant 1 : i32
      %c7_i32_924 = arith.constant 7 : i32
      %c1_i32_925 = arith.constant 1 : i32
      %c0_i32_926 = arith.constant 0 : i32
      %1015 = tpu.memref_slice %arg3[%c0_i32_921, %c0_i32_926] : memref<50x128xf32, #tpu.memory_space<any>> -> memref<1x128xf32, #tpu.memory_space<any>>
      %1016 = tpu.memref_squeeze %1015 : memref<1x128xf32, #tpu.memory_space<any>> -> memref<128xf32, #tpu.memory_space<any>>
      %c0_i32_927 = arith.constant 0 : i32
      %1017 = tpu.memref_slice %arg8[%c7_i32_922, %c1_i32_923, %c0_i32_927] : memref<8x8x128xf32, #tpu.memory_space<vmem>> -> memref<1x1x128xf32, #tpu.memory_space<vmem>>
      %1018 = tpu.memref_squeeze %1017 : memref<1x1x128xf32, #tpu.memory_space<vmem>> -> memref<128xf32, #tpu.memory_space<vmem>>
      %1019 = tpu.memref_slice %arg9[%c7_i32_924, %c1_i32_925] : memref<8x8x!tpu.dma_semaphore, #tpu.memory_space<semaphore_mem>> -> memref<1x1x!tpu.dma_semaphore, #tpu.memory_space<semaphore_mem>>
      %1020 = tpu.memref_squeeze %1019 : memref<1x1x!tpu.dma_semaphore, #tpu.memory_space<semaphore_mem>> -> memref<!tpu.dma_semaphore, #tpu.memory_space<semaphore_mem>>
      tpu.wait_dma2 semaphore(%1020 : memref<!tpu.dma_semaphore, #tpu.memory_space<semaphore_mem>>) src(%1016 : memref<128xf32, #tpu.memory_space<any>>) dst(%1018 : memref<128xf32, #tpu.memory_space<vmem>>)
      %c0_i32_928 = arith.constant 0 : i32
      %c7_i32_929 = arith.constant 7 : i32
      %c2_i32_930 = arith.constant 2 : i32
      %c7_i32_931 = arith.constant 7 : i32
      %c2_i32_932 = arith.constant 2 : i32
      %c0_i32_933 = arith.constant 0 : i32
      %1021 = tpu.memref_slice %arg3[%c0_i32_928, %c0_i32_933] : memref<50x128xf32, #tpu.memory_space<any>> -> memref<1x128xf32, #tpu.memory_space<any>>
      %1022 = tpu.memref_squeeze %1021 : memref<1x128xf32, #tpu.memory_space<any>> -> memref<128xf32, #tpu.memory_space<any>>
      %c0_i32_934 = arith.constant 0 : i32
      %1023 = tpu.memref_slice %arg8[%c7_i32_929, %c2_i32_930, %c0_i32_934] : memref<8x8x128xf32, #tpu.memory_space<vmem>> -> memref<1x1x128xf32, #tpu.memory_space<vmem>>
      %1024 = tpu.memref_squeeze %1023 : memref<1x1x128xf32, #tpu.memory_space<vmem>> -> memref<128xf32, #tpu.memory_space<vmem>>
      %1025 = tpu.memref_slice %arg9[%c7_i32_931, %c2_i32_932] : memref<8x8x!tpu.dma_semaphore, #tpu.memory_space<semaphore_mem>> -> memref<1x1x!tpu.dma_semaphore, #tpu.memory_space<semaphore_mem>>
      %1026 = tpu.memref_squeeze %1025 : memref<1x1x!tpu.dma_semaphore, #tpu.memory_space<semaphore_mem>> -> memref<!tpu.dma_semaphore, #tpu.memory_space<semaphore_mem>>
      tpu.wait_dma2 semaphore(%1026 : memref<!tpu.dma_semaphore, #tpu.memory_space<semaphore_mem>>) src(%1022 : memref<128xf32, #tpu.memory_space<any>>) dst(%1024 : memref<128xf32, #tpu.memory_space<vmem>>)
      %c0_i32_935 = arith.constant 0 : i32
      %c7_i32_936 = arith.constant 7 : i32
      %c3_i32_937 = arith.constant 3 : i32
      %c7_i32_938 = arith.constant 7 : i32
      %c3_i32_939 = arith.constant 3 : i32
      %c0_i32_940 = arith.constant 0 : i32
      %1027 = tpu.memref_slice %arg3[%c0_i32_935, %c0_i32_940] : memref<50x128xf32, #tpu.memory_space<any>> -> memref<1x128xf32, #tpu.memory_space<any>>
      %1028 = tpu.memref_squeeze %1027 : memref<1x128xf32, #tpu.memory_space<any>> -> memref<128xf32, #tpu.memory_space<any>>
      %c0_i32_941 = arith.constant 0 : i32
      %1029 = tpu.memref_slice %arg8[%c7_i32_936, %c3_i32_937, %c0_i32_941] : memref<8x8x128xf32, #tpu.memory_space<vmem>> -> memref<1x1x128xf32, #tpu.memory_space<vmem>>
      %1030 = tpu.memref_squeeze %1029 : memref<1x1x128xf32, #tpu.memory_space<vmem>> -> memref<128xf32, #tpu.memory_space<vmem>>
      %1031 = tpu.memref_slice %arg9[%c7_i32_938, %c3_i32_939] : memref<8x8x!tpu.dma_semaphore, #tpu.memory_space<semaphore_mem>> -> memref<1x1x!tpu.dma_semaphore, #tpu.memory_space<semaphore_mem>>
      %1032 = tpu.memref_squeeze %1031 : memref<1x1x!tpu.dma_semaphore, #tpu.memory_space<semaphore_mem>> -> memref<!tpu.dma_semaphore, #tpu.memory_space<semaphore_mem>>
      tpu.wait_dma2 semaphore(%1032 : memref<!tpu.dma_semaphore, #tpu.memory_space<semaphore_mem>>) src(%1028 : memref<128xf32, #tpu.memory_space<any>>) dst(%1030 : memref<128xf32, #tpu.memory_space<vmem>>)
      %c0_i32_942 = arith.constant 0 : i32
      %c7_i32_943 = arith.constant 7 : i32
      %c4_i32_944 = arith.constant 4 : i32
      %c7_i32_945 = arith.constant 7 : i32
      %c4_i32_946 = arith.constant 4 : i32
      %c0_i32_947 = arith.constant 0 : i32
      %1033 = tpu.memref_slice %arg3[%c0_i32_942, %c0_i32_947] : memref<50x128xf32, #tpu.memory_space<any>> -> memref<1x128xf32, #tpu.memory_space<any>>
      %1034 = tpu.memref_squeeze %1033 : memref<1x128xf32, #tpu.memory_space<any>> -> memref<128xf32, #tpu.memory_space<any>>
      %c0_i32_948 = arith.constant 0 : i32
      %1035 = tpu.memref_slice %arg8[%c7_i32_943, %c4_i32_944, %c0_i32_948] : memref<8x8x128xf32, #tpu.memory_space<vmem>> -> memref<1x1x128xf32, #tpu.memory_space<vmem>>
      %1036 = tpu.memref_squeeze %1035 : memref<1x1x128xf32, #tpu.memory_space<vmem>> -> memref<128xf32, #tpu.memory_space<vmem>>
      %1037 = tpu.memref_slice %arg9[%c7_i32_945, %c4_i32_946] : memref<8x8x!tpu.dma_semaphore, #tpu.memory_space<semaphore_mem>> -> memref<1x1x!tpu.dma_semaphore, #tpu.memory_space<semaphore_mem>>
      %1038 = tpu.memref_squeeze %1037 : memref<1x1x!tpu.dma_semaphore, #tpu.memory_space<semaphore_mem>> -> memref<!tpu.dma_semaphore, #tpu.memory_space<semaphore_mem>>
      tpu.wait_dma2 semaphore(%1038 : memref<!tpu.dma_semaphore, #tpu.memory_space<semaphore_mem>>) src(%1034 : memref<128xf32, #tpu.memory_space<any>>) dst(%1036 : memref<128xf32, #tpu.memory_space<vmem>>)
      %c0_i32_949 = arith.constant 0 : i32
      %c7_i32_950 = arith.constant 7 : i32
      %c5_i32_951 = arith.constant 5 : i32
      %c7_i32_952 = arith.constant 7 : i32
      %c5_i32_953 = arith.constant 5 : i32
      %c0_i32_954 = arith.constant 0 : i32
      %1039 = tpu.memref_slice %arg3[%c0_i32_949, %c0_i32_954] : memref<50x128xf32, #tpu.memory_space<any>> -> memref<1x128xf32, #tpu.memory_space<any>>
      %1040 = tpu.memref_squeeze %1039 : memref<1x128xf32, #tpu.memory_space<any>> -> memref<128xf32, #tpu.memory_space<any>>
      %c0_i32_955 = arith.constant 0 : i32
      %1041 = tpu.memref_slice %arg8[%c7_i32_950, %c5_i32_951, %c0_i32_955] : memref<8x8x128xf32, #tpu.memory_space<vmem>> -> memref<1x1x128xf32, #tpu.memory_space<vmem>>
      %1042 = tpu.memref_squeeze %1041 : memref<1x1x128xf32, #tpu.memory_space<vmem>> -> memref<128xf32, #tpu.memory_space<vmem>>
      %1043 = tpu.memref_slice %arg9[%c7_i32_952, %c5_i32_953] : memref<8x8x!tpu.dma_semaphore, #tpu.memory_space<semaphore_mem>> -> memref<1x1x!tpu.dma_semaphore, #tpu.memory_space<semaphore_mem>>
      %1044 = tpu.memref_squeeze %1043 : memref<1x1x!tpu.dma_semaphore, #tpu.memory_space<semaphore_mem>> -> memref<!tpu.dma_semaphore, #tpu.memory_space<semaphore_mem>>
      tpu.wait_dma2 semaphore(%1044 : memref<!tpu.dma_semaphore, #tpu.memory_space<semaphore_mem>>) src(%1040 : memref<128xf32, #tpu.memory_space<any>>) dst(%1042 : memref<128xf32, #tpu.memory_space<vmem>>)
      %c0_i32_956 = arith.constant 0 : i32
      %c7_i32_957 = arith.constant 7 : i32
      %c6_i32_958 = arith.constant 6 : i32
      %c7_i32_959 = arith.constant 7 : i32
      %c6_i32_960 = arith.constant 6 : i32
      %c0_i32_961 = arith.constant 0 : i32
      %1045 = tpu.memref_slice %arg3[%c0_i32_956, %c0_i32_961] : memref<50x128xf32, #tpu.memory_space<any>> -> memref<1x128xf32, #tpu.memory_space<any>>
      %1046 = tpu.memref_squeeze %1045 : memref<1x128xf32, #tpu.memory_space<any>> -> memref<128xf32, #tpu.memory_space<any>>
      %c0_i32_962 = arith.constant 0 : i32
      %1047 = tpu.memref_slice %arg8[%c7_i32_957, %c6_i32_958, %c0_i32_962] : memref<8x8x128xf32, #tpu.memory_space<vmem>> -> memref<1x1x128xf32, #tpu.memory_space<vmem>>
      %1048 = tpu.memref_squeeze %1047 : memref<1x1x128xf32, #tpu.memory_space<vmem>> -> memref<128xf32, #tpu.memory_space<vmem>>
      %1049 = tpu.memref_slice %arg9[%c7_i32_959, %c6_i32_960] : memref<8x8x!tpu.dma_semaphore, #tpu.memory_space<semaphore_mem>> -> memref<1x1x!tpu.dma_semaphore, #tpu.memory_space<semaphore_mem>>
      %1050 = tpu.memref_squeeze %1049 : memref<1x1x!tpu.dma_semaphore, #tpu.memory_space<semaphore_mem>> -> memref<!tpu.dma_semaphore, #tpu.memory_space<semaphore_mem>>
      tpu.wait_dma2 semaphore(%1050 : memref<!tpu.dma_semaphore, #tpu.memory_space<semaphore_mem>>) src(%1046 : memref<128xf32, #tpu.memory_space<any>>) dst(%1048 : memref<128xf32, #tpu.memory_space<vmem>>)
      %c0_i32_963 = arith.constant 0 : i32
      %c7_i32_964 = arith.constant 7 : i32
      %c7_i32_965 = arith.constant 7 : i32
      %c7_i32_966 = arith.constant 7 : i32
      %c7_i32_967 = arith.constant 7 : i32
      %c0_i32_968 = arith.constant 0 : i32
      %1051 = tpu.memref_slice %arg3[%c0_i32_963, %c0_i32_968] : memref<50x128xf32, #tpu.memory_space<any>> -> memref<1x128xf32, #tpu.memory_space<any>>
      %1052 = tpu.memref_squeeze %1051 : memref<1x128xf32, #tpu.memory_space<any>> -> memref<128xf32, #tpu.memory_space<any>>
      %c0_i32_969 = arith.constant 0 : i32
      %1053 = tpu.memref_slice %arg8[%c7_i32_964, %c7_i32_965, %c0_i32_969] : memref<8x8x128xf32, #tpu.memory_space<vmem>> -> memref<1x1x128xf32, #tpu.memory_space<vmem>>
      %1054 = tpu.memref_squeeze %1053 : memref<1x1x128xf32, #tpu.memory_space<vmem>> -> memref<128xf32, #tpu.memory_space<vmem>>
      %1055 = tpu.memref_slice %arg9[%c7_i32_966, %c7_i32_967] : memref<8x8x!tpu.dma_semaphore, #tpu.memory_space<semaphore_mem>> -> memref<1x1x!tpu.dma_semaphore, #tpu.memory_space<semaphore_mem>>
      %1056 = tpu.memref_squeeze %1055 : memref<1x1x!tpu.dma_semaphore, #tpu.memory_space<semaphore_mem>> -> memref<!tpu.dma_semaphore, #tpu.memory_space<semaphore_mem>>
      tpu.wait_dma2 semaphore(%1056 : memref<!tpu.dma_semaphore, #tpu.memory_space<semaphore_mem>>) src(%1052 : memref<128xf32, #tpu.memory_space<any>>) dst(%1054 : memref<128xf32, #tpu.memory_space<vmem>>)
      %c7 = arith.constant 7 : index
      %c0_970 = arith.constant 0 : index
      %c0_971 = arith.constant 0 : index
      %1057 = vector.load %arg8[%c7, %c0_970, %c0_971] : memref<8x8x128xf32, #tpu.memory_space<vmem>>, vector<1x8x128xf32>
      %1058 = vector.shape_cast %1057 : vector<1x8x128xf32> to vector<8x128xf32>
      %1059 = arith.addf %1008, %1058 : vector<8x128xf32>
      %cst_972 = arith.constant 1.250000e-01 : f32
      %1060 = vector.broadcast %cst_972 : f32 to vector<8x128xf32>
      %1061 = arith.mulf %1059, %1060 : vector<8x128xf32>
      %1062 = arith.truncf %1061 : vector<8x128xf32> to vector<8x128xbf16>
      %c0_973 = arith.constant 0 : index
      %c0_974 = arith.constant 0 : index
      %1063 = vector.load %arg7[%c0_973, %c0_974] : memref<8x128xbf16, #tpu.memory_space<vmem>>, vector<8x128xbf16>
      tpu.vector_store %arg7[%c0_973, %c0_974], %1062 {strides = array<i32>} : memref<8x128xbf16, #tpu.memory_space<vmem>>, vector<8x128xbf16>,
    } else {
    }
    %c0 = arith.constant 0 : index
    %c0_1 = arith.constant 0 : index
    %3 = vector.load %arg7[%c0, %c0_1] : memref<8x128xbf16, #tpu.memory_space<vmem>>, vector<8x128xbf16>
    %c0_2 = arith.constant 0 : index
    %c0_3 = arith.constant 0 : index
    %4 = vector.load %arg4[%c0_2, %c0_3] : memref<128x128xbf16, #tpu.memory_space<vmem>>, vector<128x128xbf16>
    %cst = arith.constant dense<0.000000e+00> : vector<8x128xf32>
    %5 = tpu.matmul %3, %4, %cst {dimension_numbers = #tpu.dot_dimension_numbers<[1], [1], [0], [0], [0, 0, 1, 0], [], []>} : vector<8x128xbf16>, vector<128x128xbf16>, vector<8x128xf32> -> vector<8x128xf32>
    %c0_4 = arith.constant 0 : index
    %c0_5 = arith.constant 0 : index
    %6 = vector.load %arg5[%c0_4, %c0_5] : memref<1x128xf32, #tpu.memory_space<vmem>>, vector<1x128xf32>
    %7 = vector.broadcast %6 : vector<1x128xf32> to vector<8x128xf32>
    %8 = arith.addf %5, %7 : vector<8x128xf32>
    %c0_6 = arith.constant 0 : index
    %c0_7 = arith.constant 0 : index
    %9 = vector.load %arg6[%c0_6, %c0_7] : memref<8x128xf32, #tpu.memory_space<vmem>>, vector<8x128xf32>
    tpu.vector_store %arg6[%c0_6, %c0_7], %8 {strides = array<i32>} : memref<8x128xf32, #tpu.memory_space<vmem>>, vector<8x128xf32>,
    return
  }
  func.func @transform_1(%arg0: i32, %arg1: i32, %arg2: memref<64xi32, #tpu.memory_space<smem>>) -> (i32, i32) {
    %c0_i32 = arith.constant 0 : i32
    %c0_i32_0 = arith.constant 0 : i32
    return %arg1, %c0_i32 : i32, i32
  }
  func.func @transform_2(%arg0: i32, %arg1: i32, %arg2: memref<64xi32, #tpu.memory_space<smem>>) -> (i32, i32) {
    %c0_i32 = arith.constant 0 : i32
    %c0_i32_0 = arith.constant 0 : i32
    return %c0_i32, %arg1 : i32, i32
  }
  func.func @transform_3(%arg0: i32, %arg1: i32, %arg2: memref<64xi32, #tpu.memory_space<smem>>) -> (i32, i32) {
    %c0_i32 = arith.constant 0 : i32
    return %arg0, %arg1 : i32, i32
  }
}

</mosaic_0001>

<llo_original>
// kernel: tpu_custom_call.1
$region0: #{tpu_custom_call.1}
  #allocation0 [shape = 'u32[]', space=smem, size = 0x4, offset = 0x4, fixed_abs, tag = 'smem constant byte address 0x4 - core index']
  #allocation1 [shape = 'u32[144,128]{1,0:T(1,128)}', space=vmem, size = 0x12000, scoped, tag = 'internal scratch']
  #allocation2 [shape = 'bf16[8,128]{1,0:T(8,128)(2,1)}', space=vmem, size = 0x800, scoped, tag = 'scratch operand']
  #allocation3 [shape = 'f32[8,8,128]{2,1,0:T(8,128)}', space=vmem, size = 0x8000, scoped, tag = 'scratch operand']
  #allocation4 [shape = 's32[64]{0}', space=sflag, size = 0x100, scoped, tag = 'scratch operand']
  #allocation5 [shape = 's32[1]{0}', space=sflag, size = 0x4, scoped, tag = 'scoped memory for tpu_custom_call.1']
  #allocation6 [shape = 'u8[512]{0}', space=smem, size = 0x200, scoped, tag = 'prefetched SMEM operand 0']
  #allocation11 [shape = 's32[]', space=sflag, size = 0x4, offset = 0, fixed_abs, tag = 'sflag constant byte address 0x0 - dummy sync flag']
  #allocation12 [shape = 's32[]', space=sflag, size = 0x4, offset = 0, fixed_abs, tag = 'sflag constant byte address 0x0 - dummy sync flag']
  #allocation13 [shape = 'u32[]', space=smem, size = 0x4, offset = 0x44, fixed_abs, tag = 'smem constant byte address 0x44 - assertion arg 0']
  #allocation14 [shape = 'u32[]', space=smem, size = 0x4, offset = 0x48, fixed_abs, tag = 'smem constant byte address 0x48 - assertion arg 1']
  #allocation15 [shape = 's32[]', space=sflag, size = 0x4, offset = 0, fixed_abs, tag = 'sflag constant byte address 0x0 - dummy sync flag']
  #allocation16 [shape = 's32[]', space=sflag, size = 0x4, offset = 0, fixed_abs, tag = 'sflag constant byte address 0x0 - dummy sync flag']
  #allocation17 [shape = 's32[]', space=sflag, size = 0x4, offset = 0, fixed_abs, tag = 'sflag constant byte address 0x0 - dummy sync flag']
  #allocation18 [shape = 's32[]', space=sflag, size = 0x4, offset = 0, fixed_abs, tag = 'sflag constant byte address 0x0 - dummy sync flag']
  #allocation19 [shape = 's32[]', space=sflag, size = 0x4, offset = 0, fixed_abs, tag = 'sflag constant byte address 0x0 - dummy sync flag']
  #allocation20 [shape = 's32[]', space=sflag, size = 0x4, offset = 0, fixed_abs, tag = 'sflag constant byte address 0x0 - dummy sync flag']
  #allocation21 [shape = 's32[]', space=sflag, size = 0x4, offset = 0, fixed_abs, tag = 'sflag constant byte address 0x0 - dummy sync flag']
  #allocation22 [shape = 's32[]', space=sflag, size = 0x4, offset = 0, fixed_abs, tag = 'sflag constant byte address 0x0 - dummy sync flag']
  #allocation23 [shape = 's32[]', space=sflag, size = 0x4, offset = 0, fixed_abs, tag = 'sflag constant byte address 0x0 - dummy sync flag']
  #allocation24 [shape = 's32[]', space=sflag, size = 0x4, offset = 0, fixed_abs, tag = 'sflag constant byte address 0x0 - dummy sync flag']
  #allocation25 [shape = 's32[]', space=sflag, size = 0x4, offset = 0, fixed_abs, tag = 'sflag constant byte address 0x0 - dummy sync flag']
  #allocation26 [shape = 's32[]', space=sflag, size = 0x4, offset = 0, fixed_abs, tag = 'sflag constant byte address 0x0 - dummy sync flag']
  #allocation27 [shape = 's32[]', space=sflag, size = 0x4, offset = 0, fixed_abs, tag = 'sflag constant byte address 0x0 - dummy sync flag']
  #allocation28 [shape = 's32[]', space=sflag, size = 0x4, offset = 0, fixed_abs, tag = 'sflag constant byte address 0x0 - dummy sync flag']
  #allocation29 [shape = 's32[]', space=sflag, size = 0x4, offset = 0, fixed_abs, tag = 'sflag constant byte address 0x0 - dummy sync flag']
  #allocation30 [shape = 's32[]', space=sflag, size = 0x4, offset = 0, fixed_abs, tag = 'sflag constant byte address 0x0 - dummy sync flag']
  #allocation31 [shape = 's32[]', space=sflag, size = 0x4, offset = 0, fixed_abs, tag = 'sflag constant byte address 0x0 - dummy sync flag']
  #allocation32 [shape = 's32[]', space=sflag, size = 0x4, offset = 0, fixed_abs, tag = 'sflag constant byte address 0x0 - dummy sync flag']
  #allocation33 [shape = 's32[]', space=sflag, size = 0x4, offset = 0, fixed_abs, tag = 'sflag constant byte address 0x0 - dummy sync flag']
  #allocation34 [shape = 's32[]', space=sflag, size = 0x4, offset = 0, fixed_abs, tag = 'sflag constant byte address 0x0 - dummy sync flag']
  #allocation35 [shape = 's32[]', space=sflag, size = 0x4, offset = 0, fixed_abs, tag = 'sflag constant byte address 0x0 - dummy sync flag']
  #allocation36 [shape = 's32[]', space=sflag, size = 0x4, offset = 0, fixed_abs, tag = 'sflag constant byte address 0x0 - dummy sync flag']
  #allocation37 [shape = 's32[]', space=sflag, size = 0x4, offset = 0, fixed_abs, tag = 'sflag constant byte address 0x0 - dummy sync flag']
  #allocation38 [shape = 's32[]', space=sflag, size = 0x4, offset = 0, fixed_abs, tag = 'sflag constant byte address 0x0 - dummy sync flag']
  #allocation39 [shape = 's32[]', space=sflag, size = 0x4, offset = 0, fixed_abs, tag = 'sflag constant byte address 0x0 - dummy sync flag']
  #allocation40 [shape = 's32[]', space=sflag, size = 0x4, offset = 0, fixed_abs, tag = 'sflag constant byte address 0x0 - dummy sync flag']
  #allocation41 [shape = 's32[]', space=sflag, size = 0x4, offset = 0, fixed_abs, tag = 'sflag constant byte address 0x0 - dummy sync flag']
  #allocation42 [shape = 's32[]', space=sflag, size = 0x4, offset = 0, fixed_abs, tag = 'sflag constant byte address 0x0 - dummy sync flag']
  #allocation43 [shape = 's32[]', space=sflag, size = 0x4, offset = 0, fixed_abs, tag = 'sflag constant byte address 0x0 - dummy sync flag']
  #allocation44 [shape = 's32[]', space=sflag, size = 0x4, offset = 0, fixed_abs, tag = 'sflag constant byte address 0x0 - dummy sync flag']
  #allocation45 [shape = 's32[]', space=sflag, size = 0x4, offset = 0, fixed_abs, tag = 'sflag constant byte address 0x0 - dummy sync flag']
  #allocation46 [shape = 's32[]', space=sflag, size = 0x4, offset = 0, fixed_abs, tag = 'sflag constant byte address 0x0 - dummy sync flag']
  #allocation47 [shape = 's32[]', space=sflag, size = 0x4, offset = 0, fixed_abs, tag = 'sflag constant byte address 0x0 - dummy sync flag']
  #allocation48 [shape = 's32[]', space=sflag, size = 0x4, offset = 0, fixed_abs, tag = 'sflag constant byte address 0x0 - dummy sync flag']
  #allocation49 [shape = 's32[]', space=sflag, size = 0x4, offset = 0, fixed_abs, tag = 'sflag constant byte address 0x0 - dummy sync flag']
  #allocation50 [shape = 's32[]', space=sflag, size = 0x4, offset = 0, fixed_abs, tag = 'sflag constant byte address 0x0 - dummy sync flag']
  #allocation51 [shape = 's32[]', space=sflag, size = 0x4, offset = 0, fixed_abs, tag = 'sflag constant byte address 0x0 - dummy sync flag']
  #allocation52 [shape = 's32[]', space=sflag, size = 0x4, offset = 0, fixed_abs, tag = 'sflag constant byte address 0x0 - dummy sync flag']
  #allocation53 [shape = 's32[]', space=sflag, size = 0x4, offset = 0, fixed_abs, tag = 'sflag constant byte address 0x0 - dummy sync flag']
  #allocation54 [shape = 's32[]', space=sflag, size = 0x4, offset = 0, fixed_abs, tag = 'sflag constant byte address 0x0 - dummy sync flag']
  #allocation55 [shape = 's32[]', space=sflag, size = 0x4, offset = 0, fixed_abs, tag = 'sflag constant byte address 0x0 - dummy sync flag']
  #allocation56 [shape = 's32[]', space=sflag, size = 0x4, offset = 0, fixed_abs, tag = 'sflag constant byte address 0x0 - dummy sync flag']
  #allocation57 [shape = 's32[]', space=sflag, size = 0x4, offset = 0, fixed_abs, tag = 'sflag constant byte address 0x0 - dummy sync flag']
  #allocation58 [shape = 's32[]', space=sflag, size = 0x4, offset = 0, fixed_abs, tag = 'sflag constant byte address 0x0 - dummy sync flag']
  #allocation59 [shape = 's32[]', space=sflag, size = 0x4, offset = 0, fixed_abs, tag = 'sflag constant byte address 0x0 - dummy sync flag']
  #allocation60 [shape = 's32[]', space=sflag, size = 0x4, offset = 0, fixed_abs, tag = 'sflag constant byte address 0x0 - dummy sync flag']
  #allocation61 [shape = 's32[]', space=sflag, size = 0x4, offset = 0, fixed_abs, tag = 'sflag constant byte address 0x0 - dummy sync flag']
  #allocation62 [shape = 's32[]', space=sflag, size = 0x4, offset = 0, fixed_abs, tag = 'sflag constant byte address 0x0 - dummy sync flag']
  #allocation63 [shape = 's32[]', space=sflag, size = 0x4, offset = 0, fixed_abs, tag = 'sflag constant byte address 0x0 - dummy sync flag']
  #allocation64 [shape = 's32[]', space=sflag, size = 0x4, offset = 0, fixed_abs, tag = 'sflag constant byte address 0x0 - dummy sync flag']
  #allocation65 [shape = 's32[]', space=sflag, size = 0x4, offset = 0, fixed_abs, tag = 'sflag constant byte address 0x0 - dummy sync flag']
  #allocation66 [shape = 's32[]', space=sflag, size = 0x4, offset = 0, fixed_abs, tag = 'sflag constant byte address 0x0 - dummy sync flag']
  #allocation67 [shape = 's32[]', space=sflag, size = 0x4, offset = 0, fixed_abs, tag = 'sflag constant byte address 0x0 - dummy sync flag']
  #allocation68 [shape = 's32[]', space=sflag, size = 0x4, offset = 0, fixed_abs, tag = 'sflag constant byte address 0x0 - dummy sync flag']
  #allocation69 [shape = 's32[]', space=sflag, size = 0x4, offset = 0, fixed_abs, tag = 'sflag constant byte address 0x0 - dummy sync flag']
  #allocation70 [shape = 's32[]', space=sflag, size = 0x4, offset = 0, fixed_abs, tag = 'sflag constant byte address 0x0 - dummy sync flag']
  #allocation71 [shape = 's32[]', space=sflag, size = 0x4, offset = 0, fixed_abs, tag = 'sflag constant byte address 0x0 - dummy sync flag']
  #allocation72 [shape = 's32[]', space=sflag, size = 0x4, offset = 0, fixed_abs, tag = 'sflag constant byte address 0x0 - dummy sync flag']
  #allocation73 [shape = 's32[]', space=sflag, size = 0x4, offset = 0, fixed_abs, tag = 'sflag constant byte address 0x0 - dummy sync flag']
  #allocation74 [shape = 's32[]', space=sflag, size = 0x4, offset = 0, fixed_abs, tag = 'sflag constant byte address 0x0 - dummy sync flag']
  #allocation75 [shape = 's32[]', space=sflag, size = 0x4, offset = 0, fixed_abs, tag = 'sflag constant byte address 0x0 - dummy sync flag']
  #allocation76 [shape = 's32[]', space=sflag, size = 0x4, offset = 0, fixed_abs, tag = 'sflag constant byte address 0x0 - dummy sync flag']
  #allocation77 [shape = 's32[]', space=sflag, size = 0x4, offset = 0, fixed_abs, tag = 'sflag constant byte address 0x0 - dummy sync flag']
  #allocation78 [shape = 's32[]', space=sflag, size = 0x4, offset = 0, fixed_abs, tag = 'sflag constant byte address 0x0 - dummy sync flag']
  #allocation79 [shape = 's32[]', space=sflag, size = 0x4, offset = 0, fixed_abs, tag = 'sflag constant byte address 0x0 - dummy sync flag']
  #allocation80 [shape = 's32[]', space=sflag, size = 0x4, offset = 0, fixed_abs, tag = 'sflag constant byte address 0x0 - dummy sync flag']
  #allocation81 [shape = 's32[]', space=sflag, size = 0x4, offset = 0, fixed_abs, tag = 'sflag constant byte address 0x0 - dummy sync flag']
  #allocation82 [shape = 's32[]', space=sflag, size = 0x4, offset = 0, fixed_abs, tag = 'sflag constant byte address 0x0 - dummy sync flag']
  #allocation83 [shape = 's32[]', space=sflag, size = 0x4, offset = 0, fixed_abs, tag = 'sflag constant byte address 0x0 - dummy sync flag']
  #allocation84 [shape = 's32[]', space=sflag, size = 0x4, offset = 0, fixed_abs, tag = 'sflag constant byte address 0x0 - dummy sync flag']
  #allocation85 [shape = 's32[]', space=sflag, size = 0x4, offset = 0, fixed_abs, tag = 'sflag constant byte address 0x0 - dummy sync flag']
  #allocation86 [shape = 's32[]', space=sflag, size = 0x4, offset = 0, fixed_abs, tag = 'sflag constant byte address 0x0 - dummy sync flag']
  #allocation87 [shape = 's32[]', space=sflag, size = 0x4, offset = 0, fixed_abs, tag = 'sflag constant byte address 0x0 - dummy sync flag']
  #allocation88 [shape = 's32[]', space=sflag, size = 0x4, offset = 0, fixed_abs, tag = 'sflag constant byte address 0x0 - dummy sync flag']
  #allocation89 [shape = 's32[]', space=sflag, size = 0x4, offset = 0, fixed_abs, tag = 'sflag constant byte address 0x0 - dummy sync flag']
  #allocation90 [shape = 's32[]', space=sflag, size = 0x4, offset = 0, fixed_abs, tag = 'sflag constant byte address 0x0 - dummy sync flag']
  #allocation91 [shape = 's32[]', space=sflag, size = 0x4, offset = 0, fixed_abs, tag = 'sflag constant byte address 0x0 - dummy sync flag']
  #allocation92 [shape = 's32[]', space=sflag, size = 0x4, offset = 0, fixed_abs, tag = 'sflag constant byte address 0x0 - dummy sync flag']
  #allocation93 [shape = 's32[]', space=sflag, size = 0x4, offset = 0, fixed_abs, tag = 'sflag constant byte address 0x0 - dummy sync flag']
  #allocation94 [shape = 's32[]', space=sflag, size = 0x4, offset = 0, fixed_abs, tag = 'sflag constant byte address 0x0 - dummy sync flag']
  #allocation95 [shape = 's32[]', space=sflag, size = 0x4, offset = 0, fixed_abs, tag = 'sflag constant byte address 0x0 - dummy sync flag']
  #allocation96 [shape = 's32[]', space=sflag, size = 0x4, offset = 0, fixed_abs, tag = 'sflag constant byte address 0x0 - dummy sync flag']
  #allocation97 [shape = 's32[]', space=sflag, size = 0x4, offset = 0, fixed_abs, tag = 'sflag constant byte address 0x0 - dummy sync flag']
  #allocation98 [shape = 's32[]', space=sflag, size = 0x4, offset = 0, fixed_abs, tag = 'sflag constant byte address 0x0 - dummy sync flag']
  #allocation99 [shape = 's32[]', space=sflag, size = 0x4, offset = 0, fixed_abs, tag = 'sflag constant byte address 0x0 - dummy sync flag']
  #allocation100 [shape = 's32[]', space=sflag, size = 0x4, offset = 0, fixed_abs, tag = 'sflag constant byte address 0x0 - dummy sync flag']
  #allocation101 [shape = 's32[]', space=sflag, size = 0x4, offset = 0, fixed_abs, tag = 'sflag constant byte address 0x0 - dummy sync flag']
  #allocation102 [shape = 's32[]', space=sflag, size = 0x4, offset = 0, fixed_abs, tag = 'sflag constant byte address 0x0 - dummy sync flag']
  #allocation103 [shape = 's32[]', space=sflag, size = 0x4, offset = 0, fixed_abs, tag = 'sflag constant byte address 0x0 - dummy sync flag']
  #allocation104 [shape = 's32[]', space=sflag, size = 0x4, offset = 0, fixed_abs, tag = 'sflag constant byte address 0x0 - dummy sync flag']
  #allocation105 [shape = 's32[]', space=sflag, size = 0x4, offset = 0, fixed_abs, tag = 'sflag constant byte address 0x0 - dummy sync flag']
  #allocation106 [shape = 's32[]', space=sflag, size = 0x4, offset = 0, fixed_abs, tag = 'sflag constant byte address 0x0 - dummy sync flag']
  #allocation107 [shape = 's32[]', space=sflag, size = 0x4, offset = 0, fixed_abs, tag = 'sflag constant byte address 0x0 - dummy sync flag']
  #allocation108 [shape = 's32[]', space=sflag, size = 0x4, offset = 0, fixed_abs, tag = 'sflag constant byte address 0x0 - dummy sync flag']
  #allocation109 [shape = 's32[]', space=sflag, size = 0x4, offset = 0, fixed_abs, tag = 'sflag constant byte address 0x0 - dummy sync flag']
  #allocation110 [shape = 's32[]', space=sflag, size = 0x4, offset = 0, fixed_abs, tag = 'sflag constant byte address 0x0 - dummy sync flag']
  #allocation111 [shape = 's32[]', space=sflag, size = 0x4, offset = 0, fixed_abs, tag = 'sflag constant byte address 0x0 - dummy sync flag']
  #allocation112 [shape = 's32[]', space=sflag, size = 0x4, offset = 0, fixed_abs, tag = 'sflag constant byte address 0x0 - dummy sync flag']
  #allocation113 [shape = 's32[]', space=sflag, size = 0x4, offset = 0, fixed_abs, tag = 'sflag constant byte address 0x0 - dummy sync flag']
  #allocation114 [shape = 's32[]', space=sflag, size = 0x4, offset = 0, fixed_abs, tag = 'sflag constant byte address 0x0 - dummy sync flag']
  #allocation115 [shape = 's32[]', space=sflag, size = 0x4, offset = 0, fixed_abs, tag = 'sflag constant byte address 0x0 - dummy sync flag']
  #allocation116 [shape = 's32[]', space=sflag, size = 0x4, offset = 0, fixed_abs, tag = 'sflag constant byte address 0x0 - dummy sync flag']
  #allocation117 [shape = 's32[]', space=sflag, size = 0x4, offset = 0, fixed_abs, tag = 'sflag constant byte address 0x0 - dummy sync flag']
  #allocation118 [shape = 's32[]', space=sflag, size = 0x4, offset = 0, fixed_abs, tag = 'sflag constant byte address 0x0 - dummy sync flag']
  #allocation119 [shape = 's32[]', space=sflag, size = 0x4, offset = 0, fixed_abs, tag = 'sflag constant byte address 0x0 - dummy sync flag']
  #allocation120 [shape = 's32[]', space=sflag, size = 0x4, offset = 0, fixed_abs, tag = 'sflag constant byte address 0x0 - dummy sync flag']
  #allocation121 [shape = 's32[]', space=sflag, size = 0x4, offset = 0, fixed_abs, tag = 'sflag constant byte address 0x0 - dummy sync flag']
  #allocation122 [shape = 's32[]', space=sflag, size = 0x4, offset = 0, fixed_abs, tag = 'sflag constant byte address 0x0 - dummy sync flag']
  #allocation123 [shape = 's32[]', space=sflag, size = 0x4, offset = 0, fixed_abs, tag = 'sflag constant byte address 0x0 - dummy sync flag']
  #allocation124 [shape = 's32[]', space=sflag, size = 0x4, offset = 0, fixed_abs, tag = 'sflag constant byte address 0x0 - dummy sync flag']
  #allocation125 [shape = 's32[]', space=sflag, size = 0x4, offset = 0, fixed_abs, tag = 'sflag constant byte address 0x0 - dummy sync flag']
  #allocation126 [shape = 's32[]', space=sflag, size = 0x4, offset = 0, fixed_abs, tag = 'sflag constant byte address 0x0 - dummy sync flag']
  #allocation127 [shape = 's32[]', space=sflag, size = 0x4, offset = 0, fixed_abs, tag = 'sflag constant byte address 0x0 - dummy sync flag']
  #allocation128 [shape = 's32[]', space=sflag, size = 0x4, offset = 0, fixed_abs, tag = 'sflag constant byte address 0x0 - dummy sync flag']
  #allocation129 [shape = 's32[]', space=sflag, size = 0x4, offset = 0, fixed_abs, tag = 'sflag constant byte address 0x0 - dummy sync flag']
  #allocation130 [shape = 's32[]', space=sflag, size = 0x4, offset = 0, fixed_abs, tag = 'sflag constant byte address 0x0 - dummy sync flag']
  #allocation131 [shape = 's32[]', space=sflag, size = 0x4, offset = 0, fixed_abs, tag = 'sflag constant byte address 0x0 - dummy sync flag']
  #allocation132 [shape = 's32[]', space=sflag, size = 0x4, offset = 0, fixed_abs, tag = 'sflag constant byte address 0x0 - dummy sync flag']
  #allocation133 [shape = 's32[]', space=sflag, size = 0x4, offset = 0, fixed_abs, tag = 'sflag constant byte address 0x0 - dummy sync flag']
  #allocation134 [shape = 's32[]', space=sflag, size = 0x4, offset = 0, fixed_abs, tag = 'sflag constant byte address 0x0 - dummy sync flag']
  #allocation135 [shape = 's32[]', space=sflag, size = 0x4, offset = 0, fixed_abs, tag = 'sflag constant byte address 0x0 - dummy sync flag']
  #allocation136 [shape = 's32[]', space=sflag, size = 0x4, offset = 0, fixed_abs, tag = 'sflag constant byte address 0x0 - dummy sync flag']
  #allocation137 [shape = 's32[]', space=sflag, size = 0x4, offset = 0, fixed_abs, tag = 'sflag constant byte address 0x0 - dummy sync flag']
  #allocation138 [shape = 's32[]', space=sflag, size = 0x4, offset = 0, fixed_abs, tag = 'sflag constant byte address 0x0 - dummy sync flag']
  #allocation139 [shape = 's32[]', space=sflag, size = 0x4, offset = 0, fixed_abs, tag = 'sflag constant byte address 0x0 - dummy sync flag']
  #allocation140 [shape = 's32[]', space=sflag, size = 0x4, offset = 0, fixed_abs, tag = 'sflag constant byte address 0x0 - dummy sync flag']
  %s0 = inlined_call_operand.hbm [shape: s32[64], index: 0, kind: input, shape index: {}]
  %s1 = inlined_call_operand.hbm [shape: f32[50,128], index: 1, kind: input, shape index: {}]
  %s2 = inlined_call_operand.hbm [shape: bf16[128,128], index: 2, kind: input, shape index: {}]
  %s3 = inlined_call_operand.vmem [shape: f32[1,128], index: 3, kind: input, shape index: {}]
  %s4 = inlined_call_operand.hbm [shape: f32[8,128], index: 4, kind: output, shape index: {}]
  %s5 = sld [smem:[#allocation0]]
  $region282: #{tpu_custom_call.1} parent=0
    _
  %s7 = ssub.s32 1, %s5
  %s8 = scalar_select 0, %s7, %s5
  %10 = dma.hbm_to_smem %s0, 16, [#allocation6], [#allocation5]
  %11 = dma.done [#allocation5], 16
  %12 = sfence
  $region1: #{tpu_custom_call.1} parent=0
    #allocation7 [shape = 'u8[32768]{0}', space=vmem, size = 0x8000, scoped, tag = 'input window, operand 2, single buffered']
    #allocation8 [shape = 's32[1]{0}', space=sflag, size = 0x4, scoped, tag = 'scoped memory for tpu_custom_call.1']
    #allocation9 [shape = 's32[1]{0}', space=sflag, size = 0x4, scoped, tag = 'scoped memory for tpu_custom_call.1']
    #allocation10 [shape = 'u8[4096]{0}', space=vmem, size = 0x1000, scoped, tag = 'output window, operand 0, single buffered']
    %13 = vsyncpa [#allocation8], 0
    %14 = vsyncpa [#allocation9], 0
    // Predicated region
    $region2: #{tpu_custom_call.1} parent=1 // pred_check
      _
    $region3: #{tpu_custom_call.1} parent=1 // pred_check_branch
      %16 = sbr.rel (0) target = $region5
    $region4: #{tpu_custom_call.1} parent=1 // pred_region
      %s18 = ssub.s32 1024, 1024
      %19 = vsyncadd [#allocation8], %s18
      %s20 = sshll.u32 [#allocation7], 4
      %s21 = int_to_ptr.vmem [resolvable:$true] %s20
      %26 = dma.hbm_to_vmem [thread:$0]  %s2, 1024, %s21, [#allocation8], 64, 64, 4
    $region5: #{tpu_custom_call.1} parent=1 // pred_fallthru
      _
    // Predicated region
    $region6: #{tpu_custom_call.1} parent=1 // pred_check
      _
    $region7: #{tpu_custom_call.1} parent=1 // pred_check_branch
      %28 = sbr.rel (0) target = $region9
    $region8: #{tpu_custom_call.1} parent=1 // pred_region
      _
    $region9: #{tpu_custom_call.1} parent=1 // pred_fallthru
      _
    // Predicated region
    $region10: #{tpu_custom_call.1} parent=1 // pred_check
      _
    $region11: #{tpu_custom_call.1} parent=1 // pred_check_branch
      %30 = sbr.rel (0) target = $region13
    $region12: #{tpu_custom_call.1} parent=1 // pred_region
      %31 = dma.done [#allocation8], 1024
    $region13: #{tpu_custom_call.1} parent=1 // pred_fallthru
      _
    %p33 = scmp.eq.s32.totalorder 0, 0
    // Predicated region
    $region14: #{tpu_custom_call.1} parent=1 // pred_check
      %p34 = pneg %p33
    $region15: #{tpu_custom_call.1} parent=1 // pred_check_branch
      %36 = sbr.rel (%p34) target = $region17
    $region16: #{tpu_custom_call.1} parent=1 // pred_region
      %s37 = smul.u32 0, 64
      %s38 = sld [smem:[#allocation6 + %s37]]
      %s39 = smul.addr %s38, 16
      %s40 = scalar_lea.hbm %s1, %s39
      // Predicated region
      $region18: #{tpu_custom_call.1} parent=16 // pred_check
        _
      $region19: #{tpu_custom_call.1} parent=16 // pred_check_branch
        %42 = sbr.rel target = $region21
      $region20: #{tpu_custom_call.1} parent=16 // pred_region
        %43 = sst [smem:[#allocation13]] [#allocation12]
        %44 = sst [smem:[#allocation14]] [#allocation11]
      $region21: #{tpu_custom_call.1} parent=16 // pred_fallthru
        _
      %46 = shalt.err (0)
      %s48 = sshll.u32 [#allocation3], 4
      %s49 = int_to_ptr.vmem [resolvable:$true] %s48
      %51 = dma.hbm_to_vmem [thread:$0]  %s40, 16, %s49, [#allocation4]
      %s52 = sadd.s32 %s37, 8
      %s53 = sld [smem:[#allocation6 + %s52]]
      %s54 = smul.addr %s53, 16
      %s55 = scalar_lea.hbm %s1, %s54
      %s56 = scalar_lea.vmem [#allocation3], 1
      %s57 = scalar_lea.sflag [#allocation4], 1
      // Predicated region
      $region22: #{tpu_custom_call.1} parent=16 // pred_check
        _
      $region23: #{tpu_custom_call.1} parent=16 // pred_check_branch
        %59 = sbr.rel target = $region25
      $region24: #{tpu_custom_call.1} parent=16 // pred_region
        %60 = sst [smem:[#allocation13]] [#allocation16]
        %61 = sst [smem:[#allocation14]] [#allocation15]
      $region25: #{tpu_custom_call.1} parent=16 // pred_fallthru
        _
      %63 = shalt.err (0)
      %s65 = sshll.u32 %s56, 4
      %s66 = int_to_ptr.vmem [resolvable:$true] %s65
      %68 = dma.hbm_to_vmem [thread:$0]  %s55, 16, %s66, %s57
      %s69 = sadd.s32 %s37, 16
      %s70 = sld [smem:[#allocation6 + %s69]]
      %s71 = smul.addr %s70, 16
      %s72 = scalar_lea.hbm %s1, %s71
      %s73 = scalar_lea.vmem [#allocation3], 2
      %s74 = scalar_lea.sflag [#allocation4], 2
      // Predicated region
      $region26: #{tpu_custom_call.1} parent=16 // pred_check
        _
      $region27: #{tpu_custom_call.1} parent=16 // pred_check_branch
        %76 = sbr.rel target = $region29
      $region28: #{tpu_custom_call.1} parent=16 // pred_region
        %77 = sst [smem:[#allocation13]] [#allocation18]
        %78 = sst [smem:[#allocation14]] [#allocation17]
      $region29: #{tpu_custom_call.1} parent=16 // pred_fallthru
        _
      %80 = shalt.err (0)
      %s82 = sshll.u32 %s73, 4
      %s83 = int_to_ptr.vmem [resolvable:$true] %s82
      %85 = dma.hbm_to_vmem [thread:$0]  %s72, 16, %s83, %s74
      %s86 = sadd.s32 %s37, 24
      %s87 = sld [smem:[#allocation6 + %s86]]
      %s88 = smul.addr %s87, 16
      %s89 = scalar_lea.hbm %s1, %s88
      %s90 = scalar_lea.vmem [#allocation3], 3
      %s91 = scalar_lea.sflag [#allocation4], 3
      // Predicated region
      $region30: #{tpu_custom_call.1} parent=16 // pred_check
        _
      $region31: #{tpu_custom_call.1} parent=16 // pred_check_branch
        %93 = sbr.rel target = $region33
      $region32: #{tpu_custom_call.1} parent=16 // pred_region
        %94 = sst [smem:[#allocation13]] [#allocation20]
        %95 = sst [smem:[#allocation14]] [#allocation19]
      $region33: #{tpu_custom_call.1} parent=16 // pred_fallthru
        _
      %97 = shalt.err (0)
      %s99 = sshll.u32 %s90, 4
      %s100 = int_to_ptr.vmem [resolvable:$true] %s99
      %102 = dma.hbm_to_vmem [thread:$0]  %s89, 16, %s100, %s91
      %s103 = sadd.s32 %s37, 32
      %s104 = sld [smem:[#allocation6 + %s103]]
      %s105 = smul.addr %s104, 16
      %s106 = scalar_lea.hbm %s1, %s105
      %s107 = scalar_lea.vmem [#allocation3], 4
      %s108 = scalar_lea.sflag [#allocation4], 4
      // Predicated region
      $region34: #{tpu_custom_call.1} parent=16 // pred_check
        _
      $region35: #{tpu_custom_call.1} parent=16 // pred_check_branch
        %110 = sbr.rel target = $region37
      $region36: #{tpu_custom_call.1} parent=16 // pred_region
        %111 = sst [smem:[#allocation13]] [#allocation22]
        %112 = sst [smem:[#allocation14]] [#allocation21]
      $region37: #{tpu_custom_call.1} parent=16 // pred_fallthru
        _
      %114 = shalt.err (0)
      %s116 = sshll.u32 %s107, 4
      %s117 = int_to_ptr.vmem [resolvable:$true] %s116
      %119 = dma.hbm_to_vmem [thread:$0]  %s106, 16, %s117, %s108
      %s120 = sadd.s32 %s37, 40
      %s121 = sld [smem:[#allocation6 + %s120]]
      %s122 = smul.addr %s121, 16
      %s123 = scalar_lea.hbm %s1, %s122
      %s124 = scalar_lea.vmem [#allocation3], 5
      %s125 = scalar_lea.sflag [#allocation4], 5
      // Predicated region
      $region38: #{tpu_custom_call.1} parent=16 // pred_check
        _
      $region39: #{tpu_custom_call.1} parent=16 // pred_check_branch
        %127 = sbr.rel target = $region41
      $region40: #{tpu_custom_call.1} parent=16 // pred_region
        %128 = sst [smem:[#allocation13]] [#allocation24]
        %129 = sst [smem:[#allocation14]] [#allocation23]
      $region41: #{tpu_custom_call.1} parent=16 // pred_fallthru
        _
      %131 = shalt.err (0)
      %s133 = sshll.u32 %s124, 4
      %s134 = int_to_ptr.vmem [resolvable:$true] %s133
      %136 = dma.hbm_to_vmem [thread:$0]  %s123, 16, %s134, %s125
      %s137 = sadd.s32 %s37, 48
      %s138 = sld [smem:[#allocation6 + %s137]]
      %s139 = smul.addr %s138, 16
      %s140 = scalar_lea.hbm %s1, %s139
      %s141 = scalar_lea.vmem [#allocation3], 6
      %s142 = scalar_lea.sflag [#allocation4], 6
      // Predicated region
      $region42: #{tpu_custom_call.1} parent=16 // pred_check
        _
      $region43: #{tpu_custom_call.1} parent=16 // pred_check_branch
        %144 = sbr.rel target = $region45
      $region44: #{tpu_custom_call.1} parent=16 // pred_region
        %145 = sst [smem:[#allocation13]] [#allocation26]
        %146 = sst [smem:[#allocation14]] [#allocation25]
      $region45: #{tpu_custom_call.1} parent=16 // pred_fallthru
        _
      %148 = shalt.err (0)
      %s150 = sshll.u32 %s141, 4
      %s151 = int_to_ptr.vmem [resolvable:$true] %s150
      %153 = dma.hbm_to_vmem [thread:$0]  %s140, 16, %s151, %s142
      %s154 = sadd.s32 %s37, 56
      %s155 = sld [smem:[#allocation6 + %s154]]
      %s156 = smul.addr %s155, 16
      %s157 = scalar_lea.hbm %s1, %s156
      %s158 = scalar_lea.vmem [#allocation3], 7
      %s159 = scalar_lea.sflag [#allocation4], 7
      // Predicated region
      $region46: #{tpu_custom_call.1} parent=16 // pred_check
        _
      $region47: #{tpu_custom_call.1} parent=16 // pred_check_branch
        %161 = sbr.rel target = $region49
      $region48: #{tpu_custom_call.1} parent=16 // pred_region
        %162 = sst [smem:[#allocation13]] [#allocation28]
        %163 = sst [smem:[#allocation14]] [#allocation27]
      $region49: #{tpu_custom_call.1} parent=16 // pred_fallthru
        _
      %165 = shalt.err (0)
      %s167 = sshll.u32 %s158, 4
      %s168 = int_to_ptr.vmem [resolvable:$true] %s167
      %170 = dma.hbm_to_vmem [thread:$0]  %s157, 16, %s168, %s159
      %s171 = sadd.s32 %s37, 1
      %s172 = sld [smem:[#allocation6 + %s171]]
      %s173 = smul.addr %s172, 16
      %s174 = scalar_lea.hbm %s1, %s173
      %s175 = scalar_lea.vmem [#allocation3], 8
      %s176 = scalar_lea.sflag [#allocation4], 8
      // Predicated region
      $region50: #{tpu_custom_call.1} parent=16 // pred_check
        _
      $region51: #{tpu_custom_call.1} parent=16 // pred_check_branch
        %178 = sbr.rel target = $region53
      $region52: #{tpu_custom_call.1} parent=16 // pred_region
        %179 = sst [smem:[#allocation13]] [#allocation30]
        %180 = sst [smem:[#allocation14]] [#allocation29]
      $region53: #{tpu_custom_call.1} parent=16 // pred_fallthru
        _
      %182 = shalt.err (0)
      %s184 = sshll.u32 %s175, 4
      %s185 = int_to_ptr.vmem [resolvable:$true] %s184
      %187 = dma.hbm_to_vmem [thread:$0]  %s174, 16, %s185, %s176
      %s188 = sadd.s32 %s37, 9
      %s189 = sld [smem:[#allocation6 + %s188]]
      %s190 = smul.addr %s189, 16
      %s191 = scalar_lea.hbm %s1, %s190
      %s192 = scalar_lea.vmem [#allocation3], 9
      %s193 = scalar_lea.sflag [#allocation4], 9
      // Predicated region
      $region54: #{tpu_custom_call.1} parent=16 // pred_check
        _
      $region55: #{tpu_custom_call.1} parent=16 // pred_check_branch
        %195 = sbr.rel target = $region57
      $region56: #{tpu_custom_call.1} parent=16 // pred_region
        %196 = sst [smem:[#allocation13]] [#allocation32]
        %197 = sst [smem:[#allocation14]] [#allocation31]
      $region57: #{tpu_custom_call.1} parent=16 // pred_fallthru
        _
      %199 = shalt.err (0)
      %s201 = sshll.u32 %s192, 4
      %s202 = int_to_ptr.vmem [resolvable:$true] %s201
      %204 = dma.hbm_to_vmem [thread:$0]  %s191, 16, %s202, %s193
      %s205 = sadd.s32 %s37, 17
      %s206 = sld [smem:[#allocation6 + %s205]]
      %s207 = smul.addr %s206, 16
      %s208 = scalar_lea.hbm %s1, %s207
      %s209 = scalar_lea.vmem [#allocation3], 10
      %s210 = scalar_lea.sflag [#allocation4], 10
      // Predicated region
      $region58: #{tpu_custom_call.1} parent=16 // pred_check
        _
      $region59: #{tpu_custom_call.1} parent=16 // pred_check_branch
        %212 = sbr.rel target = $region61
      $region60: #{tpu_custom_call.1} parent=16 // pred_region
        %213 = sst [smem:[#allocation13]] [#allocation34]
        %214 = sst [smem:[#allocation14]] [#allocation33]
      $region61: #{tpu_custom_call.1} parent=16 // pred_fallthru
        _
      %216 = shalt.err (0)
      %s218 = sshll.u32 %s209, 4
      %s219 = int_to_ptr.vmem [resolvable:$true] %s218
      %221 = dma.hbm_to_vmem [thread:$0]  %s208, 16, %s219, %s210
      %s222 = sadd.s32 %s37, 25
      %s223 = sld [smem:[#allocation6 + %s222]]
      %s224 = smul.addr %s223, 16
      %s225 = scalar_lea.hbm %s1, %s224
      %s226 = scalar_lea.vmem [#allocation3], 11
      %s227 = scalar_lea.sflag [#allocation4], 11
      // Predicated region
      $region62: #{tpu_custom_call.1} parent=16 // pred_check
        _
      $region63: #{tpu_custom_call.1} parent=16 // pred_check_branch
        %229 = sbr.rel target = $region65
      $region64: #{tpu_custom_call.1} parent=16 // pred_region
        %230 = sst [smem:[#allocation13]] [#allocation36]
        %231 = sst [smem:[#allocation14]] [#allocation35]
      $region65: #{tpu_custom_call.1} parent=16 // pred_fallthru
        _
      %233 = shalt.err (0)
      %s235 = sshll.u32 %s226, 4
      %s236 = int_to_ptr.vmem [resolvable:$true] %s235
      %238 = dma.hbm_to_vmem [thread:$0]  %s225, 16, %s236, %s227
      %s239 = sadd.s32 %s37, 33
      %s240 = sld [smem:[#allocation6 + %s239]]
      %s241 = smul.addr %s240, 16
      %s242 = scalar_lea.hbm %s1, %s241
      %s243 = scalar_lea.vmem [#allocation3], 12
      %s244 = scalar_lea.sflag [#allocation4], 12
      // Predicated region
      $region66: #{tpu_custom_call.1} parent=16 // pred_check
        _
      $region67: #{tpu_custom_call.1} parent=16 // pred_check_branch
        %246 = sbr.rel target = $region69
      $region68: #{tpu_custom_call.1} parent=16 // pred_region
        %247 = sst [smem:[#allocation13]] [#allocation38]
        %248 = sst [smem:[#allocation14]] [#allocation37]
      $region69: #{tpu_custom_call.1} parent=16 // pred_fallthru
        _
      %250 = shalt.err (0)
      %s252 = sshll.u32 %s243, 4
      %s253 = int_to_ptr.vmem [resolvable:$true] %s252
      %255 = dma.hbm_to_vmem [thread:$0]  %s242, 16, %s253, %s244
      %s256 = sadd.s32 %s37, 41
      %s257 = sld [smem:[#allocation6 + %s256]]
      %s258 = smul.addr %s257, 16
      %s259 = scalar_lea.hbm %s1, %s258
      %s260 = scalar_lea.vmem [#allocation3], 13
      %s261 = scalar_lea.sflag [#allocation4], 13
      // Predicated region
      $region70: #{tpu_custom_call.1} parent=16 // pred_check
        _
      $region71: #{tpu_custom_call.1} parent=16 // pred_check_branch
        %263 = sbr.rel target = $region73
      $region72: #{tpu_custom_call.1} parent=16 // pred_region
        %264 = sst [smem:[#allocation13]] [#allocation40]
        %265 = sst [smem:[#allocation14]] [#allocation39]
      $region73: #{tpu_custom_call.1} parent=16 // pred_fallthru
        _
      %267 = shalt.err (0)
      %s269 = sshll.u32 %s260, 4
      %s270 = int_to_ptr.vmem [resolvable:$true] %s269
      %272 = dma.hbm_to_vmem [thread:$0]  %s259, 16, %s270, %s261
      %s273 = sadd.s32 %s37, 49
      %s274 = sld [smem:[#allocation6 + %s273]]
      %s275 = smul.addr %s274, 16
      %s276 = scalar_lea.hbm %s1, %s275
      %s277 = scalar_lea.vmem [#allocation3], 14
      %s278 = scalar_lea.sflag [#allocation4], 14
      // Predicated region
      $region74: #{tpu_custom_call.1} parent=16 // pred_check
        _
      $region75: #{tpu_custom_call.1} parent=16 // pred_check_branch
        %280 = sbr.rel target = $region77
      $region76: #{tpu_custom_call.1} parent=16 // pred_region
        %281 = sst [smem:[#allocation13]] [#allocation42]
        %282 = sst [smem:[#allocation14]] [#allocation41]
      $region77: #{tpu_custom_call.1} parent=16 // pred_fallthru
        _
      %284 = shalt.err (0)
      %s286 = sshll.u32 %s277, 4
      %s287 = int_to_ptr.vmem [resolvable:$true] %s286
      %289 = dma.hbm_to_vmem [thread:$0]  %s276, 16, %s287, %s278
      %s290 = sadd.s32 %s37, 57
      %s291 = sld [smem:[#allocation6 + %s290]]
      %s292 = smul.addr %s291, 16
      %s293 = scalar_lea.hbm %s1, %s292
      %s294 = scalar_lea.vmem [#allocation3], 15
      %s295 = scalar_lea.sflag [#allocation4], 15
      // Predicated region
      $region78: #{tpu_custom_call.1} parent=16 // pred_check
        _
      $region79: #{tpu_custom_call.1} parent=16 // pred_check_branch
        %297 = sbr.rel target = $region81
      $region80: #{tpu_custom_call.1} parent=16 // pred_region
        %298 = sst [smem:[#allocation13]] [#allocation44]
        %299 = sst [smem:[#allocation14]] [#allocation43]
      $region81: #{tpu_custom_call.1} parent=16 // pred_fallthru
        _
      %301 = shalt.err (0)
      %s303 = sshll.u32 %s294, 4
      %s304 = int_to_ptr.vmem [resolvable:$true] %s303
      %306 = dma.hbm_to_vmem [thread:$0]  %s293, 16, %s304, %s295
      %s307 = sadd.s32 %s37, 2
      %s308 = sld [smem:[#allocation6 + %s307]]
      %s309 = smul.addr %s308, 16
      %s310 = scalar_lea.hbm %s1, %s309
      %s311 = scalar_lea.vmem [#allocation3], 16
      %s312 = scalar_lea.sflag [#allocation4], 16
      // Predicated region
      $region82: #{tpu_custom_call.1} parent=16 // pred_check
        _
      $region83: #{tpu_custom_call.1} parent=16 // pred_check_branch
        %314 = sbr.rel target = $region85
      $region84: #{tpu_custom_call.1} parent=16 // pred_region
        %315 = sst [smem:[#allocation13]] [#allocation46]
        %316 = sst [smem:[#allocation14]] [#allocation45]
      $region85: #{tpu_custom_call.1} parent=16 // pred_fallthru
        _
      %318 = shalt.err (0)
      %s320 = sshll.u32 %s311, 4
      %s321 = int_to_ptr.vmem [resolvable:$true] %s320
      %323 = dma.hbm_to_vmem [thread:$0]  %s310, 16, %s321, %s312
      %s324 = sadd.s32 %s37, 10
      %s325 = sld [smem:[#allocation6 + %s324]]
      %s326 = smul.addr %s325, 16
      %s327 = scalar_lea.hbm %s1, %s326
      %s328 = scalar_lea.vmem [#allocation3], 17
      %s329 = scalar_lea.sflag [#allocation4], 17
      // Predicated region
      $region86: #{tpu_custom_call.1} parent=16 // pred_check
        _
      $region87: #{tpu_custom_call.1} parent=16 // pred_check_branch
        %331 = sbr.rel target = $region89
      $region88: #{tpu_custom_call.1} parent=16 // pred_region
        %332 = sst [smem:[#allocation13]] [#allocation48]
        %333 = sst [smem:[#allocation14]] [#allocation47]
      $region89: #{tpu_custom_call.1} parent=16 // pred_fallthru
        _
      %335 = shalt.err (0)
      %s337 = sshll.u32 %s328, 4
      %s338 = int_to_ptr.vmem [resolvable:$true] %s337
      %340 = dma.hbm_to_vmem [thread:$0]  %s327, 16, %s338, %s329
      %s341 = sadd.s32 %s37, 18
      %s342 = sld [smem:[#allocation6 + %s341]]
      %s343 = smul.addr %s342, 16
      %s344 = scalar_lea.hbm %s1, %s343
      %s345 = scalar_lea.vmem [#allocation3], 18
      %s346 = scalar_lea.sflag [#allocation4], 18
      // Predicated region
      $region90: #{tpu_custom_call.1} parent=16 // pred_check
        _
      $region91: #{tpu_custom_call.1} parent=16 // pred_check_branch
        %348 = sbr.rel target = $region93
      $region92: #{tpu_custom_call.1} parent=16 // pred_region
        %349 = sst [smem:[#allocation13]] [#allocation50]
        %350 = sst [smem:[#allocation14]] [#allocation49]
      $region93: #{tpu_custom_call.1} parent=16 // pred_fallthru
        _
      %352 = shalt.err (0)
      %s354 = sshll.u32 %s345, 4
      %s355 = int_to_ptr.vmem [resolvable:$true] %s354
      %357 = dma.hbm_to_vmem [thread:$0]  %s344, 16, %s355, %s346
      %s358 = sadd.s32 %s37, 26
      %s359 = sld [smem:[#allocation6 + %s358]]
      %s360 = smul.addr %s359, 16
      %s361 = scalar_lea.hbm %s1, %s360
      %s362 = scalar_lea.vmem [#allocation3], 19
      %s363 = scalar_lea.sflag [#allocation4], 19
      // Predicated region
      $region94: #{tpu_custom_call.1} parent=16 // pred_check
        _
      $region95: #{tpu_custom_call.1} parent=16 // pred_check_branch
        %365 = sbr.rel target = $region97
      $region96: #{tpu_custom_call.1} parent=16 // pred_region
        %366 = sst [smem:[#allocation13]] [#allocation52]
        %367 = sst [smem:[#allocation14]] [#allocation51]
      $region97: #{tpu_custom_call.1} parent=16 // pred_fallthru
        _
      %369 = shalt.err (0)
      %s371 = sshll.u32 %s362, 4
      %s372 = int_to_ptr.vmem [resolvable:$true] %s371
      %374 = dma.hbm_to_vmem [thread:$0]  %s361, 16, %s372, %s363
      %s375 = sadd.s32 %s37, 34
      %s376 = sld [smem:[#allocation6 + %s375]]
      %s377 = smul.addr %s376, 16
      %s378 = scalar_lea.hbm %s1, %s377
      %s379 = scalar_lea.vmem [#allocation3], 20
      %s380 = scalar_lea.sflag [#allocation4], 20
      // Predicated region
      $region98: #{tpu_custom_call.1} parent=16 // pred_check
        _
      $region99: #{tpu_custom_call.1} parent=16 // pred_check_branch
        %382 = sbr.rel target = $region101
      $region100: #{tpu_custom_call.1} parent=16 // pred_region
        %383 = sst [smem:[#allocation13]] [#allocation54]
        %384 = sst [smem:[#allocation14]] [#allocation53]
      $region101: #{tpu_custom_call.1} parent=16 // pred_fallthru
        _
      %386 = shalt.err (0)
      %s388 = sshll.u32 %s379, 4
      %s389 = int_to_ptr.vmem [resolvable:$true] %s388
      %391 = dma.hbm_to_vmem [thread:$0]  %s378, 16, %s389, %s380
      %s392 = sadd.s32 %s37, 42
      %s393 = sld [smem:[#allocation6 + %s392]]
      %s394 = smul.addr %s393, 16
      %s395 = scalar_lea.hbm %s1, %s394
      %s396 = scalar_lea.vmem [#allocation3], 21
      %s397 = scalar_lea.sflag [#allocation4], 21
      // Predicated region
      $region102: #{tpu_custom_call.1} parent=16 // pred_check
        _
      $region103: #{tpu_custom_call.1} parent=16 // pred_check_branch
        %399 = sbr.rel target = $region105
      $region104: #{tpu_custom_call.1} parent=16 // pred_region
        %400 = sst [smem:[#allocation13]] [#allocation56]
        %401 = sst [smem:[#allocation14]] [#allocation55]
      $region105: #{tpu_custom_call.1} parent=16 // pred_fallthru
        _
      %403 = shalt.err (0)
      %s405 = sshll.u32 %s396, 4
      %s406 = int_to_ptr.vmem [resolvable:$true] %s405
      %408 = dma.hbm_to_vmem [thread:$0]  %s395, 16, %s406, %s397
      %s409 = sadd.s32 %s37, 50
      %s410 = sld [smem:[#allocation6 + %s409]]
      %s411 = smul.addr %s410, 16
      %s412 = scalar_lea.hbm %s1, %s411
      %s413 = scalar_lea.vmem [#allocation3], 22
      %s414 = scalar_lea.sflag [#allocation4], 22
      // Predicated region
      $region106: #{tpu_custom_call.1} parent=16 // pred_check
        _
      $region107: #{tpu_custom_call.1} parent=16 // pred_check_branch
        %416 = sbr.rel target = $region109
      $region108: #{tpu_custom_call.1} parent=16 // pred_region
        %417 = sst [smem:[#allocation13]] [#allocation58]
        %418 = sst [smem:[#allocation14]] [#allocation57]
      $region109: #{tpu_custom_call.1} parent=16 // pred_fallthru
        _
      %420 = shalt.err (0)
      %s422 = sshll.u32 %s413, 4
      %s423 = int_to_ptr.vmem [resolvable:$true] %s422
      %425 = dma.hbm_to_vmem [thread:$0]  %s412, 16, %s423, %s414
      %s426 = sadd.s32 %s37, 58
      %s427 = sld [smem:[#allocation6 + %s426]]
      %s428 = smul.addr %s427, 16
      %s429 = scalar_lea.hbm %s1, %s428
      %s430 = scalar_lea.vmem [#allocation3], 23
      %s431 = scalar_lea.sflag [#allocation4], 23
      // Predicated region
      $region110: #{tpu_custom_call.1} parent=16 // pred_check
        _
      $region111: #{tpu_custom_call.1} parent=16 // pred_check_branch
        %433 = sbr.rel target = $region113
      $region112: #{tpu_custom_call.1} parent=16 // pred_region
        %434 = sst [smem:[#allocation13]] [#allocation60]
        %435 = sst [smem:[#allocation14]] [#allocation59]
      $region113: #{tpu_custom_call.1} parent=16 // pred_fallthru
        _
      %437 = shalt.err (0)
      %s439 = sshll.u32 %s430, 4
      %s440 = int_to_ptr.vmem [resolvable:$true] %s439
      %442 = dma.hbm_to_vmem [thread:$0]  %s429, 16, %s440, %s431
      %s443 = sadd.s32 %s37, 3
      %s444 = sld [smem:[#allocation6 + %s443]]
      %s445 = smul.addr %s444, 16
      %s446 = scalar_lea.hbm %s1, %s445
      %s447 = scalar_lea.vmem [#allocation3], 24
      %s448 = scalar_lea.sflag [#allocation4], 24
      // Predicated region
      $region114: #{tpu_custom_call.1} parent=16 // pred_check
        _
      $region115: #{tpu_custom_call.1} parent=16 // pred_check_branch
        %450 = sbr.rel target = $region117
      $region116: #{tpu_custom_call.1} parent=16 // pred_region
        %451 = sst [smem:[#allocation13]] [#allocation62]
        %452 = sst [smem:[#allocation14]] [#allocation61]
      $region117: #{tpu_custom_call.1} parent=16 // pred_fallthru
        _
      %454 = shalt.err (0)
      %s456 = sshll.u32 %s447, 4
      %s457 = int_to_ptr.vmem [resolvable:$true] %s456
      %459 = dma.hbm_to_vmem [thread:$0]  %s446, 16, %s457, %s448
      %s460 = sadd.s32 %s37, 11
      %s461 = sld [smem:[#allocation6 + %s460]]
      %s462 = smul.addr %s461, 16
      %s463 = scalar_lea.hbm %s1, %s462
      %s464 = scalar_lea.vmem [#allocation3], 25
      %s465 = scalar_lea.sflag [#allocation4], 25
      // Predicated region
      $region118: #{tpu_custom_call.1} parent=16 // pred_check
        _
      $region119: #{tpu_custom_call.1} parent=16 // pred_check_branch
        %467 = sbr.rel target = $region121
      $region120: #{tpu_custom_call.1} parent=16 // pred_region
        %468 = sst [smem:[#allocation13]] [#allocation64]
        %469 = sst [smem:[#allocation14]] [#allocation63]
      $region121: #{tpu_custom_call.1} parent=16 // pred_fallthru
        _
      %471 = shalt.err (0)
      %s473 = sshll.u32 %s464, 4
      %s474 = int_to_ptr.vmem [resolvable:$true] %s473
      %476 = dma.hbm_to_vmem [thread:$0]  %s463, 16, %s474, %s465
      %s477 = sadd.s32 %s37, 19
      %s478 = sld [smem:[#allocation6 + %s477]]
      %s479 = smul.addr %s478, 16
      %s480 = scalar_lea.hbm %s1, %s479
      %s481 = scalar_lea.vmem [#allocation3], 26
      %s482 = scalar_lea.sflag [#allocation4], 26
      // Predicated region
      $region122: #{tpu_custom_call.1} parent=16 // pred_check
        _
      $region123: #{tpu_custom_call.1} parent=16 // pred_check_branch
        %484 = sbr.rel target = $region125
      $region124: #{tpu_custom_call.1} parent=16 // pred_region
        %485 = sst [smem:[#allocation13]] [#allocation66]
        %486 = sst [smem:[#allocation14]] [#allocation65]
      $region125: #{tpu_custom_call.1} parent=16 // pred_fallthru
        _
      %488 = shalt.err (0)
      %s490 = sshll.u32 %s481, 4
      %s491 = int_to_ptr.vmem [resolvable:$true] %s490
      %493 = dma.hbm_to_vmem [thread:$0]  %s480, 16, %s491, %s482
      %s494 = sadd.s32 %s37, 27
      %s495 = sld [smem:[#allocation6 + %s494]]
      %s496 = smul.addr %s495, 16
      %s497 = scalar_lea.hbm %s1, %s496
      %s498 = scalar_lea.vmem [#allocation3], 27
      %s499 = scalar_lea.sflag [#allocation4], 27
      // Predicated region
      $region126: #{tpu_custom_call.1} parent=16 // pred_check
        _
      $region127: #{tpu_custom_call.1} parent=16 // pred_check_branch
        %501 = sbr.rel target = $region129
      $region128: #{tpu_custom_call.1} parent=16 // pred_region
        %502 = sst [smem:[#allocation13]] [#allocation68]
        %503 = sst [smem:[#allocation14]] [#allocation67]
      $region129: #{tpu_custom_call.1} parent=16 // pred_fallthru
        _
      %505 = shalt.err (0)
      %s507 = sshll.u32 %s498, 4
      %s508 = int_to_ptr.vmem [resolvable:$true] %s507
      %510 = dma.hbm_to_vmem [thread:$0]  %s497, 16, %s508, %s499
      %s511 = sadd.s32 %s37, 35
      %s512 = sld [smem:[#allocation6 + %s511]]
      %s513 = smul.addr %s512, 16
      %s514 = scalar_lea.hbm %s1, %s513
      %s515 = scalar_lea.vmem [#allocation3], 28
      %s516 = scalar_lea.sflag [#allocation4], 28
      // Predicated region
      $region130: #{tpu_custom_call.1} parent=16 // pred_check
        _
      $region131: #{tpu_custom_call.1} parent=16 // pred_check_branch
        %518 = sbr.rel target = $region133
      $region132: #{tpu_custom_call.1} parent=16 // pred_region
        %519 = sst [smem:[#allocation13]] [#allocation70]
        %520 = sst [smem:[#allocation14]] [#allocation69]
      $region133: #{tpu_custom_call.1} parent=16 // pred_fallthru
        _
      %522 = shalt.err (0)
      %s524 = sshll.u32 %s515, 4
      %s525 = int_to_ptr.vmem [resolvable:$true] %s524
      %527 = dma.hbm_to_vmem [thread:$0]  %s514, 16, %s525, %s516
      %s528 = sadd.s32 %s37, 43
      %s529 = sld [smem:[#allocation6 + %s528]]
      %s530 = smul.addr %s529, 16
      %s531 = scalar_lea.hbm %s1, %s530
      %s532 = scalar_lea.vmem [#allocation3], 29
      %s533 = scalar_lea.sflag [#allocation4], 29
      // Predicated region
      $region134: #{tpu_custom_call.1} parent=16 // pred_check
        _
      $region135: #{tpu_custom_call.1} parent=16 // pred_check_branch
        %535 = sbr.rel target = $region137
      $region136: #{tpu_custom_call.1} parent=16 // pred_region
        %536 = sst [smem:[#allocation13]] [#allocation72]
        %537 = sst [smem:[#allocation14]] [#allocation71]
      $region137: #{tpu_custom_call.1} parent=16 // pred_fallthru
        _
      %539 = shalt.err (0)
      %s541 = sshll.u32 %s532, 4
      %s542 = int_to_ptr.vmem [resolvable:$true] %s541
      %544 = dma.hbm_to_vmem [thread:$0]  %s531, 16, %s542, %s533
      %s545 = sadd.s32 %s37, 51
      %s546 = sld [smem:[#allocation6 + %s545]]
      %s547 = smul.addr %s546, 16
      %s548 = scalar_lea.hbm %s1, %s547
      %s549 = scalar_lea.vmem [#allocation3], 30
      %s550 = scalar_lea.sflag [#allocation4], 30
      // Predicated region
      $region138: #{tpu_custom_call.1} parent=16 // pred_check
        _
      $region139: #{tpu_custom_call.1} parent=16 // pred_check_branch
        %552 = sbr.rel target = $region141
      $region140: #{tpu_custom_call.1} parent=16 // pred_region
        %553 = sst [smem:[#allocation13]] [#allocation74]
        %554 = sst [smem:[#allocation14]] [#allocation73]
      $region141: #{tpu_custom_call.1} parent=16 // pred_fallthru
        _
      %556 = shalt.err (0)
      %s558 = sshll.u32 %s549, 4
      %s559 = int_to_ptr.vmem [resolvable:$true] %s558
      %561 = dma.hbm_to_vmem [thread:$0]  %s548, 16, %s559, %s550
      %s562 = sadd.s32 %s37, 59
      %s563 = sld [smem:[#allocation6 + %s562]]
      %s564 = smul.addr %s563, 16
      %s565 = scalar_lea.hbm %s1, %s564
      %s566 = scalar_lea.vmem [#allocation3], 31
      %s567 = scalar_lea.sflag [#allocation4], 31
      // Predicated region
      $region142: #{tpu_custom_call.1} parent=16 // pred_check
        _
      $region143: #{tpu_custom_call.1} parent=16 // pred_check_branch
        %569 = sbr.rel target = $region145
      $region144: #{tpu_custom_call.1} parent=16 // pred_region
        %570 = sst [smem:[#allocation13]] [#allocation76]
        %571 = sst [smem:[#allocation14]] [#allocation75]
      $region145: #{tpu_custom_call.1} parent=16 // pred_fallthru
        _
      %573 = shalt.err (0)
      %s575 = sshll.u32 %s566, 4
      %s576 = int_to_ptr.vmem [resolvable:$true] %s575
      %578 = dma.hbm_to_vmem [thread:$0]  %s565, 16, %s576, %s567
      %s579 = sadd.s32 %s37, 4
      %s580 = sld [smem:[#allocation6 + %s579]]
      %s581 = smul.addr %s580, 16
      %s582 = scalar_lea.hbm %s1, %s581
      %s583 = scalar_lea.vmem [#allocation3], 32
      %s584 = scalar_lea.sflag [#allocation4], 32
      // Predicated region
      $region146: #{tpu_custom_call.1} parent=16 // pred_check
        _
      $region147: #{tpu_custom_call.1} parent=16 // pred_check_branch
        %586 = sbr.rel target = $region149
      $region148: #{tpu_custom_call.1} parent=16 // pred_region
        %587 = sst [smem:[#allocation13]] [#allocation78]
        %588 = sst [smem:[#allocation14]] [#allocation77]
      $region149: #{tpu_custom_call.1} parent=16 // pred_fallthru
        _
      %590 = shalt.err (0)
      %s592 = sshll.u32 %s583, 4
      %s593 = int_to_ptr.vmem [resolvable:$true] %s592
      %595 = dma.hbm_to_vmem [thread:$0]  %s582, 16, %s593, %s584
      %s596 = sadd.s32 %s37, 12
      %s597 = sld [smem:[#allocation6 + %s596]]
      %s598 = smul.addr %s597, 16
      %s599 = scalar_lea.hbm %s1, %s598
      %s600 = scalar_lea.vmem [#allocation3], 33
      %s601 = scalar_lea.sflag [#allocation4], 33
      // Predicated region
      $region150: #{tpu_custom_call.1} parent=16 // pred_check
        _
      $region151: #{tpu_custom_call.1} parent=16 // pred_check_branch
        %603 = sbr.rel target = $region153
      $region152: #{tpu_custom_call.1} parent=16 // pred_region
        %604 = sst [smem:[#allocation13]] [#allocation80]
        %605 = sst [smem:[#allocation14]] [#allocation79]
      $region153: #{tpu_custom_call.1} parent=16 // pred_fallthru
        _
      %607 = shalt.err (0)
      %s609 = sshll.u32 %s600, 4
      %s610 = int_to_ptr.vmem [resolvable:$true] %s609
      %612 = dma.hbm_to_vmem [thread:$0]  %s599, 16, %s610, %s601
      %s613 = sadd.s32 %s37, 20
      %s614 = sld [smem:[#allocation6 + %s613]]
      %s615 = smul.addr %s614, 16
      %s616 = scalar_lea.hbm %s1, %s615
      %s617 = scalar_lea.vmem [#allocation3], 34
      %s618 = scalar_lea.sflag [#allocation4], 34
      // Predicated region
      $region154: #{tpu_custom_call.1} parent=16 // pred_check
        _
      $region155: #{tpu_custom_call.1} parent=16 // pred_check_branch
        %620 = sbr.rel target = $region157
      $region156: #{tpu_custom_call.1} parent=16 // pred_region
        %621 = sst [smem:[#allocation13]] [#allocation82]
        %622 = sst [smem:[#allocation14]] [#allocation81]
      $region157: #{tpu_custom_call.1} parent=16 // pred_fallthru
        _
      %624 = shalt.err (0)
      %s626 = sshll.u32 %s617, 4
      %s627 = int_to_ptr.vmem [resolvable:$true] %s626
      %629 = dma.hbm_to_vmem [thread:$0]  %s616, 16, %s627, %s618
      %s630 = sadd.s32 %s37, 28
      %s631 = sld [smem:[#allocation6 + %s630]]
      %s632 = smul.addr %s631, 16
      %s633 = scalar_lea.hbm %s1, %s632
      %s634 = scalar_lea.vmem [#allocation3], 35
      %s635 = scalar_lea.sflag [#allocation4], 35
      // Predicated region
      $region158: #{tpu_custom_call.1} parent=16 // pred_check
        _
      $region159: #{tpu_custom_call.1} parent=16 // pred_check_branch
        %637 = sbr.rel target = $region161
      $region160: #{tpu_custom_call.1} parent=16 // pred_region
        %638 = sst [smem:[#allocation13]] [#allocation84]
        %639 = sst [smem:[#allocation14]] [#allocation83]
      $region161: #{tpu_custom_call.1} parent=16 // pred_fallthru
        _
      %641 = shalt.err (0)
      %s643 = sshll.u32 %s634, 4
      %s644 = int_to_ptr.vmem [resolvable:$true] %s643
      %646 = dma.hbm_to_vmem [thread:$0]  %s633, 16, %s644, %s635
      %s647 = sadd.s32 %s37, 36
      %s648 = sld [smem:[#allocation6 + %s647]]
      %s649 = smul.addr %s648, 16
      %s650 = scalar_lea.hbm %s1, %s649
      %s651 = scalar_lea.vmem [#allocation3], 36
      %s652 = scalar_lea.sflag [#allocation4], 36
      // Predicated region
      $region162: #{tpu_custom_call.1} parent=16 // pred_check
        _
      $region163: #{tpu_custom_call.1} parent=16 // pred_check_branch
        %654 = sbr.rel target = $region165
      $region164: #{tpu_custom_call.1} parent=16 // pred_region
        %655 = sst [smem:[#allocation13]] [#allocation86]
        %656 = sst [smem:[#allocation14]] [#allocation85]
      $region165: #{tpu_custom_call.1} parent=16 // pred_fallthru
        _
      %658 = shalt.err (0)
      %s660 = sshll.u32 %s651, 4
      %s661 = int_to_ptr.vmem [resolvable:$true] %s660
      %663 = dma.hbm_to_vmem [thread:$0]  %s650, 16, %s661, %s652
      %s664 = sadd.s32 %s37, 44
      %s665 = sld [smem:[#allocation6 + %s664]]
      %s666 = smul.addr %s665, 16
      %s667 = scalar_lea.hbm %s1, %s666
      %s668 = scalar_lea.vmem [#allocation3], 37
      %s669 = scalar_lea.sflag [#allocation4], 37
      // Predicated region
      $region166: #{tpu_custom_call.1} parent=16 // pred_check
        _
      $region167: #{tpu_custom_call.1} parent=16 // pred_check_branch
        %671 = sbr.rel target = $region169
      $region168: #{tpu_custom_call.1} parent=16 // pred_region
        %672 = sst [smem:[#allocation13]] [#allocation88]
        %673 = sst [smem:[#allocation14]] [#allocation87]
      $region169: #{tpu_custom_call.1} parent=16 // pred_fallthru
        _
      %675 = shalt.err (0)
      %s677 = sshll.u32 %s668, 4
      %s678 = int_to_ptr.vmem [resolvable:$true] %s677
      %680 = dma.hbm_to_vmem [thread:$0]  %s667, 16, %s678, %s669
      %s681 = sadd.s32 %s37, 52
      %s682 = sld [smem:[#allocation6 + %s681]]
      %s683 = smul.addr %s682, 16
      %s684 = scalar_lea.hbm %s1, %s683
      %s685 = scalar_lea.vmem [#allocation3], 38
      %s686 = scalar_lea.sflag [#allocation4], 38
      // Predicated region
      $region170: #{tpu_custom_call.1} parent=16 // pred_check
        _
      $region171: #{tpu_custom_call.1} parent=16 // pred_check_branch
        %688 = sbr.rel target = $region173
      $region172: #{tpu_custom_call.1} parent=16 // pred_region
        %689 = sst [smem:[#allocation13]] [#allocation90]
        %690 = sst [smem:[#allocation14]] [#allocation89]
      $region173: #{tpu_custom_call.1} parent=16 // pred_fallthru
        _
      %692 = shalt.err (0)
      %s694 = sshll.u32 %s685, 4
      %s695 = int_to_ptr.vmem [resolvable:$true] %s694
      %697 = dma.hbm_to_vmem [thread:$0]  %s684, 16, %s695, %s686
      %s698 = sadd.s32 %s37, 60
      %s699 = sld [smem:[#allocation6 + %s698]]
      %s700 = smul.addr %s699, 16
      %s701 = scalar_lea.hbm %s1, %s700
      %s702 = scalar_lea.vmem [#allocation3], 39
      %s703 = scalar_lea.sflag [#allocation4], 39
      // Predicated region
      $region174: #{tpu_custom_call.1} parent=16 // pred_check
        _
      $region175: #{tpu_custom_call.1} parent=16 // pred_check_branch
        %705 = sbr.rel target = $region177
      $region176: #{tpu_custom_call.1} parent=16 // pred_region
        %706 = sst [smem:[#allocation13]] [#allocation92]
        %707 = sst [smem:[#allocation14]] [#allocation91]
      $region177: #{tpu_custom_call.1} parent=16 // pred_fallthru
        _
      %709 = shalt.err (0)
      %s711 = sshll.u32 %s702, 4
      %s712 = int_to_ptr.vmem [resolvable:$true] %s711
      %714 = dma.hbm_to_vmem [thread:$0]  %s701, 16, %s712, %s703
      %s715 = sadd.s32 %s37, 5
      %s716 = sld [smem:[#allocation6 + %s715]]
      %s717 = smul.addr %s716, 16
      %s718 = scalar_lea.hbm %s1, %s717
      %s719 = scalar_lea.vmem [#allocation3], 40
      %s720 = scalar_lea.sflag [#allocation4], 40
      // Predicated region
      $region178: #{tpu_custom_call.1} parent=16 // pred_check
        _
      $region179: #{tpu_custom_call.1} parent=16 // pred_check_branch
        %722 = sbr.rel target = $region181
      $region180: #{tpu_custom_call.1} parent=16 // pred_region
        %723 = sst [smem:[#allocation13]] [#allocation94]
        %724 = sst [smem:[#allocation14]] [#allocation93]
      $region181: #{tpu_custom_call.1} parent=16 // pred_fallthru
        _
      %726 = shalt.err (0)
      %s728 = sshll.u32 %s719, 4
      %s729 = int_to_ptr.vmem [resolvable:$true] %s728
      %731 = dma.hbm_to_vmem [thread:$0]  %s718, 16, %s729, %s720
      %s732 = sadd.s32 %s37, 13
      %s733 = sld [smem:[#allocation6 + %s732]]
      %s734 = smul.addr %s733, 16
      %s735 = scalar_lea.hbm %s1, %s734
      %s736 = scalar_lea.vmem [#allocation3], 41
      %s737 = scalar_lea.sflag [#allocation4], 41
      // Predicated region
      $region182: #{tpu_custom_call.1} parent=16 // pred_check
        _
      $region183: #{tpu_custom_call.1} parent=16 // pred_check_branch
        %739 = sbr.rel target = $region185
      $region184: #{tpu_custom_call.1} parent=16 // pred_region
        %740 = sst [smem:[#allocation13]] [#allocation96]
        %741 = sst [smem:[#allocation14]] [#allocation95]
      $region185: #{tpu_custom_call.1} parent=16 // pred_fallthru
        _
      %743 = shalt.err (0)
      %s745 = sshll.u32 %s736, 4
      %s746 = int_to_ptr.vmem [resolvable:$true] %s745
      %748 = dma.hbm_to_vmem [thread:$0]  %s735, 16, %s746, %s737
      %s749 = sadd.s32 %s37, 21
      %s750 = sld [smem:[#allocation6 + %s749]]
      %s751 = smul.addr %s750, 16
      %s752 = scalar_lea.hbm %s1, %s751
      %s753 = scalar_lea.vmem [#allocation3], 42
      %s754 = scalar_lea.sflag [#allocation4], 42
      // Predicated region
      $region186: #{tpu_custom_call.1} parent=16 // pred_check
        _
      $region187: #{tpu_custom_call.1} parent=16 // pred_check_branch
        %756 = sbr.rel target = $region189
      $region188: #{tpu_custom_call.1} parent=16 // pred_region
        %757 = sst [smem:[#allocation13]] [#allocation98]
        %758 = sst [smem:[#allocation14]] [#allocation97]
      $region189: #{tpu_custom_call.1} parent=16 // pred_fallthru
        _
      %760 = shalt.err (0)
      %s762 = sshll.u32 %s753, 4
      %s763 = int_to_ptr.vmem [resolvable:$true] %s762
      %765 = dma.hbm_to_vmem [thread:$0]  %s752, 16, %s763, %s754
      %s766 = sadd.s32 %s37, 29
      %s767 = sld [smem:[#allocation6 + %s766]]
      %s768 = smul.addr %s767, 16
      %s769 = scalar_lea.hbm %s1, %s768
      %s770 = scalar_lea.vmem [#allocation3], 43
      %s771 = scalar_lea.sflag [#allocation4], 43
      // Predicated region
      $region190: #{tpu_custom_call.1} parent=16 // pred_check
        _
      $region191: #{tpu_custom_call.1} parent=16 // pred_check_branch
        %773 = sbr.rel target = $region193
      $region192: #{tpu_custom_call.1} parent=16 // pred_region
        %774 = sst [smem:[#allocation13]] [#allocation100]
        %775 = sst [smem:[#allocation14]] [#allocation99]
      $region193: #{tpu_custom_call.1} parent=16 // pred_fallthru
        _
      %777 = shalt.err (0)
      %s779 = sshll.u32 %s770, 4
      %s780 = int_to_ptr.vmem [resolvable:$true] %s779
      %782 = dma.hbm_to_vmem [thread:$0]  %s769, 16, %s780, %s771
      %s783 = sadd.s32 %s37, 37
      %s784 = sld [smem:[#allocation6 + %s783]]
      %s785 = smul.addr %s784, 16
      %s786 = scalar_lea.hbm %s1, %s785
      %s787 = scalar_lea.vmem [#allocation3], 44
      %s788 = scalar_lea.sflag [#allocation4], 44
      // Predicated region
      $region194: #{tpu_custom_call.1} parent=16 // pred_check
        _
      $region195: #{tpu_custom_call.1} parent=16 // pred_check_branch
        %790 = sbr.rel target = $region197
      $region196: #{tpu_custom_call.1} parent=16 // pred_region
        %791 = sst [smem:[#allocation13]] [#allocation102]
        %792 = sst [smem:[#allocation14]] [#allocation101]
      $region197: #{tpu_custom_call.1} parent=16 // pred_fallthru
        _
      %794 = shalt.err (0)
      %s796 = sshll.u32 %s787, 4
      %s797 = int_to_ptr.vmem [resolvable:$true] %s796
      %799 = dma.hbm_to_vmem [thread:$0]  %s786, 16, %s797, %s788
      %s800 = sadd.s32 %s37, 45
      %s801 = sld [smem:[#allocation6 + %s800]]
      %s802 = smul.addr %s801, 16
      %s803 = scalar_lea.hbm %s1, %s802
      %s804 = scalar_lea.vmem [#allocation3], 45
      %s805 = scalar_lea.sflag [#allocation4], 45
      // Predicated region
      $region198: #{tpu_custom_call.1} parent=16 // pred_check
        _
      $region199: #{tpu_custom_call.1} parent=16 // pred_check_branch
        %807 = sbr.rel target = $region201
      $region200: #{tpu_custom_call.1} parent=16 // pred_region
        %808 = sst [smem:[#allocation13]] [#allocation104]
        %809 = sst [smem:[#allocation14]] [#allocation103]
      $region201: #{tpu_custom_call.1} parent=16 // pred_fallthru
        _
      %811 = shalt.err (0)
      %s813 = sshll.u32 %s804, 4
      %s814 = int_to_ptr.vmem [resolvable:$true] %s813
      %816 = dma.hbm_to_vmem [thread:$0]  %s803, 16, %s814, %s805
      %s817 = sadd.s32 %s37, 53
      %s818 = sld [smem:[#allocation6 + %s817]]
      %s819 = smul.addr %s818, 16
      %s820 = scalar_lea.hbm %s1, %s819
      %s821 = scalar_lea.vmem [#allocation3], 46
      %s822 = scalar_lea.sflag [#allocation4], 46
      // Predicated region
      $region202: #{tpu_custom_call.1} parent=16 // pred_check
        _
      $region203: #{tpu_custom_call.1} parent=16 // pred_check_branch
        %824 = sbr.rel target = $region205
      $region204: #{tpu_custom_call.1} parent=16 // pred_region
        %825 = sst [smem:[#allocation13]] [#allocation106]
        %826 = sst [smem:[#allocation14]] [#allocation105]
      $region205: #{tpu_custom_call.1} parent=16 // pred_fallthru
        _
      %828 = shalt.err (0)
      %s830 = sshll.u32 %s821, 4
      %s831 = int_to_ptr.vmem [resolvable:$true] %s830
      %833 = dma.hbm_to_vmem [thread:$0]  %s820, 16, %s831, %s822
      %s834 = sadd.s32 %s37, 61
      %s835 = sld [smem:[#allocation6 + %s834]]
      %s836 = smul.addr %s835, 16
      %s837 = scalar_lea.hbm %s1, %s836
      %s838 = scalar_lea.vmem [#allocation3], 47
      %s839 = scalar_lea.sflag [#allocation4], 47
      // Predicated region
      $region206: #{tpu_custom_call.1} parent=16 // pred_check
        _
      $region207: #{tpu_custom_call.1} parent=16 // pred_check_branch
        %841 = sbr.rel target = $region209
      $region208: #{tpu_custom_call.1} parent=16 // pred_region
        %842 = sst [smem:[#allocation13]] [#allocation108]
        %843 = sst [smem:[#allocation14]] [#allocation107]
      $region209: #{tpu_custom_call.1} parent=16 // pred_fallthru
        _
      %845 = shalt.err (0)
      %s847 = sshll.u32 %s838, 4
      %s848 = int_to_ptr.vmem [resolvable:$true] %s847
      %850 = dma.hbm_to_vmem [thread:$0]  %s837, 16, %s848, %s839
      %s851 = sadd.s32 %s37, 6
      %s852 = sld [smem:[#allocation6 + %s851]]
      %s853 = smul.addr %s852, 16
      %s854 = scalar_lea.hbm %s1, %s853
      %s855 = scalar_lea.vmem [#allocation3], 48
      %s856 = scalar_lea.sflag [#allocation4], 48
      // Predicated region
      $region210: #{tpu_custom_call.1} parent=16 // pred_check
        _
      $region211: #{tpu_custom_call.1} parent=16 // pred_check_branch
        %858 = sbr.rel target = $region213
      $region212: #{tpu_custom_call.1} parent=16 // pred_region
        %859 = sst [smem:[#allocation13]] [#allocation110]
        %860 = sst [smem:[#allocation14]] [#allocation109]
      $region213: #{tpu_custom_call.1} parent=16 // pred_fallthru
        _
      %862 = shalt.err (0)
      %s864 = sshll.u32 %s855, 4
      %s865 = int_to_ptr.vmem [resolvable:$true] %s864
      %867 = dma.hbm_to_vmem [thread:$0]  %s854, 16, %s865, %s856
      %s868 = sadd.s32 %s37, 14
      %s869 = sld [smem:[#allocation6 + %s868]]
      %s870 = smul.addr %s869, 16
      %s871 = scalar_lea.hbm %s1, %s870
      %s872 = scalar_lea.vmem [#allocation3], 49
      %s873 = scalar_lea.sflag [#allocation4], 49
      // Predicated region
      $region214: #{tpu_custom_call.1} parent=16 // pred_check
        _
      $region215: #{tpu_custom_call.1} parent=16 // pred_check_branch
        %875 = sbr.rel target = $region217
      $region216: #{tpu_custom_call.1} parent=16 // pred_region
        %876 = sst [smem:[#allocation13]] [#allocation112]
        %877 = sst [smem:[#allocation14]] [#allocation111]
      $region217: #{tpu_custom_call.1} parent=16 // pred_fallthru
        _
      %879 = shalt.err (0)
      %s881 = sshll.u32 %s872, 4
      %s882 = int_to_ptr.vmem [resolvable:$true] %s881
      %884 = dma.hbm_to_vmem [thread:$0]  %s871, 16, %s882, %s873
      %s885 = sadd.s32 %s37, 22
      %s886 = sld [smem:[#allocation6 + %s885]]
      %s887 = smul.addr %s886, 16
      %s888 = scalar_lea.hbm %s1, %s887
      %s889 = scalar_lea.vmem [#allocation3], 50
      %s890 = scalar_lea.sflag [#allocation4], 50
      // Predicated region
      $region218: #{tpu_custom_call.1} parent=16 // pred_check
        _
      $region219: #{tpu_custom_call.1} parent=16 // pred_check_branch
        %892 = sbr.rel target = $region221
      $region220: #{tpu_custom_call.1} parent=16 // pred_region
        %893 = sst [smem:[#allocation13]] [#allocation114]
        %894 = sst [smem:[#allocation14]] [#allocation113]
      $region221: #{tpu_custom_call.1} parent=16 // pred_fallthru
        _
      %896 = shalt.err (0)
      %s898 = sshll.u32 %s889, 4
      %s899 = int_to_ptr.vmem [resolvable:$true] %s898
      %901 = dma.hbm_to_vmem [thread:$0]  %s888, 16, %s899, %s890
      %s902 = sadd.s32 %s37, 30
      %s903 = sld [smem:[#allocation6 + %s902]]
      %s904 = smul.addr %s903, 16
      %s905 = scalar_lea.hbm %s1, %s904
      %s906 = scalar_lea.vmem [#allocation3], 51
      %s907 = scalar_lea.sflag [#allocation4], 51
      // Predicated region
      $region222: #{tpu_custom_call.1} parent=16 // pred_check
        _
      $region223: #{tpu_custom_call.1} parent=16 // pred_check_branch
        %909 = sbr.rel target = $region225
      $region224: #{tpu_custom_call.1} parent=16 // pred_region
        %910 = sst [smem:[#allocation13]] [#allocation116]
        %911 = sst [smem:[#allocation14]] [#allocation115]
      $region225: #{tpu_custom_call.1} parent=16 // pred_fallthru
        _
      %913 = shalt.err (0)
      %s915 = sshll.u32 %s906, 4
      %s916 = int_to_ptr.vmem [resolvable:$true] %s915
      %918 = dma.hbm_to_vmem [thread:$0]  %s905, 16, %s916, %s907
      %s919 = sadd.s32 %s37, 38
      %s920 = sld [smem:[#allocation6 + %s919]]
      %s921 = smul.addr %s920, 16
      %s922 = scalar_lea.hbm %s1, %s921
      %s923 = scalar_lea.vmem [#allocation3], 52
      %s924 = scalar_lea.sflag [#allocation4], 52
      // Predicated region
      $region226: #{tpu_custom_call.1} parent=16 // pred_check
        _
      $region227: #{tpu_custom_call.1} parent=16 // pred_check_branch
        %926 = sbr.rel target = $region229
      $region228: #{tpu_custom_call.1} parent=16 // pred_region
        %927 = sst [smem:[#allocation13]] [#allocation118]
        %928 = sst [smem:[#allocation14]] [#allocation117]
      $region229: #{tpu_custom_call.1} parent=16 // pred_fallthru
        _
      %930 = shalt.err (0)
      %s932 = sshll.u32 %s923, 4
      %s933 = int_to_ptr.vmem [resolvable:$true] %s932
      %935 = dma.hbm_to_vmem [thread:$0]  %s922, 16, %s933, %s924
      %s936 = sadd.s32 %s37, 46
      %s937 = sld [smem:[#allocation6 + %s936]]
      %s938 = smul.addr %s937, 16
      %s939 = scalar_lea.hbm %s1, %s938
      %s940 = scalar_lea.vmem [#allocation3], 53
      %s941 = scalar_lea.sflag [#allocation4], 53
      // Predicated region
      $region230: #{tpu_custom_call.1} parent=16 // pred_check
        _
      $region231: #{tpu_custom_call.1} parent=16 // pred_check_branch
        %943 = sbr.rel target = $region233
      $region232: #{tpu_custom_call.1} parent=16 // pred_region
        %944 = sst [smem:[#allocation13]] [#allocation120]
        %945 = sst [smem:[#allocation14]] [#allocation119]
      $region233: #{tpu_custom_call.1} parent=16 // pred_fallthru
        _
      %947 = shalt.err (0)
      %s949 = sshll.u32 %s940, 4
      %s950 = int_to_ptr.vmem [resolvable:$true] %s949
      %952 = dma.hbm_to_vmem [thread:$0]  %s939, 16, %s950, %s941
      %s953 = sadd.s32 %s37, 54
      %s954 = sld [smem:[#allocation6 + %s953]]
      %s955 = smul.addr %s954, 16
      %s956 = scalar_lea.hbm %s1, %s955
      %s957 = scalar_lea.vmem [#allocation3], 54
      %s958 = scalar_lea.sflag [#allocation4], 54
      // Predicated region
      $region234: #{tpu_custom_call.1} parent=16 // pred_check
        _
      $region235: #{tpu_custom_call.1} parent=16 // pred_check_branch
        %960 = sbr.rel target = $region237
      $region236: #{tpu_custom_call.1} parent=16 // pred_region
        %961 = sst [smem:[#allocation13]] [#allocation122]
        %962 = sst [smem:[#allocation14]] [#allocation121]
      $region237: #{tpu_custom_call.1} parent=16 // pred_fallthru
        _
      %964 = shalt.err (0)
      %s966 = sshll.u32 %s957, 4
      %s967 = int_to_ptr.vmem [resolvable:$true] %s966
      %969 = dma.hbm_to_vmem [thread:$0]  %s956, 16, %s967, %s958
      %s970 = sadd.s32 %s37, 62
      %s971 = sld [smem:[#allocation6 + %s970]]
      %s972 = smul.addr %s971, 16
      %s973 = scalar_lea.hbm %s1, %s972
      %s974 = scalar_lea.vmem [#allocation3], 55
      %s975 = scalar_lea.sflag [#allocation4], 55
      // Predicated region
      $region238: #{tpu_custom_call.1} parent=16 // pred_check
        _
      $region239: #{tpu_custom_call.1} parent=16 // pred_check_branch
        %977 = sbr.rel target = $region241
      $region240: #{tpu_custom_call.1} parent=16 // pred_region
        %978 = sst [smem:[#allocation13]] [#allocation124]
        %979 = sst [smem:[#allocation14]] [#allocation123]
      $region241: #{tpu_custom_call.1} parent=16 // pred_fallthru
        _
      %981 = shalt.err (0)
      %s983 = sshll.u32 %s974, 4
      %s984 = int_to_ptr.vmem [resolvable:$true] %s983
      %986 = dma.hbm_to_vmem [thread:$0]  %s973, 16, %s984, %s975
      %s987 = sadd.s32 %s37, 7
      %s988 = sld [smem:[#allocation6 + %s987]]
      %s989 = smul.addr %s988, 16
      %s990 = scalar_lea.hbm %s1, %s989
      %s991 = scalar_lea.vmem [#allocation3], 56
      %s992 = scalar_lea.sflag [#allocation4], 56
      // Predicated region
      $region242: #{tpu_custom_call.1} parent=16 // pred_check
        _
      $region243: #{tpu_custom_call.1} parent=16 // pred_check_branch
        %994 = sbr.rel target = $region245
      $region244: #{tpu_custom_call.1} parent=16 // pred_region
        %995 = sst [smem:[#allocation13]] [#allocation126]
        %996 = sst [smem:[#allocation14]] [#allocation125]
      $region245: #{tpu_custom_call.1} parent=16 // pred_fallthru
        _
      %998 = shalt.err (0)
      %s1000 = sshll.u32 %s991, 4
      %s1001 = int_to_ptr.vmem [resolvable:$true] %s1000
      %1003 = dma.hbm_to_vmem [thread:$0]  %s990, 16, %s1001, %s992
      %s1004 = sadd.s32 %s37, 15
      %s1005 = sld [smem:[#allocation6 + %s1004]]
      %s1006 = smul.addr %s1005, 16
      %s1007 = scalar_lea.hbm %s1, %s1006
      %s1008 = scalar_lea.vmem [#allocation3], 57
      %s1009 = scalar_lea.sflag [#allocation4], 57
      // Predicated region
      $region246: #{tpu_custom_call.1} parent=16 // pred_check
        _
      $region247: #{tpu_custom_call.1} parent=16 // pred_check_branch
        %1011 = sbr.rel target = $region249
      $region248: #{tpu_custom_call.1} parent=16 // pred_region
        %1012 = sst [smem:[#allocation13]] [#allocation128]
        %1013 = sst [smem:[#allocation14]] [#allocation127]
      $region249: #{tpu_custom_call.1} parent=16 // pred_fallthru
        _
      %1015 = shalt.err (0)
      %s1017 = sshll.u32 %s1008, 4
      %s1018 = int_to_ptr.vmem [resolvable:$true] %s1017
      %1020 = dma.hbm_to_vmem [thread:$0]  %s1007, 16, %s1018, %s1009
      %s1021 = sadd.s32 %s37, 23
      %s1022 = sld [smem:[#allocation6 + %s1021]]
      %s1023 = smul.addr %s1022, 16
      %s1024 = scalar_lea.hbm %s1, %s1023
      %s1025 = scalar_lea.vmem [#allocation3], 58
      %s1026 = scalar_lea.sflag [#allocation4], 58
      // Predicated region
      $region250: #{tpu_custom_call.1} parent=16 // pred_check
        _
      $region251: #{tpu_custom_call.1} parent=16 // pred_check_branch
        %1028 = sbr.rel target = $region253
      $region252: #{tpu_custom_call.1} parent=16 // pred_region
        %1029 = sst [smem:[#allocation13]] [#allocation130]
        %1030 = sst [smem:[#allocation14]] [#allocation129]
      $region253: #{tpu_custom_call.1} parent=16 // pred_fallthru
        _
      %1032 = shalt.err (0)
      %s1034 = sshll.u32 %s1025, 4
      %s1035 = int_to_ptr.vmem [resolvable:$true] %s1034
      %1037 = dma.hbm_to_vmem [thread:$0]  %s1024, 16, %s1035, %s1026
      %s1038 = sadd.s32 %s37, 31
      %s1039 = sld [smem:[#allocation6 + %s1038]]
      %s1040 = smul.addr %s1039, 16
      %s1041 = scalar_lea.hbm %s1, %s1040
      %s1042 = scalar_lea.vmem [#allocation3], 59
      %s1043 = scalar_lea.sflag [#allocation4], 59
      // Predicated region
      $region254: #{tpu_custom_call.1} parent=16 // pred_check
        _
      $region255: #{tpu_custom_call.1} parent=16 // pred_check_branch
        %1045 = sbr.rel target = $region257
      $region256: #{tpu_custom_call.1} parent=16 // pred_region
        %1046 = sst [smem:[#allocation13]] [#allocation132]
        %1047 = sst [smem:[#allocation14]] [#allocation131]
      $region257: #{tpu_custom_call.1} parent=16 // pred_fallthru
        _
      %1049 = shalt.err (0)
      %s1051 = sshll.u32 %s1042, 4
      %s1052 = int_to_ptr.vmem [resolvable:$true] %s1051
      %1054 = dma.hbm_to_vmem [thread:$0]  %s1041, 16, %s1052, %s1043
      %s1055 = sadd.s32 %s37, 39
      %s1056 = sld [smem:[#allocation6 + %s1055]]
      %s1057 = smul.addr %s1056, 16
      %s1058 = scalar_lea.hbm %s1, %s1057
      %s1059 = scalar_lea.vmem [#allocation3], 60
      %s1060 = scalar_lea.sflag [#allocation4], 60
      // Predicated region
      $region258: #{tpu_custom_call.1} parent=16 // pred_check
        _
      $region259: #{tpu_custom_call.1} parent=16 // pred_check_branch
        %1062 = sbr.rel target = $region261
      $region260: #{tpu_custom_call.1} parent=16 // pred_region
        %1063 = sst [smem:[#allocation13]] [#allocation134]
        %1064 = sst [smem:[#allocation14]] [#allocation133]
      $region261: #{tpu_custom_call.1} parent=16 // pred_fallthru
        _
      %1066 = shalt.err (0)
      %s1068 = sshll.u32 %s1059, 4
      %s1069 = int_to_ptr.vmem [resolvable:$true] %s1068
      %1071 = dma.hbm_to_vmem [thread:$0]  %s1058, 16, %s1069, %s1060
      %s1072 = sadd.s32 %s37, 47
      %s1073 = sld [smem:[#allocation6 + %s1072]]
      %s1074 = smul.addr %s1073, 16
      %s1075 = scalar_lea.hbm %s1, %s1074
      %s1076 = scalar_lea.vmem [#allocation3], 61
      %s1077 = scalar_lea.sflag [#allocation4], 61
      // Predicated region
      $region262: #{tpu_custom_call.1} parent=16 // pred_check
        _
      $region263: #{tpu_custom_call.1} parent=16 // pred_check_branch
        %1079 = sbr.rel target = $region265
      $region264: #{tpu_custom_call.1} parent=16 // pred_region
        %1080 = sst [smem:[#allocation13]] [#allocation136]
        %1081 = sst [smem:[#allocation14]] [#allocation135]
      $region265: #{tpu_custom_call.1} parent=16 // pred_fallthru
        _
      %1083 = shalt.err (0)
      %s1085 = sshll.u32 %s1076, 4
      %s1086 = int_to_ptr.vmem [resolvable:$true] %s1085
      %1088 = dma.hbm_to_vmem [thread:$0]  %s1075, 16, %s1086, %s1077
      %s1089 = sadd.s32 %s37, 55
      %s1090 = sld [smem:[#allocation6 + %s1089]]
      %s1091 = smul.addr %s1090, 16
      %s1092 = scalar_lea.hbm %s1, %s1091
      %s1093 = scalar_lea.vmem [#allocation3], 62
      %s1094 = scalar_lea.sflag [#allocation4], 62
      // Predicated region
      $region266: #{tpu_custom_call.1} parent=16 // pred_check
        _
      $region267: #{tpu_custom_call.1} parent=16 // pred_check_branch
        %1096 = sbr.rel target = $region269
      $region268: #{tpu_custom_call.1} parent=16 // pred_region
        %1097 = sst [smem:[#allocation13]] [#allocation138]
        %1098 = sst [smem:[#allocation14]] [#allocation137]
      $region269: #{tpu_custom_call.1} parent=16 // pred_fallthru
        _
      %1100 = shalt.err (0)
      %s1102 = sshll.u32 %s1093, 4
      %s1103 = int_to_ptr.vmem [resolvable:$true] %s1102
      %1105 = dma.hbm_to_vmem [thread:$0]  %s1092, 16, %s1103, %s1094
      %s1106 = sadd.s32 %s37, 63
      %s1107 = sld [smem:[#allocation6 + %s1106]]
      %s1108 = smul.addr %s1107, 16
      %s1109 = scalar_lea.hbm %s1, %s1108
      %s1110 = scalar_lea.vmem [#allocation3], 63
      %s1111 = scalar_lea.sflag [#allocation4], 63
      // Predicated region
      $region270: #{tpu_custom_call.1} parent=16 // pred_check
        _
      $region271: #{tpu_custom_call.1} parent=16 // pred_check_branch
        %1113 = sbr.rel target = $region273
      $region272: #{tpu_custom_call.1} parent=16 // pred_region
        %1114 = sst [smem:[#allocation13]] [#allocation140]
        %1115 = sst [smem:[#allocation14]] [#allocation139]
      $region273: #{tpu_custom_call.1} parent=16 // pred_fallthru
        _
      %1117 = shalt.err (0)
      %s1119 = sshll.u32 %s1110, 4
      %s1120 = int_to_ptr.vmem [resolvable:$true] %s1119
      %1122 = dma.hbm_to_vmem [thread:$0]  %s1109, 16, %s1120, %s1111
      %1124 = dma.done [#allocation4], 16
      %1126 = dma.done %s57, 16
      %1128 = dma.done %s74, 16
      %1130 = dma.done %s91, 16
      %1132 = dma.done %s108, 16
      %1134 = dma.done %s125, 16
      %1136 = dma.done %s142, 16
      %1138 = dma.done %s159, 16
      %v1139 = vld [vmem:[#allocation3] sm:$0xff]
      %v1140 = vadd.f32 %v1139, 0.0
      %1142 = dma.done %s176, 16
      %1144 = dma.done %s193, 16
      %1146 = dma.done %s210, 16
      %1148 = dma.done %s227, 16
      %1150 = dma.done %s244, 16
      %1152 = dma.done %s261, 16
      %1154 = dma.done %s278, 16
      %1156 = dma.done %s295, 16
      %v1157 = vld [vmem:[%s175] sm:$0xff]
      %v1158 = vadd.f32 %v1140, %v1157
      %1160 = dma.done %s312, 16
      %1162 = dma.done %s329, 16
      %1164 = dma.done %s346, 16
      %1166 = dma.done %s363, 16
      %1168 = dma.done %s380, 16
      %1170 = dma.done %s397, 16
      %1172 = dma.done %s414, 16
      %1174 = dma.done %s431, 16
      %v1175 = vld [vmem:[%s311] sm:$0xff]
      %v1176 = vadd.f32 %v1158, %v1175
      %1178 = dma.done %s448, 16
      %1180 = dma.done %s465, 16
      %1182 = dma.done %s482, 16
      %1184 = dma.done %s499, 16
      %1186 = dma.done %s516, 16
      %1188 = dma.done %s533, 16
      %1190 = dma.done %s550, 16
      %1192 = dma.done %s567, 16
      %v1193 = vld [vmem:[%s447] sm:$0xff]
      %v1194 = vadd.f32 %v1176, %v1193
      %1196 = dma.done %s584, 16
      %1198 = dma.done %s601, 16
      %1200 = dma.done %s618, 16
      %1202 = dma.done %s635, 16
      %1204 = dma.done %s652, 16
      %1206 = dma.done %s669, 16
      %1208 = dma.done %s686, 16
      %1210 = dma.done %s703, 16
      %v1211 = vld [vmem:[%s583] sm:$0xff]
      %v1212 = vadd.f32 %v1194, %v1211
      %1214 = dma.done %s720, 16
      %1216 = dma.done %s737, 16
      %1218 = dma.done %s754, 16
      %1220 = dma.done %s771, 16
      %1222 = dma.done %s788, 16
      %1224 = dma.done %s805, 16
      %1226 = dma.done %s822, 16
      %1228 = dma.done %s839, 16
      %v1229 = vld [vmem:[%s719] sm:$0xff]
      %v1230 = vadd.f32 %v1212, %v1229
      %1232 = dma.done %s856, 16
      %1234 = dma.done %s873, 16
      %1236 = dma.done %s890, 16
      %1238 = dma.done %s907, 16
      %1240 = dma.done %s924, 16
      %1242 = dma.done %s941, 16
      %1244 = dma.done %s958, 16
      %1246 = dma.done %s975, 16
      %v1247 = vld [vmem:[%s855] sm:$0xff]
      %v1248 = vadd.f32 %v1230, %v1247
      %1250 = dma.done %s992, 16
      %1252 = dma.done %s1009, 16
      %1254 = dma.done %s1026, 16
      %1256 = dma.done %s1043, 16
      %1258 = dma.done %s1060, 16
      %1260 = dma.done %s1077, 16
      %1262 = dma.done %s1094, 16
      %1264 = dma.done %s1111, 16
      %v1265 = vld [vmem:[%s991] sm:$0xff]
      %v1266 = vadd.f32 %v1248, %v1265
      %v1267 = vmul.f32 %v1266, 0.125
      %v1268 = vpack.c.bf16 %v1267, %v1267
      %1269 = vst [vmem:[#allocation2] sm:$0xf] %v1268
    $region17: #{tpu_custom_call.1} parent=1 // pred_fallthru
      _
    %v1270 = vld [vmem:[#allocation2] sm:$0xf]
    %v1271 = vld [vmem:[#allocation7] sm:$0xf]
    %v1272 = vld [vmem:[#allocation7 + $0x4] sm:$0xf]
    %v1273 = vld [vmem:[#allocation7 + $0x8] sm:$0xf]
    %v1274 = vld [vmem:[#allocation7 + $0xc] sm:$0xf]
    %v1275 = vld [vmem:[#allocation7 + $0x10] sm:$0xf]
    %v1276 = vld [vmem:[#allocation7 + $0x14] sm:$0xf]
    %v1277 = vld [vmem:[#allocation7 + $0x18] sm:$0xf]
    %v1278 = vld [vmem:[#allocation7 + $0x1c] sm:$0xf]
    %v1279 = vld [vmem:[#allocation7 + $0x20] sm:$0xf]
    %v1280 = vld [vmem:[#allocation7 + $0x24] sm:$0xf]
    %v1281 = vld [vmem:[#allocation7 + $0x28] sm:$0xf]
    %v1282 = vld [vmem:[#allocation7 + $0x2c] sm:$0xf]
    %v1283 = vld [vmem:[#allocation7 + $0x30] sm:$0xf]
    %v1284 = vld [vmem:[#allocation7 + $0x34] sm:$0xf]
    %v1285 = vld [vmem:[#allocation7 + $0x38] sm:$0xf]
    %v1286 = vld [vmem:[#allocation7 + $0x3c] sm:$0xf]
    %v1287 = vld [vmem:[%s3] sm:$0x1]
    %v1289 = vlaneseq
    %v1290 = vshrl.u32 %v1289, 7
    %v1291 = vsub.s32 0, %v1290
    %v1292 = vrot.slane %v1287, %v1291
    %v1310 = vunpack.c.l.b16 %v1271
    %v1311 = vunpack.c.l.b16 %v1272
    %v1312 = vunpack.c.l.b16 %v1273
    %v1313 = vunpack.c.l.b16 %v1274
    %v1314 = vunpack.c.l.b16 %v1275
    %v1315 = vunpack.c.l.b16 %v1276
    %v1316 = vunpack.c.l.b16 %v1277
    %v1317 = vunpack.c.l.b16 %v1278
    %v1318 = vunpack.c.l.b16 %v1279
    %v1319 = vunpack.c.l.b16 %v1280
    %v1320 = vunpack.c.l.b16 %v1281
    %v1321 = vunpack.c.l.b16 %v1282
    %v1322 = vunpack.c.l.b16 %v1283
    %v1323 = vunpack.c.l.b16 %v1284
    %v1324 = vunpack.c.l.b16 %v1285
    %v1325 = vunpack.c.l.b16 %v1286
    %v1326 = vpack.c.b16 %v1311, %v1310
    %v1327 = vpack.c.b16 %v1313, %v1312
    %v1328 = vpack.c.b16 %v1315, %v1314
    %v1329 = vpack.c.b16 %v1317, %v1316
    %v1330 = vpack.c.b16 %v1319, %v1318
    %v1331 = vpack.c.b16 %v1321, %v1320
    %v1332 = vpack.c.b16 %v1323, %v1322
    %v1333 = vpack.c.b16 %v1325, %v1324
    %1342 = vmatprep.subr.bf16.mxu0 0
    %1343 = vmatpush1.bf16.xpose.msra.mxu0 %v1326
    %1344 = vmatprep.subr.bf16.mxu0 0
    %1345 = vmatpush1.bf16.xpose.msra.mxu0 %v1327
    %1346 = vmatprep.subr.bf16.mxu0 0
    %1347 = vmatpush1.bf16.xpose.msra.mxu0 %v1328
    %1348 = vmatprep.subr.bf16.mxu0 0
    %1349 = vmatpush1.bf16.xpose.msra.mxu0 %v1329
    %1350 = vmatprep.subr.bf16.mxu0 0
    %1351 = vmatpush1.bf16.xpose.msra.mxu0 %v1330
    %1352 = vmatprep.subr.bf16.mxu0 0
    %1353 = vmatpush1.bf16.xpose.msra.mxu0 %v1331
    %1354 = vmatprep.subr.bf16.mxu0 0
    %1355 = vmatpush1.bf16.xpose.msra.mxu0 %v1332
    %1356 = vmatprep.subr.bf16.mxu0 0
    %1357 = vmatpush1.bf16.xpose.msra.mxu0 %v1333
    %1358 = vmatprep.subr.bf16.mxu0 0
    %1359 = vmatpush1.bf16.xpose.msra.mxu0 0
    %1360 = vmatprep.subr.bf16.mxu0 0
    %1361 = vmatpush1.bf16.xpose.msra.mxu0 0
    %1362 = vmatprep.subr.bf16.mxu0 0
    %1363 = vmatpush1.bf16.xpose.msra.mxu0 0
    %1364 = vmatprep.subr.bf16.mxu0 0
    %1365 = vmatpush1.bf16.xpose.msra.mxu0 0
    %1366 = vmatprep.subr.bf16.mxu0 0
    %1367 = vmatpush1.bf16.xpose.msra.mxu0 0
    %1368 = vmatprep.subr.bf16.mxu0 0
    %1369 = vmatpush1.bf16.xpose.msra.mxu0 0
    %1370 = vmatprep.subr.bf16.mxu0 0
    %1371 = vmatpush1.bf16.xpose.msra.mxu0 0
    %1372 = vmatprep.subr.bf16.mxu0 0
    %1373 = vmatpush1.bf16.xpose.msra.mxu0 0
    %1374 = vmatprep.mubr.bf16.mxu0 0
    %1375 = vmatmul.mubr.bf16.gmra.mrb[0].mxu0 %v1270
    %v1376 = vpop.f32.mrb[0].mxu0
    %v1377 = vadd.f32 %v1292, %v1376
    %v1378 = vpop.f32.mrb[0].mxu0
    %v1379 = vpop.f32.mrb[0].mxu0
    %v1380 = vpop.f32.mrb[0].mxu0
    %1381 = vdwg.mxu0
    %1382 = vst [vmem:[#allocation10] sm:$0xff] %v1377
    // Predicated region
    $region274: #{tpu_custom_call.1} parent=1 // pred_check
      _
    $region275: #{tpu_custom_call.1} parent=1 // pred_check_branch
      %1384 = sbr.rel (0) target = $region277
    $region276: #{tpu_custom_call.1} parent=1 // pred_region
      %s1386 = ssub.s32 128, 128
      %1387 = vsyncadd [#allocation9], %s1386
      %s1389 = sshll.u32 [#allocation10], 4
      %s1390 = int_to_ptr.vmem [resolvable:$true] %s1389
      %1392 = dma.vmem_to_hbm [thread:$0]  %s1390, 128, %s4, [#allocation9]
    $region277: #{tpu_custom_call.1} parent=1 // pred_fallthru
      _
    // Predicated region
    $region278: #{tpu_custom_call.1} parent=1 // pred_check
      _
    $region279: #{tpu_custom_call.1} parent=1 // pred_check_branch
      %1394 = sbr.rel (0) target = $region281
    $region280: #{tpu_custom_call.1} parent=1 // pred_region
      %1395 = dma.done [#allocation9], 128
    $region281: #{tpu_custom_call.1} parent=1 // pred_fallthru
      _
    %1396 = vsyncpa [#allocation8], 1
    %1397 = vsyncpa [#allocation9], 1
  %1398 = vsyncmov [#allocation4]
  %s1399 = vpop.sfrf %1398
  %p1400 = scmp.eq.s32.totalorder %s1399, 0
  %p1401 = pneg %p1400
  %1403 = shalt.err (%p1401)
  %s1404 = scalar_lea.sflag [#allocation4], 1
  %1405 = vsyncmov %s1404
  %s1406 = vpop.sfrf %1405
  %p1407 = scmp.eq.s32.totalorder %s1406, 0
  %p1408 = pneg %p1407
  %1410 = shalt.err (%p1408)
  %s1411 = scalar_lea.sflag [#allocation4], 2
  %1412 = vsyncmov %s1411
  %s1413 = vpop.sfrf %1412
  %p1414 = scmp.eq.s32.totalorder %s1413, 0
  %p1415 = pneg %p1414
  %1417 = shalt.err (%p1415)
  %s1418 = scalar_lea.sflag [#allocation4], 3
  %1419 = vsyncmov %s1418
  %s1420 = vpop.sfrf %1419
  %p1421 = scmp.eq.s32.totalorder %s1420, 0
  %p1422 = pneg %p1421
  %1424 = shalt.err (%p1422)
  %s1425 = scalar_lea.sflag [#allocation4], 4
  %1426 = vsyncmov %s1425
  %s1427 = vpop.sfrf %1426
  %p1428 = scmp.eq.s32.totalorder %s1427, 0
  %p1429 = pneg %p1428
  %1431 = shalt.err (%p1429)
  %s1432 = scalar_lea.sflag [#allocation4], 5
  %1433 = vsyncmov %s1432
  %s1434 = vpop.sfrf %1433
  %p1435 = scmp.eq.s32.totalorder %s1434, 0
  %p1436 = pneg %p1435
  %1438 = shalt.err (%p1436)
  %s1439 = scalar_lea.sflag [#allocation4], 6
  %1440 = vsyncmov %s1439
  %s1441 = vpop.sfrf %1440
  %p1442 = scmp.eq.s32.totalorder %s1441, 0
  %p1443 = pneg %p1442
  %1445 = shalt.err (%p1443)
  %s1446 = scalar_lea.sflag [#allocation4], 7
  %1447 = vsyncmov %s1446
  %s1448 = vpop.sfrf %1447
  %p1449 = scmp.eq.s32.totalorder %s1448, 0
  %p1450 = pneg %p1449
  %1452 = shalt.err (%p1450)
  %s1453 = scalar_lea.sflag [#allocation4], 8
  %1454 = vsyncmov %s1453
  %s1455 = vpop.sfrf %1454
  %p1456 = scmp.eq.s32.totalorder %s1455, 0
  %p1457 = pneg %p1456
  %1459 = shalt.err (%p1457)
  %s1460 = scalar_lea.sflag [#allocation4], 9
  %1461 = vsyncmov %s1460
  %s1462 = vpop.sfrf %1461
  %p1463 = scmp.eq.s32.totalorder %s1462, 0
  %p1464 = pneg %p1463
  %1466 = shalt.err (%p1464)
  %s1467 = scalar_lea.sflag [#allocation4], 10
  %1468 = vsyncmov %s1467
  %s1469 = vpop.sfrf %1468
  %p1470 = scmp.eq.s32.totalorder %s1469, 0
  %p1471 = pneg %p1470
  %1473 = shalt.err (%p1471)
  %s1474 = scalar_lea.sflag [#allocation4], 11
  %1475 = vsyncmov %s1474
  %s1476 = vpop.sfrf %1475
  %p1477 = scmp.eq.s32.totalorder %s1476, 0
  %p1478 = pneg %p1477
  %1480 = shalt.err (%p1478)
  %s1481 = scalar_lea.sflag [#allocation4], 12
  %1482 = vsyncmov %s1481
  %s1483 = vpop.sfrf %1482
  %p1484 = scmp.eq.s32.totalorder %s1483, 0
  %p1485 = pneg %p1484
  %1487 = shalt.err (%p1485)
  %s1488 = scalar_lea.sflag [#allocation4], 13
  %1489 = vsyncmov %s1488
  %s1490 = vpop.sfrf %1489
  %p1491 = scmp.eq.s32.totalorder %s1490, 0
  %p1492 = pneg %p1491
  %1494 = shalt.err (%p1492)
  %s1495 = scalar_lea.sflag [#allocation4], 14
  %1496 = vsyncmov %s1495
  %s1497 = vpop.sfrf %1496
  %p1498 = scmp.eq.s32.totalorder %s1497, 0
  %p1499 = pneg %p1498
  %1501 = shalt.err (%p1499)
  %s1502 = scalar_lea.sflag [#allocation4], 15
  %1503 = vsyncmov %s1502
  %s1504 = vpop.sfrf %1503
  %p1505 = scmp.eq.s32.totalorder %s1504, 0
  %p1506 = pneg %p1505
  %1508 = shalt.err (%p1506)
  %s1509 = scalar_lea.sflag [#allocation4], 16
  %1510 = vsyncmov %s1509
  %s1511 = vpop.sfrf %1510
  %p1512 = scmp.eq.s32.totalorder %s1511, 0
  %p1513 = pneg %p1512
  %1515 = shalt.err (%p1513)
  %s1516 = scalar_lea.sflag [#allocation4], 17
  %1517 = vsyncmov %s1516
  %s1518 = vpop.sfrf %1517
  %p1519 = scmp.eq.s32.totalorder %s1518, 0
  %p1520 = pneg %p1519
  %1522 = shalt.err (%p1520)
  %s1523 = scalar_lea.sflag [#allocation4], 18
  %1524 = vsyncmov %s1523
  %s1525 = vpop.sfrf %1524
  %p1526 = scmp.eq.s32.totalorder %s1525, 0
  %p1527 = pneg %p1526
  %1529 = shalt.err (%p1527)
  %s1530 = scalar_lea.sflag [#allocation4], 19
  %1531 = vsyncmov %s1530
  %s1532 = vpop.sfrf %1531
  %p1533 = scmp.eq.s32.totalorder %s1532, 0
  %p1534 = pneg %p1533
  %1536 = shalt.err (%p1534)
  %s1537 = scalar_lea.sflag [#allocation4], 20
  %1538 = vsyncmov %s1537
  %s1539 = vpop.sfrf %1538
  %p1540 = scmp.eq.s32.totalorder %s1539, 0
  %p1541 = pneg %p1540
  %1543 = shalt.err (%p1541)
  %s1544 = scalar_lea.sflag [#allocation4], 21
  %1545 = vsyncmov %s1544
  %s1546 = vpop.sfrf %1545
  %p1547 = scmp.eq.s32.totalorder %s1546, 0
  %p1548 = pneg %p1547
  %1550 = shalt.err (%p1548)
  %s1551 = scalar_lea.sflag [#allocation4], 22
  %1552 = vsyncmov %s1551
  %s1553 = vpop.sfrf %1552
  %p1554 = scmp.eq.s32.totalorder %s1553, 0
  %p1555 = pneg %p1554
  %1557 = shalt.err (%p1555)
  %s1558 = scalar_lea.sflag [#allocation4], 23
  %1559 = vsyncmov %s1558
  %s1560 = vpop.sfrf %1559
  %p1561 = scmp.eq.s32.totalorder %s1560, 0
  %p1562 = pneg %p1561
  %1564 = shalt.err (%p1562)
  %s1565 = scalar_lea.sflag [#allocation4], 24
  %1566 = vsyncmov %s1565
  %s1567 = vpop.sfrf %1566
  %p1568 = scmp.eq.s32.totalorder %s1567, 0
  %p1569 = pneg %p1568
  %1571 = shalt.err (%p1569)
  %s1572 = scalar_lea.sflag [#allocation4], 25
  %1573 = vsyncmov %s1572
  %s1574 = vpop.sfrf %1573
  %p1575 = scmp.eq.s32.totalorder %s1574, 0
  %p1576 = pneg %p1575
  %1578 = shalt.err (%p1576)
  %s1579 = scalar_lea.sflag [#allocation4], 26
  %1580 = vsyncmov %s1579
  %s1581 = vpop.sfrf %1580
  %p1582 = scmp.eq.s32.totalorder %s1581, 0
  %p1583 = pneg %p1582
  %1585 = shalt.err (%p1583)
  %s1586 = scalar_lea.sflag [#allocation4], 27
  %1587 = vsyncmov %s1586
  %s1588 = vpop.sfrf %1587
  %p1589 = scmp.eq.s32.totalorder %s1588, 0
  %p1590 = pneg %p1589
  %1592 = shalt.err (%p1590)
  %s1593 = scalar_lea.sflag [#allocation4], 28
  %1594 = vsyncmov %s1593
  %s1595 = vpop.sfrf %1594
  %p1596 = scmp.eq.s32.totalorder %s1595, 0
  %p1597 = pneg %p1596
  %1599 = shalt.err (%p1597)
  %s1600 = scalar_lea.sflag [#allocation4], 29
  %1601 = vsyncmov %s1600
  %s1602 = vpop.sfrf %1601
  %p1603 = scmp.eq.s32.totalorder %s1602, 0
  %p1604 = pneg %p1603
  %1606 = shalt.err (%p1604)
  %s1607 = scalar_lea.sflag [#allocation4], 30
  %1608 = vsyncmov %s1607
  %s1609 = vpop.sfrf %1608
  %p1610 = scmp.eq.s32.totalorder %s1609, 0
  %p1611 = pneg %p1610
  %1613 = shalt.err (%p1611)
  %s1614 = scalar_lea.sflag [#allocation4], 31
  %1615 = vsyncmov %s1614
  %s1616 = vpop.sfrf %1615
  %p1617 = scmp.eq.s32.totalorder %s1616, 0
  %p1618 = pneg %p1617
  %1620 = shalt.err (%p1618)
  %s1621 = scalar_lea.sflag [#allocation4], 32
  %1622 = vsyncmov %s1621
  %s1623 = vpop.sfrf %1622
  %p1624 = scmp.eq.s32.totalorder %s1623, 0
  %p1625 = pneg %p1624
  %1627 = shalt.err (%p1625)
  %s1628 = scalar_lea.sflag [#allocation4], 33
  %1629 = vsyncmov %s1628
  %s1630 = vpop.sfrf %1629
  %p1631 = scmp.eq.s32.totalorder %s1630, 0
  %p1632 = pneg %p1631
  %1634 = shalt.err (%p1632)
  %s1635 = scalar_lea.sflag [#allocation4], 34
  %1636 = vsyncmov %s1635
  %s1637 = vpop.sfrf %1636
  %p1638 = scmp.eq.s32.totalorder %s1637, 0
  %p1639 = pneg %p1638
  %1641 = shalt.err (%p1639)
  %s1642 = scalar_lea.sflag [#allocation4], 35
  %1643 = vsyncmov %s1642
  %s1644 = vpop.sfrf %1643
  %p1645 = scmp.eq.s32.totalorder %s1644, 0
  %p1646 = pneg %p1645
  %1648 = shalt.err (%p1646)
  %s1649 = scalar_lea.sflag [#allocation4], 36
  %1650 = vsyncmov %s1649
  %s1651 = vpop.sfrf %1650
  %p1652 = scmp.eq.s32.totalorder %s1651, 0
  %p1653 = pneg %p1652
  %1655 = shalt.err (%p1653)
  %s1656 = scalar_lea.sflag [#allocation4], 37
  %1657 = vsyncmov %s1656
  %s1658 = vpop.sfrf %1657
  %p1659 = scmp.eq.s32.totalorder %s1658, 0
  %p1660 = pneg %p1659
  %1662 = shalt.err (%p1660)
  %s1663 = scalar_lea.sflag [#allocation4], 38
  %1664 = vsyncmov %s1663
  %s1665 = vpop.sfrf %1664
  %p1666 = scmp.eq.s32.totalorder %s1665, 0
  %p1667 = pneg %p1666
  %1669 = shalt.err (%p1667)
  %s1670 = scalar_lea.sflag [#allocation4], 39
  %1671 = vsyncmov %s1670
  %s1672 = vpop.sfrf %1671
  %p1673 = scmp.eq.s32.totalorder %s1672, 0
  %p1674 = pneg %p1673
  %1676 = shalt.err (%p1674)
  %s1677 = scalar_lea.sflag [#allocation4], 40
  %1678 = vsyncmov %s1677
  %s1679 = vpop.sfrf %1678
  %p1680 = scmp.eq.s32.totalorder %s1679, 0
  %p1681 = pneg %p1680
  %1683 = shalt.err (%p1681)
  %s1684 = scalar_lea.sflag [#allocation4], 41
  %1685 = vsyncmov %s1684
  %s1686 = vpop.sfrf %1685
  %p1687 = scmp.eq.s32.totalorder %s1686, 0
  %p1688 = pneg %p1687
  %1690 = shalt.err (%p1688)
  %s1691 = scalar_lea.sflag [#allocation4], 42
  %1692 = vsyncmov %s1691
  %s1693 = vpop.sfrf %1692
  %p1694 = scmp.eq.s32.totalorder %s1693, 0
  %p1695 = pneg %p1694
  %1697 = shalt.err (%p1695)
  %s1698 = scalar_lea.sflag [#allocation4], 43
  %1699 = vsyncmov %s1698
  %s1700 = vpop.sfrf %1699
  %p1701 = scmp.eq.s32.totalorder %s1700, 0
  %p1702 = pneg %p1701
  %1704 = shalt.err (%p1702)
  %s1705 = scalar_lea.sflag [#allocation4], 44
  %1706 = vsyncmov %s1705
  %s1707 = vpop.sfrf %1706
  %p1708 = scmp.eq.s32.totalorder %s1707, 0
  %p1709 = pneg %p1708
  %1711 = shalt.err (%p1709)
  %s1712 = scalar_lea.sflag [#allocation4], 45
  %1713 = vsyncmov %s1712
  %s1714 = vpop.sfrf %1713
  %p1715 = scmp.eq.s32.totalorder %s1714, 0
  %p1716 = pneg %p1715
  %1718 = shalt.err (%p1716)
  %s1719 = scalar_lea.sflag [#allocation4], 46
  %1720 = vsyncmov %s1719
  %s1721 = vpop.sfrf %1720
  %p1722 = scmp.eq.s32.totalorder %s1721, 0
  %p1723 = pneg %p1722
  %1725 = shalt.err (%p1723)
  %s1726 = scalar_lea.sflag [#allocation4], 47
  %1727 = vsyncmov %s1726
  %s1728 = vpop.sfrf %1727
  %p1729 = scmp.eq.s32.totalorder %s1728, 0
  %p1730 = pneg %p1729
  %1732 = shalt.err (%p1730)
  %s1733 = scalar_lea.sflag [#allocation4], 48
  %1734 = vsyncmov %s1733
  %s1735 = vpop.sfrf %1734
  %p1736 = scmp.eq.s32.totalorder %s1735, 0
  %p1737 = pneg %p1736
  %1739 = shalt.err (%p1737)
  %s1740 = scalar_lea.sflag [#allocation4], 49
  %1741 = vsyncmov %s1740
  %s1742 = vpop.sfrf %1741
  %p1743 = scmp.eq.s32.totalorder %s1742, 0
  %p1744 = pneg %p1743
  %1746 = shalt.err (%p1744)
  %s1747 = scalar_lea.sflag [#allocation4], 50
  %1748 = vsyncmov %s1747
  %s1749 = vpop.sfrf %1748
  %p1750 = scmp.eq.s32.totalorder %s1749, 0
  %p1751 = pneg %p1750
  %1753 = shalt.err (%p1751)
  %s1754 = scalar_lea.sflag [#allocation4], 51
  %1755 = vsyncmov %s1754
  %s1756 = vpop.sfrf %1755
  %p1757 = scmp.eq.s32.totalorder %s1756, 0
  %p1758 = pneg %p1757
  %1760 = shalt.err (%p1758)
  %s1761 = scalar_lea.sflag [#allocation4], 52
  %1762 = vsyncmov %s1761
  %s1763 = vpop.sfrf %1762
  %p1764 = scmp.eq.s32.totalorder %s1763, 0
  %p1765 = pneg %p1764
  %1767 = shalt.err (%p1765)
  %s1768 = scalar_lea.sflag [#allocation4], 53
  %1769 = vsyncmov %s1768
  %s1770 = vpop.sfrf %1769
  %p1771 = scmp.eq.s32.totalorder %s1770, 0
  %p1772 = pneg %p1771
  %1774 = shalt.err (%p1772)
  %s1775 = scalar_lea.sflag [#allocation4], 54
  %1776 = vsyncmov %s1775
  %s1777 = vpop.sfrf %1776
  %p1778 = scmp.eq.s32.totalorder %s1777, 0
  %p1779 = pneg %p1778
  %1781 = shalt.err (%p1779)
  %s1782 = scalar_lea.sflag [#allocation4], 55
  %1783 = vsyncmov %s1782
  %s1784 = vpop.sfrf %1783
  %p1785 = scmp.eq.s32.totalorder %s1784, 0
  %p1786 = pneg %p1785
  %1788 = shalt.err (%p1786)
  %s1789 = scalar_lea.sflag [#allocation4], 56
  %1790 = vsyncmov %s1789
  %s1791 = vpop.sfrf %1790
  %p1792 = scmp.eq.s32.totalorder %s1791, 0
  %p1793 = pneg %p1792
  %1795 = shalt.err (%p1793)
  %s1796 = scalar_lea.sflag [#allocation4], 57
  %1797 = vsyncmov %s1796
  %s1798 = vpop.sfrf %1797
  %p1799 = scmp.eq.s32.totalorder %s1798, 0
  %p1800 = pneg %p1799
  %1802 = shalt.err (%p1800)
  %s1803 = scalar_lea.sflag [#allocation4], 58
  %1804 = vsyncmov %s1803
  %s1805 = vpop.sfrf %1804
  %p1806 = scmp.eq.s32.totalorder %s1805, 0
  %p1807 = pneg %p1806
  %1809 = shalt.err (%p1807)
  %s1810 = scalar_lea.sflag [#allocation4], 59
  %1811 = vsyncmov %s1810
  %s1812 = vpop.sfrf %1811
  %p1813 = scmp.eq.s32.totalorder %s1812, 0
  %p1814 = pneg %p1813
  %1816 = shalt.err (%p1814)
  %s1817 = scalar_lea.sflag [#allocation4], 60
  %1818 = vsyncmov %s1817
  %s1819 = vpop.sfrf %1818
  %p1820 = scmp.eq.s32.totalorder %s1819, 0
  %p1821 = pneg %p1820
  %1823 = shalt.err (%p1821)
  %s1824 = scalar_lea.sflag [#allocation4], 61
  %1825 = vsyncmov %s1824
  %s1826 = vpop.sfrf %1825
  %p1827 = scmp.eq.s32.totalorder %s1826, 0
  %p1828 = pneg %p1827
  %1830 = shalt.err (%p1828)
  %s1831 = scalar_lea.sflag [#allocation4], 62
  %1832 = vsyncmov %s1831
  %s1833 = vpop.sfrf %1832
  %p1834 = scmp.eq.s32.totalorder %s1833, 0
  %p1835 = pneg %p1834
  %1837 = shalt.err (%p1835)
  %s1838 = scalar_lea.sflag [#allocation4], 63
  %1839 = vsyncmov %s1838
  %s1840 = vpop.sfrf %1839
  %p1841 = scmp.eq.s32.totalorder %s1840, 0
  %p1842 = pneg %p1841
  %1844 = shalt.err (%p1842)

</llo_original>
